<compile_context>
chip_gen: v7x
topology: tpu7x:2x2x1
jax: 0.10.0
libtpu: 0.0.40
codegen_flags: <defaults>
</compile_context>

<pallas_src>
import functools

import jax
import jax.numpy as jnp
from jax import lax
from jax.experimental import pallas as pl
from jax.experimental.pallas import tpu as pltpu

BN_EPS = 1e-5


def _round_up(x, m):
    return ((x + m - 1) // m) * m


# ----------------------------- MaxPool3d(2, 2) ------------------------------

def _maxpool_kernel(x_ref, o_ref):
    # x_ref: (8, 8, L) -- window element on axis 0; o_ref: (8, L) dense tile.
    o_ref[...] = jnp.max(x_ref[...], axis=0)


def maxpool3d_2x2x2_ndhwc(x, lanes=2048):
    """(N, C, D, H, W) -> pooled (N, D//2, H//2, W//2, C) (channels-last).

    Odd trailing D/H/W are floored, matching nn.MaxPool3d(2, 2).
    """
    N, C, D, H, W = x.shape
    Dp, Hp, Wp = D // 2, H // 2, W // 2
    M = N * Dp * Hp * Wp * C

    # Window-major glue (one XLA transpose): (8, M), M ordered as (N, Dp, Hp, Wp, C) so
    # the pooled result comes out directly in NDHWC layout (no extra transpose after).
    xr = x[:, :, :2 * Dp, :2 * Hp, :2 * Wp].reshape(N, C, Dp, 2, Hp, 2, Wp, 2)
    xr = jnp.transpose(xr, (3, 5, 7, 0, 2, 4, 6, 1)).reshape(8, M)

    L = min(lanes, _round_up(-(-M // 8), 128))
    Mp = _round_up(M, 8 * L)
    xr = jnp.pad(xr, ((0, 0), (0, Mp - M))).reshape(8, 8, Mp // 8)

    out = pl.pallas_call(
        _maxpool_kernel,
        grid=(Mp // 8 // L,),
        in_specs=[pl.BlockSpec((8, 8, L), lambda i: (0, 0, i))],
        out_specs=pl.BlockSpec((8, L), lambda i: (0, i)),
        out_shape=jax.ShapeDtypeStruct((8, Mp // 8), x.dtype),
        compiler_params=pltpu.CompilerParams(dimension_semantics=("parallel",)),
    )(xr)
    return out.reshape(Mp)[:M].reshape(N, Dp, Hp, Wp, C)


# -------------------- Conv3d(3x3x3, pad=1) + BN + ReLU -----------------------
# Pass 1 (Pallas): direct conv = 27 shifted bf16 matmuls accumulated in f32, plus
#                  per-(n, d) partial channel sum / sum-of-squares.
# (XLA)          : tiny reduction of the partials -> per-channel scale/shift.
# Pass 2 (Pallas): fused y*scale + shift, ReLU.

def _conv_tap_stats_kernel(xm_ref, x0_ref, xp_ref, w_ref, out_ref, stats_ref,
                           *, W, S, R):
    cout = out_ref.shape[-1]
    acc = jnp.zeros((R, cout), jnp.float32)
    for kd, xref in enumerate((xm_ref, x0_ref, xp_ref)):
        for kh in range(3):
            for kw in range(3):
                off = kh * S + kw
                lhs = xref[0, 0, off:off + R, :]                    # (R, Cin) bf16
                acc = acc + jnp.dot(lhs, w_ref[kd * 9 + kh * 3 + kw],
                                    preferred_element_type=jnp.float32)
    out_ref[0, 0] = acc.astype(out_ref.dtype)

    # Exclude the 2 wrap-around columns (w in {W, W+1}) from the BN statistics.
    col = lax.broadcasted_iota(jnp.int32, (R, 1), 0) % S
    accv = jnp.where(col < W, acc, 0.0)
    stats_ref[0, 0, 0:1, :] = jnp.sum(accv, axis=0, keepdims=True)
    stats_ref[0, 0, 1:2, :] = jnp.sum(accv * acc, axis=0, keepdims=True)


def _bn_relu_kernel(y_ref, ss_ref, o_ref):
    y = y_ref[0, 0].astype(jnp.float32)
    scale = ss_ref[0:1, :]
    shift = ss_ref[1:2, :]
    o_ref[0, 0] = jnp.maximum(y * scale + shift, 0.0).astype(o_ref.dtype)


def conv3x3x3_bn_relu(x_ndhwc, w_oidhw, gamma, beta, eps=BN_EPS):
    """x_ndhwc: (N, D, H, W, Cin); w_oidhw: PyTorch Conv3d weight (Cout, Cin, 3, 3, 3).

    Training-mode BatchNorm3d (batch statistics).  The conv bias is intentionally
    folded out: it cancels exactly under training-mode BN.
    """
    N, D, H, W, Cin = x_ndhwc.shape
    Cout = w_oidhw.shape[0]
    S = W + 2                    # padded row width (1 left + 1 right)
    R = H * S                    # rows of the per-(n, d) "output + wrap" matrix
    RR = (H + 3) * S             # rows of the flattened padded input slab

    # Zero-pad depth (1,1), H (1,2), W (1,1); flatten (H, W) -> rows.  bf16 for the MXU.
    xp = jnp.pad(x_ndhwc.astype(jnp.bfloat16),
                 ((0, 0), (1, 1), (1, 2), (1, 1), (0, 0)))
    xp = xp.reshape(N, D + 2, RR, Cin)

    # (Cout, Cin, kd, kh, kw) -> (27, Cin, Cout), bf16, kept resident in VMEM.
    w_taps = jnp.transpose(w_oidhw, (2, 3, 4, 1, 0)).reshape(27, Cin, Cout)
    w_taps = w_taps.astype(jnp.bfloat16)

    def x_spec(kd):
        return pl.BlockSpec((1, 1, RR, Cin), lambda n, d, kd=kd: (n, d + kd, 0, 0))

    kernel1 = functools.partial(_conv_tap_stats_kernel, W=W, S=S, R=R)
    conv_out, stats = pl.pallas_call(
        kernel1,
        grid=(N, D),
        in_specs=[x_spec(0), x_spec(1), x_spec(2),
                  pl.BlockSpec((27, Cin, Cout), lambda n, d: (0, 0, 0))],
        out_specs=[pl.BlockSpec((1, 1, R, Cout), lambda n, d: (n, d, 0, 0)),
                   pl.BlockSpec((1, 1, 2, Cout), lambda n, d: (n, d, 0, 0))],
        out_shape=(jax.ShapeDtypeStruct((N, D, R, Cout), jnp.bfloat16),
                   jax.ShapeDtypeStruct((N, D, 2, Cout), jnp.float32)),
        compiler_params=pltpu.CompilerParams(
            dimension_semantics=("parallel", "parallel"),
            vmem_limit_bytes=64 * 1024 * 1024),
    )(xp, xp, xp, w_taps)

    # Tiny XLA reduction of partial stats; scale/shift precomputed once (not per tile).
    count = float(N * D * H * W)
    sums = jnp.sum(stats[:, :, 0, :], axis=(0, 1))
    sqs = jnp.sum(stats[:, :, 1, :], axis=(0, 1))
    mean = sums / count
    var = jnp.maximum(sqs / count - mean * mean, 0.0)
    scale = gamma.astype(jnp.float32) * lax.rsqrt(var + eps)
    shift = beta.astype(jnp.float32) - mean * scale
    ss = jnp.stack([scale, shift], axis=0)                 # (2, Cout)

    out = pl.pallas_call(
        _bn_relu_kernel,
        grid=(N, D),
        in_specs=[pl.BlockSpec((1, 1, R, Cout), lambda n, d: (n, d, 0, 0)),
                  pl.BlockSpec((2, Cout), lambda n, d: (0, 0))],
        out_specs=pl.BlockSpec((1, 1, R, Cout), lambda n, d: (n, d, 0, 0)),
        out_shape=jax.ShapeDtypeStruct((N, D, R, Cout), x_ndhwc.dtype),
        compiler_params=pltpu.CompilerParams(
            dimension_semantics=("parallel", "parallel")),
    )(conv_out, ss)

    # Drop the 2 wrap-around columns: row r = h*S + w, valid w < W.
    return out.reshape(N, D, H, S, Cout)[:, :, :, :W, :]


# ------------------------------- Down module ---------------------------------

def init_down_params(key, in_ch, out_ch):
    mid = out_ch // 2 if in_ch <= out_ch else in_ch // 2
    k1, k2, k3, k4 = jax.random.split(key, 4)
    return {
        "w1": 0.1 * jax.random.normal(k1, (mid, in_ch, 3, 3, 3), jnp.float32),
        "b1": 0.05 * jax.random.normal(k2, (mid,), jnp.float32),
        "g1": jnp.ones((mid,), jnp.float32),
        "beta1": jnp.zeros((mid,), jnp.float32),
        "w2": 0.1 * jax.random.normal(k3, (out_ch, mid, 3, 3, 3), jnp.float32),
        "b2": 0.05 * jax.random.normal(k4, (out_ch,), jnp.float32),
        "g2": jnp.ones((out_ch,), jnp.float32),
        "beta2": jnp.zeros((out_ch,), jnp.float32),
    }


def down_forward(x_ncdhw, params):
    """Down.forward: x (N, C, D, H, W) -> (N, out_ch, D//2, H//2, W//2)."""
    h = maxpool3d_2x2x2_ndhwc(x_ncdhw)                     # Pallas kernel, NDHWC out
    # Conv biases (b1/b2) cancel exactly under training-mode BN -> folded out.
    h = conv3x3x3_bn_relu(h, params["w1"], params["g1"], params["beta1"])
    h = conv3x3x3_bn_relu(h, params["w2"], params["g2"], params["beta2"])
    return jnp.transpose(h, (0, 4, 1, 2, 3))               # NDHWC -> NCDHW (glue)


# ----------------------------- pure-JAX reference ----------------------------

def _ref_conv_bn_relu(h, w, b, g, beta):
    out = lax.conv_general_dilated(
        h, w, window_strides=(1, 1, 1), padding=((1, 1), (1, 1), (1, 1)),
        dimension_numbers=("NCDHW", "OIDHW", "NCDHW"))
    out = out + b.reshape(1, -1, 1, 1, 1)
    mean = jnp.mean(out, axis=(0, 2, 3, 4), keepdims=True)
    var = jnp.mean(jnp.square(out - mean), axis=(0, 2, 3, 4), keepdims=True)
    out = (out - mean) / jnp.sqrt(var + BN_EPS)
    out = out * g.reshape(1, -1, 1, 1, 1) + beta.reshape(1, -1, 1, 1, 1)
    return jnp.maximum(out, 0.0)


def down_forward_ref(x, params):
    h = lax.reduce_window(x, -jnp.inf, lax.max, (1, 1, 2, 2, 2), (1, 1, 2, 2, 2), "VALID")
    h = _ref_conv_bn_relu(h, params["w1"], params["b1"], params["g1"], params["beta1"])
    h = _ref_conv_bn_relu(h, params["w2"], params["b2"], params["g2"], params["beta2"])
    return h


# ------------------------------------ main -----------------------------------

if __name__ == "__main__":
    N, in_ch, out_ch, D, H, W = 2, 4, 8, 16, 16, 16

    key = jax.random.PRNGKey(0)
    kx, kp = jax.random.split(key)
    x = jax.random.normal(kx, (N, in_ch, D, H, W), jnp.float32)
    params = init_down_params(kp, in_ch, out_ch)

    out = jax.jit(down_forward)(x, params)
    out = jax.block_until_ready(out)

    expected_shape = (N, out_ch, D // 2, H // 2, W // 2)
    assert out.shape == expected_shape, (out.shape, expected_shape)

    ref = jax.block_until_ready(down_forward_ref(x, params))
    # bf16 MXU operands + bf16 inter-pass buffer -> ~1e-2-level agreement vs f32 ref.
    err = float(jnp.max(jnp.abs(out - ref)))
    assert jnp.allclose(out, ref, rtol=5e-2, atol=5e-2), err

    print("KERNEL_OK")
</pallas_src>

<mosaic_0001>
module attributes {stable_mosaic.version = 11 : i64} {
  func.func @_maxpool_kernel(%arg0: i32, %arg1: memref<8x8x512xf32, #tpu.memory_space<vmem>>, %arg2: memref<8x512xf32, #tpu.memory_space<vmem>>) attributes {dimension_semantics = [#tpu.dimension_semantics<parallel>], iteration_bounds = array<i64: 1>, scalar_prefetch = 0 : i64, scratch_operands = 0 : i64, tpu.core_type = #tpu.core_type<tc>, window_params = [{transform_indices = @transform_0, window_bounds = array<i64: 8, 8, 512>}, {transform_indices = @transform_1, window_bounds = array<i64: 8, 512>}]} {
    %c0 = arith.constant 0 : index
    %c0_0 = arith.constant 0 : index
    %c0_1 = arith.constant 0 : index
    %0 = vector.load %arg1[%c0, %c0_0, %c0_1] : memref<8x8x512xf32, #tpu.memory_space<vmem>>, vector<8x8x512xf32>
    %cst = arith.constant dense<0xFF800000> : vector<8x512xf32>
    %1 = vector.multi_reduction <maximumf>, %0, %cst [0] : vector<8x8x512xf32> to vector<8x512xf32>
    %c0_2 = arith.constant 0 : index
    %c0_3 = arith.constant 0 : index
    %2 = vector.load %arg2[%c0_2, %c0_3] : memref<8x512xf32, #tpu.memory_space<vmem>>, vector<8x512xf32>
    tpu.vector_store %arg2[%c0_2, %c0_3], %1 {strides = array<i32>} : memref<8x512xf32, #tpu.memory_space<vmem>>, vector<8x512xf32>,
    return
  }
  func.func @transform_0(%arg0: i32) -> (i32, i32, i32) {
    %c0_i32 = arith.constant 0 : i32
    %c0_i32_0 = arith.constant 0 : i32
    %c0_i32_1 = arith.constant 0 : i32
    return %c0_i32, %c0_i32_0, %arg0 : i32, i32, i32
  }
  func.func @transform_1(%arg0: i32) -> (i32, i32) {
    %c0_i32 = arith.constant 0 : i32
    %c0_i32_0 = arith.constant 0 : i32
    return %c0_i32, %arg0 : i32, i32
  }
}

module attributes {stable_mosaic.version = 11 : i64} {
  func.func @_conv_tap_stats_kernel(%arg0: i32, %arg1: i32, %arg2: memref<1x1x110x4xbf16, #tpu.memory_space<vmem>>, %arg3: memref<1x1x110x4xbf16, #tpu.memory_space<vmem>>, %arg4: memref<1x1x110x4xbf16, #tpu.memory_space<vmem>>, %arg5: memref<27x4x4xbf16, #tpu.memory_space<vmem>>, %arg6: memref<1x1x80x4xbf16, #tpu.memory_space<vmem>>, %arg7: memref<1x1x2x4xf32, #tpu.memory_space<vmem>>) attributes {dimension_semantics = [#tpu.dimension_semantics<parallel>, #tpu.dimension_semantics<parallel>], iteration_bounds = array<i64: 2, 8>, scalar_prefetch = 0 : i64, scratch_operands = 0 : i64, tpu.core_type = #tpu.core_type<tc>, window_params = [{transform_indices = @transform_0, window_bounds = array<i64: 1, 1, 110, 4>}, {transform_indices = @transform_1, window_bounds = array<i64: 1, 1, 110, 4>}, {transform_indices = @transform_2, window_bounds = array<i64: 1, 1, 110, 4>}, {pipeline_mode = #tpu.pipeline_mode<synchronous>, transform_indices = @transform_3, window_bounds = array<i64: 27, 4, 4>}, {transform_indices = @transform_4, window_bounds = array<i64: 1, 1, 80, 4>}, {transform_indices = @transform_5, window_bounds = array<i64: 1, 1, 2, 4>}]} {
    %cst = arith.constant 0.000000e+00 : f32
    %0 = vector.broadcast %cst : f32 to vector<80x4xf32>
    %c0 = arith.constant 0 : index
    %c0_0 = arith.constant 0 : index
    %c0_1 = arith.constant 0 : index
    %c0_2 = arith.constant 0 : index
    %1 = vector.load %arg2[%c0, %c0_0, %c0_1, %c0_2] : memref<1x1x110x4xbf16, #tpu.memory_space<vmem>>, vector<1x1x80x4xbf16>
    %2 = vector.shape_cast %1 : vector<1x1x80x4xbf16> to vector<80x4xbf16>
    %c0_3 = arith.constant 0 : index
    %c0_4 = arith.constant 0 : index
    %c0_5 = arith.constant 0 : index
    %3 = vector.load %arg5[%c0_3, %c0_4, %c0_5] : memref<27x4x4xbf16, #tpu.memory_space<vmem>>, vector<1x4x4xbf16>
    %4 = vector.shape_cast %3 : vector<1x4x4xbf16> to vector<4x4xbf16>
    %cst_6 = arith.constant dense<0.000000e+00> : vector<80x4xf32>
    %5 = tpu.matmul %2, %4, %cst_6 {dimension_numbers = #tpu.dot_dimension_numbers<[1], [0], [0], [1], [0, 0, 1, 1], [], []>} : vector<80x4xbf16>, vector<4x4xbf16>, vector<80x4xf32> -> vector<80x4xf32>
    %6 = arith.addf %0, %5 : vector<80x4xf32>
    %c0_7 = arith.constant 0 : index
    %c0_8 = arith.constant 0 : index
    %c1 = arith.constant 1 : index
    %c0_9 = arith.constant 0 : index
    %7 = vector.load %arg2[%c0_7, %c0_8, %c1, %c0_9] : memref<1x1x110x4xbf16, #tpu.memory_space<vmem>>, vector<1x1x80x4xbf16>
    %8 = vector.shape_cast %7 : vector<1x1x80x4xbf16> to vector<80x4xbf16>
    %c1_10 = arith.constant 1 : index
    %c0_11 = arith.constant 0 : index
    %c0_12 = arith.constant 0 : index
    %9 = vector.load %arg5[%c1_10, %c0_11, %c0_12] : memref<27x4x4xbf16, #tpu.memory_space<vmem>>, vector<1x4x4xbf16>
    %10 = vector.shape_cast %9 : vector<1x4x4xbf16> to vector<4x4xbf16>
    %cst_13 = arith.constant dense<0.000000e+00> : vector<80x4xf32>
    %11 = tpu.matmul %8, %10, %cst_13 {dimension_numbers = #tpu.dot_dimension_numbers<[1], [0], [0], [1], [0, 0, 1, 1], [], []>} : vector<80x4xbf16>, vector<4x4xbf16>, vector<80x4xf32> -> vector<80x4xf32>
    %12 = arith.addf %6, %11 : vector<80x4xf32>
    %c0_14 = arith.constant 0 : index
    %c0_15 = arith.constant 0 : index
    %c2 = arith.constant 2 : index
    %c0_16 = arith.constant 0 : index
    %13 = vector.load %arg2[%c0_14, %c0_15, %c2, %c0_16] : memref<1x1x110x4xbf16, #tpu.memory_space<vmem>>, vector<1x1x80x4xbf16>
    %14 = vector.shape_cast %13 : vector<1x1x80x4xbf16> to vector<80x4xbf16>
    %c2_17 = arith.constant 2 : index
    %c0_18 = arith.constant 0 : index
    %c0_19 = arith.constant 0 : index
    %15 = vector.load %arg5[%c2_17, %c0_18, %c0_19] : memref<27x4x4xbf16, #tpu.memory_space<vmem>>, vector<1x4x4xbf16>
    %16 = vector.shape_cast %15 : vector<1x4x4xbf16> to vector<4x4xbf16>
    %cst_20 = arith.constant dense<0.000000e+00> : vector<80x4xf32>
    %17 = tpu.matmul %14, %16, %cst_20 {dimension_numbers = #tpu.dot_dimension_numbers<[1], [0], [0], [1], [0, 0, 1, 1], [], []>} : vector<80x4xbf16>, vector<4x4xbf16>, vector<80x4xf32> -> vector<80x4xf32>
    %18 = arith.addf %12, %17 : vector<80x4xf32>
    %c0_21 = arith.constant 0 : index
    %c0_22 = arith.constant 0 : index
    %c10 = arith.constant 10 : index
    %c0_23 = arith.constant 0 : index
    %19 = vector.load %arg2[%c0_21, %c0_22, %c10, %c0_23] : memref<1x1x110x4xbf16, #tpu.memory_space<vmem>>, vector<1x1x80x4xbf16>
    %20 = vector.shape_cast %19 : vector<1x1x80x4xbf16> to vector<80x4xbf16>
    %c3 = arith.constant 3 : index
    %c0_24 = arith.constant 0 : index
    %c0_25 = arith.constant 0 : index
    %21 = vector.load %arg5[%c3, %c0_24, %c0_25] : memref<27x4x4xbf16, #tpu.memory_space<vmem>>, vector<1x4x4xbf16>
    %22 = vector.shape_cast %21 : vector<1x4x4xbf16> to vector<4x4xbf16>
    %cst_26 = arith.constant dense<0.000000e+00> : vector<80x4xf32>
    %23 = tpu.matmul %20, %22, %cst_26 {dimension_numbers = #tpu.dot_dimension_numbers<[1], [0], [0], [1], [0, 0, 1, 1], [], []>} : vector<80x4xbf16>, vector<4x4xbf16>, vector<80x4xf32> -> vector<80x4xf32>
    %24 = arith.addf %18, %23 : vector<80x4xf32>
    %c0_27 = arith.constant 0 : index
    %c0_28 = arith.constant 0 : index
    %c11 = arith.constant 11 : index
    %c0_29 = arith.constant 0 : index
    %25 = vector.load %arg2[%c0_27, %c0_28, %c11, %c0_29] : memref<1x1x110x4xbf16, #tpu.memory_space<vmem>>, vector<1x1x80x4xbf16>
    %26 = vector.shape_cast %25 : vector<1x1x80x4xbf16> to vector<80x4xbf16>
    %c4 = arith.constant 4 : index
    %c0_30 = arith.constant 0 : index
    %c0_31 = arith.constant 0 : index
    %27 = vector.load %arg5[%c4, %c0_30, %c0_31] : memref<27x4x4xbf16, #tpu.memory_space<vmem>>, vector<1x4x4xbf16>
    %28 = vector.shape_cast %27 : vector<1x4x4xbf16> to vector<4x4xbf16>
    %cst_32 = arith.constant dense<0.000000e+00> : vector<80x4xf32>
    %29 = tpu.matmul %26, %28, %cst_32 {dimension_numbers = #tpu.dot_dimension_numbers<[1], [0], [0], [1], [0, 0, 1, 1], [], []>} : vector<80x4xbf16>, vector<4x4xbf16>, vector<80x4xf32> -> vector<80x4xf32>
    %30 = arith.addf %24, %29 : vector<80x4xf32>
    %c0_33 = arith.constant 0 : index
    %c0_34 = arith.constant 0 : index
    %c12 = arith.constant 12 : index
    %c0_35 = arith.constant 0 : index
    %31 = vector.load %arg2[%c0_33, %c0_34, %c12, %c0_35] : memref<1x1x110x4xbf16, #tpu.memory_space<vmem>>, vector<1x1x80x4xbf16>
    %32 = vector.shape_cast %31 : vector<1x1x80x4xbf16> to vector<80x4xbf16>
    %c5 = arith.constant 5 : index
    %c0_36 = arith.constant 0 : index
    %c0_37 = arith.constant 0 : index
    %33 = vector.load %arg5[%c5, %c0_36, %c0_37] : memref<27x4x4xbf16, #tpu.memory_space<vmem>>, vector<1x4x4xbf16>
    %34 = vector.shape_cast %33 : vector<1x4x4xbf16> to vector<4x4xbf16>
    %cst_38 = arith.constant dense<0.000000e+00> : vector<80x4xf32>
    %35 = tpu.matmul %32, %34, %cst_38 {dimension_numbers = #tpu.dot_dimension_numbers<[1], [0], [0], [1], [0, 0, 1, 1], [], []>} : vector<80x4xbf16>, vector<4x4xbf16>, vector<80x4xf32> -> vector<80x4xf32>
    %36 = arith.addf %30, %35 : vector<80x4xf32>
    %c0_39 = arith.constant 0 : index
    %c0_40 = arith.constant 0 : index
    %c20 = arith.constant 20 : index
    %c0_41 = arith.constant 0 : index
    %37 = vector.load %arg2[%c0_39, %c0_40, %c20, %c0_41] : memref<1x1x110x4xbf16, #tpu.memory_space<vmem>>, vector<1x1x80x4xbf16>
    %38 = vector.shape_cast %37 : vector<1x1x80x4xbf16> to vector<80x4xbf16>
    %c6 = arith.constant 6 : index
    %c0_42 = arith.constant 0 : index
    %c0_43 = arith.constant 0 : index
    %39 = vector.load %arg5[%c6, %c0_42, %c0_43] : memref<27x4x4xbf16, #tpu.memory_space<vmem>>, vector<1x4x4xbf16>
    %40 = vector.shape_cast %39 : vector<1x4x4xbf16> to vector<4x4xbf16>
    %cst_44 = arith.constant dense<0.000000e+00> : vector<80x4xf32>
    %41 = tpu.matmul %38, %40, %cst_44 {dimension_numbers = #tpu.dot_dimension_numbers<[1], [0], [0], [1], [0, 0, 1, 1], [], []>} : vector<80x4xbf16>, vector<4x4xbf16>, vector<80x4xf32> -> vector<80x4xf32>
    %42 = arith.addf %36, %41 : vector<80x4xf32>
    %c0_45 = arith.constant 0 : index
    %c0_46 = arith.constant 0 : index
    %c21 = arith.constant 21 : index
    %c0_47 = arith.constant 0 : index
    %43 = vector.load %arg2[%c0_45, %c0_46, %c21, %c0_47] : memref<1x1x110x4xbf16, #tpu.memory_space<vmem>>, vector<1x1x80x4xbf16>
    %44 = vector.shape_cast %43 : vector<1x1x80x4xbf16> to vector<80x4xbf16>
    %c7 = arith.constant 7 : index
    %c0_48 = arith.constant 0 : index
    %c0_49 = arith.constant 0 : index
    %45 = vector.load %arg5[%c7, %c0_48, %c0_49] : memref<27x4x4xbf16, #tpu.memory_space<vmem>>, vector<1x4x4xbf16>
    %46 = vector.shape_cast %45 : vector<1x4x4xbf16> to vector<4x4xbf16>
    %cst_50 = arith.constant dense<0.000000e+00> : vector<80x4xf32>
    %47 = tpu.matmul %44, %46, %cst_50 {dimension_numbers = #tpu.dot_dimension_numbers<[1], [0], [0], [1], [0, 0, 1, 1], [], []>} : vector<80x4xbf16>, vector<4x4xbf16>, vector<80x4xf32> -> vector<80x4xf32>
    %48 = arith.addf %42, %47 : vector<80x4xf32>
    %c0_51 = arith.constant 0 : index
    %c0_52 = arith.constant 0 : index
    %c22 = arith.constant 22 : index
    %c0_53 = arith.constant 0 : index
    %49 = vector.load %arg2[%c0_51, %c0_52, %c22, %c0_53] : memref<1x1x110x4xbf16, #tpu.memory_space<vmem>>, vector<1x1x80x4xbf16>
    %50 = vector.shape_cast %49 : vector<1x1x80x4xbf16> to vector<80x4xbf16>
    %c8 = arith.constant 8 : index
    %c0_54 = arith.constant 0 : index
    %c0_55 = arith.constant 0 : index
    %51 = vector.load %arg5[%c8, %c0_54, %c0_55] : memref<27x4x4xbf16, #tpu.memory_space<vmem>>, vector<1x4x4xbf16>
    %52 = vector.shape_cast %51 : vector<1x4x4xbf16> to vector<4x4xbf16>
    %cst_56 = arith.constant dense<0.000000e+00> : vector<80x4xf32>
    %53 = tpu.matmul %50, %52, %cst_56 {dimension_numbers = #tpu.dot_dimension_numbers<[1], [0], [0], [1], [0, 0, 1, 1], [], []>} : vector<80x4xbf16>, vector<4x4xbf16>, vector<80x4xf32> -> vector<80x4xf32>
    %54 = arith.addf %48, %53 : vector<80x4xf32>
    %c0_57 = arith.constant 0 : index
    %c0_58 = arith.constant 0 : index
    %c0_59 = arith.constant 0 : index
    %c0_60 = arith.constant 0 : index
    %55 = vector.load %arg3[%c0_57, %c0_58, %c0_59, %c0_60] : memref<1x1x110x4xbf16, #tpu.memory_space<vmem>>, vector<1x1x80x4xbf16>
    %56 = vector.shape_cast %55 : vector<1x1x80x4xbf16> to vector<80x4xbf16>
    %c9 = arith.constant 9 : index
    %c0_61 = arith.constant 0 : index
    %c0_62 = arith.constant 0 : index
    %57 = vector.load %arg5[%c9, %c0_61, %c0_62] : memref<27x4x4xbf16, #tpu.memory_space<vmem>>, vector<1x4x4xbf16>
    %58 = vector.shape_cast %57 : vector<1x4x4xbf16> to vector<4x4xbf16>
    %cst_63 = arith.constant dense<0.000000e+00> : vector<80x4xf32>
    %59 = tpu.matmul %56, %58, %cst_63 {dimension_numbers = #tpu.dot_dimension_numbers<[1], [0], [0], [1], [0, 0, 1, 1], [], []>} : vector<80x4xbf16>, vector<4x4xbf16>, vector<80x4xf32> -> vector<80x4xf32>
    %60 = arith.addf %54, %59 : vector<80x4xf32>
    %c0_64 = arith.constant 0 : index
    %c0_65 = arith.constant 0 : index
    %c1_66 = arith.constant 1 : index
    %c0_67 = arith.constant 0 : index
    %61 = vector.load %arg3[%c0_64, %c0_65, %c1_66, %c0_67] : memref<1x1x110x4xbf16, #tpu.memory_space<vmem>>, vector<1x1x80x4xbf16>
    %62 = vector.shape_cast %61 : vector<1x1x80x4xbf16> to vector<80x4xbf16>
    %c10_68 = arith.constant 10 : index
    %c0_69 = arith.constant 0 : index
    %c0_70 = arith.constant 0 : index
    %63 = vector.load %arg5[%c10_68, %c0_69, %c0_70] : memref<27x4x4xbf16, #tpu.memory_space<vmem>>, vector<1x4x4xbf16>
    %64 = vector.shape_cast %63 : vector<1x4x4xbf16> to vector<4x4xbf16>
    %cst_71 = arith.constant dense<0.000000e+00> : vector<80x4xf32>
    %65 = tpu.matmul %62, %64, %cst_71 {dimension_numbers = #tpu.dot_dimension_numbers<[1], [0], [0], [1], [0, 0, 1, 1], [], []>} : vector<80x4xbf16>, vector<4x4xbf16>, vector<80x4xf32> -> vector<80x4xf32>
    %66 = arith.addf %60, %65 : vector<80x4xf32>
    %c0_72 = arith.constant 0 : index
    %c0_73 = arith.constant 0 : index
    %c2_74 = arith.constant 2 : index
    %c0_75 = arith.constant 0 : index
    %67 = vector.load %arg3[%c0_72, %c0_73, %c2_74, %c0_75] : memref<1x1x110x4xbf16, #tpu.memory_space<vmem>>, vector<1x1x80x4xbf16>
    %68 = vector.shape_cast %67 : vector<1x1x80x4xbf16> to vector<80x4xbf16>
    %c11_76 = arith.constant 11 : index
    %c0_77 = arith.constant 0 : index
    %c0_78 = arith.constant 0 : index
    %69 = vector.load %arg5[%c11_76, %c0_77, %c0_78] : memref<27x4x4xbf16, #tpu.memory_space<vmem>>, vector<1x4x4xbf16>
    %70 = vector.shape_cast %69 : vector<1x4x4xbf16> to vector<4x4xbf16>
    %cst_79 = arith.constant dense<0.000000e+00> : vector<80x4xf32>
    %71 = tpu.matmul %68, %70, %cst_79 {dimension_numbers = #tpu.dot_dimension_numbers<[1], [0], [0], [1], [0, 0, 1, 1], [], []>} : vector<80x4xbf16>, vector<4x4xbf16>, vector<80x4xf32> -> vector<80x4xf32>
    %72 = arith.addf %66, %71 : vector<80x4xf32>
    %c0_80 = arith.constant 0 : index
    %c0_81 = arith.constant 0 : index
    %c10_82 = arith.constant 10 : index
    %c0_83 = arith.constant 0 : index
    %73 = vector.load %arg3[%c0_80, %c0_81, %c10_82, %c0_83] : memref<1x1x110x4xbf16, #tpu.memory_space<vmem>>, vector<1x1x80x4xbf16>
    %74 = vector.shape_cast %73 : vector<1x1x80x4xbf16> to vector<80x4xbf16>
    %c12_84 = arith.constant 12 : index
    %c0_85 = arith.constant 0 : index
    %c0_86 = arith.constant 0 : index
    %75 = vector.load %arg5[%c12_84, %c0_85, %c0_86] : memref<27x4x4xbf16, #tpu.memory_space<vmem>>, vector<1x4x4xbf16>
    %76 = vector.shape_cast %75 : vector<1x4x4xbf16> to vector<4x4xbf16>
    %cst_87 = arith.constant dense<0.000000e+00> : vector<80x4xf32>
    %77 = tpu.matmul %74, %76, %cst_87 {dimension_numbers = #tpu.dot_dimension_numbers<[1], [0], [0], [1], [0, 0, 1, 1], [], []>} : vector<80x4xbf16>, vector<4x4xbf16>, vector<80x4xf32> -> vector<80x4xf32>
    %78 = arith.addf %72, %77 : vector<80x4xf32>
    %c0_88 = arith.constant 0 : index
    %c0_89 = arith.constant 0 : index
    %c11_90 = arith.constant 11 : index
    %c0_91 = arith.constant 0 : index
    %79 = vector.load %arg3[%c0_88, %c0_89, %c11_90, %c0_91] : memref<1x1x110x4xbf16, #tpu.memory_space<vmem>>, vector<1x1x80x4xbf16>
    %80 = vector.shape_cast %79 : vector<1x1x80x4xbf16> to vector<80x4xbf16>
    %c13 = arith.constant 13 : index
    %c0_92 = arith.constant 0 : index
    %c0_93 = arith.constant 0 : index
    %81 = vector.load %arg5[%c13, %c0_92, %c0_93] : memref<27x4x4xbf16, #tpu.memory_space<vmem>>, vector<1x4x4xbf16>
    %82 = vector.shape_cast %81 : vector<1x4x4xbf16> to vector<4x4xbf16>
    %cst_94 = arith.constant dense<0.000000e+00> : vector<80x4xf32>
    %83 = tpu.matmul %80, %82, %cst_94 {dimension_numbers = #tpu.dot_dimension_numbers<[1], [0], [0], [1], [0, 0, 1, 1], [], []>} : vector<80x4xbf16>, vector<4x4xbf16>, vector<80x4xf32> -> vector<80x4xf32>
    %84 = arith.addf %78, %83 : vector<80x4xf32>
    %c0_95 = arith.constant 0 : index
    %c0_96 = arith.constant 0 : index
    %c12_97 = arith.constant 12 : index
    %c0_98 = arith.constant 0 : index
    %85 = vector.load %arg3[%c0_95, %c0_96, %c12_97, %c0_98] : memref<1x1x110x4xbf16, #tpu.memory_space<vmem>>, vector<1x1x80x4xbf16>
    %86 = vector.shape_cast %85 : vector<1x1x80x4xbf16> to vector<80x4xbf16>
    %c14 = arith.constant 14 : index
    %c0_99 = arith.constant 0 : index
    %c0_100 = arith.constant 0 : index
    %87 = vector.load %arg5[%c14, %c0_99, %c0_100] : memref<27x4x4xbf16, #tpu.memory_space<vmem>>, vector<1x4x4xbf16>
    %88 = vector.shape_cast %87 : vector<1x4x4xbf16> to vector<4x4xbf16>
    %cst_101 = arith.constant dense<0.000000e+00> : vector<80x4xf32>
    %89 = tpu.matmul %86, %88, %cst_101 {dimension_numbers = #tpu.dot_dimension_numbers<[1], [0], [0], [1], [0, 0, 1, 1], [], []>} : vector<80x4xbf16>, vector<4x4xbf16>, vector<80x4xf32> -> vector<80x4xf32>
    %90 = arith.addf %84, %89 : vector<80x4xf32>
    %c0_102 = arith.constant 0 : index
    %c0_103 = arith.constant 0 : index
    %c20_104 = arith.constant 20 : index
    %c0_105 = arith.constant 0 : index
    %91 = vector.load %arg3[%c0_102, %c0_103, %c20_104, %c0_105] : memref<1x1x110x4xbf16, #tpu.memory_space<vmem>>, vector<1x1x80x4xbf16>
    %92 = vector.shape_cast %91 : vector<1x1x80x4xbf16> to vector<80x4xbf16>
    %c15 = arith.constant 15 : index
    %c0_106 = arith.constant 0 : index
    %c0_107 = arith.constant 0 : index
    %93 = vector.load %arg5[%c15, %c0_106, %c0_107] : memref<27x4x4xbf16, #tpu.memory_space<vmem>>, vector<1x4x4xbf16>
    %94 = vector.shape_cast %93 : vector<1x4x4xbf16> to vector<4x4xbf16>
    %cst_108 = arith.constant dense<0.000000e+00> : vector<80x4xf32>
    %95 = tpu.matmul %92, %94, %cst_108 {dimension_numbers = #tpu.dot_dimension_numbers<[1], [0], [0], [1], [0, 0, 1, 1], [], []>} : vector<80x4xbf16>, vector<4x4xbf16>, vector<80x4xf32> -> vector<80x4xf32>
    %96 = arith.addf %90, %95 : vector<80x4xf32>
    %c0_109 = arith.constant 0 : index
    %c0_110 = arith.constant 0 : index
    %c21_111 = arith.constant 21 : index
    %c0_112 = arith.constant 0 : index
    %97 = vector.load %arg3[%c0_109, %c0_110, %c21_111, %c0_112] : memref<1x1x110x4xbf16, #tpu.memory_space<vmem>>, vector<1x1x80x4xbf16>
    %98 = vector.shape_cast %97 : vector<1x1x80x4xbf16> to vector<80x4xbf16>
    %c16 = arith.constant 16 : index
    %c0_113 = arith.constant 0 : index
    %c0_114 = arith.constant 0 : index
    %99 = vector.load %arg5[%c16, %c0_113, %c0_114] : memref<27x4x4xbf16, #tpu.memory_space<vmem>>, vector<1x4x4xbf16>
    %100 = vector.shape_cast %99 : vector<1x4x4xbf16> to vector<4x4xbf16>
    %cst_115 = arith.constant dense<0.000000e+00> : vector<80x4xf32>
    %101 = tpu.matmul %98, %100, %cst_115 {dimension_numbers = #tpu.dot_dimension_numbers<[1], [0], [0], [1], [0, 0, 1, 1], [], []>} : vector<80x4xbf16>, vector<4x4xbf16>, vector<80x4xf32> -> vector<80x4xf32>
    %102 = arith.addf %96, %101 : vector<80x4xf32>
    %c0_116 = arith.constant 0 : index
    %c0_117 = arith.constant 0 : index
    %c22_118 = arith.constant 22 : index
    %c0_119 = arith.constant 0 : index
    %103 = vector.load %arg3[%c0_116, %c0_117, %c22_118, %c0_119] : memref<1x1x110x4xbf16, #tpu.memory_space<vmem>>, vector<1x1x80x4xbf16>
    %104 = vector.shape_cast %103 : vector<1x1x80x4xbf16> to vector<80x4xbf16>
    %c17 = arith.constant 17 : index
    %c0_120 = arith.constant 0 : index
    %c0_121 = arith.constant 0 : index
    %105 = vector.load %arg5[%c17, %c0_120, %c0_121] : memref<27x4x4xbf16, #tpu.memory_space<vmem>>, vector<1x4x4xbf16>
    %106 = vector.shape_cast %105 : vector<1x4x4xbf16> to vector<4x4xbf16>
    %cst_122 = arith.constant dense<0.000000e+00> : vector<80x4xf32>
    %107 = tpu.matmul %104, %106, %cst_122 {dimension_numbers = #tpu.dot_dimension_numbers<[1], [0], [0], [1], [0, 0, 1, 1], [], []>} : vector<80x4xbf16>, vector<4x4xbf16>, vector<80x4xf32> -> vector<80x4xf32>
    %108 = arith.addf %102, %107 : vector<80x4xf32>
    %c0_123 = arith.constant 0 : index
    %c0_124 = arith.constant 0 : index
    %c0_125 = arith.constant 0 : index
    %c0_126 = arith.constant 0 : index
    %109 = vector.load %arg4[%c0_123, %c0_124, %c0_125, %c0_126] : memref<1x1x110x4xbf16, #tpu.memory_space<vmem>>, vector<1x1x80x4xbf16>
    %110 = vector.shape_cast %109 : vector<1x1x80x4xbf16> to vector<80x4xbf16>
    %c18 = arith.constant 18 : index
    %c0_127 = arith.constant 0 : index
    %c0_128 = arith.constant 0 : index
    %111 = vector.load %arg5[%c18, %c0_127, %c0_128] : memref<27x4x4xbf16, #tpu.memory_space<vmem>>, vector<1x4x4xbf16>
    %112 = vector.shape_cast %111 : vector<1x4x4xbf16> to vector<4x4xbf16>
    %cst_129 = arith.constant dense<0.000000e+00> : vector<80x4xf32>
    %113 = tpu.matmul %110, %112, %cst_129 {dimension_numbers = #tpu.dot_dimension_numbers<[1], [0], [0], [1], [0, 0, 1, 1], [], []>} : vector<80x4xbf16>, vector<4x4xbf16>, vector<80x4xf32> -> vector<80x4xf32>
    %114 = arith.addf %108, %113 : vector<80x4xf32>
    %c0_130 = arith.constant 0 : index
    %c0_131 = arith.constant 0 : index
    %c1_132 = arith.constant 1 : index
    %c0_133 = arith.constant 0 : index
    %115 = vector.load %arg4[%c0_130, %c0_131, %c1_132, %c0_133] : memref<1x1x110x4xbf16, #tpu.memory_space<vmem>>, vector<1x1x80x4xbf16>
    %116 = vector.shape_cast %115 : vector<1x1x80x4xbf16> to vector<80x4xbf16>
    %c19 = arith.constant 19 : index
    %c0_134 = arith.constant 0 : index
    %c0_135 = arith.constant 0 : index
    %117 = vector.load %arg5[%c19, %c0_134, %c0_135] : memref<27x4x4xbf16, #tpu.memory_space<vmem>>, vector<1x4x4xbf16>
    %118 = vector.shape_cast %117 : vector<1x4x4xbf16> to vector<4x4xbf16>
    %cst_136 = arith.constant dense<0.000000e+00> : vector<80x4xf32>
    %119 = tpu.matmul %116, %118, %cst_136 {dimension_numbers = #tpu.dot_dimension_numbers<[1], [0], [0], [1], [0, 0, 1, 1], [], []>} : vector<80x4xbf16>, vector<4x4xbf16>, vector<80x4xf32> -> vector<80x4xf32>
    %120 = arith.addf %114, %119 : vector<80x4xf32>
    %c0_137 = arith.constant 0 : index
    %c0_138 = arith.constant 0 : index
    %c2_139 = arith.constant 2 : index
    %c0_140 = arith.constant 0 : index
    %121 = vector.load %arg4[%c0_137, %c0_138, %c2_139, %c0_140] : memref<1x1x110x4xbf16, #tpu.memory_space<vmem>>, vector<1x1x80x4xbf16>
    %122 = vector.shape_cast %121 : vector<1x1x80x4xbf16> to vector<80x4xbf16>
    %c20_141 = arith.constant 20 : index
    %c0_142 = arith.constant 0 : index
    %c0_143 = arith.constant 0 : index
    %123 = vector.load %arg5[%c20_141, %c0_142, %c0_143] : memref<27x4x4xbf16, #tpu.memory_space<vmem>>, vector<1x4x4xbf16>
    %124 = vector.shape_cast %123 : vector<1x4x4xbf16> to vector<4x4xbf16>
    %cst_144 = arith.constant dense<0.000000e+00> : vector<80x4xf32>
    %125 = tpu.matmul %122, %124, %cst_144 {dimension_numbers = #tpu.dot_dimension_numbers<[1], [0], [0], [1], [0, 0, 1, 1], [], []>} : vector<80x4xbf16>, vector<4x4xbf16>, vector<80x4xf32> -> vector<80x4xf32>
    %126 = arith.addf %120, %125 : vector<80x4xf32>
    %c0_145 = arith.constant 0 : index
    %c0_146 = arith.constant 0 : index
    %c10_147 = arith.constant 10 : index
    %c0_148 = arith.constant 0 : index
    %127 = vector.load %arg4[%c0_145, %c0_146, %c10_147, %c0_148] : memref<1x1x110x4xbf16, #tpu.memory_space<vmem>>, vector<1x1x80x4xbf16>
    %128 = vector.shape_cast %127 : vector<1x1x80x4xbf16> to vector<80x4xbf16>
    %c21_149 = arith.constant 21 : index
    %c0_150 = arith.constant 0 : index
    %c0_151 = arith.constant 0 : index
    %129 = vector.load %arg5[%c21_149, %c0_150, %c0_151] : memref<27x4x4xbf16, #tpu.memory_space<vmem>>, vector<1x4x4xbf16>
    %130 = vector.shape_cast %129 : vector<1x4x4xbf16> to vector<4x4xbf16>
    %cst_152 = arith.constant dense<0.000000e+00> : vector<80x4xf32>
    %131 = tpu.matmul %128, %130, %cst_152 {dimension_numbers = #tpu.dot_dimension_numbers<[1], [0], [0], [1], [0, 0, 1, 1], [], []>} : vector<80x4xbf16>, vector<4x4xbf16>, vector<80x4xf32> -> vector<80x4xf32>
    %132 = arith.addf %126, %131 : vector<80x4xf32>
    %c0_153 = arith.constant 0 : index
    %c0_154 = arith.constant 0 : index
    %c11_155 = arith.constant 11 : index
    %c0_156 = arith.constant 0 : index
    %133 = vector.load %arg4[%c0_153, %c0_154, %c11_155, %c0_156] : memref<1x1x110x4xbf16, #tpu.memory_space<vmem>>, vector<1x1x80x4xbf16>
    %134 = vector.shape_cast %133 : vector<1x1x80x4xbf16> to vector<80x4xbf16>
    %c22_157 = arith.constant 22 : index
    %c0_158 = arith.constant 0 : index
    %c0_159 = arith.constant 0 : index
    %135 = vector.load %arg5[%c22_157, %c0_158, %c0_159] : memref<27x4x4xbf16, #tpu.memory_space<vmem>>, vector<1x4x4xbf16>
    %136 = vector.shape_cast %135 : vector<1x4x4xbf16> to vector<4x4xbf16>
    %cst_160 = arith.constant dense<0.000000e+00> : vector<80x4xf32>
    %137 = tpu.matmul %134, %136, %cst_160 {dimension_numbers = #tpu.dot_dimension_numbers<[1], [0], [0], [1], [0, 0, 1, 1], [], []>} : vector<80x4xbf16>, vector<4x4xbf16>, vector<80x4xf32> -> vector<80x4xf32>
    %138 = arith.addf %132, %137 : vector<80x4xf32>
    %c0_161 = arith.constant 0 : index
    %c0_162 = arith.constant 0 : index
    %c12_163 = arith.constant 12 : index
    %c0_164 = arith.constant 0 : index
    %139 = vector.load %arg4[%c0_161, %c0_162, %c12_163, %c0_164] : memref<1x1x110x4xbf16, #tpu.memory_space<vmem>>, vector<1x1x80x4xbf16>
    %140 = vector.shape_cast %139 : vector<1x1x80x4xbf16> to vector<80x4xbf16>
    %c23 = arith.constant 23 : index
    %c0_165 = arith.constant 0 : index
    %c0_166 = arith.constant 0 : index
    %141 = vector.load %arg5[%c23, %c0_165, %c0_166] : memref<27x4x4xbf16, #tpu.memory_space<vmem>>, vector<1x4x4xbf16>
    %142 = vector.shape_cast %141 : vector<1x4x4xbf16> to vector<4x4xbf16>
    %cst_167 = arith.constant dense<0.000000e+00> : vector<80x4xf32>
    %143 = tpu.matmul %140, %142, %cst_167 {dimension_numbers = #tpu.dot_dimension_numbers<[1], [0], [0], [1], [0, 0, 1, 1], [], []>} : vector<80x4xbf16>, vector<4x4xbf16>, vector<80x4xf32> -> vector<80x4xf32>
    %144 = arith.addf %138, %143 : vector<80x4xf32>
    %c0_168 = arith.constant 0 : index
    %c0_169 = arith.constant 0 : index
    %c20_170 = arith.constant 20 : index
    %c0_171 = arith.constant 0 : index
    %145 = vector.load %arg4[%c0_168, %c0_169, %c20_170, %c0_171] : memref<1x1x110x4xbf16, #tpu.memory_space<vmem>>, vector<1x1x80x4xbf16>
    %146 = vector.shape_cast %145 : vector<1x1x80x4xbf16> to vector<80x4xbf16>
    %c24 = arith.constant 24 : index
    %c0_172 = arith.constant 0 : index
    %c0_173 = arith.constant 0 : index
    %147 = vector.load %arg5[%c24, %c0_172, %c0_173] : memref<27x4x4xbf16, #tpu.memory_space<vmem>>, vector<1x4x4xbf16>
    %148 = vector.shape_cast %147 : vector<1x4x4xbf16> to vector<4x4xbf16>
    %cst_174 = arith.constant dense<0.000000e+00> : vector<80x4xf32>
    %149 = tpu.matmul %146, %148, %cst_174 {dimension_numbers = #tpu.dot_dimension_numbers<[1], [0], [0], [1], [0, 0, 1, 1], [], []>} : vector<80x4xbf16>, vector<4x4xbf16>, vector<80x4xf32> -> vector<80x4xf32>
    %150 = arith.addf %144, %149 : vector<80x4xf32>
    %c0_175 = arith.constant 0 : index
    %c0_176 = arith.constant 0 : index
    %c21_177 = arith.constant 21 : index
    %c0_178 = arith.constant 0 : index
    %151 = vector.load %arg4[%c0_175, %c0_176, %c21_177, %c0_178] : memref<1x1x110x4xbf16, #tpu.memory_space<vmem>>, vector<1x1x80x4xbf16>
    %152 = vector.shape_cast %151 : vector<1x1x80x4xbf16> to vector<80x4xbf16>
    %c25 = arith.constant 25 : index
    %c0_179 = arith.constant 0 : index
    %c0_180 = arith.constant 0 : index
    %153 = vector.load %arg5[%c25, %c0_179, %c0_180] : memref<27x4x4xbf16, #tpu.memory_space<vmem>>, vector<1x4x4xbf16>
    %154 = vector.shape_cast %153 : vector<1x4x4xbf16> to vector<4x4xbf16>
    %cst_181 = arith.constant dense<0.000000e+00> : vector<80x4xf32>
    %155 = tpu.matmul %152, %154, %cst_181 {dimension_numbers = #tpu.dot_dimension_numbers<[1], [0], [0], [1], [0, 0, 1, 1], [], []>} : vector<80x4xbf16>, vector<4x4xbf16>, vector<80x4xf32> -> vector<80x4xf32>
    %156 = arith.addf %150, %155 : vector<80x4xf32>
    %c0_182 = arith.constant 0 : index
    %c0_183 = arith.constant 0 : index
    %c22_184 = arith.constant 22 : index
    %c0_185 = arith.constant 0 : index
    %157 = vector.load %arg4[%c0_182, %c0_183, %c22_184, %c0_185] : memref<1x1x110x4xbf16, #tpu.memory_space<vmem>>, vector<1x1x80x4xbf16>
    %158 = vector.shape_cast %157 : vector<1x1x80x4xbf16> to vector<80x4xbf16>
    %c26 = arith.constant 26 : index
    %c0_186 = arith.constant 0 : index
    %c0_187 = arith.constant 0 : index
    %159 = vector.load %arg5[%c26, %c0_186, %c0_187] : memref<27x4x4xbf16, #tpu.memory_space<vmem>>, vector<1x4x4xbf16>
    %160 = vector.shape_cast %159 : vector<1x4x4xbf16> to vector<4x4xbf16>
    %cst_188 = arith.constant dense<0.000000e+00> : vector<80x4xf32>
    %161 = tpu.matmul %158, %160, %cst_188 {dimension_numbers = #tpu.dot_dimension_numbers<[1], [0], [0], [1], [0, 0, 1, 1], [], []>} : vector<80x4xbf16>, vector<4x4xbf16>, vector<80x4xf32> -> vector<80x4xf32>
    %162 = arith.addf %156, %161 : vector<80x4xf32>
    %163 = arith.truncf %162 : vector<80x4xf32> to vector<80x4xbf16>
    %c0_189 = arith.constant 0 : index
    %c0_190 = arith.constant 0 : index
    %c0_191 = arith.constant 0 : index
    %c0_192 = arith.constant 0 : index
    %164 = vector.load %arg6[%c0_189, %c0_190, %c0_191, %c0_192] : memref<1x1x80x4xbf16, #tpu.memory_space<vmem>>, vector<1x1x80x4xbf16>
    %165 = vector.shape_cast %164 : vector<1x1x80x4xbf16> to vector<80x4xbf16>
    %166 = vector.shape_cast %163 : vector<80x4xbf16> to vector<1x1x80x4xbf16>
    tpu.vector_store %arg6[%c0_189, %c0_190, %c0_191, %c0_192], %166 {strides = array<i32>} : memref<1x1x80x4xbf16, #tpu.memory_space<vmem>>, vector<1x1x80x4xbf16>,
    %167 = tpu.iota {dimensions = array<i32: 0>} : vector<80x1xi32>
    %c10_i32 = arith.constant 10 : i32
    %c0_i32 = arith.constant 0 : i32
    %168 = arith.cmpi eq, %c10_i32, %c0_i32 : i32
    %c1_i32 = arith.constant 1 : i32
    %169 = arith.select %168, %c1_i32, %c10_i32 : i32
    %170 = vector.broadcast %169 : i32 to vector<80x1xi32>
    %171 = arith.remsi %167, %170 : vector<80x1xi32>
    %c0_i32_193 = arith.constant 0 : i32
    %172 = vector.broadcast %c0_i32_193 : i32 to vector<80x1xi32>
    %173 = arith.cmpi ne, %171, %172 : vector<80x1xi32>
    %c0_i32_194 = arith.constant 0 : i32
    %174 = vector.broadcast %c0_i32_194 : i32 to vector<80x1xi32>
    %175 = arith.cmpi slt, %171, %174 : vector<80x1xi32>
    %c0_i32_195 = arith.constant 0 : i32
    %176 = arith.cmpi slt, %169, %c0_i32_195 : i32
    %177 = vector.broadcast %176 : i1 to vector<80x1xi1>
    %178 = vector.broadcast %177 : vector<80x1xi1> to vector<80x1xi1>
    %179 = arith.xori %175, %178 : vector<80x1xi1>
    %180 = arith.andi %179, %173 : vector<80x1xi1>
    %181 = vector.broadcast %169 : i32 to vector<80x1xi32>
    %182 = arith.addi %171, %181 : vector<80x1xi32>
    %183 = arith.select %180, %182, %171 : vector<80x1xi1>, vector<80x1xi32>
    %c8_i32 = arith.constant 8 : i32
    %184 = vector.broadcast %c8_i32 : i32 to vector<80x1xi32>
    %185 = arith.cmpi slt, %183, %184 : vector<80x1xi32>
    %cst_196 = arith.constant 0.000000e+00 : f32
    %186 = vector.shape_cast %185 : vector<80x1xi1> to vector<80x1xi1>
    %187 = vector.broadcast %186 : vector<80x1xi1> to vector<80x4xi1>
    %188 = vector.broadcast %cst_196 : f32 to vector<80x4xf32>
    %189 = arith.select %187, %162, %188 : vector<80x4xi1>, vector<80x4xf32>
    %cst_197 = arith.constant dense<0.000000e+00> : vector<4xf32>
    %190 = vector.multi_reduction <add>, %189, %cst_197 [0] : vector<80x4xf32> to vector<4xf32>
    %191 = vector.shape_cast %190 : vector<4xf32> to vector<1x4xf32>
    %c0_198 = arith.constant 0 : index
    %c0_199 = arith.constant 0 : index
    %c0_200 = arith.constant 0 : index
    %c0_201 = arith.constant 0 : index
    %192 = vector.load %arg7[%c0_198, %c0_199, %c0_200, %c0_201] : memref<1x1x2x4xf32, #tpu.memory_space<vmem>>, vector<1x1x1x4xf32>
    %193 = vector.shape_cast %192 : vector<1x1x1x4xf32> to vector<1x4xf32>
    %194 = vector.shape_cast %191 : vector<1x4xf32> to vector<1x1x1x4xf32>
    tpu.vector_store %arg7[%c0_198, %c0_199, %c0_200, %c0_201], %194 {strides = array<i32>} : memref<1x1x2x4xf32, #tpu.memory_space<vmem>>, vector<1x1x1x4xf32>,
    %195 = arith.mulf %189, %162 : vector<80x4xf32>
    %cst_202 = arith.constant dense<0.000000e+00> : vector<4xf32>
    %196 = vector.multi_reduction <add>, %195, %cst_202 [0] : vector<80x4xf32> to vector<4xf32>
    %197 = vector.shape_cast %196 : vector<4xf32> to vector<1x4xf32>
    %c0_203 = arith.constant 0 : index
    %c0_204 = arith.constant 0 : index
    %c1_205 = arith.constant 1 : index
    %c0_206 = arith.constant 0 : index
    %198 = vector.load %arg7[%c0_203, %c0_204, %c1_205, %c0_206] : memref<1x1x2x4xf32, #tpu.memory_space<vmem>>, vector<1x1x1x4xf32>
    %199 = vector.shape_cast %198 : vector<1x1x1x4xf32> to vector<1x4xf32>
    %200 = vector.shape_cast %197 : vector<1x4xf32> to vector<1x1x1x4xf32>
    tpu.vector_store %arg7[%c0_203, %c0_204, %c1_205, %c0_206], %200 {strides = array<i32>} : memref<1x1x2x4xf32, #tpu.memory_space<vmem>>, vector<1x1x1x4xf32>,
    return
  }
  func.func @transform_0(%arg0: i32, %arg1: i32) -> (i32, i32, i32, i32) {
    %c0_i32 = arith.constant 0 : i32
    %0 = arith.addi %arg1, %c0_i32 : i32
    %c0_i32_0 = arith.constant 0 : i32
    %c0_i32_1 = arith.constant 0 : i32
    %c0_i32_2 = arith.constant 0 : i32
    return %arg0, %0, %c0_i32_0, %c0_i32_1 : i32, i32, i32, i32
  }
  func.func @transform_1(%arg0: i32, %arg1: i32) -> (i32, i32, i32, i32) {
    %c1_i32 = arith.constant 1 : i32
    %0 = arith.addi %arg1, %c1_i32 : i32
    %c0_i32 = arith.constant 0 : i32
    %c0_i32_0 = arith.constant 0 : i32
    %c0_i32_1 = arith.constant 0 : i32
    return %arg0, %0, %c0_i32, %c0_i32_0 : i32, i32, i32, i32
  }
  func.func @transform_2(%arg0: i32, %arg1: i32) -> (i32, i32, i32, i32) {
    %c2_i32 = arith.constant 2 : i32
    %0 = arith.addi %arg1, %c2_i32 : i32
    %c0_i32 = arith.constant 0 : i32
    %c0_i32_0 = arith.constant 0 : i32
    %c0_i32_1 = arith.constant 0 : i32
    return %arg0, %0, %c0_i32, %c0_i32_0 : i32, i32, i32, i32
  }
  func.func @transform_3(%arg0: i32, %arg1: i32) -> (i32, i32, i32) {
    %c0_i32 = arith.constant 0 : i32
    %c0_i32_0 = arith.constant 0 : i32
    %c0_i32_1 = arith.constant 0 : i32
    %c0_i32_2 = arith.constant 0 : i32
    return %c0_i32, %c0_i32_0, %c0_i32_1 : i32, i32, i32
  }
  func.func @transform_4(%arg0: i32, %arg1: i32) -> (i32, i32, i32, i32) {
    %c0_i32 = arith.constant 0 : i32
    %c0_i32_0 = arith.constant 0 : i32
    %c0_i32_1 = arith.constant 0 : i32
    return %arg0, %arg1, %c0_i32, %c0_i32_0 : i32, i32, i32, i32
  }
  func.func @transform_5(%arg0: i32, %arg1: i32) -> (i32, i32, i32, i32) {
    %c0_i32 = arith.constant 0 : i32
    %c0_i32_0 = arith.constant 0 : i32
    %c0_i32_1 = arith.constant 0 : i32
    return %arg0, %arg1, %c0_i32, %c0_i32_0 : i32, i32, i32, i32
  }
}

module attributes {stable_mosaic.version = 11 : i64} {
  func.func @_bn_relu_kernel(%arg0: i32, %arg1: i32, %arg2: memref<1x1x80x4xbf16, #tpu.memory_space<vmem>>, %arg3: memref<2x4xf32, #tpu.memory_space<vmem>>, %arg4: memref<1x1x80x4xf32, #tpu.memory_space<vmem>>) attributes {dimension_semantics = [#tpu.dimension_semantics<parallel>, #tpu.dimension_semantics<parallel>], iteration_bounds = array<i64: 2, 8>, scalar_prefetch = 0 : i64, scratch_operands = 0 : i64, tpu.core_type = #tpu.core_type<tc>, window_params = [{transform_indices = @transform_0, window_bounds = array<i64: 1, 1, 80, 4>}, {pipeline_mode = #tpu.pipeline_mode<synchronous>, transform_indices = @transform_1, window_bounds = array<i64: 2, 4>}, {transform_indices = @transform_2, window_bounds = array<i64: 1, 1, 80, 4>}]} {
    %c0 = arith.constant 0 : index
    %c0_0 = arith.constant 0 : index
    %c0_1 = arith.constant 0 : index
    %c0_2 = arith.constant 0 : index
    %0 = vector.load %arg2[%c0, %c0_0, %c0_1, %c0_2] : memref<1x1x80x4xbf16, #tpu.memory_space<vmem>>, vector<1x1x80x4xbf16>
    %1 = vector.shape_cast %0 : vector<1x1x80x4xbf16> to vector<80x4xbf16>
    %2 = arith.extf %1 : vector<80x4xbf16> to vector<80x4xf32>
    %c0_3 = arith.constant 0 : index
    %c0_4 = arith.constant 0 : index
    %3 = vector.load %arg3[%c0_3, %c0_4] : memref<2x4xf32, #tpu.memory_space<vmem>>, vector<1x4xf32>
    %c1 = arith.constant 1 : index
    %c0_5 = arith.constant 0 : index
    %4 = vector.load %arg3[%c1, %c0_5] : memref<2x4xf32, #tpu.memory_space<vmem>>, vector<1x4xf32>
    %5 = vector.broadcast %3 : vector<1x4xf32> to vector<80x4xf32>
    %6 = arith.mulf %2, %5 : vector<80x4xf32>
    %7 = vector.broadcast %4 : vector<1x4xf32> to vector<80x4xf32>
    %8 = arith.addf %6, %7 : vector<80x4xf32>
    %cst = arith.constant 0.000000e+00 : f32
    %9 = vector.broadcast %cst : f32 to vector<80x4xf32>
    %10 = arith.maximumf %8, %9 : vector<80x4xf32>
    %c0_6 = arith.constant 0 : index
    %c0_7 = arith.constant 0 : index
    %c0_8 = arith.constant 0 : index
    %c0_9 = arith.constant 0 : index
    %11 = vector.load %arg4[%c0_6, %c0_7, %c0_8, %c0_9] : memref<1x1x80x4xf32, #tpu.memory_space<vmem>>, vector<1x1x80x4xf32>
    %12 = vector.shape_cast %11 : vector<1x1x80x4xf32> to vector<80x4xf32>
    %13 = vector.shape_cast %10 : vector<80x4xf32> to vector<1x1x80x4xf32>
    tpu.vector_store %arg4[%c0_6, %c0_7, %c0_8, %c0_9], %13 {strides = array<i32>} : memref<1x1x80x4xf32, #tpu.memory_space<vmem>>, vector<1x1x80x4xf32>,
    return
  }
  func.func @transform_0(%arg0: i32, %arg1: i32) -> (i32, i32, i32, i32) {
    %c0_i32 = arith.constant 0 : i32
    %c0_i32_0 = arith.constant 0 : i32
    %c0_i32_1 = arith.constant 0 : i32
    return %arg0, %arg1, %c0_i32, %c0_i32_0 : i32, i32, i32, i32
  }
  func.func @transform_1(%arg0: i32, %arg1: i32) -> (i32, i32) {
    %c0_i32 = arith.constant 0 : i32
    %c0_i32_0 = arith.constant 0 : i32
    %c0_i32_1 = arith.constant 0 : i32
    return %c0_i32, %c0_i32_0 : i32, i32
  }
  func.func @transform_2(%arg0: i32, %arg1: i32) -> (i32, i32, i32, i32) {
    %c0_i32 = arith.constant 0 : i32
    %c0_i32_0 = arith.constant 0 : i32
    %c0_i32_1 = arith.constant 0 : i32
    return %arg0, %arg1, %c0_i32, %c0_i32_0 : i32, i32, i32, i32
  }
}

module attributes {stable_mosaic.version = 11 : i64} {
  func.func @_conv_tap_stats_kernel(%arg0: i32, %arg1: i32, %arg2: memref<1x1x110x4xbf16, #tpu.memory_space<vmem>>, %arg3: memref<1x1x110x4xbf16, #tpu.memory_space<vmem>>, %arg4: memref<1x1x110x4xbf16, #tpu.memory_space<vmem>>, %arg5: memref<27x4x8xbf16, #tpu.memory_space<vmem>>, %arg6: memref<1x1x80x8xbf16, #tpu.memory_space<vmem>>, %arg7: memref<1x1x2x8xf32, #tpu.memory_space<vmem>>) attributes {dimension_semantics = [#tpu.dimension_semantics<parallel>, #tpu.dimension_semantics<parallel>], iteration_bounds = array<i64: 2, 8>, scalar_prefetch = 0 : i64, scratch_operands = 0 : i64, tpu.core_type = #tpu.core_type<tc>, window_params = [{transform_indices = @transform_0, window_bounds = array<i64: 1, 1, 110, 4>}, {transform_indices = @transform_1, window_bounds = array<i64: 1, 1, 110, 4>}, {transform_indices = @transform_2, window_bounds = array<i64: 1, 1, 110, 4>}, {pipeline_mode = #tpu.pipeline_mode<synchronous>, transform_indices = @transform_3, window_bounds = array<i64: 27, 4, 8>}, {transform_indices = @transform_4, window_bounds = array<i64: 1, 1, 80, 8>}, {transform_indices = @transform_5, window_bounds = array<i64: 1, 1, 2, 8>}]} {
    %cst = arith.constant 0.000000e+00 : f32
    %0 = vector.broadcast %cst : f32 to vector<80x8xf32>
    %c0 = arith.constant 0 : index
    %c0_0 = arith.constant 0 : index
    %c0_1 = arith.constant 0 : index
    %c0_2 = arith.constant 0 : index
    %1 = vector.load %arg2[%c0, %c0_0, %c0_1, %c0_2] : memref<1x1x110x4xbf16, #tpu.memory_space<vmem>>, vector<1x1x80x4xbf16>
    %2 = vector.shape_cast %1 : vector<1x1x80x4xbf16> to vector<80x4xbf16>
    %c0_3 = arith.constant 0 : index
    %c0_4 = arith.constant 0 : index
    %c0_5 = arith.constant 0 : index
    %3 = vector.load %arg5[%c0_3, %c0_4, %c0_5] : memref<27x4x8xbf16, #tpu.memory_space<vmem>>, vector<1x4x8xbf16>
    %4 = vector.shape_cast %3 : vector<1x4x8xbf16> to vector<4x8xbf16>
    %cst_6 = arith.constant dense<0.000000e+00> : vector<80x8xf32>
    %5 = tpu.matmul %2, %4, %cst_6 {dimension_numbers = #tpu.dot_dimension_numbers<[1], [0], [0], [1], [0, 0, 1, 1], [], []>} : vector<80x4xbf16>, vector<4x8xbf16>, vector<80x8xf32> -> vector<80x8xf32>
    %6 = arith.addf %0, %5 : vector<80x8xf32>
    %c0_7 = arith.constant 0 : index
    %c0_8 = arith.constant 0 : index
    %c1 = arith.constant 1 : index
    %c0_9 = arith.constant 0 : index
    %7 = vector.load %arg2[%c0_7, %c0_8, %c1, %c0_9] : memref<1x1x110x4xbf16, #tpu.memory_space<vmem>>, vector<1x1x80x4xbf16>
    %8 = vector.shape_cast %7 : vector<1x1x80x4xbf16> to vector<80x4xbf16>
    %c1_10 = arith.constant 1 : index
    %c0_11 = arith.constant 0 : index
    %c0_12 = arith.constant 0 : index
    %9 = vector.load %arg5[%c1_10, %c0_11, %c0_12] : memref<27x4x8xbf16, #tpu.memory_space<vmem>>, vector<1x4x8xbf16>
    %10 = vector.shape_cast %9 : vector<1x4x8xbf16> to vector<4x8xbf16>
    %cst_13 = arith.constant dense<0.000000e+00> : vector<80x8xf32>
    %11 = tpu.matmul %8, %10, %cst_13 {dimension_numbers = #tpu.dot_dimension_numbers<[1], [0], [0], [1], [0, 0, 1, 1], [], []>} : vector<80x4xbf16>, vector<4x8xbf16>, vector<80x8xf32> -> vector<80x8xf32>
    %12 = arith.addf %6, %11 : vector<80x8xf32>
    %c0_14 = arith.constant 0 : index
    %c0_15 = arith.constant 0 : index
    %c2 = arith.constant 2 : index
    %c0_16 = arith.constant 0 : index
    %13 = vector.load %arg2[%c0_14, %c0_15, %c2, %c0_16] : memref<1x1x110x4xbf16, #tpu.memory_space<vmem>>, vector<1x1x80x4xbf16>
    %14 = vector.shape_cast %13 : vector<1x1x80x4xbf16> to vector<80x4xbf16>
    %c2_17 = arith.constant 2 : index
    %c0_18 = arith.constant 0 : index
    %c0_19 = arith.constant 0 : index
    %15 = vector.load %arg5[%c2_17, %c0_18, %c0_19] : memref<27x4x8xbf16, #tpu.memory_space<vmem>>, vector<1x4x8xbf16>
    %16 = vector.shape_cast %15 : vector<1x4x8xbf16> to vector<4x8xbf16>
    %cst_20 = arith.constant dense<0.000000e+00> : vector<80x8xf32>
    %17 = tpu.matmul %14, %16, %cst_20 {dimension_numbers = #tpu.dot_dimension_numbers<[1], [0], [0], [1], [0, 0, 1, 1], [], []>} : vector<80x4xbf16>, vector<4x8xbf16>, vector<80x8xf32> -> vector<80x8xf32>
    %18 = arith.addf %12, %17 : vector<80x8xf32>
    %c0_21 = arith.constant 0 : index
    %c0_22 = arith.constant 0 : index
    %c10 = arith.constant 10 : index
    %c0_23 = arith.constant 0 : index
    %19 = vector.load %arg2[%c0_21, %c0_22, %c10, %c0_23] : memref<1x1x110x4xbf16, #tpu.memory_space<vmem>>, vector<1x1x80x4xbf16>
    %20 = vector.shape_cast %19 : vector<1x1x80x4xbf16> to vector<80x4xbf16>
    %c3 = arith.constant 3 : index
    %c0_24 = arith.constant 0 : index
    %c0_25 = arith.constant 0 : index
    %21 = vector.load %arg5[%c3, %c0_24, %c0_25] : memref<27x4x8xbf16, #tpu.memory_space<vmem>>, vector<1x4x8xbf16>
    %22 = vector.shape_cast %21 : vector<1x4x8xbf16> to vector<4x8xbf16>
    %cst_26 = arith.constant dense<0.000000e+00> : vector<80x8xf32>
    %23 = tpu.matmul %20, %22, %cst_26 {dimension_numbers = #tpu.dot_dimension_numbers<[1], [0], [0], [1], [0, 0, 1, 1], [], []>} : vector<80x4xbf16>, vector<4x8xbf16>, vector<80x8xf32> -> vector<80x8xf32>
    %24 = arith.addf %18, %23 : vector<80x8xf32>
    %c0_27 = arith.constant 0 : index
    %c0_28 = arith.constant 0 : index
    %c11 = arith.constant 11 : index
    %c0_29 = arith.constant 0 : index
    %25 = vector.load %arg2[%c0_27, %c0_28, %c11, %c0_29] : memref<1x1x110x4xbf16, #tpu.memory_space<vmem>>, vector<1x1x80x4xbf16>
    %26 = vector.shape_cast %25 : vector<1x1x80x4xbf16> to vector<80x4xbf16>
    %c4 = arith.constant 4 : index
    %c0_30 = arith.constant 0 : index
    %c0_31 = arith.constant 0 : index
    %27 = vector.load %arg5[%c4, %c0_30, %c0_31] : memref<27x4x8xbf16, #tpu.memory_space<vmem>>, vector<1x4x8xbf16>
    %28 = vector.shape_cast %27 : vector<1x4x8xbf16> to vector<4x8xbf16>
    %cst_32 = arith.constant dense<0.000000e+00> : vector<80x8xf32>
    %29 = tpu.matmul %26, %28, %cst_32 {dimension_numbers = #tpu.dot_dimension_numbers<[1], [0], [0], [1], [0, 0, 1, 1], [], []>} : vector<80x4xbf16>, vector<4x8xbf16>, vector<80x8xf32> -> vector<80x8xf32>
    %30 = arith.addf %24, %29 : vector<80x8xf32>
    %c0_33 = arith.constant 0 : index
    %c0_34 = arith.constant 0 : index
    %c12 = arith.constant 12 : index
    %c0_35 = arith.constant 0 : index
    %31 = vector.load %arg2[%c0_33, %c0_34, %c12, %c0_35] : memref<1x1x110x4xbf16, #tpu.memory_space<vmem>>, vector<1x1x80x4xbf16>
    %32 = vector.shape_cast %31 : vector<1x1x80x4xbf16> to vector<80x4xbf16>
    %c5 = arith.constant 5 : index
    %c0_36 = arith.constant 0 : index
    %c0_37 = arith.constant 0 : index
    %33 = vector.load %arg5[%c5, %c0_36, %c0_37] : memref<27x4x8xbf16, #tpu.memory_space<vmem>>, vector<1x4x8xbf16>
    %34 = vector.shape_cast %33 : vector<1x4x8xbf16> to vector<4x8xbf16>
    %cst_38 = arith.constant dense<0.000000e+00> : vector<80x8xf32>
    %35 = tpu.matmul %32, %34, %cst_38 {dimension_numbers = #tpu.dot_dimension_numbers<[1], [0], [0], [1], [0, 0, 1, 1], [], []>} : vector<80x4xbf16>, vector<4x8xbf16>, vector<80x8xf32> -> vector<80x8xf32>
    %36 = arith.addf %30, %35 : vector<80x8xf32>
    %c0_39 = arith.constant 0 : index
    %c0_40 = arith.constant 0 : index
    %c20 = arith.constant 20 : index
    %c0_41 = arith.constant 0 : index
    %37 = vector.load %arg2[%c0_39, %c0_40, %c20, %c0_41] : memref<1x1x110x4xbf16, #tpu.memory_space<vmem>>, vector<1x1x80x4xbf16>
    %38 = vector.shape_cast %37 : vector<1x1x80x4xbf16> to vector<80x4xbf16>
    %c6 = arith.constant 6 : index
    %c0_42 = arith.constant 0 : index
    %c0_43 = arith.constant 0 : index
    %39 = vector.load %arg5[%c6, %c0_42, %c0_43] : memref<27x4x8xbf16, #tpu.memory_space<vmem>>, vector<1x4x8xbf16>
    %40 = vector.shape_cast %39 : vector<1x4x8xbf16> to vector<4x8xbf16>
    %cst_44 = arith.constant dense<0.000000e+00> : vector<80x8xf32>
    %41 = tpu.matmul %38, %40, %cst_44 {dimension_numbers = #tpu.dot_dimension_numbers<[1], [0], [0], [1], [0, 0, 1, 1], [], []>} : vector<80x4xbf16>, vector<4x8xbf16>, vector<80x8xf32> -> vector<80x8xf32>
    %42 = arith.addf %36, %41 : vector<80x8xf32>
    %c0_45 = arith.constant 0 : index
    %c0_46 = arith.constant 0 : index
    %c21 = arith.constant 21 : index
    %c0_47 = arith.constant 0 : index
    %43 = vector.load %arg2[%c0_45, %c0_46, %c21, %c0_47] : memref<1x1x110x4xbf16, #tpu.memory_space<vmem>>, vector<1x1x80x4xbf16>
    %44 = vector.shape_cast %43 : vector<1x1x80x4xbf16> to vector<80x4xbf16>
    %c7 = arith.constant 7 : index
    %c0_48 = arith.constant 0 : index
    %c0_49 = arith.constant 0 : index
    %45 = vector.load %arg5[%c7, %c0_48, %c0_49] : memref<27x4x8xbf16, #tpu.memory_space<vmem>>, vector<1x4x8xbf16>
    %46 = vector.shape_cast %45 : vector<1x4x8xbf16> to vector<4x8xbf16>
    %cst_50 = arith.constant dense<0.000000e+00> : vector<80x8xf32>
    %47 = tpu.matmul %44, %46, %cst_50 {dimension_numbers = #tpu.dot_dimension_numbers<[1], [0], [0], [1], [0, 0, 1, 1], [], []>} : vector<80x4xbf16>, vector<4x8xbf16>, vector<80x8xf32> -> vector<80x8xf32>
    %48 = arith.addf %42, %47 : vector<80x8xf32>
    %c0_51 = arith.constant 0 : index
    %c0_52 = arith.constant 0 : index
    %c22 = arith.constant 22 : index
    %c0_53 = arith.constant 0 : index
    %49 = vector.load %arg2[%c0_51, %c0_52, %c22, %c0_53] : memref<1x1x110x4xbf16, #tpu.memory_space<vmem>>, vector<1x1x80x4xbf16>
    %50 = vector.shape_cast %49 : vector<1x1x80x4xbf16> to vector<80x4xbf16>
    %c8 = arith.constant 8 : index
    %c0_54 = arith.constant 0 : index
    %c0_55 = arith.constant 0 : index
    %51 = vector.load %arg5[%c8, %c0_54, %c0_55] : memref<27x4x8xbf16, #tpu.memory_space<vmem>>, vector<1x4x8xbf16>
    %52 = vector.shape_cast %51 : vector<1x4x8xbf16> to vector<4x8xbf16>
    %cst_56 = arith.constant dense<0.000000e+00> : vector<80x8xf32>
    %53 = tpu.matmul %50, %52, %cst_56 {dimension_numbers = #tpu.dot_dimension_numbers<[1], [0], [0], [1], [0, 0, 1, 1], [], []>} : vector<80x4xbf16>, vector<4x8xbf16>, vector<80x8xf32> -> vector<80x8xf32>
    %54 = arith.addf %48, %53 : vector<80x8xf32>
    %c0_57 = arith.constant 0 : index
    %c0_58 = arith.constant 0 : index
    %c0_59 = arith.constant 0 : index
    %c0_60 = arith.constant 0 : index
    %55 = vector.load %arg3[%c0_57, %c0_58, %c0_59, %c0_60] : memref<1x1x110x4xbf16, #tpu.memory_space<vmem>>, vector<1x1x80x4xbf16>
    %56 = vector.shape_cast %55 : vector<1x1x80x4xbf16> to vector<80x4xbf16>
    %c9 = arith.constant 9 : index
    %c0_61 = arith.constant 0 : index
    %c0_62 = arith.constant 0 : index
    %57 = vector.load %arg5[%c9, %c0_61, %c0_62] : memref<27x4x8xbf16, #tpu.memory_space<vmem>>, vector<1x4x8xbf16>
    %58 = vector.shape_cast %57 : vector<1x4x8xbf16> to vector<4x8xbf16>
    %cst_63 = arith.constant dense<0.000000e+00> : vector<80x8xf32>
    %59 = tpu.matmul %56, %58, %cst_63 {dimension_numbers = #tpu.dot_dimension_numbers<[1], [0], [0], [1], [0, 0, 1, 1], [], []>} : vector<80x4xbf16>, vector<4x8xbf16>, vector<80x8xf32> -> vector<80x8xf32>
    %60 = arith.addf %54, %59 : vector<80x8xf32>
    %c0_64 = arith.constant 0 : index
    %c0_65 = arith.constant 0 : index
    %c1_66 = arith.constant 1 : index
    %c0_67 = arith.constant 0 : index
    %61 = vector.load %arg3[%c0_64, %c0_65, %c1_66, %c0_67] : memref<1x1x110x4xbf16, #tpu.memory_space<vmem>>, vector<1x1x80x4xbf16>
    %62 = vector.shape_cast %61 : vector<1x1x80x4xbf16> to vector<80x4xbf16>
    %c10_68 = arith.constant 10 : index
    %c0_69 = arith.constant 0 : index
    %c0_70 = arith.constant 0 : index
    %63 = vector.load %arg5[%c10_68, %c0_69, %c0_70] : memref<27x4x8xbf16, #tpu.memory_space<vmem>>, vector<1x4x8xbf16>
    %64 = vector.shape_cast %63 : vector<1x4x8xbf16> to vector<4x8xbf16>
    %cst_71 = arith.constant dense<0.000000e+00> : vector<80x8xf32>
    %65 = tpu.matmul %62, %64, %cst_71 {dimension_numbers = #tpu.dot_dimension_numbers<[1], [0], [0], [1], [0, 0, 1, 1], [], []>} : vector<80x4xbf16>, vector<4x8xbf16>, vector<80x8xf32> -> vector<80x8xf32>
    %66 = arith.addf %60, %65 : vector<80x8xf32>
    %c0_72 = arith.constant 0 : index
    %c0_73 = arith.constant 0 : index
    %c2_74 = arith.constant 2 : index
    %c0_75 = arith.constant 0 : index
    %67 = vector.load %arg3[%c0_72, %c0_73, %c2_74, %c0_75] : memref<1x1x110x4xbf16, #tpu.memory_space<vmem>>, vector<1x1x80x4xbf16>
    %68 = vector.shape_cast %67 : vector<1x1x80x4xbf16> to vector<80x4xbf16>
    %c11_76 = arith.constant 11 : index
    %c0_77 = arith.constant 0 : index
    %c0_78 = arith.constant 0 : index
    %69 = vector.load %arg5[%c11_76, %c0_77, %c0_78] : memref<27x4x8xbf16, #tpu.memory_space<vmem>>, vector<1x4x8xbf16>
    %70 = vector.shape_cast %69 : vector<1x4x8xbf16> to vector<4x8xbf16>
    %cst_79 = arith.constant dense<0.000000e+00> : vector<80x8xf32>
    %71 = tpu.matmul %68, %70, %cst_79 {dimension_numbers = #tpu.dot_dimension_numbers<[1], [0], [0], [1], [0, 0, 1, 1], [], []>} : vector<80x4xbf16>, vector<4x8xbf16>, vector<80x8xf32> -> vector<80x8xf32>
    %72 = arith.addf %66, %71 : vector<80x8xf32>
    %c0_80 = arith.constant 0 : index
    %c0_81 = arith.constant 0 : index
    %c10_82 = arith.constant 10 : index
    %c0_83 = arith.constant 0 : index
    %73 = vector.load %arg3[%c0_80, %c0_81, %c10_82, %c0_83] : memref<1x1x110x4xbf16, #tpu.memory_space<vmem>>, vector<1x1x80x4xbf16>
    %74 = vector.shape_cast %73 : vector<1x1x80x4xbf16> to vector<80x4xbf16>
    %c12_84 = arith.constant 12 : index
    %c0_85 = arith.constant 0 : index
    %c0_86 = arith.constant 0 : index
    %75 = vector.load %arg5[%c12_84, %c0_85, %c0_86] : memref<27x4x8xbf16, #tpu.memory_space<vmem>>, vector<1x4x8xbf16>
    %76 = vector.shape_cast %75 : vector<1x4x8xbf16> to vector<4x8xbf16>
    %cst_87 = arith.constant dense<0.000000e+00> : vector<80x8xf32>
    %77 = tpu.matmul %74, %76, %cst_87 {dimension_numbers = #tpu.dot_dimension_numbers<[1], [0], [0], [1], [0, 0, 1, 1], [], []>} : vector<80x4xbf16>, vector<4x8xbf16>, vector<80x8xf32> -> vector<80x8xf32>
    %78 = arith.addf %72, %77 : vector<80x8xf32>
    %c0_88 = arith.constant 0 : index
    %c0_89 = arith.constant 0 : index
    %c11_90 = arith.constant 11 : index
    %c0_91 = arith.constant 0 : index
    %79 = vector.load %arg3[%c0_88, %c0_89, %c11_90, %c0_91] : memref<1x1x110x4xbf16, #tpu.memory_space<vmem>>, vector<1x1x80x4xbf16>
    %80 = vector.shape_cast %79 : vector<1x1x80x4xbf16> to vector<80x4xbf16>
    %c13 = arith.constant 13 : index
    %c0_92 = arith.constant 0 : index
    %c0_93 = arith.constant 0 : index
    %81 = vector.load %arg5[%c13, %c0_92, %c0_93] : memref<27x4x8xbf16, #tpu.memory_space<vmem>>, vector<1x4x8xbf16>
    %82 = vector.shape_cast %81 : vector<1x4x8xbf16> to vector<4x8xbf16>
    %cst_94 = arith.constant dense<0.000000e+00> : vector<80x8xf32>
    %83 = tpu.matmul %80, %82, %cst_94 {dimension_numbers = #tpu.dot_dimension_numbers<[1], [0], [0], [1], [0, 0, 1, 1], [], []>} : vector<80x4xbf16>, vector<4x8xbf16>, vector<80x8xf32> -> vector<80x8xf32>
    %84 = arith.addf %78, %83 : vector<80x8xf32>
    %c0_95 = arith.constant 0 : index
    %c0_96 = arith.constant 0 : index
    %c12_97 = arith.constant 12 : index
    %c0_98 = arith.constant 0 : index
    %85 = vector.load %arg3[%c0_95, %c0_96, %c12_97, %c0_98] : memref<1x1x110x4xbf16, #tpu.memory_space<vmem>>, vector<1x1x80x4xbf16>
    %86 = vector.shape_cast %85 : vector<1x1x80x4xbf16> to vector<80x4xbf16>
    %c14 = arith.constant 14 : index
    %c0_99 = arith.constant 0 : index
    %c0_100 = arith.constant 0 : index
    %87 = vector.load %arg5[%c14, %c0_99, %c0_100] : memref<27x4x8xbf16, #tpu.memory_space<vmem>>, vector<1x4x8xbf16>
    %88 = vector.shape_cast %87 : vector<1x4x8xbf16> to vector<4x8xbf16>
    %cst_101 = arith.constant dense<0.000000e+00> : vector<80x8xf32>
    %89 = tpu.matmul %86, %88, %cst_101 {dimension_numbers = #tpu.dot_dimension_numbers<[1], [0], [0], [1], [0, 0, 1, 1], [], []>} : vector<80x4xbf16>, vector<4x8xbf16>, vector<80x8xf32> -> vector<80x8xf32>
    %90 = arith.addf %84, %89 : vector<80x8xf32>
    %c0_102 = arith.constant 0 : index
    %c0_103 = arith.constant 0 : index
    %c20_104 = arith.constant 20 : index
    %c0_105 = arith.constant 0 : index
    %91 = vector.load %arg3[%c0_102, %c0_103, %c20_104, %c0_105] : memref<1x1x110x4xbf16, #tpu.memory_space<vmem>>, vector<1x1x80x4xbf16>
    %92 = vector.shape_cast %91 : vector<1x1x80x4xbf16> to vector<80x4xbf16>
    %c15 = arith.constant 15 : index
    %c0_106 = arith.constant 0 : index
    %c0_107 = arith.constant 0 : index
    %93 = vector.load %arg5[%c15, %c0_106, %c0_107] : memref<27x4x8xbf16, #tpu.memory_space<vmem>>, vector<1x4x8xbf16>
    %94 = vector.shape_cast %93 : vector<1x4x8xbf16> to vector<4x8xbf16>
    %cst_108 = arith.constant dense<0.000000e+00> : vector<80x8xf32>
    %95 = tpu.matmul %92, %94, %cst_108 {dimension_numbers = #tpu.dot_dimension_numbers<[1], [0], [0], [1], [0, 0, 1, 1], [], []>} : vector<80x4xbf16>, vector<4x8xbf16>, vector<80x8xf32> -> vector<80x8xf32>
    %96 = arith.addf %90, %95 : vector<80x8xf32>
    %c0_109 = arith.constant 0 : index
    %c0_110 = arith.constant 0 : index
    %c21_111 = arith.constant 21 : index
    %c0_112 = arith.constant 0 : index
    %97 = vector.load %arg3[%c0_109, %c0_110, %c21_111, %c0_112] : memref<1x1x110x4xbf16, #tpu.memory_space<vmem>>, vector<1x1x80x4xbf16>
    %98 = vector.shape_cast %97 : vector<1x1x80x4xbf16> to vector<80x4xbf16>
    %c16 = arith.constant 16 : index
    %c0_113 = arith.constant 0 : index
    %c0_114 = arith.constant 0 : index
    %99 = vector.load %arg5[%c16, %c0_113, %c0_114] : memref<27x4x8xbf16, #tpu.memory_space<vmem>>, vector<1x4x8xbf16>
    %100 = vector.shape_cast %99 : vector<1x4x8xbf16> to vector<4x8xbf16>
    %cst_115 = arith.constant dense<0.000000e+00> : vector<80x8xf32>
    %101 = tpu.matmul %98, %100, %cst_115 {dimension_numbers = #tpu.dot_dimension_numbers<[1], [0], [0], [1], [0, 0, 1, 1], [], []>} : vector<80x4xbf16>, vector<4x8xbf16>, vector<80x8xf32> -> vector<80x8xf32>
    %102 = arith.addf %96, %101 : vector<80x8xf32>
    %c0_116 = arith.constant 0 : index
    %c0_117 = arith.constant 0 : index
    %c22_118 = arith.constant 22 : index
    %c0_119 = arith.constant 0 : index
    %103 = vector.load %arg3[%c0_116, %c0_117, %c22_118, %c0_119] : memref<1x1x110x4xbf16, #tpu.memory_space<vmem>>, vector<1x1x80x4xbf16>
    %104 = vector.shape_cast %103 : vector<1x1x80x4xbf16> to vector<80x4xbf16>
    %c17 = arith.constant 17 : index
    %c0_120 = arith.constant 0 : index
    %c0_121 = arith.constant 0 : index
    %105 = vector.load %arg5[%c17, %c0_120, %c0_121] : memref<27x4x8xbf16, #tpu.memory_space<vmem>>, vector<1x4x8xbf16>
    %106 = vector.shape_cast %105 : vector<1x4x8xbf16> to vector<4x8xbf16>
    %cst_122 = arith.constant dense<0.000000e+00> : vector<80x8xf32>
    %107 = tpu.matmul %104, %106, %cst_122 {dimension_numbers = #tpu.dot_dimension_numbers<[1], [0], [0], [1], [0, 0, 1, 1], [], []>} : vector<80x4xbf16>, vector<4x8xbf16>, vector<80x8xf32> -> vector<80x8xf32>
    %108 = arith.addf %102, %107 : vector<80x8xf32>
    %c0_123 = arith.constant 0 : index
    %c0_124 = arith.constant 0 : index
    %c0_125 = arith.constant 0 : index
    %c0_126 = arith.constant 0 : index
    %109 = vector.load %arg4[%c0_123, %c0_124, %c0_125, %c0_126] : memref<1x1x110x4xbf16, #tpu.memory_space<vmem>>, vector<1x1x80x4xbf16>
    %110 = vector.shape_cast %109 : vector<1x1x80x4xbf16> to vector<80x4xbf16>
    %c18 = arith.constant 18 : index
    %c0_127 = arith.constant 0 : index
    %c0_128 = arith.constant 0 : index
    %111 = vector.load %arg5[%c18, %c0_127, %c0_128] : memref<27x4x8xbf16, #tpu.memory_space<vmem>>, vector<1x4x8xbf16>
    %112 = vector.shape_cast %111 : vector<1x4x8xbf16> to vector<4x8xbf16>
    %cst_129 = arith.constant dense<0.000000e+00> : vector<80x8xf32>
    %113 = tpu.matmul %110, %112, %cst_129 {dimension_numbers = #tpu.dot_dimension_numbers<[1], [0], [0], [1], [0, 0, 1, 1], [], []>} : vector<80x4xbf16>, vector<4x8xbf16>, vector<80x8xf32> -> vector<80x8xf32>
    %114 = arith.addf %108, %113 : vector<80x8xf32>
    %c0_130 = arith.constant 0 : index
    %c0_131 = arith.constant 0 : index
    %c1_132 = arith.constant 1 : index
    %c0_133 = arith.constant 0 : index
    %115 = vector.load %arg4[%c0_130, %c0_131, %c1_132, %c0_133] : memref<1x1x110x4xbf16, #tpu.memory_space<vmem>>, vector<1x1x80x4xbf16>
    %116 = vector.shape_cast %115 : vector<1x1x80x4xbf16> to vector<80x4xbf16>
    %c19 = arith.constant 19 : index
    %c0_134 = arith.constant 0 : index
    %c0_135 = arith.constant 0 : index
    %117 = vector.load %arg5[%c19, %c0_134, %c0_135] : memref<27x4x8xbf16, #tpu.memory_space<vmem>>, vector<1x4x8xbf16>
    %118 = vector.shape_cast %117 : vector<1x4x8xbf16> to vector<4x8xbf16>
    %cst_136 = arith.constant dense<0.000000e+00> : vector<80x8xf32>
    %119 = tpu.matmul %116, %118, %cst_136 {dimension_numbers = #tpu.dot_dimension_numbers<[1], [0], [0], [1], [0, 0, 1, 1], [], []>} : vector<80x4xbf16>, vector<4x8xbf16>, vector<80x8xf32> -> vector<80x8xf32>
    %120 = arith.addf %114, %119 : vector<80x8xf32>
    %c0_137 = arith.constant 0 : index
    %c0_138 = arith.constant 0 : index
    %c2_139 = arith.constant 2 : index
    %c0_140 = arith.constant 0 : index
    %121 = vector.load %arg4[%c0_137, %c0_138, %c2_139, %c0_140] : memref<1x1x110x4xbf16, #tpu.memory_space<vmem>>, vector<1x1x80x4xbf16>
    %122 = vector.shape_cast %121 : vector<1x1x80x4xbf16> to vector<80x4xbf16>
    %c20_141 = arith.constant 20 : index
    %c0_142 = arith.constant 0 : index
    %c0_143 = arith.constant 0 : index
    %123 = vector.load %arg5[%c20_141, %c0_142, %c0_143] : memref<27x4x8xbf16, #tpu.memory_space<vmem>>, vector<1x4x8xbf16>
    %124 = vector.shape_cast %123 : vector<1x4x8xbf16> to vector<4x8xbf16>
    %cst_144 = arith.constant dense<0.000000e+00> : vector<80x8xf32>
    %125 = tpu.matmul %122, %124, %cst_144 {dimension_numbers = #tpu.dot_dimension_numbers<[1], [0], [0], [1], [0, 0, 1, 1], [], []>} : vector<80x4xbf16>, vector<4x8xbf16>, vector<80x8xf32> -> vector<80x8xf32>
    %126 = arith.addf %120, %125 : vector<80x8xf32>
    %c0_145 = arith.constant 0 : index
    %c0_146 = arith.constant 0 : index
    %c10_147 = arith.constant 10 : index
    %c0_148 = arith.constant 0 : index
    %127 = vector.load %arg4[%c0_145, %c0_146, %c10_147, %c0_148] : memref<1x1x110x4xbf16, #tpu.memory_space<vmem>>, vector<1x1x80x4xbf16>
    %128 = vector.shape_cast %127 : vector<1x1x80x4xbf16> to vector<80x4xbf16>
    %c21_149 = arith.constant 21 : index
    %c0_150 = arith.constant 0 : index
    %c0_151 = arith.constant 0 : index
    %129 = vector.load %arg5[%c21_149, %c0_150, %c0_151] : memref<27x4x8xbf16, #tpu.memory_space<vmem>>, vector<1x4x8xbf16>
    %130 = vector.shape_cast %129 : vector<1x4x8xbf16> to vector<4x8xbf16>
    %cst_152 = arith.constant dense<0.000000e+00> : vector<80x8xf32>
    %131 = tpu.matmul %128, %130, %cst_152 {dimension_numbers = #tpu.dot_dimension_numbers<[1], [0], [0], [1], [0, 0, 1, 1], [], []>} : vector<80x4xbf16>, vector<4x8xbf16>, vector<80x8xf32> -> vector<80x8xf32>
    %132 = arith.addf %126, %131 : vector<80x8xf32>
    %c0_153 = arith.constant 0 : index
    %c0_154 = arith.constant 0 : index
    %c11_155 = arith.constant 11 : index
    %c0_156 = arith.constant 0 : index
    %133 = vector.load %arg4[%c0_153, %c0_154, %c11_155, %c0_156] : memref<1x1x110x4xbf16, #tpu.memory_space<vmem>>, vector<1x1x80x4xbf16>
    %134 = vector.shape_cast %133 : vector<1x1x80x4xbf16> to vector<80x4xbf16>
    %c22_157 = arith.constant 22 : index
    %c0_158 = arith.constant 0 : index
    %c0_159 = arith.constant 0 : index
    %135 = vector.load %arg5[%c22_157, %c0_158, %c0_159] : memref<27x4x8xbf16, #tpu.memory_space<vmem>>, vector<1x4x8xbf16>
    %136 = vector.shape_cast %135 : vector<1x4x8xbf16> to vector<4x8xbf16>
    %cst_160 = arith.constant dense<0.000000e+00> : vector<80x8xf32>
    %137 = tpu.matmul %134, %136, %cst_160 {dimension_numbers = #tpu.dot_dimension_numbers<[1], [0], [0], [1], [0, 0, 1, 1], [], []>} : vector<80x4xbf16>, vector<4x8xbf16>, vector<80x8xf32> -> vector<80x8xf32>
    %138 = arith.addf %132, %137 : vector<80x8xf32>
    %c0_161 = arith.constant 0 : index
    %c0_162 = arith.constant 0 : index
    %c12_163 = arith.constant 12 : index
    %c0_164 = arith.constant 0 : index
    %139 = vector.load %arg4[%c0_161, %c0_162, %c12_163, %c0_164] : memref<1x1x110x4xbf16, #tpu.memory_space<vmem>>, vector<1x1x80x4xbf16>
    %140 = vector.shape_cast %139 : vector<1x1x80x4xbf16> to vector<80x4xbf16>
    %c23 = arith.constant 23 : index
    %c0_165 = arith.constant 0 : index
    %c0_166 = arith.constant 0 : index
    %141 = vector.load %arg5[%c23, %c0_165, %c0_166] : memref<27x4x8xbf16, #tpu.memory_space<vmem>>, vector<1x4x8xbf16>
    %142 = vector.shape_cast %141 : vector<1x4x8xbf16> to vector<4x8xbf16>
    %cst_167 = arith.constant dense<0.000000e+00> : vector<80x8xf32>
    %143 = tpu.matmul %140, %142, %cst_167 {dimension_numbers = #tpu.dot_dimension_numbers<[1], [0], [0], [1], [0, 0, 1, 1], [], []>} : vector<80x4xbf16>, vector<4x8xbf16>, vector<80x8xf32> -> vector<80x8xf32>
    %144 = arith.addf %138, %143 : vector<80x8xf32>
    %c0_168 = arith.constant 0 : index
    %c0_169 = arith.constant 0 : index
    %c20_170 = arith.constant 20 : index
    %c0_171 = arith.constant 0 : index
    %145 = vector.load %arg4[%c0_168, %c0_169, %c20_170, %c0_171] : memref<1x1x110x4xbf16, #tpu.memory_space<vmem>>, vector<1x1x80x4xbf16>
    %146 = vector.shape_cast %145 : vector<1x1x80x4xbf16> to vector<80x4xbf16>
    %c24 = arith.constant 24 : index
    %c0_172 = arith.constant 0 : index
    %c0_173 = arith.constant 0 : index
    %147 = vector.load %arg5[%c24, %c0_172, %c0_173] : memref<27x4x8xbf16, #tpu.memory_space<vmem>>, vector<1x4x8xbf16>
    %148 = vector.shape_cast %147 : vector<1x4x8xbf16> to vector<4x8xbf16>
    %cst_174 = arith.constant dense<0.000000e+00> : vector<80x8xf32>
    %149 = tpu.matmul %146, %148, %cst_174 {dimension_numbers = #tpu.dot_dimension_numbers<[1], [0], [0], [1], [0, 0, 1, 1], [], []>} : vector<80x4xbf16>, vector<4x8xbf16>, vector<80x8xf32> -> vector<80x8xf32>
    %150 = arith.addf %144, %149 : vector<80x8xf32>
    %c0_175 = arith.constant 0 : index
    %c0_176 = arith.constant 0 : index
    %c21_177 = arith.constant 21 : index
    %c0_178 = arith.constant 0 : index
    %151 = vector.load %arg4[%c0_175, %c0_176, %c21_177, %c0_178] : memref<1x1x110x4xbf16, #tpu.memory_space<vmem>>, vector<1x1x80x4xbf16>
    %152 = vector.shape_cast %151 : vector<1x1x80x4xbf16> to vector<80x4xbf16>
    %c25 = arith.constant 25 : index
    %c0_179 = arith.constant 0 : index
    %c0_180 = arith.constant 0 : index
    %153 = vector.load %arg5[%c25, %c0_179, %c0_180] : memref<27x4x8xbf16, #tpu.memory_space<vmem>>, vector<1x4x8xbf16>
    %154 = vector.shape_cast %153 : vector<1x4x8xbf16> to vector<4x8xbf16>
    %cst_181 = arith.constant dense<0.000000e+00> : vector<80x8xf32>
    %155 = tpu.matmul %152, %154, %cst_181 {dimension_numbers = #tpu.dot_dimension_numbers<[1], [0], [0], [1], [0, 0, 1, 1], [], []>} : vector<80x4xbf16>, vector<4x8xbf16>, vector<80x8xf32> -> vector<80x8xf32>
    %156 = arith.addf %150, %155 : vector<80x8xf32>
    %c0_182 = arith.constant 0 : index
    %c0_183 = arith.constant 0 : index
    %c22_184 = arith.constant 22 : index
    %c0_185 = arith.constant 0 : index
    %157 = vector.load %arg4[%c0_182, %c0_183, %c22_184, %c0_185] : memref<1x1x110x4xbf16, #tpu.memory_space<vmem>>, vector<1x1x80x4xbf16>
    %158 = vector.shape_cast %157 : vector<1x1x80x4xbf16> to vector<80x4xbf16>
    %c26 = arith.constant 26 : index
    %c0_186 = arith.constant 0 : index
    %c0_187 = arith.constant 0 : index
    %159 = vector.load %arg5[%c26, %c0_186, %c0_187] : memref<27x4x8xbf16, #tpu.memory_space<vmem>>, vector<1x4x8xbf16>
    %160 = vector.shape_cast %159 : vector<1x4x8xbf16> to vector<4x8xbf16>
    %cst_188 = arith.constant dense<0.000000e+00> : vector<80x8xf32>
    %161 = tpu.matmul %158, %160, %cst_188 {dimension_numbers = #tpu.dot_dimension_numbers<[1], [0], [0], [1], [0, 0, 1, 1], [], []>} : vector<80x4xbf16>, vector<4x8xbf16>, vector<80x8xf32> -> vector<80x8xf32>
    %162 = arith.addf %156, %161 : vector<80x8xf32>
    %163 = arith.truncf %162 : vector<80x8xf32> to vector<80x8xbf16>
    %c0_189 = arith.constant 0 : index
    %c0_190 = arith.constant 0 : index
    %c0_191 = arith.constant 0 : index
    %c0_192 = arith.constant 0 : index
    %164 = vector.load %arg6[%c0_189, %c0_190, %c0_191, %c0_192] : memref<1x1x80x8xbf16, #tpu.memory_space<vmem>>, vector<1x1x80x8xbf16>
    %165 = vector.shape_cast %164 : vector<1x1x80x8xbf16> to vector<80x8xbf16>
    %166 = vector.shape_cast %163 : vector<80x8xbf16> to vector<1x1x80x8xbf16>
    tpu.vector_store %arg6[%c0_189, %c0_190, %c0_191, %c0_192], %166 {strides = array<i32>} : memref<1x1x80x8xbf16, #tpu.memory_space<vmem>>, vector<1x1x80x8xbf16>,
    %167 = tpu.iota {dimensions = array<i32: 0>} : vector<80x1xi32>
    %c10_i32 = arith.constant 10 : i32
    %c0_i32 = arith.constant 0 : i32
    %168 = arith.cmpi eq, %c10_i32, %c0_i32 : i32
    %c1_i32 = arith.constant 1 : i32
    %169 = arith.select %168, %c1_i32, %c10_i32 : i32
    %170 = vector.broadcast %169 : i32 to vector<80x1xi32>
    %171 = arith.remsi %167, %170 : vector<80x1xi32>
    %c0_i32_193 = arith.constant 0 : i32
    %172 = vector.broadcast %c0_i32_193 : i32 to vector<80x1xi32>
    %173 = arith.cmpi ne, %171, %172 : vector<80x1xi32>
    %c0_i32_194 = arith.constant 0 : i32
    %174 = vector.broadcast %c0_i32_194 : i32 to vector<80x1xi32>
    %175 = arith.cmpi slt, %171, %174 : vector<80x1xi32>
    %c0_i32_195 = arith.constant 0 : i32
    %176 = arith.cmpi slt, %169, %c0_i32_195 : i32
    %177 = vector.broadcast %176 : i1 to vector<80x1xi1>
    %178 = vector.broadcast %177 : vector<80x1xi1> to vector<80x1xi1>
    %179 = arith.xori %175, %178 : vector<80x1xi1>
    %180 = arith.andi %179, %173 : vector<80x1xi1>
    %181 = vector.broadcast %169 : i32 to vector<80x1xi32>
    %182 = arith.addi %171, %181 : vector<80x1xi32>
    %183 = arith.select %180, %182, %171 : vector<80x1xi1>, vector<80x1xi32>
    %c8_i32 = arith.constant 8 : i32
    %184 = vector.broadcast %c8_i32 : i32 to vector<80x1xi32>
    %185 = arith.cmpi slt, %183, %184 : vector<80x1xi32>
    %cst_196 = arith.constant 0.000000e+00 : f32
    %186 = vector.shape_cast %185 : vector<80x1xi1> to vector<80x1xi1>
    %187 = vector.broadcast %186 : vector<80x1xi1> to vector<80x8xi1>
    %188 = vector.broadcast %cst_196 : f32 to vector<80x8xf32>
    %189 = arith.select %187, %162, %188 : vector<80x8xi1>, vector<80x8xf32>
    %cst_197 = arith.constant dense<0.000000e+00> : vector<8xf32>
    %190 = vector.multi_reduction <add>, %189, %cst_197 [0] : vector<80x8xf32> to vector<8xf32>
    %191 = vector.shape_cast %190 : vector<8xf32> to vector<1x8xf32>
    %c0_198 = arith.constant 0 : index
    %c0_199 = arith.constant 0 : index
    %c0_200 = arith.constant 0 : index
    %c0_201 = arith.constant 0 : index
    %192 = vector.load %arg7[%c0_198, %c0_199, %c0_200, %c0_201] : memref<1x1x2x8xf32, #tpu.memory_space<vmem>>, vector<1x1x1x8xf32>
    %193 = vector.shape_cast %192 : vector<1x1x1x8xf32> to vector<1x8xf32>
    %194 = vector.shape_cast %191 : vector<1x8xf32> to vector<1x1x1x8xf32>
    tpu.vector_store %arg7[%c0_198, %c0_199, %c0_200, %c0_201], %194 {strides = array<i32>} : memref<1x1x2x8xf32, #tpu.memory_space<vmem>>, vector<1x1x1x8xf32>,
    %195 = arith.mulf %189, %162 : vector<80x8xf32>
    %cst_202 = arith.constant dense<0.000000e+00> : vector<8xf32>
    %196 = vector.multi_reduction <add>, %195, %cst_202 [0] : vector<80x8xf32> to vector<8xf32>
    %197 = vector.shape_cast %196 : vector<8xf32> to vector<1x8xf32>
    %c0_203 = arith.constant 0 : index
    %c0_204 = arith.constant 0 : index
    %c1_205 = arith.constant 1 : index
    %c0_206 = arith.constant 0 : index
    %198 = vector.load %arg7[%c0_203, %c0_204, %c1_205, %c0_206] : memref<1x1x2x8xf32, #tpu.memory_space<vmem>>, vector<1x1x1x8xf32>
    %199 = vector.shape_cast %198 : vector<1x1x1x8xf32> to vector<1x8xf32>
    %200 = vector.shape_cast %197 : vector<1x8xf32> to vector<1x1x1x8xf32>
    tpu.vector_store %arg7[%c0_203, %c0_204, %c1_205, %c0_206], %200 {strides = array<i32>} : memref<1x1x2x8xf32, #tpu.memory_space<vmem>>, vector<1x1x1x8xf32>,
    return
  }
  func.func @transform_0(%arg0: i32, %arg1: i32) -> (i32, i32, i32, i32) {
    %c0_i32 = arith.constant 0 : i32
    %0 = arith.addi %arg1, %c0_i32 : i32
    %c0_i32_0 = arith.constant 0 : i32
    %c0_i32_1 = arith.constant 0 : i32
    %c0_i32_2 = arith.constant 0 : i32
    return %arg0, %0, %c0_i32_0, %c0_i32_1 : i32, i32, i32, i32
  }
  func.func @transform_1(%arg0: i32, %arg1: i32) -> (i32, i32, i32, i32) {
    %c1_i32 = arith.constant 1 : i32
    %0 = arith.addi %arg1, %c1_i32 : i32
    %c0_i32 = arith.constant 0 : i32
    %c0_i32_0 = arith.constant 0 : i32
    %c0_i32_1 = arith.constant 0 : i32
    return %arg0, %0, %c0_i32, %c0_i32_0 : i32, i32, i32, i32
  }
  func.func @transform_2(%arg0: i32, %arg1: i32) -> (i32, i32, i32, i32) {
    %c2_i32 = arith.constant 2 : i32
    %0 = arith.addi %arg1, %c2_i32 : i32
    %c0_i32 = arith.constant 0 : i32
    %c0_i32_0 = arith.constant 0 : i32
    %c0_i32_1 = arith.constant 0 : i32
    return %arg0, %0, %c0_i32, %c0_i32_0 : i32, i32, i32, i32
  }
  func.func @transform_3(%arg0: i32, %arg1: i32) -> (i32, i32, i32) {
    %c0_i32 = arith.constant 0 : i32
    %c0_i32_0 = arith.constant 0 : i32
    %c0_i32_1 = arith.constant 0 : i32
    %c0_i32_2 = arith.constant 0 : i32
    return %c0_i32, %c0_i32_0, %c0_i32_1 : i32, i32, i32
  }
  func.func @transform_4(%arg0: i32, %arg1: i32) -> (i32, i32, i32, i32) {
    %c0_i32 = arith.constant 0 : i32
    %c0_i32_0 = arith.constant 0 : i32
    %c0_i32_1 = arith.constant 0 : i32
    return %arg0, %arg1, %c0_i32, %c0_i32_0 : i32, i32, i32, i32
  }
  func.func @transform_5(%arg0: i32, %arg1: i32) -> (i32, i32, i32, i32) {
    %c0_i32 = arith.constant 0 : i32
    %c0_i32_0 = arith.constant 0 : i32
    %c0_i32_1 = arith.constant 0 : i32
    return %arg0, %arg1, %c0_i32, %c0_i32_0 : i32, i32, i32, i32
  }
}

module attributes {stable_mosaic.version = 11 : i64} {
  func.func @_bn_relu_kernel(%arg0: i32, %arg1: i32, %arg2: memref<1x1x80x8xbf16, #tpu.memory_space<vmem>>, %arg3: memref<2x8xf32, #tpu.memory_space<vmem>>, %arg4: memref<1x1x80x8xf32, #tpu.memory_space<vmem>>) attributes {dimension_semantics = [#tpu.dimension_semantics<parallel>, #tpu.dimension_semantics<parallel>], iteration_bounds = array<i64: 2, 8>, scalar_prefetch = 0 : i64, scratch_operands = 0 : i64, tpu.core_type = #tpu.core_type<tc>, window_params = [{transform_indices = @transform_0, window_bounds = array<i64: 1, 1, 80, 8>}, {pipeline_mode = #tpu.pipeline_mode<synchronous>, transform_indices = @transform_1, window_bounds = array<i64: 2, 8>}, {transform_indices = @transform_2, window_bounds = array<i64: 1, 1, 80, 8>}]} {
    %c0 = arith.constant 0 : index
    %c0_0 = arith.constant 0 : index
    %c0_1 = arith.constant 0 : index
    %c0_2 = arith.constant 0 : index
    %0 = vector.load %arg2[%c0, %c0_0, %c0_1, %c0_2] : memref<1x1x80x8xbf16, #tpu.memory_space<vmem>>, vector<1x1x80x8xbf16>
    %1 = vector.shape_cast %0 : vector<1x1x80x8xbf16> to vector<80x8xbf16>
    %2 = arith.extf %1 : vector<80x8xbf16> to vector<80x8xf32>
    %c0_3 = arith.constant 0 : index
    %c0_4 = arith.constant 0 : index
    %3 = vector.load %arg3[%c0_3, %c0_4] : memref<2x8xf32, #tpu.memory_space<vmem>>, vector<1x8xf32>
    %c1 = arith.constant 1 : index
    %c0_5 = arith.constant 0 : index
    %4 = vector.load %arg3[%c1, %c0_5] : memref<2x8xf32, #tpu.memory_space<vmem>>, vector<1x8xf32>
    %5 = vector.broadcast %3 : vector<1x8xf32> to vector<80x8xf32>
    %6 = arith.mulf %2, %5 : vector<80x8xf32>
    %7 = vector.broadcast %4 : vector<1x8xf32> to vector<80x8xf32>
    %8 = arith.addf %6, %7 : vector<80x8xf32>
    %cst = arith.constant 0.000000e+00 : f32
    %9 = vector.broadcast %cst : f32 to vector<80x8xf32>
    %10 = arith.maximumf %8, %9 : vector<80x8xf32>
    %c0_6 = arith.constant 0 : index
    %c0_7 = arith.constant 0 : index
    %c0_8 = arith.constant 0 : index
    %c0_9 = arith.constant 0 : index
    %11 = vector.load %arg4[%c0_6, %c0_7, %c0_8, %c0_9] : memref<1x1x80x8xf32, #tpu.memory_space<vmem>>, vector<1x1x80x8xf32>
    %12 = vector.shape_cast %11 : vector<1x1x80x8xf32> to vector<80x8xf32>
    %13 = vector.shape_cast %10 : vector<80x8xf32> to vector<1x1x80x8xf32>
    tpu.vector_store %arg4[%c0_6, %c0_7, %c0_8, %c0_9], %13 {strides = array<i32>} : memref<1x1x80x8xf32, #tpu.memory_space<vmem>>, vector<1x1x80x8xf32>,
    return
  }
  func.func @transform_0(%arg0: i32, %arg1: i32) -> (i32, i32, i32, i32) {
    %c0_i32 = arith.constant 0 : i32
    %c0_i32_0 = arith.constant 0 : i32
    %c0_i32_1 = arith.constant 0 : i32
    return %arg0, %arg1, %c0_i32, %c0_i32_0 : i32, i32, i32, i32
  }
  func.func @transform_1(%arg0: i32, %arg1: i32) -> (i32, i32) {
    %c0_i32 = arith.constant 0 : i32
    %c0_i32_0 = arith.constant 0 : i32
    %c0_i32_1 = arith.constant 0 : i32
    return %c0_i32, %c0_i32_0 : i32, i32
  }
  func.func @transform_2(%arg0: i32, %arg1: i32) -> (i32, i32, i32, i32) {
    %c0_i32 = arith.constant 0 : i32
    %c0_i32_0 = arith.constant 0 : i32
    %c0_i32_1 = arith.constant 0 : i32
    return %arg0, %arg1, %c0_i32, %c0_i32_0 : i32, i32, i32, i32
  }
}

</mosaic_0001>

<llo_original>
// kernel: down_forward.5
$region0: #{down_forward.5}
  #allocation0 [shape = 'u32[]', space=smem, size = 0x4, offset = 0x4, fixed_abs, tag = 'smem constant byte address 0x4 - core index']
  #allocation1 [shape = 'u32[144,128]{1,0:T(1,128)}', space=vmem, size = 0x12000, scoped, tag = 'internal scratch']
  %s0 = inlined_call_operand.vmem [shape: f32[8,8,512], index: 0, kind: input, shape index: {}]
  %s1 = inlined_call_operand.vmem [shape: f32[8,512], index: 1, kind: output, shape index: {}]
  %s2 = sld [smem:[#allocation0]]
  $region14: #{down_forward.5} parent=0
    _
  %s4 = ssub.s32 1, %s2
  %s5 = scalar_select 0, %s4, %s2
  // Predicated region
  $region2: #{down_forward.5} parent=0 // pred_check
    _
  $region3: #{down_forward.5} parent=0 // pred_check_branch
    %7 = sbr.rel (0) target = $region5
  $region4: #{down_forward.5} parent=0 // pred_region
    _
  $region5: #{down_forward.5} parent=0 // pred_fallthru
    _
  %v8 = vld [vmem:[%s0] sm:$0xff]
  %v9 = vld [vmem:[%s0 + $0x8] sm:$0xff]
  %v10 = vld [vmem:[%s0 + $0x10] sm:$0xff]
  %v11 = vld [vmem:[%s0 + $0x18] sm:$0xff]
  %v12 = vld [vmem:[%s0 + $0x20] sm:$0xff]
  %v13 = vld [vmem:[%s0 + $0x28] sm:$0xff]
  %v14 = vld [vmem:[%s0 + $0x30] sm:$0xff]
  %v15 = vld [vmem:[%s0 + $0x38] sm:$0xff]
  %v16 = vld [vmem:[%s0 + $0x40] sm:$0xff]
  %v17 = vld [vmem:[%s0 + $0x48] sm:$0xff]
  %v18 = vld [vmem:[%s0 + $0x50] sm:$0xff]
  %v19 = vld [vmem:[%s0 + $0x58] sm:$0xff]
  %v20 = vld [vmem:[%s0 + $0x60] sm:$0xff]
  %v21 = vld [vmem:[%s0 + $0x68] sm:$0xff]
  %v22 = vld [vmem:[%s0 + $0x70] sm:$0xff]
  %v23 = vld [vmem:[%s0 + $0x78] sm:$0xff]
  %v24 = vld [vmem:[%s0 + $0x80] sm:$0xff]
  %v25 = vld [vmem:[%s0 + $0x88] sm:$0xff]
  %v26 = vld [vmem:[%s0 + $0x90] sm:$0xff]
  %v27 = vld [vmem:[%s0 + $0x98] sm:$0xff]
  %v28 = vld [vmem:[%s0 + $0xa0] sm:$0xff]
  %v29 = vld [vmem:[%s0 + $0xa8] sm:$0xff]
  %v30 = vld [vmem:[%s0 + $0xb0] sm:$0xff]
  %v31 = vld [vmem:[%s0 + $0xb8] sm:$0xff]
  %v32 = vld [vmem:[%s0 + $0xc0] sm:$0xff]
  %v33 = vld [vmem:[%s0 + $0xc8] sm:$0xff]
  %v34 = vld [vmem:[%s0 + $0xd0] sm:$0xff]
  %v35 = vld [vmem:[%s0 + $0xd8] sm:$0xff]
  %v36 = vld [vmem:[%s0 + $0xe0] sm:$0xff]
  %v37 = vld [vmem:[%s0 + $0xe8] sm:$0xff]
  %v38 = vld [vmem:[%s0 + $0xf0] sm:$0xff]
  %v39 = vld [vmem:[%s0 + $0xf8] sm:$0xff]
  %v40 = vmax.f32 %v8, %v12
  %v41 = vmax.f32 %v40, %v16
  %v42 = vmax.f32 %v41, %v20
  %v43 = vmax.f32 %v42, %v24
  %v44 = vmax.f32 %v43, %v28
  %v45 = vmax.f32 %v44, %v32
  %v46 = vmax.f32 %v45, %v36
  %v47 = vmax.f32 %v9, %v13
  %v48 = vmax.f32 %v47, %v17
  %v49 = vmax.f32 %v48, %v21
  %v50 = vmax.f32 %v49, %v25
  %v51 = vmax.f32 %v50, %v29
  %v52 = vmax.f32 %v51, %v33
  %v53 = vmax.f32 %v52, %v37
  %v54 = vmax.f32 %v10, %v14
  %v55 = vmax.f32 %v54, %v18
  %v56 = vmax.f32 %v55, %v22
  %v57 = vmax.f32 %v56, %v26
  %v58 = vmax.f32 %v57, %v30
  %v59 = vmax.f32 %v58, %v34
  %v60 = vmax.f32 %v59, %v38
  %v61 = vmax.f32 %v11, %v15
  %v62 = vmax.f32 %v61, %v19
  %v63 = vmax.f32 %v62, %v23
  %v64 = vmax.f32 %v63, %v27
  %v65 = vmax.f32 %v64, %v31
  %v66 = vmax.f32 %v65, %v35
  %v67 = vmax.f32 %v66, %v39
  %68 = vst [vmem:[%s1] sm:$0xff] %v46
  %69 = vst [vmem:[%s1 + $0x8] sm:$0xff] %v53
  %70 = vst [vmem:[%s1 + $0x10] sm:$0xff] %v60
  %71 = vst [vmem:[%s1 + $0x18] sm:$0xff] %v67
  // Predicated region
  $region6: #{down_forward.5} parent=0 // pred_check
    _
  $region7: #{down_forward.5} parent=0 // pred_check_branch
    %73 = sbr.rel (0) target = $region9
  $region8: #{down_forward.5} parent=0 // pred_region
    _
  $region9: #{down_forward.5} parent=0 // pred_fallthru
    _
  // Predicated region
  $region10: #{down_forward.5} parent=0 // pred_check
    _
  $region11: #{down_forward.5} parent=0 // pred_check_branch
    %75 = sbr.rel (0) target = $region13
  $region12: #{down_forward.5} parent=0 // pred_region
    _
  $region13: #{down_forward.5} parent=0 // pred_fallthru
    _

// kernel: down_forward.6
$region0: #{down_forward.6}
  #allocation0 [shape = 'u32[]', space=smem, size = 0x4, offset = 0x4, fixed_abs, tag = 'smem constant byte address 0x4 - core index']
  #allocation1 [shape = 'u32[144,128]{1,0:T(1,128)}', space=vmem, size = 0x12000, scoped, tag = 'internal scratch']
  %s0 = inlined_call_operand.hbm [shape: bf16[2,10,110,4], index: 0, kind: input, shape index: {}, may-alias: {0,1,2}]
  %s1 = inlined_call_operand.hbm [shape: bf16[2,10,110,4], index: 1, kind: input, shape index: {}, may-alias: {0,1,2}]
  %s2 = inlined_call_operand.hbm [shape: bf16[2,10,110,4], index: 2, kind: input, shape index: {}, may-alias: {0,1,2}]
  %s3 = inlined_call_operand.hbm [shape: bf16[27,4,4], index: 3, kind: input, shape index: {}]
  %s4 = inlined_call_operand.hbm [shape: bf16[2,8,80,4], index: 4, kind: output, shape index: {0}]
  %s5 = inlined_call_operand.hbm [shape: f32[2,8,2,4], index: 5, kind: output, shape index: {1}]
  %6 = xla_tuple %s4, %s5
  %s7 = sld [smem:[#allocation0]]
  $region73: #{down_forward.6} parent=0
    _
  %s9 = ssub.s32 1, %s7
  %s10 = scalar_select 0, %s9, %s7
  $region1: #{down_forward.6} parent=0
    #allocation2 [shape = 'u8[57344]{0}', space=vmem, size = 0xe000, scoped, tag = 'input window, operand 0']
    #allocation3 [shape = 's32[2]{0}', space=sflag, size = 0x8, scoped, tag = 'scoped memory for down_forward.6']
    #allocation4 [shape = 's32[2]{0}', space=sflag, size = 0x8, scoped, tag = 'scoped memory for down_forward.6']
    #allocation5 [shape = 'u8[57344]{0}', space=vmem, size = 0xe000, scoped, tag = 'input window, operand 1']
    #allocation6 [shape = 's32[2]{0}', space=sflag, size = 0x8, scoped, tag = 'scoped memory for down_forward.6']
    #allocation7 [shape = 'u8[57344]{0}', space=vmem, size = 0xe000, scoped, tag = 'input window, operand 2']
    #allocation8 [shape = 'u8[27648]{0}', space=vmem, size = 0x6c00, scoped, tag = 'input window, operand 3, single buffered']
    #allocation9 [shape = 's32[1]{0}', space=sflag, size = 0x4, scoped, tag = 'scoped memory for down_forward.6']
    #allocation10 [shape = 'u8[40960]{0}', space=vmem, size = 0xa000, scoped, tag = 'output window, operand 0']
    #allocation11 [shape = 'u8[2048]{0}', space=vmem, size = 0x800, scoped, tag = 'output window, operand 1']
    #allocation12 [shape = 's32[2]{0}', space=sflag, size = 0x8, scoped, tag = 'scoped memory for down_forward.6']
    %11 = vsyncpa [#allocation3], 0
    %s12 = scalar_lea.sflag [#allocation3], 1
    %13 = vsyncpa %s12, 0
    %14 = vsyncpa [#allocation6], 0
    %s15 = scalar_lea.sflag [#allocation6], 1
    %16 = vsyncpa %s15, 0
    %17 = vsyncpa [#allocation9], 0
    %18 = vsyncpa [#allocation4], 0
    %s19 = scalar_lea.sflag [#allocation4], 1
    %20 = vsyncpa %s19, 0
    %21 = vsyncpa [#allocation12], 0
    %s22 = scalar_lea.sflag [#allocation12], 1
    %23 = vsyncpa %s22, 0
    loop: start=0, step=1, limit=18
    $region2: #{down_forward.6} parent=1 // loop_pre_header
      _
    $region3: #{down_forward.6} parent=1 // loop_header
      %s25 = sphi 0, %s29
      %p26 = scmp.ge.s32.totalorder %s25, 18
      %s32 = sphi 0, %s44
      %s33 = sphi 0, %s40
      %s34 = sphi 0, %s32
      %s35 = sphi 0, %s33
      %s36 = sphi 0, %s34
      %s37 = sphi 0, %s35
      %s49 = sphi 0, %s51
      %s52 = sphi 0, %s49
      %s53 = sphi 0, %s52
      %s69 = sphi 0, %s53
      %s79 = sphi 0, %s81
      %s82 = sphi 0, %s79
      %s83 = sphi 0, %s82
      %s99 = sphi 0, %s83
      %s109 = sphi 0, %s111
      %s112 = sphi 0, %s109
      %s113 = sphi 0, %s112
      %s129 = sphi 0, %s113
      %s133 = sphi 0, %s133
      %s135 = sphi 0, %s133
      %s136 = sphi 0, %s135
      %s150 = sphi 0, %s136
      %s158 = sphi 0, %s160
      %s161 = sphi 0, %s158
      %s162 = sphi 0, %s161
      %s178 = sphi 0, %s162
      %s186 = sphi 0, %s188
      %s189 = sphi 0, %s186
      %s190 = sphi 0, %s189
      %s206 = sphi 0, %s190
    $region4: #{down_forward.6} parent=1 // loop_header_branch
      %28 = sbr.rel (%p26) target = $region8
    $region5: #{down_forward.6} parent=1 // loop_body
      %s30 = ssub.s32 %s25, 1
      %s31 = ssub.s32 %s25, 2
      %s38 = sadd.s32 1, %s33
      %p39 = scmp.ge.s32.totalorder %s38, 8
      %s40 = scalar_select %p39, 0, %s38
      %s41 = sadd.s32 1, %s32
      %s42 = scalar_select %p39, %s41, %s32
      %p43 = scmp.ge.s32.totalorder %s42, 2
      %s44 = scalar_select %p43, 0, %s42
      %s45 = ssub.s32 %s32, %s44
      %s46 = ssub.s32 %s33, %s40
      %s47 = sor.u32 %s45, %s46
      %p48 = scmp.eq.s32.totalorder %s47, 0
      %s50 = sadd.s32 %s49, 1
      %s51 = scalar_select %p48, %s49, %s50
      %p54 = pneg %p48
      %p55 = scmp.eq.s32.totalorder %s25, 15
      %p56 = por %p54, %p55
      %p57 = scmp.ne.s32.totalorder %s49, %s52
      %p58 = scmp.eq.s32.totalorder %s25, 0
      %p59 = por %p57, %p58
      %p60 = scmp.ne.s32.totalorder %s49, %s52
      %p61 = scmp.eq.s32.totalorder %s30, 15
      %p62 = por %p60, %p61
      %p63 = scmp.ne.s32.totalorder %s52, %s53
      %p64 = scmp.eq.s32.totalorder %s30, 0
      %p65 = por %p63, %p64
      %p66 = scmp.ne.s32.totalorder %s52, %s53
      %p67 = scmp.eq.s32.totalorder %s31, 15
      %p68 = por %p66, %p67
      %p70 = scmp.ne.s32.totalorder %s53, %s69
      %p71 = scmp.eq.s32.totalorder %s31, 0
      %p72 = por %p70, %p71
      %s73 = sadd.s32 %s33, 1
      %s74 = sadd.s32 %s40, 1
      %s75 = ssub.s32 %s32, %s44
      %s76 = ssub.s32 %s73, %s74
      %s77 = sor.u32 %s75, %s76
      %p78 = scmp.eq.s32.totalorder %s77, 0
      %s80 = sadd.s32 %s79, 1
      %s81 = scalar_select %p78, %s79, %s80
      %p84 = pneg %p78
      %p85 = scmp.eq.s32.totalorder %s25, 15
      %p86 = por %p84, %p85
      %p87 = scmp.ne.s32.totalorder %s79, %s82
      %p88 = scmp.eq.s32.totalorder %s25, 0
      %p89 = por %p87, %p88
      %p90 = scmp.ne.s32.totalorder %s79, %s82
      %p91 = scmp.eq.s32.totalorder %s30, 15
      %p92 = por %p90, %p91
      %p93 = scmp.ne.s32.totalorder %s82, %s83
      %p94 = scmp.eq.s32.totalorder %s30, 0
      %p95 = por %p93, %p94
      %p96 = scmp.ne.s32.totalorder %s82, %s83
      %p97 = scmp.eq.s32.totalorder %s31, 15
      %p98 = por %p96, %p97
      %p100 = scmp.ne.s32.totalorder %s83, %s99
      %p101 = scmp.eq.s32.totalorder %s31, 0
      %p102 = por %p100, %p101
      %s103 = sadd.s32 %s33, 2
      %s104 = sadd.s32 %s40, 2
      %s105 = ssub.s32 %s32, %s44
      %s106 = ssub.s32 %s103, %s104
      %s107 = sor.u32 %s105, %s106
      %p108 = scmp.eq.s32.totalorder %s107, 0
      %s110 = sadd.s32 %s109, 1
      %s111 = scalar_select %p108, %s109, %s110
      %p114 = pneg %p108
      %p115 = scmp.eq.s32.totalorder %s25, 15
      %p116 = por %p114, %p115
      %p117 = scmp.ne.s32.totalorder %s109, %s112
      %p118 = scmp.eq.s32.totalorder %s25, 0
      %p119 = por %p117, %p118
      %p120 = scmp.ne.s32.totalorder %s109, %s112
      %p121 = scmp.eq.s32.totalorder %s30, 15
      %p122 = por %p120, %p121
      %p123 = scmp.ne.s32.totalorder %s112, %s113
      %p124 = scmp.eq.s32.totalorder %s30, 0
      %p125 = por %p123, %p124
      %p126 = scmp.ne.s32.totalorder %s112, %s113
      %p127 = scmp.eq.s32.totalorder %s31, 15
      %p128 = por %p126, %p127
      %p130 = scmp.ne.s32.totalorder %s113, %s129
      %p131 = scmp.eq.s32.totalorder %s31, 0
      %p132 = por %p130, %p131
      %s134 = sadd.s32 %s133, 1
      %p137 = scmp.eq.s32.totalorder %s25, 15
      %p138 = scmp.ne.s32.totalorder %s133, %s135
      %p139 = scmp.eq.s32.totalorder %s25, 0
      %p140 = por %p138, %p139
      %p141 = scmp.ne.s32.totalorder %s133, %s135
      %p142 = scmp.eq.s32.totalorder %s30, 15
      %p143 = por %p141, %p142
      %p144 = scmp.ne.s32.totalorder %s135, %s136
      %p145 = scmp.eq.s32.totalorder %s30, 0
      %p146 = por %p144, %p145
      %p147 = scmp.ne.s32.totalorder %s135, %s136
      %p148 = scmp.eq.s32.totalorder %s31, 15
      %p149 = por %p147, %p148
      %p151 = scmp.ne.s32.totalorder %s136, %s150
      %p152 = scmp.eq.s32.totalorder %s31, 0
      %p153 = por %p151, %p152
      %s154 = ssub.s32 %s32, %s44
      %s155 = ssub.s32 %s33, %s40
      %s156 = sor.u32 %s154, %s155
      %p157 = scmp.eq.s32.totalorder %s156, 0
      %s159 = sadd.s32 %s158, 1
      %s160 = scalar_select %p157, %s158, %s159
      %p163 = pneg %p157
      %p164 = scmp.eq.s32.totalorder %s25, 15
      %p165 = por %p163, %p164
      %p166 = scmp.ne.s32.totalorder %s158, %s161
      %p167 = scmp.eq.s32.totalorder %s25, 0
      %p168 = por %p166, %p167
      %p169 = scmp.ne.s32.totalorder %s158, %s161
      %p170 = scmp.eq.s32.totalorder %s30, 15
      %p171 = por %p169, %p170
      %p172 = scmp.ne.s32.totalorder %s161, %s162
      %p173 = scmp.eq.s32.totalorder %s30, 0
      %p174 = por %p172, %p173
      %p175 = scmp.ne.s32.totalorder %s161, %s162
      %p176 = scmp.eq.s32.totalorder %s31, 15
      %p177 = por %p175, %p176
      %p179 = scmp.ne.s32.totalorder %s162, %s178
      %p180 = scmp.eq.s32.totalorder %s31, 0
      %p181 = por %p179, %p180
      %s182 = ssub.s32 %s32, %s44
      %s183 = ssub.s32 %s33, %s40
      %s184 = sor.u32 %s182, %s183
      %p185 = scmp.eq.s32.totalorder %s184, 0
      %s187 = sadd.s32 %s186, 1
      %s188 = scalar_select %p185, %s186, %s187
      %p191 = pneg %p185
      %p192 = scmp.eq.s32.totalorder %s25, 15
      %p193 = por %p191, %p192
      %p194 = scmp.ne.s32.totalorder %s186, %s189
      %p195 = scmp.eq.s32.totalorder %s25, 0
      %p196 = por %p194, %p195
      %p197 = scmp.ne.s32.totalorder %s186, %s189
      %p198 = scmp.eq.s32.totalorder %s30, 15
      %p199 = por %p197, %p198
      %p200 = scmp.ne.s32.totalorder %s189, %s190
      %p201 = scmp.eq.s32.totalorder %s30, 0
      %p202 = por %p200, %p201
      %p203 = scmp.ne.s32.totalorder %s189, %s190
      %p204 = scmp.eq.s32.totalorder %s31, 15
      %p205 = por %p203, %p204
      %p207 = scmp.ne.s32.totalorder %s190, %s206
      %p208 = scmp.eq.s32.totalorder %s31, 0
      %p209 = por %p207, %p208
      %p210 = scmp.le.s32.totalorder 1, %s25
      %p211 = scmp.lt.s32.totalorder %s25, 17
      %p212 = pnand %p210, %p211
      %p213 = pneg %p212
      // Predicated region
      $region9: #{down_forward.6} parent=5 // pred_check
        _
      $region10: #{down_forward.6} parent=5 // pred_check_branch
        %215 = sbr.rel (%p212) target = $region12
      $region11: #{down_forward.6} parent=5 // pred_region
        %s216 = ssub.s32 %s25, 1
        // Predicated region
        $region13: #{down_forward.6} parent=11 // pred_check
          %p217 = pneg %p146
        $region14: #{down_forward.6} parent=11 // pred_check_branch
          %219 = sbr.rel (%p217) target = $region16
        $region15: #{down_forward.6} parent=11 // pred_region
          %s221 = ssub.s32 864, 864
          %222 = vsyncadd [#allocation9], %s221
          %s223 = sshll.u32 [#allocation8], 4
          %s224 = int_to_ptr.vmem [resolvable:$true] %s223
          %229 = dma.hbm_to_vmem [thread:$0]  %s3, 864, %s224, [#allocation9], 32, 32, 2
        $region16: #{down_forward.6} parent=11 // pred_fallthru
          _
      $region12: #{down_forward.6} parent=5 // pred_fallthru
        _
      %p230 = scmp.lt.s32.totalorder %s25, 16
      // Predicated region
      $region17: #{down_forward.6} parent=5 // pred_check
        %p231 = pneg %p230
      $region18: #{down_forward.6} parent=5 // pred_check_branch
        %233 = sbr.rel (%p231) target = $region20
      $region19: #{down_forward.6} parent=5 // pred_region
        // Predicated region
        $region21: #{down_forward.6} parent=19 // pred_check
          %p234 = pneg %p59
        $region22: #{down_forward.6} parent=19 // pred_check_branch
          %236 = sbr.rel (%p234) target = $region24
        $region23: #{down_forward.6} parent=19 // pred_region
          %s237 = sand.u32 %s49, 1
          %s238 = scalar_lea.sflag [#allocation3], %s237
          %s239 = sand.u32 %s49, 1
          %s240 = smul.addr %s239, 56
          %s241 = scalar_lea.vmem [#allocation2], %s240
          %s243 = ssub.s32 896, 896
          %244 = vsyncadd %s238, %s243
          %s245 = smul.addr %s33, 14
          %s246 = smul.addr %s32, 140
          %s247 = sadd.s32 %s245, %s246
          %s248 = smul.addr %s247, 64
          %s249 = scalar_lea.hbm %s0, %s248
          %s250 = sshll.u32 %s241, 4
          %s251 = int_to_ptr.vmem [resolvable:$true] %s250
          %256 = dma.hbm_to_vmem [thread:$0]  %s249, 896, %s251, %s238, 64, 64, 4
        $region24: #{down_forward.6} parent=19 // pred_fallthru
          _
        // Predicated region
        $region25: #{down_forward.6} parent=19 // pred_check
          %p257 = pneg %p89
        $region26: #{down_forward.6} parent=19 // pred_check_branch
          %259 = sbr.rel (%p257) target = $region28
        $region27: #{down_forward.6} parent=19 // pred_region
          %s260 = sand.u32 %s25, 1
          %s261 = scalar_lea.sflag [#allocation6], %s260
          %s262 = sand.u32 %s79, 1
          %s263 = smul.addr %s262, 56
          %s264 = scalar_lea.vmem [#allocation5], %s263
          %s265 = sadd.s32 %s33, 1
          %s267 = ssub.s32 896, 896
          %268 = vsyncadd %s261, %s267
          %s269 = smul.addr %s265, 14
          %s270 = smul.addr %s32, 140
          %s271 = sadd.s32 %s269, %s270
          %s272 = smul.addr %s271, 64
          %s273 = scalar_lea.hbm %s1, %s272
          %s274 = sshll.u32 %s264, 4
          %s275 = int_to_ptr.vmem [resolvable:$true] %s274
          %280 = dma.hbm_to_vmem [thread:$0]  %s273, 896, %s275, %s261, 64, 64, 4
        $region28: #{down_forward.6} parent=19 // pred_fallthru
          _
        // Predicated region
        $region29: #{down_forward.6} parent=19 // pred_check
          %p281 = pneg %p119
        $region30: #{down_forward.6} parent=19 // pred_check_branch
          %283 = sbr.rel (%p281) target = $region32
        $region31: #{down_forward.6} parent=19 // pred_region
          %s284 = sand.u32 %s25, 1
          %s285 = scalar_lea.sflag [#allocation6], %s284
          %s286 = sand.u32 %s109, 1
          %s287 = smul.addr %s286, 56
          %s288 = scalar_lea.vmem [#allocation7], %s287
          %s289 = sadd.s32 %s33, 2
          %s291 = ssub.s32 896, 896
          %292 = vsyncadd %s285, %s291
          %s293 = smul.addr %s289, 14
          %s294 = smul.addr %s32, 140
          %s295 = sadd.s32 %s293, %s294
          %s296 = smul.addr %s295, 64
          %s297 = scalar_lea.hbm %s2, %s296
          %s298 = sshll.u32 %s288, 4
          %s299 = int_to_ptr.vmem [resolvable:$true] %s298
          %304 = dma.hbm_to_vmem [thread:$0]  %s297, 896, %s299, %s285, 64, 64, 4
        $region32: #{down_forward.6} parent=19 // pred_fallthru
          _
      $region20: #{down_forward.6} parent=5 // pred_fallthru
        _
      %p305 = scmp.le.s32.totalorder 1, %s25
      %p306 = scmp.lt.s32.totalorder %s25, 17
      %p307 = pnand %p305, %p306
      %p308 = pneg %p307
      // Predicated region
      $region33: #{down_forward.6} parent=5 // pred_check
        _
      $region34: #{down_forward.6} parent=5 // pred_check_branch
        %310 = sbr.rel (%p307) target = $region36
      $region35: #{down_forward.6} parent=5 // pred_region
        %s311 = ssub.s32 %s25, 1
        %s312 = sand.u32 %s52, 1
        %s313 = scalar_lea.sflag [#allocation3], %s312
        %s314 = sand.u32 %s52, 1
        %s315 = smul.addr %s314, 56
        %s316 = scalar_lea.vmem [#allocation2], %s315
        // Predicated region
        $region37: #{down_forward.6} parent=35 // pred_check
          %p317 = pneg %p65
        $region38: #{down_forward.6} parent=35 // pred_check_branch
          %319 = sbr.rel (%p317) target = $region40
        $region39: #{down_forward.6} parent=35 // pred_region
          %320 = dma.done %s313, 896
        $region40: #{down_forward.6} parent=35 // pred_fallthru
          _
        %s321 = sand.u32 %s30, 1
        %s322 = scalar_lea.sflag [#allocation6], %s321
        %s323 = sand.u32 %s82, 1
        %s324 = smul.addr %s323, 56
        %s325 = scalar_lea.vmem [#allocation5], %s324
        // Predicated region
        $region41: #{down_forward.6} parent=35 // pred_check
          %p326 = pneg %p95
        $region42: #{down_forward.6} parent=35 // pred_check_branch
          %328 = sbr.rel (%p326) target = $region44
        $region43: #{down_forward.6} parent=35 // pred_region
          %329 = dma.done %s322, 896
        $region44: #{down_forward.6} parent=35 // pred_fallthru
          _
        %s330 = sand.u32 %s30, 1
        %s331 = scalar_lea.sflag [#allocation6], %s330
        %s332 = sand.u32 %s112, 1
        %s333 = smul.addr %s332, 56
        %s334 = scalar_lea.vmem [#allocation7], %s333
        // Predicated region
        $region45: #{down_forward.6} parent=35 // pred_check
          %p335 = pneg %p125
        $region46: #{down_forward.6} parent=35 // pred_check_branch
          %337 = sbr.rel (%p335) target = $region48
        $region47: #{down_forward.6} parent=35 // pred_region
          %338 = dma.done %s331, 896
        $region48: #{down_forward.6} parent=35 // pred_fallthru
          _
        // Predicated region
        $region49: #{down_forward.6} parent=35 // pred_check
          %p339 = pneg %p146
        $region50: #{down_forward.6} parent=35 // pred_check_branch
          %341 = sbr.rel (%p339) target = $region52
        $region51: #{down_forward.6} parent=35 // pred_region
          %342 = dma.done [#allocation9], 864
        $region52: #{down_forward.6} parent=35 // pred_fallthru
          _
        %s343 = sand.u32 %s52, 1
        %s344 = scalar_lea.sflag [#allocation3], %s343
        %s345 = sand.u32 %s52, 1
        %s346 = smul.addr %s345, 56
        %s347 = scalar_lea.vmem [#allocation2], %s346
        %p348 = pneg %p65
        %p349 = pneg %p62
        %s350 = sand.u32 %s30, 1
        %s351 = scalar_lea.sflag [#allocation6], %s350
        %s352 = sand.u32 %s82, 1
        %s353 = smul.addr %s352, 56
        %s354 = scalar_lea.vmem [#allocation5], %s353
        %p355 = pneg %p95
        %p356 = pneg %p92
        %s357 = sand.u32 %s30, 1
        %s358 = scalar_lea.sflag [#allocation6], %s357
        %s359 = sand.u32 %s112, 1
        %s360 = smul.addr %s359, 56
        %s361 = scalar_lea.vmem [#allocation7], %s360
        %p362 = pneg %p125
        %p363 = pneg %p122
        %p364 = pneg %p146
        %p365 = pneg %p143
        %p366 = pneg %p174
        %p367 = pneg %p171
        %s368 = sand.u32 %s161, 1
        %s369 = scalar_lea.sflag [#allocation4], %s368
        %s370 = sand.u32 %s161, 1
        %s371 = smul.addr %s370, 40
        %s372 = scalar_lea.vmem [#allocation10], %s371
        %p373 = pneg %p202
        %p374 = pneg %p199
        %s375 = sand.u32 %s189, 1
        %s376 = scalar_lea.sflag [#allocation12], %s375
        %s377 = sand.u32 %s189, 1
        %s378 = smul.addr %s377, 2
        %s379 = scalar_lea.vmem [#allocation11], %s378
        %s380 = sadd.s32 %s35, 1
        %s381 = sadd.s32 %s35, 2
        %v383 = vld [vmem:[%s316] sm:$0xf]
        %v384 = vld [vmem:[%s316 + $0x4] sm:$0xf]
        %v385 = vld [vmem:[%s316 + $0x8] sm:$0xf]
        %v386 = vld [vmem:[%s316 + $0xc] sm:$0xf]
        %v387 = vld [vmem:[%s316 + $0x10] sm:$0xf]
        %v388 = vld [vmem:[%s316 + $0x14] sm:$0xf]
        %v389 = vld [vmem:[%s316 + $0x18] sm:$0xf]
        %v390 = vld [vmem:[%s316 + $0x1c] sm:$0xf]
        %v391 = vld [vmem:[%s316 + $0x20] sm:$0xf]
        %v392 = vld [vmem:[%s316 + $0x24] sm:$0xf]
        %v393 = vld [vmem:[#allocation8] sm:$0x3]
        %v394 = vld [vmem:[%s316 + $0x28] sm:$0x1]
        %s395 = scalar_lea.vmem [#allocation8], 2
        %v396 = vld [vmem:[%s395] sm:$0x3]
        %v408 = vunpack.c.l.b16 %v383
        %v409 = vunpack.c.l.b16 %v384
        %v410 = vunpack.c.l.b16 %v385
        %v411 = vunpack.c.l.b16 %v386
        %v412 = vunpack.c.l.b16 %v387
        %v413 = vunpack.c.l.b16 %v388
        %v414 = vunpack.c.l.b16 %v389
        %v415 = vunpack.c.l.b16 %v390
        %v416 = vunpack.c.l.b16 %v391
        %v417 = vunpack.c.l.b16 %v392
        %v418 = vunpack.c.l.b16 %v394
        %v419 = vpack.c.b16 %v409, %v408
        %v420 = vpack.c.b16 %v411, %v410
        %v421 = vpack.c.b16 %v413, %v412
        %v422 = vpack.c.b16 %v415, %v414
        %v423 = vpack.c.b16 %v417, %v416
        %v424 = vpack.c.b16 %v418, %v418
        %vm425 = vsmask.f32 7424
        %v427 = vshrl.u32 %v419, 16
        %v429 = vshll.u32 %v419, 16
        %v431 = vrot.slane %v429, 1
        %v432 = vor.u32 %v427, %v431
        %v434 = vshll.u32 %v420, 16
        %v436 = vrot.slane %v434, 1
        %v437 = vsel %vm425, %v432, %v436
        %v438 = vshrl.u32 %v420, 16
        %v440 = vor.u32 %v438, %v436
        %v442 = vshll.u32 %v421, 16
        %v444 = vrot.slane %v442, 1
        %v445 = vsel %vm425, %v440, %v444
        %v446 = vshrl.u32 %v421, 16
        %v448 = vor.u32 %v446, %v444
        %v450 = vshll.u32 %v422, 16
        %v452 = vrot.slane %v450, 1
        %v453 = vsel %vm425, %v448, %v452
        %v454 = vshrl.u32 %v422, 16
        %v456 = vor.u32 %v454, %v452
        %v458 = vshll.u32 %v423, 16
        %v460 = vrot.slane %v458, 1
        %v461 = vsel %vm425, %v456, %v460
        %v462 = vshrl.u32 %v423, 16
        %v464 = vor.u32 %v462, %v460
        %v466 = vshll.u32 %v424, 16
        %v468 = vrot.slane %v466, 1
        %v469 = vsel %vm425, %v464, %v468
        %vm470 = vcmask 31744
        %v472 = vsel %vm470, %v437, 0
        %v475 = vsel %vm470, %v445, 0
        %v478 = vsel %vm470, %v453, 0
        %v481 = vsel %vm470, %v461, 0
        %v484 = vsel %vm470, %v469, 0
        %vm486 = vcmask 1041408
        %v488 = vsel %vm486, %v396, 0
        %490 = vmatprep.subr.bf16.mxu0 0
        %491 = vmatpush1.bf16.msra.mxu0 %v488
        %492 = vmatprep.subr.bf16.mxu0 0
        %493 = vmatpush1.bf16.msra.mxu0 0
        %494 = vmatprep.subr.bf16.mxu0 0
        %495 = vmatpush1.bf16.msra.mxu0 0
        %496 = vmatprep.subr.bf16.mxu0 0
        %497 = vmatpush1.bf16.msra.mxu0 0
        %498 = vmatprep.subr.bf16.mxu0 0
        %499 = vmatpush1.bf16.msra.mxu0 0
        %500 = vmatprep.subr.bf16.mxu0 0
        %501 = vmatpush1.bf16.msra.mxu0 0
        %502 = vmatprep.subr.bf16.mxu0 0
        %503 = vmatpush1.bf16.msra.mxu0 0
        %504 = vmatprep.subr.bf16.mxu0 0
        %505 = vmatpush1.bf16.msra.mxu0 0
        %506 = vmatprep.subr.bf16.mxu0 0
        %507 = vmatpush1.bf16.msra.mxu0 0
        %508 = vmatprep.subr.bf16.mxu0 0
        %509 = vmatpush1.bf16.msra.mxu0 0
        %510 = vmatprep.subr.bf16.mxu0 0
        %511 = vmatpush1.bf16.msra.mxu0 0
        %512 = vmatprep.subr.bf16.mxu0 0
        %513 = vmatpush1.bf16.msra.mxu0 0
        %514 = vmatprep.subr.bf16.mxu0 0
        %515 = vmatpush1.bf16.msra.mxu0 0
        %516 = vmatprep.subr.bf16.mxu0 0
        %517 = vmatpush1.bf16.msra.mxu0 0
        %518 = vmatprep.subr.bf16.mxu0 0
        %519 = vmatpush1.bf16.msra.mxu0 0
        %520 = vmatprep.subr.bf16.mxu0 0
        %521 = vmatpush1.bf16.msra.mxu0 0
        %522 = vmatprep.mubr.bf16.mxu0 0
        %523 = vmatmul.mubr.bf16.gmra.mrb[0].mxu0 %v472
        %v524 = vpop.f32.mrb[0].mxu0
        %v525 = vadd.f32 0.0, %v524
        %v526 = vpop.f32.mrb[0].mxu0
        %v527 = vpop.f32.mrb[0].mxu0
        %v528 = vadd.f32 0.0, %v527
        %v529 = vpop.f32.mrb[0].mxu0
        %530 = vmatprep.mubr.bf16.mxu0 0
        %531 = vmatmul.mubr.bf16.gmra.mrb[0].mxu0 %v475
        %v532 = vpop.f32.mrb[0].mxu0
        %v533 = vadd.f32 0.0, %v532
        %v534 = vpop.f32.mrb[0].mxu0
        %v535 = vpop.f32.mrb[0].mxu0
        %v536 = vadd.f32 0.0, %v535
        %v537 = vpop.f32.mrb[0].mxu0
        %538 = vmatprep.mubr.bf16.mxu0 0
        %539 = vmatmul.mubr.bf16.gmra.mrb[0].mxu0 %v478
        %v540 = vpop.f32.mrb[0].mxu0
        %v541 = vadd.f32 0.0, %v540
        %v542 = vpop.f32.mrb[0].mxu0
        %v543 = vpop.f32.mrb[0].mxu0
        %v544 = vadd.f32 0.0, %v543
        %v545 = vpop.f32.mrb[0].mxu0
        %546 = vmatprep.mubr.bf16.mxu0 0
        %547 = vmatmul.mubr.bf16.gmra.mrb[0].mxu0 %v481
        %v548 = vpop.f32.mrb[0].mxu0
        %v549 = vadd.f32 0.0, %v548
        %v550 = vpop.f32.mrb[0].mxu0
        %v551 = vpop.f32.mrb[0].mxu0
        %v552 = vadd.f32 0.0, %v551
        %v553 = vpop.f32.mrb[0].mxu0
        %554 = vmatprep.mubr.bf16.mxu0 0
        %555 = vmatmul.mubr.bf16.gmra.mrb[0].mxu0 %v484
        %v556 = vpop.f32.mrb[0].mxu0
        %v557 = vadd.f32 0.0, %v556
        %v558 = vpop.f32.mrb[0].mxu0
        %v559 = vpop.f32.mrb[0].mxu0
        %v560 = vadd.f32 0.0, %v559
        %v561 = vpop.f32.mrb[0].mxu0
        %562 = vdwg.mxu0
        %v563 = vsel %vm470, %v419, 0
        %v565 = vsel %vm470, %v420, 0
        %v567 = vsel %vm470, %v421, 0
        %v569 = vsel %vm470, %v422, 0
        %v571 = vsel %vm470, %v423, 0
        %v574 = vsel %vm486, %v393, 0
        %576 = vmatprep.subr.bf16.mxu0 0
        %577 = vmatpush1.bf16.msra.mxu0 %v574
        %578 = vmatprep.subr.bf16.mxu0 0
        %579 = vmatpush1.bf16.msra.mxu0 0
        %580 = vmatprep.subr.bf16.mxu0 0
        %581 = vmatpush1.bf16.msra.mxu0 0
        %582 = vmatprep.subr.bf16.mxu0 0
        %583 = vmatpush1.bf16.msra.mxu0 0
        %584 = vmatprep.subr.bf16.mxu0 0
        %585 = vmatpush1.bf16.msra.mxu0 0
        %586 = vmatprep.subr.bf16.mxu0 0
        %587 = vmatpush1.bf16.msra.mxu0 0
        %588 = vmatprep.subr.bf16.mxu0 0
        %589 = vmatpush1.bf16.msra.mxu0 0
        %590 = vmatprep.subr.bf16.mxu0 0
        %591 = vmatpush1.bf16.msra.mxu0 0
        %592 = vmatprep.subr.bf16.mxu0 0
        %593 = vmatpush1.bf16.msra.mxu0 0
        %594 = vmatprep.subr.bf16.mxu0 0
        %595 = vmatpush1.bf16.msra.mxu0 0
        %596 = vmatprep.subr.bf16.mxu0 0
        %597 = vmatpush1.bf16.msra.mxu0 0
        %598 = vmatprep.subr.bf16.mxu0 0
        %599 = vmatpush1.bf16.msra.mxu0 0
        %600 = vmatprep.subr.bf16.mxu0 0
        %601 = vmatpush1.bf16.msra.mxu0 0
        %602 = vmatprep.subr.bf16.mxu0 0
        %603 = vmatpush1.bf16.msra.mxu0 0
        %604 = vmatprep.subr.bf16.mxu0 0
        %605 = vmatpush1.bf16.msra.mxu0 0
        %606 = vmatprep.subr.bf16.mxu0 0
        %607 = vmatpush1.bf16.msra.mxu0 0
        %608 = vmatprep.mubr.bf16.mxu0 0
        %609 = vmatmul.mubr.bf16.gmra.mrb[0].mxu0 %v563
        %v610 = vpop.f32.mrb[0].mxu0
        %v611 = vadd.f32 %v525, %v610
        %v612 = vpop.f32.mrb[0].mxu0
        %v613 = vpop.f32.mrb[0].mxu0
        %v614 = vadd.f32 %v528, %v613
        %v615 = vpop.f32.mrb[0].mxu0
        %616 = vmatprep.mubr.bf16.mxu0 0
        %617 = vmatmul.mubr.bf16.gmra.mrb[0].mxu0 %v565
        %v618 = vpop.f32.mrb[0].mxu0
        %v619 = vadd.f32 %v533, %v618
        %v620 = vpop.f32.mrb[0].mxu0
        %v621 = vpop.f32.mrb[0].mxu0
        %v622 = vadd.f32 %v536, %v621
        %v623 = vpop.f32.mrb[0].mxu0
        %624 = vmatprep.mubr.bf16.mxu0 0
        %625 = vmatmul.mubr.bf16.gmra.mrb[0].mxu0 %v567
        %v626 = vpop.f32.mrb[0].mxu0
        %v627 = vadd.f32 %v541, %v626
        %v628 = vpop.f32.mrb[0].mxu0
        %v629 = vpop.f32.mrb[0].mxu0
        %v630 = vadd.f32 %v544, %v629
        %v631 = vpop.f32.mrb[0].mxu0
        %632 = vmatprep.mubr.bf16.mxu0 0
        %633 = vmatmul.mubr.bf16.gmra.mrb[0].mxu0 %v569
        %v634 = vpop.f32.mrb[0].mxu0
        %v635 = vadd.f32 %v549, %v634
        %v636 = vpop.f32.mrb[0].mxu0
        %v637 = vpop.f32.mrb[0].mxu0
        %v638 = vadd.f32 %v552, %v637
        %v639 = vpop.f32.mrb[0].mxu0
        %640 = vmatprep.mubr.bf16.mxu0 0
        %641 = vmatmul.mubr.bf16.gmra.mrb[0].mxu0 %v571
        %v642 = vpop.f32.mrb[0].mxu0
        %v643 = vadd.f32 %v557, %v642
        %v644 = vpop.f32.mrb[0].mxu0
        %v645 = vpop.f32.mrb[0].mxu0
        %v646 = vadd.f32 %v560, %v645
        %v647 = vpop.f32.mrb[0].mxu0
        %648 = vdwg.mxu0
        %v649 = vld [vmem:[%s316] sm:$0xe]
        %s650 = scalar_lea.vmem [#allocation8], 4
        %v651 = vld [vmem:[%s650] sm:$0x3]
        %v653 = vunpack.c.l.b16 %v649
        %v654 = vpack.c.b16 %v409, %v653
        %vm655 = vcmask 1046528
        %v656 = vrot.slane %v654, 1
        %v657 = vrot.slane %v420, 1
        %v658 = vsel %vm655, %v656, %v657
        %v659 = vrot.slane %v421, 1
        %v660 = vsel %vm655, %v657, %v659
        %v661 = vrot.slane %v422, 1
        %v662 = vsel %vm655, %v659, %v661
        %v663 = vrot.slane %v423, 1
        %v664 = vsel %vm655, %v661, %v663
        %v665 = vrot.slane %v424, 1
        %v666 = vsel %vm655, %v663, %v665
        %v668 = vsel %vm470, %v658, 0
        %v671 = vsel %vm470, %v660, 0
        %v674 = vsel %vm470, %v662, 0
        %v677 = vsel %vm470, %v664, 0
        %v680 = vsel %vm470, %v666, 0
        %v683 = vsel %vm486, %v651, 0
        %685 = vmatprep.subr.bf16.mxu0 0
        %686 = vmatpush1.bf16.msra.mxu0 %v683
        %687 = vmatprep.subr.bf16.mxu0 0
        %688 = vmatpush1.bf16.msra.mxu0 0
        %689 = vmatprep.subr.bf16.mxu0 0
        %690 = vmatpush1.bf16.msra.mxu0 0
        %691 = vmatprep.subr.bf16.mxu0 0
        %692 = vmatpush1.bf16.msra.mxu0 0
        %693 = vmatprep.subr.bf16.mxu0 0
        %694 = vmatpush1.bf16.msra.mxu0 0
        %695 = vmatprep.subr.bf16.mxu0 0
        %696 = vmatpush1.bf16.msra.mxu0 0
        %697 = vmatprep.subr.bf16.mxu0 0
        %698 = vmatpush1.bf16.msra.mxu0 0
        %699 = vmatprep.subr.bf16.mxu0 0
        %700 = vmatpush1.bf16.msra.mxu0 0
        %701 = vmatprep.subr.bf16.mxu0 0
        %702 = vmatpush1.bf16.msra.mxu0 0
        %703 = vmatprep.subr.bf16.mxu0 0
        %704 = vmatpush1.bf16.msra.mxu0 0
        %705 = vmatprep.subr.bf16.mxu0 0
        %706 = vmatpush1.bf16.msra.mxu0 0
        %707 = vmatprep.subr.bf16.mxu0 0
        %708 = vmatpush1.bf16.msra.mxu0 0
        %709 = vmatprep.subr.bf16.mxu0 0
        %710 = vmatpush1.bf16.msra.mxu0 0
        %711 = vmatprep.subr.bf16.mxu0 0
        %712 = vmatpush1.bf16.msra.mxu0 0
        %713 = vmatprep.subr.bf16.mxu0 0
        %714 = vmatpush1.bf16.msra.mxu0 0
        %715 = vmatprep.subr.bf16.mxu0 0
        %716 = vmatpush1.bf16.msra.mxu0 0
        %717 = vmatprep.mubr.bf16.mxu0 0
        %718 = vmatmul.mubr.bf16.gmra.mrb[0].mxu0 %v668
        %v719 = vpop.f32.mrb[0].mxu0
        %v720 = vadd.f32 0.0, %v719
        %v721 = vpop.f32.mrb[0].mxu0
        %v722 = vpop.f32.mrb[0].mxu0
        %v723 = vadd.f32 0.0, %v722
        %v724 = vpop.f32.mrb[0].mxu0
        %725 = vmatprep.mubr.bf16.mxu0 0
        %726 = vmatmul.mubr.bf16.gmra.mrb[0].mxu0 %v671
        %v727 = vpop.f32.mrb[0].mxu0
        %v728 = vadd.f32 0.0, %v727
        %v729 = vpop.f32.mrb[0].mxu0
        %v730 = vpop.f32.mrb[0].mxu0
        %v731 = vadd.f32 0.0, %v730
        %v732 = vpop.f32.mrb[0].mxu0
        %733 = vmatprep.mubr.bf16.mxu0 0
        %734 = vmatmul.mubr.bf16.gmra.mrb[0].mxu0 %v674
        %v735 = vpop.f32.mrb[0].mxu0
        %v736 = vadd.f32 0.0, %v735
        %v737 = vpop.f32.mrb[0].mxu0
        %v738 = vpop.f32.mrb[0].mxu0
        %v739 = vadd.f32 0.0, %v738
        %v740 = vpop.f32.mrb[0].mxu0
        %741 = vmatprep.mubr.bf16.mxu0 0
        %742 = vmatmul.mubr.bf16.gmra.mrb[0].mxu0 %v677
        %v743 = vpop.f32.mrb[0].mxu0
        %v744 = vadd.f32 0.0, %v743
        %v745 = vpop.f32.mrb[0].mxu0
        %v746 = vpop.f32.mrb[0].mxu0
        %v747 = vadd.f32 0.0, %v746
        %v748 = vpop.f32.mrb[0].mxu0
        %749 = vmatprep.mubr.bf16.mxu0 0
        %750 = vmatmul.mubr.bf16.gmra.mrb[0].mxu0 %v680
        %v751 = vpop.f32.mrb[0].mxu0
        %v752 = vadd.f32 0.0, %v751
        %v753 = vpop.f32.mrb[0].mxu0
        %v754 = vpop.f32.mrb[0].mxu0
        %v755 = vadd.f32 0.0, %v754
        %v756 = vpop.f32.mrb[0].mxu0
        %757 = vdwg.mxu0
        %v758 = vadd.f32 %v611, %v720
        %v759 = vadd.f32 %v614, %v723
        %v760 = vadd.f32 %v619, %v728
        %v761 = vadd.f32 %v622, %v731
        %v762 = vadd.f32 %v627, %v736
        %v763 = vadd.f32 %v630, %v739
        %v764 = vadd.f32 %v635, %v744
        %v765 = vadd.f32 %v638, %v747
        %v766 = vadd.f32 %v643, %v752
        %v767 = vadd.f32 %v646, %v755
        %v768 = vld [vmem:[%s316 + $0x4] sm:$0xe]
        %v769 = vld [vmem:[%s316 + $0x8] sm:$0xf]
        %v770 = vld [vmem:[%s316 + $0xc] sm:$0xf]
        %v771 = vld [vmem:[%s316 + $0x10] sm:$0xf]
        %v772 = vld [vmem:[%s316 + $0x14] sm:$0xf]
        %v773 = vld [vmem:[%s316 + $0x18] sm:$0xf]
        %v774 = vld [vmem:[%s316 + $0x1c] sm:$0xf]
        %v775 = vld [vmem:[%s316 + $0x20] sm:$0xf]
        %v776 = vld [vmem:[%s316 + $0x24] sm:$0xf]
        %v777 = vld [vmem:[%s316 + $0x28] sm:$0xf]
        %v778 = vld [vmem:[%s316 + $0x2c] sm:$0x1]
        %s779 = scalar_lea.vmem [#allocation8], 6
        %v780 = vld [vmem:[%s779] sm:$0x3]
        %v792 = vunpack.c.l.b16 %v768
        %v793 = vunpack.c.l.b16 %v769
        %v794 = vunpack.c.l.b16 %v770
        %v795 = vunpack.c.l.b16 %v771
        %v796 = vunpack.c.l.b16 %v772
        %v797 = vunpack.c.l.b16 %v773
        %v798 = vunpack.c.l.b16 %v774
        %v799 = vunpack.c.l.b16 %v775
        %v800 = vunpack.c.l.b16 %v776
        %v801 = vunpack.c.l.b16 %v777
        %v802 = vunpack.c.l.b16 %v778
        %v803 = vpack.c.b16 %v793, %v792
        %v804 = vpack.c.b16 %v795, %v794
        %v805 = vpack.c.b16 %v797, %v796
        %v806 = vpack.c.b16 %v799, %v798
        %v807 = vpack.c.b16 %v801, %v800
        %v808 = vpack.c.b16 %v802, %v802
        %v809 = vrot.slane %v803, 1
        %v810 = vrot.slane %v804, 1
        %v811 = vsel %vm655, %v809, %v810
        %v812 = vrot.slane %v805, 1
        %v813 = vsel %vm655, %v810, %v812
        %v814 = vrot.slane %v806, 1
        %v815 = vsel %vm655, %v812, %v814
        %v816 = vrot.slane %v807, 1
        %v817 = vsel %vm655, %v814, %v816
        %v818 = vrot.slane %v808, 1
        %v819 = vsel %vm655, %v816, %v818
        %v821 = vsel %vm470, %v811, 0
        %v824 = vsel %vm470, %v813, 0
        %v827 = vsel %vm470, %v815, 0
        %v830 = vsel %vm470, %v817, 0
        %v833 = vsel %vm470, %v819, 0
        %v836 = vsel %vm486, %v780, 0
        %838 = vmatprep.subr.bf16.mxu0 0
        %839 = vmatpush1.bf16.msra.mxu0 %v836
        %840 = vmatprep.subr.bf16.mxu0 0
        %841 = vmatpush1.bf16.msra.mxu0 0
        %842 = vmatprep.subr.bf16.mxu0 0
        %843 = vmatpush1.bf16.msra.mxu0 0
        %844 = vmatprep.subr.bf16.mxu0 0
        %845 = vmatpush1.bf16.msra.mxu0 0
        %846 = vmatprep.subr.bf16.mxu0 0
        %847 = vmatpush1.bf16.msra.mxu0 0
        %848 = vmatprep.subr.bf16.mxu0 0
        %849 = vmatpush1.bf16.msra.mxu0 0
        %850 = vmatprep.subr.bf16.mxu0 0
        %851 = vmatpush1.bf16.msra.mxu0 0
        %852 = vmatprep.subr.bf16.mxu0 0
        %853 = vmatpush1.bf16.msra.mxu0 0
        %854 = vmatprep.subr.bf16.mxu0 0
        %855 = vmatpush1.bf16.msra.mxu0 0
        %856 = vmatprep.subr.bf16.mxu0 0
        %857 = vmatpush1.bf16.msra.mxu0 0
        %858 = vmatprep.subr.bf16.mxu0 0
        %859 = vmatpush1.bf16.msra.mxu0 0
        %860 = vmatprep.subr.bf16.mxu0 0
        %861 = vmatpush1.bf16.msra.mxu0 0
        %862 = vmatprep.subr.bf16.mxu0 0
        %863 = vmatpush1.bf16.msra.mxu0 0
        %864 = vmatprep.subr.bf16.mxu0 0
        %865 = vmatpush1.bf16.msra.mxu0 0
        %866 = vmatprep.subr.bf16.mxu0 0
        %867 = vmatpush1.bf16.msra.mxu0 0
        %868 = vmatprep.subr.bf16.mxu0 0
        %869 = vmatpush1.bf16.msra.mxu0 0
        %870 = vmatprep.mubr.bf16.mxu0 0
        %871 = vmatmul.mubr.bf16.gmra.mrb[0].mxu0 %v821
        %v872 = vpop.f32.mrb[0].mxu0
        %v873 = vadd.f32 0.0, %v872
        %v874 = vpop.f32.mrb[0].mxu0
        %v875 = vpop.f32.mrb[0].mxu0
        %v876 = vadd.f32 0.0, %v875
        %v877 = vpop.f32.mrb[0].mxu0
        %878 = vmatprep.mubr.bf16.mxu0 0
        %879 = vmatmul.mubr.bf16.gmra.mrb[0].mxu0 %v824
        %v880 = vpop.f32.mrb[0].mxu0
        %v881 = vadd.f32 0.0, %v880
        %v882 = vpop.f32.mrb[0].mxu0
        %v883 = vpop.f32.mrb[0].mxu0
        %v884 = vadd.f32 0.0, %v883
        %v885 = vpop.f32.mrb[0].mxu0
        %886 = vmatprep.mubr.bf16.mxu0 0
        %887 = vmatmul.mubr.bf16.gmra.mrb[0].mxu0 %v827
        %v888 = vpop.f32.mrb[0].mxu0
        %v889 = vadd.f32 0.0, %v888
        %v890 = vpop.f32.mrb[0].mxu0
        %v891 = vpop.f32.mrb[0].mxu0
        %v892 = vadd.f32 0.0, %v891
        %v893 = vpop.f32.mrb[0].mxu0
        %894 = vmatprep.mubr.bf16.mxu0 0
        %895 = vmatmul.mubr.bf16.gmra.mrb[0].mxu0 %v830
        %v896 = vpop.f32.mrb[0].mxu0
        %v897 = vadd.f32 0.0, %v896
        %v898 = vpop.f32.mrb[0].mxu0
        %v899 = vpop.f32.mrb[0].mxu0
        %v900 = vadd.f32 0.0, %v899
        %v901 = vpop.f32.mrb[0].mxu0
        %902 = vmatprep.mubr.bf16.mxu0 0
        %903 = vmatmul.mubr.bf16.gmra.mrb[0].mxu0 %v833
        %v904 = vpop.f32.mrb[0].mxu0
        %v905 = vadd.f32 0.0, %v904
        %v906 = vpop.f32.mrb[0].mxu0
        %v907 = vpop.f32.mrb[0].mxu0
        %v908 = vadd.f32 0.0, %v907
        %v909 = vpop.f32.mrb[0].mxu0
        %910 = vdwg.mxu0
        %v911 = vadd.f32 %v758, %v873
        %v912 = vadd.f32 %v759, %v876
        %v913 = vadd.f32 %v760, %v881
        %v914 = vadd.f32 %v761, %v884
        %v915 = vadd.f32 %v762, %v889
        %v916 = vadd.f32 %v763, %v892
        %v917 = vadd.f32 %v764, %v897
        %v918 = vadd.f32 %v765, %v900
        %v919 = vadd.f32 %v766, %v905
        %v920 = vadd.f32 %v767, %v908
        %v921 = vld [vmem:[%s316 + $0x2c] sm:$0x3]
        %s922 = scalar_lea.vmem [#allocation8], 8
        %v923 = vld [vmem:[%s922] sm:$0x3]
        %v925 = vunpack.c.l.b16 %v921
        %v926 = vpack.c.b16 %v925, %v925
        %vm927 = vsmask.f32 6400
        %v929 = vshrl.u32 %v803, 16
        %v931 = vrot.slane %v929, 1
        %v932 = vshll.u32 %v803, 16
        %v934 = vrot.slane %v932, 2
        %v935 = vor.u32 %v931, %v934
        %v937 = vshrl.u32 %v804, 16
        %v939 = vrot.slane %v937, 1
        %v940 = vshll.u32 %v804, 16
        %v942 = vrot.slane %v940, 2
        %v943 = vor.u32 %v939, %v942
        %v944 = vsel %vm927, %v935, %v943
        %v946 = vshrl.u32 %v805, 16
        %v948 = vrot.slane %v946, 1
        %v949 = vshll.u32 %v805, 16
        %v951 = vrot.slane %v949, 2
        %v952 = vor.u32 %v948, %v951
        %v953 = vsel %vm927, %v943, %v952
        %v955 = vshrl.u32 %v806, 16
        %v957 = vrot.slane %v955, 1
        %v958 = vshll.u32 %v806, 16
        %v960 = vrot.slane %v958, 2
        %v961 = vor.u32 %v957, %v960
        %v962 = vsel %vm927, %v952, %v961
        %v964 = vshrl.u32 %v807, 16
        %v966 = vrot.slane %v964, 1
        %v967 = vshll.u32 %v807, 16
        %v969 = vrot.slane %v967, 2
        %v970 = vor.u32 %v966, %v969
        %v971 = vsel %vm927, %v961, %v970
        %v973 = vshrl.u32 %v926, 16
        %v975 = vrot.slane %v973, 1
        %v976 = vshll.u32 %v926, 16
        %v978 = vrot.slane %v976, 2
        %v979 = vor.u32 %v975, %v978
        %v980 = vsel %vm927, %v970, %v979
        %v982 = vsel %vm470, %v944, 0
        %v985 = vsel %vm470, %v953, 0
        %v988 = vsel %vm470, %v962, 0
        %v991 = vsel %vm470, %v971, 0
        %v994 = vsel %vm470, %v980, 0
        %v997 = vsel %vm486, %v923, 0
        %999 = vmatprep.subr.bf16.mxu0 0
        %1000 = vmatpush1.bf16.msra.mxu0 %v997
        %1001 = vmatprep.subr.bf16.mxu0 0
        %1002 = vmatpush1.bf16.msra.mxu0 0
        %1003 = vmatprep.subr.bf16.mxu0 0
        %1004 = vmatpush1.bf16.msra.mxu0 0
        %1005 = vmatprep.subr.bf16.mxu0 0
        %1006 = vmatpush1.bf16.msra.mxu0 0
        %1007 = vmatprep.subr.bf16.mxu0 0
        %1008 = vmatpush1.bf16.msra.mxu0 0
        %1009 = vmatprep.subr.bf16.mxu0 0
        %1010 = vmatpush1.bf16.msra.mxu0 0
        %1011 = vmatprep.subr.bf16.mxu0 0
        %1012 = vmatpush1.bf16.msra.mxu0 0
        %1013 = vmatprep.subr.bf16.mxu0 0
        %1014 = vmatpush1.bf16.msra.mxu0 0
        %1015 = vmatprep.subr.bf16.mxu0 0
        %1016 = vmatpush1.bf16.msra.mxu0 0
        %1017 = vmatprep.subr.bf16.mxu0 0
        %1018 = vmatpush1.bf16.msra.mxu0 0
        %1019 = vmatprep.subr.bf16.mxu0 0
        %1020 = vmatpush1.bf16.msra.mxu0 0
        %1021 = vmatprep.subr.bf16.mxu0 0
        %1022 = vmatpush1.bf16.msra.mxu0 0
        %1023 = vmatprep.subr.bf16.mxu0 0
        %1024 = vmatpush1.bf16.msra.mxu0 0
        %1025 = vmatprep.subr.bf16.mxu0 0
        %1026 = vmatpush1.bf16.msra.mxu0 0
        %1027 = vmatprep.subr.bf16.mxu0 0
        %1028 = vmatpush1.bf16.msra.mxu0 0
        %1029 = vmatprep.subr.bf16.mxu0 0
        %1030 = vmatpush1.bf16.msra.mxu0 0
        %1031 = vmatprep.mubr.bf16.mxu0 0
        %1032 = vmatmul.mubr.bf16.gmra.mrb[0].mxu0 %v982
        %v1033 = vpop.f32.mrb[0].mxu0
        %v1034 = vadd.f32 0.0, %v1033
        %v1035 = vpop.f32.mrb[0].mxu0
        %v1036 = vpop.f32.mrb[0].mxu0
        %v1037 = vadd.f32 0.0, %v1036
        %v1038 = vpop.f32.mrb[0].mxu0
        %1039 = vmatprep.mubr.bf16.mxu0 0
        %1040 = vmatmul.mubr.bf16.gmra.mrb[0].mxu0 %v985
        %v1041 = vpop.f32.mrb[0].mxu0
        %v1042 = vadd.f32 0.0, %v1041
        %v1043 = vpop.f32.mrb[0].mxu0
        %v1044 = vpop.f32.mrb[0].mxu0
        %v1045 = vadd.f32 0.0, %v1044
        %v1046 = vpop.f32.mrb[0].mxu0
        %1047 = vmatprep.mubr.bf16.mxu0 0
        %1048 = vmatmul.mubr.bf16.gmra.mrb[0].mxu0 %v988
        %v1049 = vpop.f32.mrb[0].mxu0
        %v1050 = vadd.f32 0.0, %v1049
        %v1051 = vpop.f32.mrb[0].mxu0
        %v1052 = vpop.f32.mrb[0].mxu0
        %v1053 = vadd.f32 0.0, %v1052
        %v1054 = vpop.f32.mrb[0].mxu0
        %1055 = vmatprep.mubr.bf16.mxu0 0
        %1056 = vmatmul.mubr.bf16.gmra.mrb[0].mxu0 %v991
        %v1057 = vpop.f32.mrb[0].mxu0
        %v1058 = vadd.f32 0.0, %v1057
        %v1059 = vpop.f32.mrb[0].mxu0
        %v1060 = vpop.f32.mrb[0].mxu0
        %v1061 = vadd.f32 0.0, %v1060
        %v1062 = vpop.f32.mrb[0].mxu0
        %1063 = vmatprep.mubr.bf16.mxu0 0
        %1064 = vmatmul.mubr.bf16.gmra.mrb[0].mxu0 %v994
        %v1065 = vpop.f32.mrb[0].mxu0
        %v1066 = vadd.f32 0.0, %v1065
        %v1067 = vpop.f32.mrb[0].mxu0
        %v1068 = vpop.f32.mrb[0].mxu0
        %v1069 = vadd.f32 0.0, %v1068
        %v1070 = vpop.f32.mrb[0].mxu0
        %1071 = vdwg.mxu0
        %v1072 = vadd.f32 %v911, %v1034
        %v1073 = vadd.f32 %v912, %v1037
        %v1074 = vadd.f32 %v913, %v1042
        %v1075 = vadd.f32 %v914, %v1045
        %v1076 = vadd.f32 %v915, %v1050
        %v1077 = vadd.f32 %v916, %v1053
        %v1078 = vadd.f32 %v917, %v1058
        %v1079 = vadd.f32 %v918, %v1061
        %v1080 = vadd.f32 %v919, %v1066
        %v1081 = vadd.f32 %v920, %v1069
        %v1082 = vld [vmem:[%s316 + $0x4] sm:$0xc]
        %s1083 = scalar_lea.vmem [#allocation8], 10
        %v1084 = vld [vmem:[%s1083] sm:$0x3]
        %v1086 = vunpack.c.l.b16 %v1082
        %v1087 = vpack.c.b16 %v793, %v1086
        %vm1088 = vcmask 1045504
        %v1089 = vrot.slane %v1087, 2
        %v1090 = vrot.slane %v804, 2
        %v1091 = vsel %vm1088, %v1089, %v1090
        %v1092 = vrot.slane %v805, 2
        %v1093 = vsel %vm1088, %v1090, %v1092
        %v1094 = vrot.slane %v806, 2
        %v1095 = vsel %vm1088, %v1092, %v1094
        %v1096 = vrot.slane %v807, 2
        %v1097 = vsel %vm1088, %v1094, %v1096
        %v1098 = vrot.slane %v926, 2
        %v1099 = vsel %vm1088, %v1096, %v1098
        %v1101 = vsel %vm470, %v1091, 0
        %v1104 = vsel %vm470, %v1093, 0
        %v1107 = vsel %vm470, %v1095, 0
        %v1110 = vsel %vm470, %v1097, 0
        %v1113 = vsel %vm470, %v1099, 0
        %v1116 = vsel %vm486, %v1084, 0
        %1118 = vmatprep.subr.bf16.mxu0 0
        %1119 = vmatpush1.bf16.msra.mxu0 %v1116
        %1120 = vmatprep.subr.bf16.mxu0 0
        %1121 = vmatpush1.bf16.msra.mxu0 0
        %1122 = vmatprep.subr.bf16.mxu0 0
        %1123 = vmatpush1.bf16.msra.mxu0 0
        %1124 = vmatprep.subr.bf16.mxu0 0
        %1125 = vmatpush1.bf16.msra.mxu0 0
        %1126 = vmatprep.subr.bf16.mxu0 0
        %1127 = vmatpush1.bf16.msra.mxu0 0
        %1128 = vmatprep.subr.bf16.mxu0 0
        %1129 = vmatpush1.bf16.msra.mxu0 0
        %1130 = vmatprep.subr.bf16.mxu0 0
        %1131 = vmatpush1.bf16.msra.mxu0 0
        %1132 = vmatprep.subr.bf16.mxu0 0
        %1133 = vmatpush1.bf16.msra.mxu0 0
        %1134 = vmatprep.subr.bf16.mxu0 0
        %1135 = vmatpush1.bf16.msra.mxu0 0
        %1136 = vmatprep.subr.bf16.mxu0 0
        %1137 = vmatpush1.bf16.msra.mxu0 0
        %1138 = vmatprep.subr.bf16.mxu0 0
        %1139 = vmatpush1.bf16.msra.mxu0 0
        %1140 = vmatprep.subr.bf16.mxu0 0
        %1141 = vmatpush1.bf16.msra.mxu0 0
        %1142 = vmatprep.subr.bf16.mxu0 0
        %1143 = vmatpush1.bf16.msra.mxu0 0
        %1144 = vmatprep.subr.bf16.mxu0 0
        %1145 = vmatpush1.bf16.msra.mxu0 0
        %1146 = vmatprep.subr.bf16.mxu0 0
        %1147 = vmatpush1.bf16.msra.mxu0 0
        %1148 = vmatprep.subr.bf16.mxu0 0
        %1149 = vmatpush1.bf16.msra.mxu0 0
        %1150 = vmatprep.mubr.bf16.mxu0 0
        %1151 = vmatmul.mubr.bf16.gmra.mrb[0].mxu0 %v1101
        %v1152 = vpop.f32.mrb[0].mxu0
        %v1153 = vadd.f32 0.0, %v1152
        %v1154 = vpop.f32.mrb[0].mxu0
        %v1155 = vpop.f32.mrb[0].mxu0
        %v1156 = vadd.f32 0.0, %v1155
        %v1157 = vpop.f32.mrb[0].mxu0
        %1158 = vmatprep.mubr.bf16.mxu0 0
        %1159 = vmatmul.mubr.bf16.gmra.mrb[0].mxu0 %v1104
        %v1160 = vpop.f32.mrb[0].mxu0
        %v1161 = vadd.f32 0.0, %v1160
        %v1162 = vpop.f32.mrb[0].mxu0
        %v1163 = vpop.f32.mrb[0].mxu0
        %v1164 = vadd.f32 0.0, %v1163
        %v1165 = vpop.f32.mrb[0].mxu0
        %1166 = vmatprep.mubr.bf16.mxu0 0
        %1167 = vmatmul.mubr.bf16.gmra.mrb[0].mxu0 %v1107
        %v1168 = vpop.f32.mrb[0].mxu0
        %v1169 = vadd.f32 0.0, %v1168
        %v1170 = vpop.f32.mrb[0].mxu0
        %v1171 = vpop.f32.mrb[0].mxu0
        %v1172 = vadd.f32 0.0, %v1171
        %v1173 = vpop.f32.mrb[0].mxu0
        %1174 = vmatprep.mubr.bf16.mxu0 0
        %1175 = vmatmul.mubr.bf16.gmra.mrb[0].mxu0 %v1110
        %v1176 = vpop.f32.mrb[0].mxu0
        %v1177 = vadd.f32 0.0, %v1176
        %v1178 = vpop.f32.mrb[0].mxu0
        %v1179 = vpop.f32.mrb[0].mxu0
        %v1180 = vadd.f32 0.0, %v1179
        %v1181 = vpop.f32.mrb[0].mxu0
        %1182 = vmatprep.mubr.bf16.mxu0 0
        %1183 = vmatmul.mubr.bf16.gmra.mrb[0].mxu0 %v1113
        %v1184 = vpop.f32.mrb[0].mxu0
        %v1185 = vadd.f32 0.0, %v1184
        %v1186 = vpop.f32.mrb[0].mxu0
        %v1187 = vpop.f32.mrb[0].mxu0
        %v1188 = vadd.f32 0.0, %v1187
        %v1189 = vpop.f32.mrb[0].mxu0
        %1190 = vdwg.mxu0
        %v1191 = vadd.f32 %v1072, %v1153
        %v1192 = vadd.f32 %v1073, %v1156
        %v1193 = vadd.f32 %v1074, %v1161
        %v1194 = vadd.f32 %v1075, %v1164
        %v1195 = vadd.f32 %v1076, %v1169
        %v1196 = vadd.f32 %v1077, %v1172
        %v1197 = vadd.f32 %v1078, %v1177
        %v1198 = vadd.f32 %v1079, %v1180
        %v1199 = vadd.f32 %v1080, %v1185
        %v1200 = vadd.f32 %v1081, %v1188
        %v1201 = vld [vmem:[%s316 + $0x8] sm:$0xc]
        %v1202 = vld [vmem:[%s316 + $0xc] sm:$0xf]
        %v1203 = vld [vmem:[%s316 + $0x10] sm:$0xf]
        %v1204 = vld [vmem:[%s316 + $0x14] sm:$0xf]
        %v1205 = vld [vmem:[%s316 + $0x18] sm:$0xf]
        %v1206 = vld [vmem:[%s316 + $0x1c] sm:$0xf]
        %v1207 = vld [vmem:[%s316 + $0x20] sm:$0xf]
        %v1208 = vld [vmem:[%s316 + $0x24] sm:$0xf]
        %v1209 = vld [vmem:[%s316 + $0x28] sm:$0xf]
        %v1210 = vld [vmem:[%s316 + $0x2c] sm:$0xf]
        %v1211 = vld [vmem:[%s316 + $0x30] sm:$0x3]
        %s1212 = scalar_lea.vmem [#allocation8], 12
        %v1213 = vld [vmem:[%s1212] sm:$0x3]
        %v1225 = vunpack.c.l.b16 %v1201
        %v1226 = vunpack.c.l.b16 %v1202
        %v1227 = vunpack.c.l.b16 %v1203
        %v1228 = vunpack.c.l.b16 %v1204
        %v1229 = vunpack.c.l.b16 %v1205
        %v1230 = vunpack.c.l.b16 %v1206
        %v1231 = vunpack.c.l.b16 %v1207
        %v1232 = vunpack.c.l.b16 %v1208
        %v1233 = vunpack.c.l.b16 %v1209
        %v1234 = vunpack.c.l.b16 %v1210
        %v1235 = vunpack.c.l.b16 %v1211
        %v1236 = vpack.c.b16 %v1226, %v1225
        %v1237 = vpack.c.b16 %v1228, %v1227
        %v1238 = vpack.c.b16 %v1230, %v1229
        %v1239 = vpack.c.b16 %v1232, %v1231
        %v1240 = vpack.c.b16 %v1234, %v1233
        %v1241 = vpack.c.b16 %v1235, %v1235
        %v1242 = vrot.slane %v1236, 2
        %v1243 = vrot.slane %v1237, 2
        %v1244 = vsel %vm1088, %v1242, %v1243
        %v1245 = vrot.slane %v1238, 2
        %v1246 = vsel %vm1088, %v1243, %v1245
        %v1247 = vrot.slane %v1239, 2
        %v1248 = vsel %vm1088, %v1245, %v1247
        %v1249 = vrot.slane %v1240, 2
        %v1250 = vsel %vm1088, %v1247, %v1249
        %v1251 = vrot.slane %v1241, 2
        %v1252 = vsel %vm1088, %v1249, %v1251
        %v1254 = vsel %vm470, %v1244, 0
        %v1257 = vsel %vm470, %v1246, 0
        %v1260 = vsel %vm470, %v1248, 0
        %v1263 = vsel %vm470, %v1250, 0
        %v1266 = vsel %vm470, %v1252, 0
        %v1269 = vsel %vm486, %v1213, 0
        %1271 = vmatprep.subr.bf16.mxu0 0
        %1272 = vmatpush1.bf16.msra.mxu0 %v1269
        %1273 = vmatprep.subr.bf16.mxu0 0
        %1274 = vmatpush1.bf16.msra.mxu0 0
        %1275 = vmatprep.subr.bf16.mxu0 0
        %1276 = vmatpush1.bf16.msra.mxu0 0
        %1277 = vmatprep.subr.bf16.mxu0 0
        %1278 = vmatpush1.bf16.msra.mxu0 0
        %1279 = vmatprep.subr.bf16.mxu0 0
        %1280 = vmatpush1.bf16.msra.mxu0 0
        %1281 = vmatprep.subr.bf16.mxu0 0
        %1282 = vmatpush1.bf16.msra.mxu0 0
        %1283 = vmatprep.subr.bf16.mxu0 0
        %1284 = vmatpush1.bf16.msra.mxu0 0
        %1285 = vmatprep.subr.bf16.mxu0 0
        %1286 = vmatpush1.bf16.msra.mxu0 0
        %1287 = vmatprep.subr.bf16.mxu0 0
        %1288 = vmatpush1.bf16.msra.mxu0 0
        %1289 = vmatprep.subr.bf16.mxu0 0
        %1290 = vmatpush1.bf16.msra.mxu0 0
        %1291 = vmatprep.subr.bf16.mxu0 0
        %1292 = vmatpush1.bf16.msra.mxu0 0
        %1293 = vmatprep.subr.bf16.mxu0 0
        %1294 = vmatpush1.bf16.msra.mxu0 0
        %1295 = vmatprep.subr.bf16.mxu0 0
        %1296 = vmatpush1.bf16.msra.mxu0 0
        %1297 = vmatprep.subr.bf16.mxu0 0
        %1298 = vmatpush1.bf16.msra.mxu0 0
        %1299 = vmatprep.subr.bf16.mxu0 0
        %1300 = vmatpush1.bf16.msra.mxu0 0
        %1301 = vmatprep.subr.bf16.mxu0 0
        %1302 = vmatpush1.bf16.msra.mxu0 0
        %1303 = vmatprep.mubr.bf16.mxu0 0
        %1304 = vmatmul.mubr.bf16.gmra.mrb[0].mxu0 %v1254
        %v1305 = vpop.f32.mrb[0].mxu0
        %v1306 = vadd.f32 0.0, %v1305
        %v1307 = vpop.f32.mrb[0].mxu0
        %v1308 = vpop.f32.mrb[0].mxu0
        %v1309 = vadd.f32 0.0, %v1308
        %v1310 = vpop.f32.mrb[0].mxu0
        %1311 = vmatprep.mubr.bf16.mxu0 0
        %1312 = vmatmul.mubr.bf16.gmra.mrb[0].mxu0 %v1257
        %v1313 = vpop.f32.mrb[0].mxu0
        %v1314 = vadd.f32 0.0, %v1313
        %v1315 = vpop.f32.mrb[0].mxu0
        %v1316 = vpop.f32.mrb[0].mxu0
        %v1317 = vadd.f32 0.0, %v1316
        %v1318 = vpop.f32.mrb[0].mxu0
        %1319 = vmatprep.mubr.bf16.mxu0 0
        %1320 = vmatmul.mubr.bf16.gmra.mrb[0].mxu0 %v1260
        %v1321 = vpop.f32.mrb[0].mxu0
        %v1322 = vadd.f32 0.0, %v1321
        %v1323 = vpop.f32.mrb[0].mxu0
        %v1324 = vpop.f32.mrb[0].mxu0
        %v1325 = vadd.f32 0.0, %v1324
        %v1326 = vpop.f32.mrb[0].mxu0
        %1327 = vmatprep.mubr.bf16.mxu0 0
        %1328 = vmatmul.mubr.bf16.gmra.mrb[0].mxu0 %v1263
        %v1329 = vpop.f32.mrb[0].mxu0
        %v1330 = vadd.f32 0.0, %v1329
        %v1331 = vpop.f32.mrb[0].mxu0
        %v1332 = vpop.f32.mrb[0].mxu0
        %v1333 = vadd.f32 0.0, %v1332
        %v1334 = vpop.f32.mrb[0].mxu0
        %1335 = vmatprep.mubr.bf16.mxu0 0
        %1336 = vmatmul.mubr.bf16.gmra.mrb[0].mxu0 %v1266
        %v1337 = vpop.f32.mrb[0].mxu0
        %v1338 = vadd.f32 0.0, %v1337
        %v1339 = vpop.f32.mrb[0].mxu0
        %v1340 = vpop.f32.mrb[0].mxu0
        %v1341 = vadd.f32 0.0, %v1340
        %v1342 = vpop.f32.mrb[0].mxu0
        %1343 = vdwg.mxu0
        %v1344 = vadd.f32 %v1191, %v1306
        %v1345 = vadd.f32 %v1192, %v1309
        %v1346 = vadd.f32 %v1193, %v1314
        %v1347 = vadd.f32 %v1194, %v1317
        %v1348 = vadd.f32 %v1195, %v1322
        %v1349 = vadd.f32 %v1196, %v1325
        %v1350 = vadd.f32 %v1197, %v1330
        %v1351 = vadd.f32 %v1198, %v1333
        %v1352 = vadd.f32 %v1199, %v1338
        %v1353 = vadd.f32 %v1200, %v1341
        %v1354 = vld [vmem:[%s316 + $0x30] sm:$0x7]
        %s1355 = scalar_lea.vmem [#allocation8], 14
        %v1356 = vld [vmem:[%s1355] sm:$0x3]
        %v1358 = vunpack.c.l.b16 %v1354
        %v1359 = vpack.c.b16 %v1358, %v1358
        %vm1360 = vsmask.f32 5376
        %v1362 = vshrl.u32 %v1236, 16
        %v1364 = vrot.slane %v1362, 2
        %v1365 = vshll.u32 %v1236, 16
        %v1367 = vrot.slane %v1365, 3
        %v1368 = vor.u32 %v1364, %v1367
        %v1370 = vshrl.u32 %v1237, 16
        %v1372 = vrot.slane %v1370, 2
        %v1373 = vshll.u32 %v1237, 16
        %v1375 = vrot.slane %v1373, 3
        %v1376 = vor.u32 %v1372, %v1375
        %v1377 = vsel %vm1360, %v1368, %v1376
        %v1379 = vshrl.u32 %v1238, 16
        %v1381 = vrot.slane %v1379, 2
        %v1382 = vshll.u32 %v1238, 16
        %v1384 = vrot.slane %v1382, 3
        %v1385 = vor.u32 %v1381, %v1384
        %v1386 = vsel %vm1360, %v1376, %v1385
        %v1388 = vshrl.u32 %v1239, 16
        %v1390 = vrot.slane %v1388, 2
        %v1391 = vshll.u32 %v1239, 16
        %v1393 = vrot.slane %v1391, 3
        %v1394 = vor.u32 %v1390, %v1393
        %v1395 = vsel %vm1360, %v1385, %v1394
        %v1397 = vshrl.u32 %v1240, 16
        %v1399 = vrot.slane %v1397, 2
        %v1400 = vshll.u32 %v1240, 16
        %v1402 = vrot.slane %v1400, 3
        %v1403 = vor.u32 %v1399, %v1402
        %v1404 = vsel %vm1360, %v1394, %v1403
        %v1406 = vshrl.u32 %v1359, 16
        %v1408 = vrot.slane %v1406, 2
        %v1409 = vshll.u32 %v1359, 16
        %v1411 = vrot.slane %v1409, 3
        %v1412 = vor.u32 %v1408, %v1411
        %v1413 = vsel %vm1360, %v1403, %v1412
        %v1415 = vsel %vm470, %v1377, 0
        %v1418 = vsel %vm470, %v1386, 0
        %v1421 = vsel %vm470, %v1395, 0
        %v1424 = vsel %vm470, %v1404, 0
        %v1427 = vsel %vm470, %v1413, 0
        %v1430 = vsel %vm486, %v1356, 0
        %1432 = vmatprep.subr.bf16.mxu0 0
        %1433 = vmatpush1.bf16.msra.mxu0 %v1430
        %1434 = vmatprep.subr.bf16.mxu0 0
        %1435 = vmatpush1.bf16.msra.mxu0 0
        %1436 = vmatprep.subr.bf16.mxu0 0
        %1437 = vmatpush1.bf16.msra.mxu0 0
        %1438 = vmatprep.subr.bf16.mxu0 0
        %1439 = vmatpush1.bf16.msra.mxu0 0
        %1440 = vmatprep.subr.bf16.mxu0 0
        %1441 = vmatpush1.bf16.msra.mxu0 0
        %1442 = vmatprep.subr.bf16.mxu0 0
        %1443 = vmatpush1.bf16.msra.mxu0 0
        %1444 = vmatprep.subr.bf16.mxu0 0
        %1445 = vmatpush1.bf16.msra.mxu0 0
        %1446 = vmatprep.subr.bf16.mxu0 0
        %1447 = vmatpush1.bf16.msra.mxu0 0
        %1448 = vmatprep.subr.bf16.mxu0 0
        %1449 = vmatpush1.bf16.msra.mxu0 0
        %1450 = vmatprep.subr.bf16.mxu0 0
        %1451 = vmatpush1.bf16.msra.mxu0 0
        %1452 = vmatprep.subr.bf16.mxu0 0
        %1453 = vmatpush1.bf16.msra.mxu0 0
        %1454 = vmatprep.subr.bf16.mxu0 0
        %1455 = vmatpush1.bf16.msra.mxu0 0
        %1456 = vmatprep.subr.bf16.mxu0 0
        %1457 = vmatpush1.bf16.msra.mxu0 0
        %1458 = vmatprep.subr.bf16.mxu0 0
        %1459 = vmatpush1.bf16.msra.mxu0 0
        %1460 = vmatprep.subr.bf16.mxu0 0
        %1461 = vmatpush1.bf16.msra.mxu0 0
        %1462 = vmatprep.subr.bf16.mxu0 0
        %1463 = vmatpush1.bf16.msra.mxu0 0
        %1464 = vmatprep.mubr.bf16.mxu0 0
        %1465 = vmatmul.mubr.bf16.gmra.mrb[0].mxu0 %v1415
        %v1466 = vpop.f32.mrb[0].mxu0
        %v1467 = vadd.f32 0.0, %v1466
        %v1468 = vpop.f32.mrb[0].mxu0
        %v1469 = vpop.f32.mrb[0].mxu0
        %v1470 = vadd.f32 0.0, %v1469
        %v1471 = vpop.f32.mrb[0].mxu0
        %1472 = vmatprep.mubr.bf16.mxu0 0
        %1473 = vmatmul.mubr.bf16.gmra.mrb[0].mxu0 %v1418
        %v1474 = vpop.f32.mrb[0].mxu0
        %v1475 = vadd.f32 0.0, %v1474
        %v1476 = vpop.f32.mrb[0].mxu0
        %v1477 = vpop.f32.mrb[0].mxu0
        %v1478 = vadd.f32 0.0, %v1477
        %v1479 = vpop.f32.mrb[0].mxu0
        %1480 = vmatprep.mubr.bf16.mxu0 0
        %1481 = vmatmul.mubr.bf16.gmra.mrb[0].mxu0 %v1421
        %v1482 = vpop.f32.mrb[0].mxu0
        %v1483 = vadd.f32 0.0, %v1482
        %v1484 = vpop.f32.mrb[0].mxu0
        %v1485 = vpop.f32.mrb[0].mxu0
        %v1486 = vadd.f32 0.0, %v1485
        %v1487 = vpop.f32.mrb[0].mxu0
        %1488 = vmatprep.mubr.bf16.mxu0 0
        %1489 = vmatmul.mubr.bf16.gmra.mrb[0].mxu0 %v1424
        %v1490 = vpop.f32.mrb[0].mxu0
        %v1491 = vadd.f32 0.0, %v1490
        %v1492 = vpop.f32.mrb[0].mxu0
        %v1493 = vpop.f32.mrb[0].mxu0
        %v1494 = vadd.f32 0.0, %v1493
        %v1495 = vpop.f32.mrb[0].mxu0
        %1496 = vmatprep.mubr.bf16.mxu0 0
        %1497 = vmatmul.mubr.bf16.gmra.mrb[0].mxu0 %v1427
        %v1498 = vpop.f32.mrb[0].mxu0
        %v1499 = vadd.f32 0.0, %v1498
        %v1500 = vpop.f32.mrb[0].mxu0
        %v1501 = vpop.f32.mrb[0].mxu0
        %v1502 = vadd.f32 0.0, %v1501
        %v1503 = vpop.f32.mrb[0].mxu0
        %1504 = vdwg.mxu0
        %v1505 = vadd.f32 %v1344, %v1467
        %v1506 = vadd.f32 %v1345, %v1470
        %v1507 = vadd.f32 %v1346, %v1475
        %v1508 = vadd.f32 %v1347, %v1478
        %v1509 = vadd.f32 %v1348, %v1483
        %v1510 = vadd.f32 %v1349, %v1486
        %v1511 = vadd.f32 %v1350, %v1491
        %v1512 = vadd.f32 %v1351, %v1494
        %v1513 = vadd.f32 %v1352, %v1499
        %v1514 = vadd.f32 %v1353, %v1502
        %v1515 = vld [vmem:[%s316 + $0x8] sm:$0x8]
        %s1516 = scalar_lea.vmem [#allocation8], 16
        %v1517 = vld [vmem:[%s1516] sm:$0x3]
        %v1519 = vunpack.c.l.b16 %v1515
        %v1520 = vpack.c.b16 %v1226, %v1519
        %vm1521 = vcmask 1044480
        %v1522 = vrot.slane %v1520, 3
        %v1523 = vrot.slane %v1237, 3
        %v1524 = vsel %vm1521, %v1522, %v1523
        %v1525 = vrot.slane %v1238, 3
        %v1526 = vsel %vm1521, %v1523, %v1525
        %v1527 = vrot.slane %v1239, 3
        %v1528 = vsel %vm1521, %v1525, %v1527
        %v1529 = vrot.slane %v1240, 3
        %v1530 = vsel %vm1521, %v1527, %v1529
        %v1531 = vrot.slane %v1359, 3
        %v1532 = vsel %vm1521, %v1529, %v1531
        %v1534 = vsel %vm470, %v1524, 0
        %v1537 = vsel %vm470, %v1526, 0
        %v1540 = vsel %vm470, %v1528, 0
        %v1543 = vsel %vm470, %v1530, 0
        %v1546 = vsel %vm470, %v1532, 0
        %v1549 = vsel %vm486, %v1517, 0
        %1551 = vmatprep.subr.bf16.mxu0 0
        %1552 = vmatpush1.bf16.msra.mxu0 %v1549
        %1553 = vmatprep.subr.bf16.mxu0 0
        %1554 = vmatpush1.bf16.msra.mxu0 0
        %1555 = vmatprep.subr.bf16.mxu0 0
        %1556 = vmatpush1.bf16.msra.mxu0 0
        %1557 = vmatprep.subr.bf16.mxu0 0
        %1558 = vmatpush1.bf16.msra.mxu0 0
        %1559 = vmatprep.subr.bf16.mxu0 0
        %1560 = vmatpush1.bf16.msra.mxu0 0
        %1561 = vmatprep.subr.bf16.mxu0 0
        %1562 = vmatpush1.bf16.msra.mxu0 0
        %1563 = vmatprep.subr.bf16.mxu0 0
        %1564 = vmatpush1.bf16.msra.mxu0 0
        %1565 = vmatprep.subr.bf16.mxu0 0
        %1566 = vmatpush1.bf16.msra.mxu0 0
        %1567 = vmatprep.subr.bf16.mxu0 0
        %1568 = vmatpush1.bf16.msra.mxu0 0
        %1569 = vmatprep.subr.bf16.mxu0 0
        %1570 = vmatpush1.bf16.msra.mxu0 0
        %1571 = vmatprep.subr.bf16.mxu0 0
        %1572 = vmatpush1.bf16.msra.mxu0 0
        %1573 = vmatprep.subr.bf16.mxu0 0
        %1574 = vmatpush1.bf16.msra.mxu0 0
        %1575 = vmatprep.subr.bf16.mxu0 0
        %1576 = vmatpush1.bf16.msra.mxu0 0
        %1577 = vmatprep.subr.bf16.mxu0 0
        %1578 = vmatpush1.bf16.msra.mxu0 0
        %1579 = vmatprep.subr.bf16.mxu0 0
        %1580 = vmatpush1.bf16.msra.mxu0 0
        %1581 = vmatprep.subr.bf16.mxu0 0
        %1582 = vmatpush1.bf16.msra.mxu0 0
        %1583 = vmatprep.mubr.bf16.mxu0 0
        %1584 = vmatmul.mubr.bf16.gmra.mrb[0].mxu0 %v1534
        %v1585 = vpop.f32.mrb[0].mxu0
        %v1586 = vadd.f32 0.0, %v1585
        %v1587 = vpop.f32.mrb[0].mxu0
        %v1588 = vpop.f32.mrb[0].mxu0
        %v1589 = vadd.f32 0.0, %v1588
        %v1590 = vpop.f32.mrb[0].mxu0
        %1591 = vmatprep.mubr.bf16.mxu0 0
        %1592 = vmatmul.mubr.bf16.gmra.mrb[0].mxu0 %v1537
        %v1593 = vpop.f32.mrb[0].mxu0
        %v1594 = vadd.f32 0.0, %v1593
        %v1595 = vpop.f32.mrb[0].mxu0
        %v1596 = vpop.f32.mrb[0].mxu0
        %v1597 = vadd.f32 0.0, %v1596
        %v1598 = vpop.f32.mrb[0].mxu0
        %1599 = vmatprep.mubr.bf16.mxu0 0
        %1600 = vmatmul.mubr.bf16.gmra.mrb[0].mxu0 %v1540
        %v1601 = vpop.f32.mrb[0].mxu0
        %v1602 = vadd.f32 0.0, %v1601
        %v1603 = vpop.f32.mrb[0].mxu0
        %v1604 = vpop.f32.mrb[0].mxu0
        %v1605 = vadd.f32 0.0, %v1604
        %v1606 = vpop.f32.mrb[0].mxu0
        %1607 = vmatprep.mubr.bf16.mxu0 0
        %1608 = vmatmul.mubr.bf16.gmra.mrb[0].mxu0 %v1543
        %v1609 = vpop.f32.mrb[0].mxu0
        %v1610 = vadd.f32 0.0, %v1609
        %v1611 = vpop.f32.mrb[0].mxu0
        %v1612 = vpop.f32.mrb[0].mxu0
        %v1613 = vadd.f32 0.0, %v1612
        %v1614 = vpop.f32.mrb[0].mxu0
        %1615 = vmatprep.mubr.bf16.mxu0 0
        %1616 = vmatmul.mubr.bf16.gmra.mrb[0].mxu0 %v1546
        %v1617 = vpop.f32.mrb[0].mxu0
        %v1618 = vadd.f32 0.0, %v1617
        %v1619 = vpop.f32.mrb[0].mxu0
        %v1620 = vpop.f32.mrb[0].mxu0
        %v1621 = vadd.f32 0.0, %v1620
        %v1622 = vpop.f32.mrb[0].mxu0
        %1623 = vdwg.mxu0
        %v1624 = vadd.f32 %v1505, %v1586
        %v1625 = vadd.f32 %v1506, %v1589
        %v1626 = vadd.f32 %v1507, %v1594
        %v1627 = vadd.f32 %v1508, %v1597
        %v1628 = vadd.f32 %v1509, %v1602
        %v1629 = vadd.f32 %v1510, %v1605
        %v1630 = vadd.f32 %v1511, %v1610
        %v1631 = vadd.f32 %v1512, %v1613
        %v1632 = vadd.f32 %v1513, %v1618
        %v1633 = vadd.f32 %v1514, %v1621
        %v1634 = vld [vmem:[%s325] sm:$0xf]
        %v1635 = vld [vmem:[%s325 + $0x4] sm:$0xf]
        %v1636 = vld [vmem:[%s325 + $0x8] sm:$0xf]
        %v1637 = vld [vmem:[%s325 + $0xc] sm:$0xf]
        %v1638 = vld [vmem:[%s325 + $0x10] sm:$0xf]
        %v1639 = vld [vmem:[%s325 + $0x14] sm:$0xf]
        %v1640 = vld [vmem:[%s325 + $0x18] sm:$0xf]
        %v1641 = vld [vmem:[%s325 + $0x1c] sm:$0xf]
        %v1642 = vld [vmem:[%s325 + $0x20] sm:$0xf]
        %v1643 = vld [vmem:[%s325 + $0x24] sm:$0xf]
        %s1644 = scalar_lea.vmem [#allocation8], 18
        %v1645 = vld [vmem:[%s1644] sm:$0x3]
        %v1656 = vunpack.c.l.b16 %v1634
        %v1657 = vunpack.c.l.b16 %v1635
        %v1658 = vunpack.c.l.b16 %v1636
        %v1659 = vunpack.c.l.b16 %v1637
        %v1660 = vunpack.c.l.b16 %v1638
        %v1661 = vunpack.c.l.b16 %v1639
        %v1662 = vunpack.c.l.b16 %v1640
        %v1663 = vunpack.c.l.b16 %v1641
        %v1664 = vunpack.c.l.b16 %v1642
        %v1665 = vunpack.c.l.b16 %v1643
        %v1666 = vpack.c.b16 %v1657, %v1656
        %v1667 = vpack.c.b16 %v1659, %v1658
        %v1668 = vpack.c.b16 %v1661, %v1660
        %v1669 = vpack.c.b16 %v1663, %v1662
        %v1670 = vpack.c.b16 %v1665, %v1664
        %v1672 = vsel %vm470, %v1666, 0
        %v1675 = vsel %vm470, %v1667, 0
        %v1678 = vsel %vm470, %v1668, 0
        %v1681 = vsel %vm470, %v1669, 0
        %v1684 = vsel %vm470, %v1670, 0
        %v1687 = vsel %vm486, %v1645, 0
        %1689 = vmatprep.subr.bf16.mxu0 0
        %1690 = vmatpush1.bf16.msra.mxu0 %v1687
        %1691 = vmatprep.subr.bf16.mxu0 0
        %1692 = vmatpush1.bf16.msra.mxu0 0
        %1693 = vmatprep.subr.bf16.mxu0 0
        %1694 = vmatpush1.bf16.msra.mxu0 0
        %1695 = vmatprep.subr.bf16.mxu0 0
        %1696 = vmatpush1.bf16.msra.mxu0 0
        %1697 = vmatprep.subr.bf16.mxu0 0
        %1698 = vmatpush1.bf16.msra.mxu0 0
        %1699 = vmatprep.subr.bf16.mxu0 0
        %1700 = vmatpush1.bf16.msra.mxu0 0
        %1701 = vmatprep.subr.bf16.mxu0 0
        %1702 = vmatpush1.bf16.msra.mxu0 0
        %1703 = vmatprep.subr.bf16.mxu0 0
        %1704 = vmatpush1.bf16.msra.mxu0 0
        %1705 = vmatprep.subr.bf16.mxu0 0
        %1706 = vmatpush1.bf16.msra.mxu0 0
        %1707 = vmatprep.subr.bf16.mxu0 0
        %1708 = vmatpush1.bf16.msra.mxu0 0
        %1709 = vmatprep.subr.bf16.mxu0 0
        %1710 = vmatpush1.bf16.msra.mxu0 0
        %1711 = vmatprep.subr.bf16.mxu0 0
        %1712 = vmatpush1.bf16.msra.mxu0 0
        %1713 = vmatprep.subr.bf16.mxu0 0
        %1714 = vmatpush1.bf16.msra.mxu0 0
        %1715 = vmatprep.subr.bf16.mxu0 0
        %1716 = vmatpush1.bf16.msra.mxu0 0
        %1717 = vmatprep.subr.bf16.mxu0 0
        %1718 = vmatpush1.bf16.msra.mxu0 0
        %1719 = vmatprep.subr.bf16.mxu0 0
        %1720 = vmatpush1.bf16.msra.mxu0 0
        %1721 = vmatprep.mubr.bf16.mxu0 0
        %1722 = vmatmul.mubr.bf16.gmra.mrb[0].mxu0 %v1672
        %v1723 = vpop.f32.mrb[0].mxu0
        %v1724 = vadd.f32 0.0, %v1723
        %v1725 = vpop.f32.mrb[0].mxu0
        %v1726 = vpop.f32.mrb[0].mxu0
        %v1727 = vadd.f32 0.0, %v1726
        %v1728 = vpop.f32.mrb[0].mxu0
        %1729 = vmatprep.mubr.bf16.mxu0 0
        %1730 = vmatmul.mubr.bf16.gmra.mrb[0].mxu0 %v1675
        %v1731 = vpop.f32.mrb[0].mxu0
        %v1732 = vadd.f32 0.0, %v1731
        %v1733 = vpop.f32.mrb[0].mxu0
        %v1734 = vpop.f32.mrb[0].mxu0
        %v1735 = vadd.f32 0.0, %v1734
        %v1736 = vpop.f32.mrb[0].mxu0
        %1737 = vmatprep.mubr.bf16.mxu0 0
        %1738 = vmatmul.mubr.bf16.gmra.mrb[0].mxu0 %v1678
        %v1739 = vpop.f32.mrb[0].mxu0
        %v1740 = vadd.f32 0.0, %v1739
        %v1741 = vpop.f32.mrb[0].mxu0
        %v1742 = vpop.f32.mrb[0].mxu0
        %v1743 = vadd.f32 0.0, %v1742
        %v1744 = vpop.f32.mrb[0].mxu0
        %1745 = vmatprep.mubr.bf16.mxu0 0
        %1746 = vmatmul.mubr.bf16.gmra.mrb[0].mxu0 %v1681
        %v1747 = vpop.f32.mrb[0].mxu0
        %v1748 = vadd.f32 0.0, %v1747
        %v1749 = vpop.f32.mrb[0].mxu0
        %v1750 = vpop.f32.mrb[0].mxu0
        %v1751 = vadd.f32 0.0, %v1750
        %v1752 = vpop.f32.mrb[0].mxu0
        %1753 = vmatprep.mubr.bf16.mxu0 0
        %1754 = vmatmul.mubr.bf16.gmra.mrb[0].mxu0 %v1684
        %v1755 = vpop.f32.mrb[0].mxu0
        %v1756 = vadd.f32 0.0, %v1755
        %v1757 = vpop.f32.mrb[0].mxu0
        %v1758 = vpop.f32.mrb[0].mxu0
        %v1759 = vadd.f32 0.0, %v1758
        %v1760 = vpop.f32.mrb[0].mxu0
        %1761 = vdwg.mxu0
        %v1762 = vadd.f32 %v1624, %v1724
        %v1763 = vadd.f32 %v1625, %v1727
        %v1764 = vadd.f32 %v1626, %v1732
        %v1765 = vadd.f32 %v1627, %v1735
        %v1766 = vadd.f32 %v1628, %v1740
        %v1767 = vadd.f32 %v1629, %v1743
        %v1768 = vadd.f32 %v1630, %v1748
        %v1769 = vadd.f32 %v1631, %v1751
        %v1770 = vadd.f32 %v1632, %v1756
        %v1771 = vadd.f32 %v1633, %v1759
        %v1772 = vld [vmem:[%s325] sm:$0xf]
        %v1773 = vld [vmem:[%s325 + $0x4] sm:$0xf]
        %v1774 = vld [vmem:[%s325 + $0x8] sm:$0xf]
        %v1775 = vld [vmem:[%s325 + $0xc] sm:$0xf]
        %v1776 = vld [vmem:[%s325 + $0x10] sm:$0xf]
        %v1777 = vld [vmem:[%s325 + $0x14] sm:$0xf]
        %v1778 = vld [vmem:[%s325 + $0x18] sm:$0xf]
        %v1779 = vld [vmem:[%s325 + $0x1c] sm:$0xf]
        %v1780 = vld [vmem:[%s325 + $0x20] sm:$0xf]
        %v1781 = vld [vmem:[%s325 + $0x24] sm:$0xf]
        %v1782 = vld [vmem:[%s325 + $0x28] sm:$0x1]
        %s1783 = scalar_lea.vmem [#allocation8], 20
        %v1784 = vld [vmem:[%s1783] sm:$0x3]
        %v1796 = vunpack.c.l.b16 %v1772
        %v1797 = vunpack.c.l.b16 %v1773
        %v1798 = vunpack.c.l.b16 %v1774
        %v1799 = vunpack.c.l.b16 %v1775
        %v1800 = vunpack.c.l.b16 %v1776
        %v1801 = vunpack.c.l.b16 %v1777
        %v1802 = vunpack.c.l.b16 %v1778
        %v1803 = vunpack.c.l.b16 %v1779
        %v1804 = vunpack.c.l.b16 %v1780
        %v1805 = vunpack.c.l.b16 %v1781
        %v1806 = vunpack.c.l.b16 %v1782
        %v1807 = vpack.c.b16 %v1797, %v1796
        %v1808 = vpack.c.b16 %v1799, %v1798
        %v1809 = vpack.c.b16 %v1801, %v1800
        %v1810 = vpack.c.b16 %v1803, %v1802
        %v1811 = vpack.c.b16 %v1805, %v1804
        %v1812 = vpack.c.b16 %v1806, %v1806
        %v1814 = vshrl.u32 %v1807, 16
        %v1816 = vshll.u32 %v1807, 16
        %v1818 = vrot.slane %v1816, 1
        %v1819 = vor.u32 %v1814, %v1818
        %v1821 = vshll.u32 %v1808, 16
        %v1823 = vrot.slane %v1821, 1
        %v1824 = vsel %vm425, %v1819, %v1823
        %v1825 = vshrl.u32 %v1808, 16
        %v1827 = vor.u32 %v1825, %v1823
        %v1829 = vshll.u32 %v1809, 16
        %v1831 = vrot.slane %v1829, 1
        %v1832 = vsel %vm425, %v1827, %v1831
        %v1833 = vshrl.u32 %v1809, 16
        %v1835 = vor.u32 %v1833, %v1831
        %v1837 = vshll.u32 %v1810, 16
        %v1839 = vrot.slane %v1837, 1
        %v1840 = vsel %vm425, %v1835, %v1839
        %v1841 = vshrl.u32 %v1810, 16
        %v1843 = vor.u32 %v1841, %v1839
        %v1845 = vshll.u32 %v1811, 16
        %v1847 = vrot.slane %v1845, 1
        %v1848 = vsel %vm425, %v1843, %v1847
        %v1849 = vshrl.u32 %v1811, 16
        %v1851 = vor.u32 %v1849, %v1847
        %v1853 = vshll.u32 %v1812, 16
        %v1855 = vrot.slane %v1853, 1
        %v1856 = vsel %vm425, %v1851, %v1855
        %v1858 = vsel %vm470, %v1824, 0
        %v1861 = vsel %vm470, %v1832, 0
        %v1864 = vsel %vm470, %v1840, 0
        %v1867 = vsel %vm470, %v1848, 0
        %v1870 = vsel %vm470, %v1856, 0
        %v1873 = vsel %vm486, %v1784, 0
        %1875 = vmatprep.subr.bf16.mxu0 0
        %1876 = vmatpush1.bf16.msra.mxu0 %v1873
        %1877 = vmatprep.subr.bf16.mxu0 0
        %1878 = vmatpush1.bf16.msra.mxu0 0
        %1879 = vmatprep.subr.bf16.mxu0 0
        %1880 = vmatpush1.bf16.msra.mxu0 0
        %1881 = vmatprep.subr.bf16.mxu0 0
        %1882 = vmatpush1.bf16.msra.mxu0 0
        %1883 = vmatprep.subr.bf16.mxu0 0
        %1884 = vmatpush1.bf16.msra.mxu0 0
        %1885 = vmatprep.subr.bf16.mxu0 0
        %1886 = vmatpush1.bf16.msra.mxu0 0
        %1887 = vmatprep.subr.bf16.mxu0 0
        %1888 = vmatpush1.bf16.msra.mxu0 0
        %1889 = vmatprep.subr.bf16.mxu0 0
        %1890 = vmatpush1.bf16.msra.mxu0 0
        %1891 = vmatprep.subr.bf16.mxu0 0
        %1892 = vmatpush1.bf16.msra.mxu0 0
        %1893 = vmatprep.subr.bf16.mxu0 0
        %1894 = vmatpush1.bf16.msra.mxu0 0
        %1895 = vmatprep.subr.bf16.mxu0 0
        %1896 = vmatpush1.bf16.msra.mxu0 0
        %1897 = vmatprep.subr.bf16.mxu0 0
        %1898 = vmatpush1.bf16.msra.mxu0 0
        %1899 = vmatprep.subr.bf16.mxu0 0
        %1900 = vmatpush1.bf16.msra.mxu0 0
        %1901 = vmatprep.subr.bf16.mxu0 0
        %1902 = vmatpush1.bf16.msra.mxu0 0
        %1903 = vmatprep.subr.bf16.mxu0 0
        %1904 = vmatpush1.bf16.msra.mxu0 0
        %1905 = vmatprep.subr.bf16.mxu0 0
        %1906 = vmatpush1.bf16.msra.mxu0 0
        %1907 = vmatprep.mubr.bf16.mxu0 0
        %1908 = vmatmul.mubr.bf16.gmra.mrb[0].mxu0 %v1858
        %v1909 = vpop.f32.mrb[0].mxu0
        %v1910 = vadd.f32 0.0, %v1909
        %v1911 = vpop.f32.mrb[0].mxu0
        %v1912 = vpop.f32.mrb[0].mxu0
        %v1913 = vadd.f32 0.0, %v1912
        %v1914 = vpop.f32.mrb[0].mxu0
        %1915 = vmatprep.mubr.bf16.mxu0 0
        %1916 = vmatmul.mubr.bf16.gmra.mrb[0].mxu0 %v1861
        %v1917 = vpop.f32.mrb[0].mxu0
        %v1918 = vadd.f32 0.0, %v1917
        %v1919 = vpop.f32.mrb[0].mxu0
        %v1920 = vpop.f32.mrb[0].mxu0
        %v1921 = vadd.f32 0.0, %v1920
        %v1922 = vpop.f32.mrb[0].mxu0
        %1923 = vmatprep.mubr.bf16.mxu0 0
        %1924 = vmatmul.mubr.bf16.gmra.mrb[0].mxu0 %v1864
        %v1925 = vpop.f32.mrb[0].mxu0
        %v1926 = vadd.f32 0.0, %v1925
        %v1927 = vpop.f32.mrb[0].mxu0
        %v1928 = vpop.f32.mrb[0].mxu0
        %v1929 = vadd.f32 0.0, %v1928
        %v1930 = vpop.f32.mrb[0].mxu0
        %1931 = vmatprep.mubr.bf16.mxu0 0
        %1932 = vmatmul.mubr.bf16.gmra.mrb[0].mxu0 %v1867
        %v1933 = vpop.f32.mrb[0].mxu0
        %v1934 = vadd.f32 0.0, %v1933
        %v1935 = vpop.f32.mrb[0].mxu0
        %v1936 = vpop.f32.mrb[0].mxu0
        %v1937 = vadd.f32 0.0, %v1936
        %v1938 = vpop.f32.mrb[0].mxu0
        %1939 = vmatprep.mubr.bf16.mxu0 0
        %1940 = vmatmul.mubr.bf16.gmra.mrb[0].mxu0 %v1870
        %v1941 = vpop.f32.mrb[0].mxu0
        %v1942 = vadd.f32 0.0, %v1941
        %v1943 = vpop.f32.mrb[0].mxu0
        %v1944 = vpop.f32.mrb[0].mxu0
        %v1945 = vadd.f32 0.0, %v1944
        %v1946 = vpop.f32.mrb[0].mxu0
        %1947 = vdwg.mxu0
        %v1948 = vadd.f32 %v1762, %v1910
        %v1949 = vadd.f32 %v1763, %v1913
        %v1950 = vadd.f32 %v1764, %v1918
        %v1951 = vadd.f32 %v1765, %v1921
        %v1952 = vadd.f32 %v1766, %v1926
        %v1953 = vadd.f32 %v1767, %v1929
        %v1954 = vadd.f32 %v1768, %v1934
        %v1955 = vadd.f32 %v1769, %v1937
        %v1956 = vadd.f32 %v1770, %v1942
        %v1957 = vadd.f32 %v1771, %v1945
        %v1958 = vld [vmem:[%s325] sm:$0xe]
        %s1959 = scalar_lea.vmem [#allocation8], 22
        %v1960 = vld [vmem:[%s1959] sm:$0x3]
        %v1962 = vunpack.c.l.b16 %v1958
        %v1963 = vpack.c.b16 %v1797, %v1962
        %v1964 = vrot.slane %v1963, 1
        %v1965 = vrot.slane %v1808, 1
        %v1966 = vsel %vm655, %v1964, %v1965
        %v1967 = vrot.slane %v1809, 1
        %v1968 = vsel %vm655, %v1965, %v1967
        %v1969 = vrot.slane %v1810, 1
        %v1970 = vsel %vm655, %v1967, %v1969
        %v1971 = vrot.slane %v1811, 1
        %v1972 = vsel %vm655, %v1969, %v1971
        %v1973 = vrot.slane %v1812, 1
        %v1974 = vsel %vm655, %v1971, %v1973
        %v1976 = vsel %vm470, %v1966, 0
        %v1979 = vsel %vm470, %v1968, 0
        %v1982 = vsel %vm470, %v1970, 0
        %v1985 = vsel %vm470, %v1972, 0
        %v1988 = vsel %vm470, %v1974, 0
        %v1991 = vsel %vm486, %v1960, 0
        %1993 = vmatprep.subr.bf16.mxu0 0
        %1994 = vmatpush1.bf16.msra.mxu0 %v1991
        %1995 = vmatprep.subr.bf16.mxu0 0
        %1996 = vmatpush1.bf16.msra.mxu0 0
        %1997 = vmatprep.subr.bf16.mxu0 0
        %1998 = vmatpush1.bf16.msra.mxu0 0
        %1999 = vmatprep.subr.bf16.mxu0 0
        %2000 = vmatpush1.bf16.msra.mxu0 0
        %2001 = vmatprep.subr.bf16.mxu0 0
        %2002 = vmatpush1.bf16.msra.mxu0 0
        %2003 = vmatprep.subr.bf16.mxu0 0
        %2004 = vmatpush1.bf16.msra.mxu0 0
        %2005 = vmatprep.subr.bf16.mxu0 0
        %2006 = vmatpush1.bf16.msra.mxu0 0
        %2007 = vmatprep.subr.bf16.mxu0 0
        %2008 = vmatpush1.bf16.msra.mxu0 0
        %2009 = vmatprep.subr.bf16.mxu0 0
        %2010 = vmatpush1.bf16.msra.mxu0 0
        %2011 = vmatprep.subr.bf16.mxu0 0
        %2012 = vmatpush1.bf16.msra.mxu0 0
        %2013 = vmatprep.subr.bf16.mxu0 0
        %2014 = vmatpush1.bf16.msra.mxu0 0
        %2015 = vmatprep.subr.bf16.mxu0 0
        %2016 = vmatpush1.bf16.msra.mxu0 0
        %2017 = vmatprep.subr.bf16.mxu0 0
        %2018 = vmatpush1.bf16.msra.mxu0 0
        %2019 = vmatprep.subr.bf16.mxu0 0
        %2020 = vmatpush1.bf16.msra.mxu0 0
        %2021 = vmatprep.subr.bf16.mxu0 0
        %2022 = vmatpush1.bf16.msra.mxu0 0
        %2023 = vmatprep.subr.bf16.mxu0 0
        %2024 = vmatpush1.bf16.msra.mxu0 0
        %2025 = vmatprep.mubr.bf16.mxu0 0
        %2026 = vmatmul.mubr.bf16.gmra.mrb[0].mxu0 %v1976
        %v2027 = vpop.f32.mrb[0].mxu0
        %v2028 = vadd.f32 0.0, %v2027
        %v2029 = vpop.f32.mrb[0].mxu0
        %v2030 = vpop.f32.mrb[0].mxu0
        %v2031 = vadd.f32 0.0, %v2030
        %v2032 = vpop.f32.mrb[0].mxu0
        %2033 = vmatprep.mubr.bf16.mxu0 0
        %2034 = vmatmul.mubr.bf16.gmra.mrb[0].mxu0 %v1979
        %v2035 = vpop.f32.mrb[0].mxu0
        %v2036 = vadd.f32 0.0, %v2035
        %v2037 = vpop.f32.mrb[0].mxu0
        %v2038 = vpop.f32.mrb[0].mxu0
        %v2039 = vadd.f32 0.0, %v2038
        %v2040 = vpop.f32.mrb[0].mxu0
        %2041 = vmatprep.mubr.bf16.mxu0 0
        %2042 = vmatmul.mubr.bf16.gmra.mrb[0].mxu0 %v1982
        %v2043 = vpop.f32.mrb[0].mxu0
        %v2044 = vadd.f32 0.0, %v2043
        %v2045 = vpop.f32.mrb[0].mxu0
        %v2046 = vpop.f32.mrb[0].mxu0
        %v2047 = vadd.f32 0.0, %v2046
        %v2048 = vpop.f32.mrb[0].mxu0
        %2049 = vmatprep.mubr.bf16.mxu0 0
        %2050 = vmatmul.mubr.bf16.gmra.mrb[0].mxu0 %v1985
        %v2051 = vpop.f32.mrb[0].mxu0
        %v2052 = vadd.f32 0.0, %v2051
        %v2053 = vpop.f32.mrb[0].mxu0
        %v2054 = vpop.f32.mrb[0].mxu0
        %v2055 = vadd.f32 0.0, %v2054
        %v2056 = vpop.f32.mrb[0].mxu0
        %2057 = vmatprep.mubr.bf16.mxu0 0
        %2058 = vmatmul.mubr.bf16.gmra.mrb[0].mxu0 %v1988
        %v2059 = vpop.f32.mrb[0].mxu0
        %v2060 = vadd.f32 0.0, %v2059
        %v2061 = vpop.f32.mrb[0].mxu0
        %v2062 = vpop.f32.mrb[0].mxu0
        %v2063 = vadd.f32 0.0, %v2062
        %v2064 = vpop.f32.mrb[0].mxu0
        %2065 = vdwg.mxu0
        %v2066 = vadd.f32 %v1948, %v2028
        %v2067 = vadd.f32 %v1949, %v2031
        %v2068 = vadd.f32 %v1950, %v2036
        %v2069 = vadd.f32 %v1951, %v2039
        %v2070 = vadd.f32 %v1952, %v2044
        %v2071 = vadd.f32 %v1953, %v2047
        %v2072 = vadd.f32 %v1954, %v2052
        %v2073 = vadd.f32 %v1955, %v2055
        %v2074 = vadd.f32 %v1956, %v2060
        %v2075 = vadd.f32 %v1957, %v2063
        %v2076 = vld [vmem:[%s325 + $0x4] sm:$0xe]
        %v2077 = vld [vmem:[%s325 + $0x8] sm:$0xf]
        %v2078 = vld [vmem:[%s325 + $0xc] sm:$0xf]
        %v2079 = vld [vmem:[%s325 + $0x10] sm:$0xf]
        %v2080 = vld [vmem:[%s325 + $0x14] sm:$0xf]
        %v2081 = vld [vmem:[%s325 + $0x18] sm:$0xf]
        %v2082 = vld [vmem:[%s325 + $0x1c] sm:$0xf]
        %v2083 = vld [vmem:[%s325 + $0x20] sm:$0xf]
        %v2084 = vld [vmem:[%s325 + $0x24] sm:$0xf]
        %v2085 = vld [vmem:[%s325 + $0x28] sm:$0xf]
        %v2086 = vld [vmem:[%s325 + $0x2c] sm:$0x1]
        %s2087 = scalar_lea.vmem [#allocation8], 24
        %v2088 = vld [vmem:[%s2087] sm:$0x3]
        %v2100 = vunpack.c.l.b16 %v2076
        %v2101 = vunpack.c.l.b16 %v2077
        %v2102 = vunpack.c.l.b16 %v2078
        %v2103 = vunpack.c.l.b16 %v2079
        %v2104 = vunpack.c.l.b16 %v2080
        %v2105 = vunpack.c.l.b16 %v2081
        %v2106 = vunpack.c.l.b16 %v2082
        %v2107 = vunpack.c.l.b16 %v2083
        %v2108 = vunpack.c.l.b16 %v2084
        %v2109 = vunpack.c.l.b16 %v2085
        %v2110 = vunpack.c.l.b16 %v2086
        %v2111 = vpack.c.b16 %v2101, %v2100
        %v2112 = vpack.c.b16 %v2103, %v2102
        %v2113 = vpack.c.b16 %v2105, %v2104
        %v2114 = vpack.c.b16 %v2107, %v2106
        %v2115 = vpack.c.b16 %v2109, %v2108
        %v2116 = vpack.c.b16 %v2110, %v2110
        %v2117 = vrot.slane %v2111, 1
        %v2118 = vrot.slane %v2112, 1
        %v2119 = vsel %vm655, %v2117, %v2118
        %v2120 = vrot.slane %v2113, 1
        %v2121 = vsel %vm655, %v2118, %v2120
        %v2122 = vrot.slane %v2114, 1
        %v2123 = vsel %vm655, %v2120, %v2122
        %v2124 = vrot.slane %v2115, 1
        %v2125 = vsel %vm655, %v2122, %v2124
        %v2126 = vrot.slane %v2116, 1
        %v2127 = vsel %vm655, %v2124, %v2126
        %v2129 = vsel %vm470, %v2119, 0
        %v2132 = vsel %vm470, %v2121, 0
        %v2135 = vsel %vm470, %v2123, 0
        %v2138 = vsel %vm470, %v2125, 0
        %v2141 = vsel %vm470, %v2127, 0
        %v2144 = vsel %vm486, %v2088, 0
        %2146 = vmatprep.subr.bf16.mxu0 0
        %2147 = vmatpush1.bf16.msra.mxu0 %v2144
        %2148 = vmatprep.subr.bf16.mxu0 0
        %2149 = vmatpush1.bf16.msra.mxu0 0
        %2150 = vmatprep.subr.bf16.mxu0 0
        %2151 = vmatpush1.bf16.msra.mxu0 0
        %2152 = vmatprep.subr.bf16.mxu0 0
        %2153 = vmatpush1.bf16.msra.mxu0 0
        %2154 = vmatprep.subr.bf16.mxu0 0
        %2155 = vmatpush1.bf16.msra.mxu0 0
        %2156 = vmatprep.subr.bf16.mxu0 0
        %2157 = vmatpush1.bf16.msra.mxu0 0
        %2158 = vmatprep.subr.bf16.mxu0 0
        %2159 = vmatpush1.bf16.msra.mxu0 0
        %2160 = vmatprep.subr.bf16.mxu0 0
        %2161 = vmatpush1.bf16.msra.mxu0 0
        %2162 = vmatprep.subr.bf16.mxu0 0
        %2163 = vmatpush1.bf16.msra.mxu0 0
        %2164 = vmatprep.subr.bf16.mxu0 0
        %2165 = vmatpush1.bf16.msra.mxu0 0
        %2166 = vmatprep.subr.bf16.mxu0 0
        %2167 = vmatpush1.bf16.msra.mxu0 0
        %2168 = vmatprep.subr.bf16.mxu0 0
        %2169 = vmatpush1.bf16.msra.mxu0 0
        %2170 = vmatprep.subr.bf16.mxu0 0
        %2171 = vmatpush1.bf16.msra.mxu0 0
        %2172 = vmatprep.subr.bf16.mxu0 0
        %2173 = vmatpush1.bf16.msra.mxu0 0
        %2174 = vmatprep.subr.bf16.mxu0 0
        %2175 = vmatpush1.bf16.msra.mxu0 0
        %2176 = vmatprep.subr.bf16.mxu0 0
        %2177 = vmatpush1.bf16.msra.mxu0 0
        %2178 = vmatprep.mubr.bf16.mxu0 0
        %2179 = vmatmul.mubr.bf16.gmra.mrb[0].mxu0 %v2129
        %v2180 = vpop.f32.mrb[0].mxu0
        %v2181 = vadd.f32 0.0, %v2180
        %v2182 = vpop.f32.mrb[0].mxu0
        %v2183 = vpop.f32.mrb[0].mxu0
        %v2184 = vadd.f32 0.0, %v2183
        %v2185 = vpop.f32.mrb[0].mxu0
        %2186 = vmatprep.mubr.bf16.mxu0 0
        %2187 = vmatmul.mubr.bf16.gmra.mrb[0].mxu0 %v2132
        %v2188 = vpop.f32.mrb[0].mxu0
        %v2189 = vadd.f32 0.0, %v2188
        %v2190 = vpop.f32.mrb[0].mxu0
        %v2191 = vpop.f32.mrb[0].mxu0
        %v2192 = vadd.f32 0.0, %v2191
        %v2193 = vpop.f32.mrb[0].mxu0
        %2194 = vmatprep.mubr.bf16.mxu0 0
        %2195 = vmatmul.mubr.bf16.gmra.mrb[0].mxu0 %v2135
        %v2196 = vpop.f32.mrb[0].mxu0
        %v2197 = vadd.f32 0.0, %v2196
        %v2198 = vpop.f32.mrb[0].mxu0
        %v2199 = vpop.f32.mrb[0].mxu0
        %v2200 = vadd.f32 0.0, %v2199
        %v2201 = vpop.f32.mrb[0].mxu0
        %2202 = vmatprep.mubr.bf16.mxu0 0
        %2203 = vmatmul.mubr.bf16.gmra.mrb[0].mxu0 %v2138
        %v2204 = vpop.f32.mrb[0].mxu0
        %v2205 = vadd.f32 0.0, %v2204
        %v2206 = vpop.f32.mrb[0].mxu0
        %v2207 = vpop.f32.mrb[0].mxu0
        %v2208 = vadd.f32 0.0, %v2207
        %v2209 = vpop.f32.mrb[0].mxu0
        %2210 = vmatprep.mubr.bf16.mxu0 0
        %2211 = vmatmul.mubr.bf16.gmra.mrb[0].mxu0 %v2141
        %v2212 = vpop.f32.mrb[0].mxu0
        %v2213 = vadd.f32 0.0, %v2212
        %v2214 = vpop.f32.mrb[0].mxu0
        %v2215 = vpop.f32.mrb[0].mxu0
        %v2216 = vadd.f32 0.0, %v2215
        %v2217 = vpop.f32.mrb[0].mxu0
        %2218 = vdwg.mxu0
        %v2219 = vadd.f32 %v2066, %v2181
        %v2220 = vadd.f32 %v2067, %v2184
        %v2221 = vadd.f32 %v2068, %v2189
        %v2222 = vadd.f32 %v2069, %v2192
        %v2223 = vadd.f32 %v2070, %v2197
        %v2224 = vadd.f32 %v2071, %v2200
        %v2225 = vadd.f32 %v2072, %v2205
        %v2226 = vadd.f32 %v2073, %v2208
        %v2227 = vadd.f32 %v2074, %v2213
        %v2228 = vadd.f32 %v2075, %v2216
        %v2229 = vld [vmem:[%s325 + $0x2c] sm:$0x3]
        %s2230 = scalar_lea.vmem [#allocation8], 26
        %v2231 = vld [vmem:[%s2230] sm:$0x3]
        %v2233 = vunpack.c.l.b16 %v2229
        %v2234 = vpack.c.b16 %v2233, %v2233
        %v2236 = vshrl.u32 %v2111, 16
        %v2238 = vrot.slane %v2236, 1
        %v2239 = vshll.u32 %v2111, 16
        %v2241 = vrot.slane %v2239, 2
        %v2242 = vor.u32 %v2238, %v2241
        %v2244 = vshrl.u32 %v2112, 16
        %v2246 = vrot.slane %v2244, 1
        %v2247 = vshll.u32 %v2112, 16
        %v2249 = vrot.slane %v2247, 2
        %v2250 = vor.u32 %v2246, %v2249
        %v2251 = vsel %vm927, %v2242, %v2250
        %v2253 = vshrl.u32 %v2113, 16
        %v2255 = vrot.slane %v2253, 1
        %v2256 = vshll.u32 %v2113, 16
        %v2258 = vrot.slane %v2256, 2
        %v2259 = vor.u32 %v2255, %v2258
        %v2260 = vsel %vm927, %v2250, %v2259
        %v2262 = vshrl.u32 %v2114, 16
        %v2264 = vrot.slane %v2262, 1
        %v2265 = vshll.u32 %v2114, 16
        %v2267 = vrot.slane %v2265, 2
        %v2268 = vor.u32 %v2264, %v2267
        %v2269 = vsel %vm927, %v2259, %v2268
        %v2271 = vshrl.u32 %v2115, 16
        %v2273 = vrot.slane %v2271, 1
        %v2274 = vshll.u32 %v2115, 16
        %v2276 = vrot.slane %v2274, 2
        %v2277 = vor.u32 %v2273, %v2276
        %v2278 = vsel %vm927, %v2268, %v2277
        %v2280 = vshrl.u32 %v2234, 16
        %v2282 = vrot.slane %v2280, 1
        %v2283 = vshll.u32 %v2234, 16
        %v2285 = vrot.slane %v2283, 2
        %v2286 = vor.u32 %v2282, %v2285
        %v2287 = vsel %vm927, %v2277, %v2286
        %v2289 = vsel %vm470, %v2251, 0
        %v2292 = vsel %vm470, %v2260, 0
        %v2295 = vsel %vm470, %v2269, 0
        %v2298 = vsel %vm470, %v2278, 0
        %v2301 = vsel %vm470, %v2287, 0
        %v2304 = vsel %vm486, %v2231, 0
        %2306 = vmatprep.subr.bf16.mxu0 0
        %2307 = vmatpush1.bf16.msra.mxu0 %v2304
        %2308 = vmatprep.subr.bf16.mxu0 0
        %2309 = vmatpush1.bf16.msra.mxu0 0
        %2310 = vmatprep.subr.bf16.mxu0 0
        %2311 = vmatpush1.bf16.msra.mxu0 0
        %2312 = vmatprep.subr.bf16.mxu0 0
        %2313 = vmatpush1.bf16.msra.mxu0 0
        %2314 = vmatprep.subr.bf16.mxu0 0
        %2315 = vmatpush1.bf16.msra.mxu0 0
        %2316 = vmatprep.subr.bf16.mxu0 0
        %2317 = vmatpush1.bf16.msra.mxu0 0
        %2318 = vmatprep.subr.bf16.mxu0 0
        %2319 = vmatpush1.bf16.msra.mxu0 0
        %2320 = vmatprep.subr.bf16.mxu0 0
        %2321 = vmatpush1.bf16.msra.mxu0 0
        %2322 = vmatprep.subr.bf16.mxu0 0
        %2323 = vmatpush1.bf16.msra.mxu0 0
        %2324 = vmatprep.subr.bf16.mxu0 0
        %2325 = vmatpush1.bf16.msra.mxu0 0
        %2326 = vmatprep.subr.bf16.mxu0 0
        %2327 = vmatpush1.bf16.msra.mxu0 0
        %2328 = vmatprep.subr.bf16.mxu0 0
        %2329 = vmatpush1.bf16.msra.mxu0 0
        %2330 = vmatprep.subr.bf16.mxu0 0
        %2331 = vmatpush1.bf16.msra.mxu0 0
        %2332 = vmatprep.subr.bf16.mxu0 0
        %2333 = vmatpush1.bf16.msra.mxu0 0
        %2334 = vmatprep.subr.bf16.mxu0 0
        %2335 = vmatpush1.bf16.msra.mxu0 0
        %2336 = vmatprep.subr.bf16.mxu0 0
        %2337 = vmatpush1.bf16.msra.mxu0 0
        %2338 = vmatprep.mubr.bf16.mxu0 0
        %2339 = vmatmul.mubr.bf16.gmra.mrb[0].mxu0 %v2289
        %v2340 = vpop.f32.mrb[0].mxu0
        %v2341 = vadd.f32 0.0, %v2340
        %v2342 = vpop.f32.mrb[0].mxu0
        %v2343 = vpop.f32.mrb[0].mxu0
        %v2344 = vadd.f32 0.0, %v2343
        %v2345 = vpop.f32.mrb[0].mxu0
        %2346 = vmatprep.mubr.bf16.mxu0 0
        %2347 = vmatmul.mubr.bf16.gmra.mrb[0].mxu0 %v2292
        %v2348 = vpop.f32.mrb[0].mxu0
        %v2349 = vadd.f32 0.0, %v2348
        %v2350 = vpop.f32.mrb[0].mxu0
        %v2351 = vpop.f32.mrb[0].mxu0
        %v2352 = vadd.f32 0.0, %v2351
        %v2353 = vpop.f32.mrb[0].mxu0
        %2354 = vmatprep.mubr.bf16.mxu0 0
        %2355 = vmatmul.mubr.bf16.gmra.mrb[0].mxu0 %v2295
        %v2356 = vpop.f32.mrb[0].mxu0
        %v2357 = vadd.f32 0.0, %v2356
        %v2358 = vpop.f32.mrb[0].mxu0
        %v2359 = vpop.f32.mrb[0].mxu0
        %v2360 = vadd.f32 0.0, %v2359
        %v2361 = vpop.f32.mrb[0].mxu0
        %2362 = vmatprep.mubr.bf16.mxu0 0
        %2363 = vmatmul.mubr.bf16.gmra.mrb[0].mxu0 %v2298
        %v2364 = vpop.f32.mrb[0].mxu0
        %v2365 = vadd.f32 0.0, %v2364
        %v2366 = vpop.f32.mrb[0].mxu0
        %v2367 = vpop.f32.mrb[0].mxu0
        %v2368 = vadd.f32 0.0, %v2367
        %v2369 = vpop.f32.mrb[0].mxu0
        %2370 = vmatprep.mubr.bf16.mxu0 0
        %2371 = vmatmul.mubr.bf16.gmra.mrb[0].mxu0 %v2301
        %v2372 = vpop.f32.mrb[0].mxu0
        %v2373 = vadd.f32 0.0, %v2372
        %v2374 = vpop.f32.mrb[0].mxu0
        %v2375 = vpop.f32.mrb[0].mxu0
        %v2376 = vadd.f32 0.0, %v2375
        %v2377 = vpop.f32.mrb[0].mxu0
        %2378 = vdwg.mxu0
        %v2379 = vadd.f32 %v2219, %v2341
        %v2380 = vadd.f32 %v2220, %v2344
        %v2381 = vadd.f32 %v2221, %v2349
        %v2382 = vadd.f32 %v2222, %v2352
        %v2383 = vadd.f32 %v2223, %v2357
        %v2384 = vadd.f32 %v2224, %v2360
        %v2385 = vadd.f32 %v2225, %v2365
        %v2386 = vadd.f32 %v2226, %v2368
        %v2387 = vadd.f32 %v2227, %v2373
        %v2388 = vadd.f32 %v2228, %v2376
        %v2389 = vld [vmem:[%s325 + $0x4] sm:$0xc]
        %s2390 = scalar_lea.vmem [#allocation8], 28
        %v2391 = vld [vmem:[%s2390] sm:$0x3]
        %v2393 = vunpack.c.l.b16 %v2389
        %v2394 = vpack.c.b16 %v2101, %v2393
        %v2395 = vrot.slane %v2394, 2
        %v2396 = vrot.slane %v2112, 2
        %v2397 = vsel %vm1088, %v2395, %v2396
        %v2398 = vrot.slane %v2113, 2
        %v2399 = vsel %vm1088, %v2396, %v2398
        %v2400 = vrot.slane %v2114, 2
        %v2401 = vsel %vm1088, %v2398, %v2400
        %v2402 = vrot.slane %v2115, 2
        %v2403 = vsel %vm1088, %v2400, %v2402
        %v2404 = vrot.slane %v2234, 2
        %v2405 = vsel %vm1088, %v2402, %v2404
        %v2407 = vsel %vm470, %v2397, 0
        %v2410 = vsel %vm470, %v2399, 0
        %v2413 = vsel %vm470, %v2401, 0
        %v2416 = vsel %vm470, %v2403, 0
        %v2419 = vsel %vm470, %v2405, 0
        %v2422 = vsel %vm486, %v2391, 0
        %2424 = vmatprep.subr.bf16.mxu0 0
        %2425 = vmatpush1.bf16.msra.mxu0 %v2422
        %2426 = vmatprep.subr.bf16.mxu0 0
        %2427 = vmatpush1.bf16.msra.mxu0 0
        %2428 = vmatprep.subr.bf16.mxu0 0
        %2429 = vmatpush1.bf16.msra.mxu0 0
        %2430 = vmatprep.subr.bf16.mxu0 0
        %2431 = vmatpush1.bf16.msra.mxu0 0
        %2432 = vmatprep.subr.bf16.mxu0 0
        %2433 = vmatpush1.bf16.msra.mxu0 0
        %2434 = vmatprep.subr.bf16.mxu0 0
        %2435 = vmatpush1.bf16.msra.mxu0 0
        %2436 = vmatprep.subr.bf16.mxu0 0
        %2437 = vmatpush1.bf16.msra.mxu0 0
        %2438 = vmatprep.subr.bf16.mxu0 0
        %2439 = vmatpush1.bf16.msra.mxu0 0
        %2440 = vmatprep.subr.bf16.mxu0 0
        %2441 = vmatpush1.bf16.msra.mxu0 0
        %2442 = vmatprep.subr.bf16.mxu0 0
        %2443 = vmatpush1.bf16.msra.mxu0 0
        %2444 = vmatprep.subr.bf16.mxu0 0
        %2445 = vmatpush1.bf16.msra.mxu0 0
        %2446 = vmatprep.subr.bf16.mxu0 0
        %2447 = vmatpush1.bf16.msra.mxu0 0
        %2448 = vmatprep.subr.bf16.mxu0 0
        %2449 = vmatpush1.bf16.msra.mxu0 0
        %2450 = vmatprep.subr.bf16.mxu0 0
        %2451 = vmatpush1.bf16.msra.mxu0 0
        %2452 = vmatprep.subr.bf16.mxu0 0
        %2453 = vmatpush1.bf16.msra.mxu0 0
        %2454 = vmatprep.subr.bf16.mxu0 0
        %2455 = vmatpush1.bf16.msra.mxu0 0
        %2456 = vmatprep.mubr.bf16.mxu0 0
        %2457 = vmatmul.mubr.bf16.gmra.mrb[0].mxu0 %v2407
        %v2458 = vpop.f32.mrb[0].mxu0
        %v2459 = vadd.f32 0.0, %v2458
        %v2460 = vpop.f32.mrb[0].mxu0
        %v2461 = vpop.f32.mrb[0].mxu0
        %v2462 = vadd.f32 0.0, %v2461
        %v2463 = vpop.f32.mrb[0].mxu0
        %2464 = vmatprep.mubr.bf16.mxu0 0
        %2465 = vmatmul.mubr.bf16.gmra.mrb[0].mxu0 %v2410
        %v2466 = vpop.f32.mrb[0].mxu0
        %v2467 = vadd.f32 0.0, %v2466
        %v2468 = vpop.f32.mrb[0].mxu0
        %v2469 = vpop.f32.mrb[0].mxu0
        %v2470 = vadd.f32 0.0, %v2469
        %v2471 = vpop.f32.mrb[0].mxu0
        %2472 = vmatprep.mubr.bf16.mxu0 0
        %2473 = vmatmul.mubr.bf16.gmra.mrb[0].mxu0 %v2413
        %v2474 = vpop.f32.mrb[0].mxu0
        %v2475 = vadd.f32 0.0, %v2474
        %v2476 = vpop.f32.mrb[0].mxu0
        %v2477 = vpop.f32.mrb[0].mxu0
        %v2478 = vadd.f32 0.0, %v2477
        %v2479 = vpop.f32.mrb[0].mxu0
        %2480 = vmatprep.mubr.bf16.mxu0 0
        %2481 = vmatmul.mubr.bf16.gmra.mrb[0].mxu0 %v2416
        %v2482 = vpop.f32.mrb[0].mxu0
        %v2483 = vadd.f32 0.0, %v2482
        %v2484 = vpop.f32.mrb[0].mxu0
        %v2485 = vpop.f32.mrb[0].mxu0
        %v2486 = vadd.f32 0.0, %v2485
        %v2487 = vpop.f32.mrb[0].mxu0
        %2488 = vmatprep.mubr.bf16.mxu0 0
        %2489 = vmatmul.mubr.bf16.gmra.mrb[0].mxu0 %v2419
        %v2490 = vpop.f32.mrb[0].mxu0
        %v2491 = vadd.f32 0.0, %v2490
        %v2492 = vpop.f32.mrb[0].mxu0
        %v2493 = vpop.f32.mrb[0].mxu0
        %v2494 = vadd.f32 0.0, %v2493
        %v2495 = vpop.f32.mrb[0].mxu0
        %2496 = vdwg.mxu0
        %v2497 = vadd.f32 %v2379, %v2459
        %v2498 = vadd.f32 %v2380, %v2462
        %v2499 = vadd.f32 %v2381, %v2467
        %v2500 = vadd.f32 %v2382, %v2470
        %v2501 = vadd.f32 %v2383, %v2475
        %v2502 = vadd.f32 %v2384, %v2478
        %v2503 = vadd.f32 %v2385, %v2483
        %v2504 = vadd.f32 %v2386, %v2486
        %v2505 = vadd.f32 %v2387, %v2491
        %v2506 = vadd.f32 %v2388, %v2494
        %v2507 = vld [vmem:[%s325 + $0x8] sm:$0xc]
        %v2508 = vld [vmem:[%s325 + $0xc] sm:$0xf]
        %v2509 = vld [vmem:[%s325 + $0x10] sm:$0xf]
        %v2510 = vld [vmem:[%s325 + $0x14] sm:$0xf]
        %v2511 = vld [vmem:[%s325 + $0x18] sm:$0xf]
        %v2512 = vld [vmem:[%s325 + $0x1c] sm:$0xf]
        %v2513 = vld [vmem:[%s325 + $0x20] sm:$0xf]
        %v2514 = vld [vmem:[%s325 + $0x24] sm:$0xf]
        %v2515 = vld [vmem:[%s325 + $0x28] sm:$0xf]
        %v2516 = vld [vmem:[%s325 + $0x2c] sm:$0xf]
        %v2517 = vld [vmem:[%s325 + $0x30] sm:$0x3]
        %s2518 = scalar_lea.vmem [#allocation8], 30
        %v2519 = vld [vmem:[%s2518] sm:$0x3]
        %v2531 = vunpack.c.l.b16 %v2507
        %v2532 = vunpack.c.l.b16 %v2508
        %v2533 = vunpack.c.l.b16 %v2509
        %v2534 = vunpack.c.l.b16 %v2510
        %v2535 = vunpack.c.l.b16 %v2511
        %v2536 = vunpack.c.l.b16 %v2512
        %v2537 = vunpack.c.l.b16 %v2513
        %v2538 = vunpack.c.l.b16 %v2514
        %v2539 = vunpack.c.l.b16 %v2515
        %v2540 = vunpack.c.l.b16 %v2516
        %v2541 = vunpack.c.l.b16 %v2517
        %v2542 = vpack.c.b16 %v2532, %v2531
        %v2543 = vpack.c.b16 %v2534, %v2533
        %v2544 = vpack.c.b16 %v2536, %v2535
        %v2545 = vpack.c.b16 %v2538, %v2537
        %v2546 = vpack.c.b16 %v2540, %v2539
        %v2547 = vpack.c.b16 %v2541, %v2541
        %v2548 = vrot.slane %v2542, 2
        %v2549 = vrot.slane %v2543, 2
        %v2550 = vsel %vm1088, %v2548, %v2549
        %v2551 = vrot.slane %v2544, 2
        %v2552 = vsel %vm1088, %v2549, %v2551
        %v2553 = vrot.slane %v2545, 2
        %v2554 = vsel %vm1088, %v2551, %v2553
        %v2555 = vrot.slane %v2546, 2
        %v2556 = vsel %vm1088, %v2553, %v2555
        %v2557 = vrot.slane %v2547, 2
        %v2558 = vsel %vm1088, %v2555, %v2557
        %v2560 = vsel %vm470, %v2550, 0
        %v2563 = vsel %vm470, %v2552, 0
        %v2566 = vsel %vm470, %v2554, 0
        %v2569 = vsel %vm470, %v2556, 0
        %v2572 = vsel %vm470, %v2558, 0
        %v2575 = vsel %vm486, %v2519, 0
        %2577 = vmatprep.subr.bf16.mxu0 0
        %2578 = vmatpush1.bf16.msra.mxu0 %v2575
        %2579 = vmatprep.subr.bf16.mxu0 0
        %2580 = vmatpush1.bf16.msra.mxu0 0
        %2581 = vmatprep.subr.bf16.mxu0 0
        %2582 = vmatpush1.bf16.msra.mxu0 0
        %2583 = vmatprep.subr.bf16.mxu0 0
        %2584 = vmatpush1.bf16.msra.mxu0 0
        %2585 = vmatprep.subr.bf16.mxu0 0
        %2586 = vmatpush1.bf16.msra.mxu0 0
        %2587 = vmatprep.subr.bf16.mxu0 0
        %2588 = vmatpush1.bf16.msra.mxu0 0
        %2589 = vmatprep.subr.bf16.mxu0 0
        %2590 = vmatpush1.bf16.msra.mxu0 0
        %2591 = vmatprep.subr.bf16.mxu0 0
        %2592 = vmatpush1.bf16.msra.mxu0 0
        %2593 = vmatprep.subr.bf16.mxu0 0
        %2594 = vmatpush1.bf16.msra.mxu0 0
        %2595 = vmatprep.subr.bf16.mxu0 0
        %2596 = vmatpush1.bf16.msra.mxu0 0
        %2597 = vmatprep.subr.bf16.mxu0 0
        %2598 = vmatpush1.bf16.msra.mxu0 0
        %2599 = vmatprep.subr.bf16.mxu0 0
        %2600 = vmatpush1.bf16.msra.mxu0 0
        %2601 = vmatprep.subr.bf16.mxu0 0
        %2602 = vmatpush1.bf16.msra.mxu0 0
        %2603 = vmatprep.subr.bf16.mxu0 0
        %2604 = vmatpush1.bf16.msra.mxu0 0
        %2605 = vmatprep.subr.bf16.mxu0 0
        %2606 = vmatpush1.bf16.msra.mxu0 0
        %2607 = vmatprep.subr.bf16.mxu0 0
        %2608 = vmatpush1.bf16.msra.mxu0 0
        %2609 = vmatprep.mubr.bf16.mxu0 0
        %2610 = vmatmul.mubr.bf16.gmra.mrb[0].mxu0 %v2560
        %v2611 = vpop.f32.mrb[0].mxu0
        %v2612 = vadd.f32 0.0, %v2611
        %v2613 = vpop.f32.mrb[0].mxu0
        %v2614 = vpop.f32.mrb[0].mxu0
        %v2615 = vadd.f32 0.0, %v2614
        %v2616 = vpop.f32.mrb[0].mxu0
        %2617 = vmatprep.mubr.bf16.mxu0 0
        %2618 = vmatmul.mubr.bf16.gmra.mrb[0].mxu0 %v2563
        %v2619 = vpop.f32.mrb[0].mxu0
        %v2620 = vadd.f32 0.0, %v2619
        %v2621 = vpop.f32.mrb[0].mxu0
        %v2622 = vpop.f32.mrb[0].mxu0
        %v2623 = vadd.f32 0.0, %v2622
        %v2624 = vpop.f32.mrb[0].mxu0
        %2625 = vmatprep.mubr.bf16.mxu0 0
        %2626 = vmatmul.mubr.bf16.gmra.mrb[0].mxu0 %v2566
        %v2627 = vpop.f32.mrb[0].mxu0
        %v2628 = vadd.f32 0.0, %v2627
        %v2629 = vpop.f32.mrb[0].mxu0
        %v2630 = vpop.f32.mrb[0].mxu0
        %v2631 = vadd.f32 0.0, %v2630
        %v2632 = vpop.f32.mrb[0].mxu0
        %2633 = vmatprep.mubr.bf16.mxu0 0
        %2634 = vmatmul.mubr.bf16.gmra.mrb[0].mxu0 %v2569
        %v2635 = vpop.f32.mrb[0].mxu0
        %v2636 = vadd.f32 0.0, %v2635
        %v2637 = vpop.f32.mrb[0].mxu0
        %v2638 = vpop.f32.mrb[0].mxu0
        %v2639 = vadd.f32 0.0, %v2638
        %v2640 = vpop.f32.mrb[0].mxu0
        %2641 = vmatprep.mubr.bf16.mxu0 0
        %2642 = vmatmul.mubr.bf16.gmra.mrb[0].mxu0 %v2572
        %v2643 = vpop.f32.mrb[0].mxu0
        %v2644 = vadd.f32 0.0, %v2643
        %v2645 = vpop.f32.mrb[0].mxu0
        %v2646 = vpop.f32.mrb[0].mxu0
        %v2647 = vadd.f32 0.0, %v2646
        %v2648 = vpop.f32.mrb[0].mxu0
        %2649 = vdwg.mxu0
        %v2650 = vadd.f32 %v2497, %v2612
        %v2651 = vadd.f32 %v2498, %v2615
        %v2652 = vadd.f32 %v2499, %v2620
        %v2653 = vadd.f32 %v2500, %v2623
        %v2654 = vadd.f32 %v2501, %v2628
        %v2655 = vadd.f32 %v2502, %v2631
        %v2656 = vadd.f32 %v2503, %v2636
        %v2657 = vadd.f32 %v2504, %v2639
        %v2658 = vadd.f32 %v2505, %v2644
        %v2659 = vadd.f32 %v2506, %v2647
        %v2660 = vld [vmem:[%s325 + $0x30] sm:$0x7]
        %s2661 = scalar_lea.vmem [#allocation8], 32
        %v2662 = vld [vmem:[%s2661] sm:$0x3]
        %v2664 = vunpack.c.l.b16 %v2660
        %v2665 = vpack.c.b16 %v2664, %v2664
        %v2667 = vshrl.u32 %v2542, 16
        %v2669 = vrot.slane %v2667, 2
        %v2670 = vshll.u32 %v2542, 16
        %v2672 = vrot.slane %v2670, 3
        %v2673 = vor.u32 %v2669, %v2672
        %v2675 = vshrl.u32 %v2543, 16
        %v2677 = vrot.slane %v2675, 2
        %v2678 = vshll.u32 %v2543, 16
        %v2680 = vrot.slane %v2678, 3
        %v2681 = vor.u32 %v2677, %v2680
        %v2682 = vsel %vm1360, %v2673, %v2681
        %v2684 = vshrl.u32 %v2544, 16
        %v2686 = vrot.slane %v2684, 2
        %v2687 = vshll.u32 %v2544, 16
        %v2689 = vrot.slane %v2687, 3
        %v2690 = vor.u32 %v2686, %v2689
        %v2691 = vsel %vm1360, %v2681, %v2690
        %v2693 = vshrl.u32 %v2545, 16
        %v2695 = vrot.slane %v2693, 2
        %v2696 = vshll.u32 %v2545, 16
        %v2698 = vrot.slane %v2696, 3
        %v2699 = vor.u32 %v2695, %v2698
        %v2700 = vsel %vm1360, %v2690, %v2699
        %v2702 = vshrl.u32 %v2546, 16
        %v2704 = vrot.slane %v2702, 2
        %v2705 = vshll.u32 %v2546, 16
        %v2707 = vrot.slane %v2705, 3
        %v2708 = vor.u32 %v2704, %v2707
        %v2709 = vsel %vm1360, %v2699, %v2708
        %v2711 = vshrl.u32 %v2665, 16
        %v2713 = vrot.slane %v2711, 2
        %v2714 = vshll.u32 %v2665, 16
        %v2716 = vrot.slane %v2714, 3
        %v2717 = vor.u32 %v2713, %v2716
        %v2718 = vsel %vm1360, %v2708, %v2717
        %v2720 = vsel %vm470, %v2682, 0
        %v2723 = vsel %vm470, %v2691, 0
        %v2726 = vsel %vm470, %v2700, 0
        %v2729 = vsel %vm470, %v2709, 0
        %v2732 = vsel %vm470, %v2718, 0
        %v2735 = vsel %vm486, %v2662, 0
        %2737 = vmatprep.subr.bf16.mxu0 0
        %2738 = vmatpush1.bf16.msra.mxu0 %v2735
        %2739 = vmatprep.subr.bf16.mxu0 0
        %2740 = vmatpush1.bf16.msra.mxu0 0
        %2741 = vmatprep.subr.bf16.mxu0 0
        %2742 = vmatpush1.bf16.msra.mxu0 0
        %2743 = vmatprep.subr.bf16.mxu0 0
        %2744 = vmatpush1.bf16.msra.mxu0 0
        %2745 = vmatprep.subr.bf16.mxu0 0
        %2746 = vmatpush1.bf16.msra.mxu0 0
        %2747 = vmatprep.subr.bf16.mxu0 0
        %2748 = vmatpush1.bf16.msra.mxu0 0
        %2749 = vmatprep.subr.bf16.mxu0 0
        %2750 = vmatpush1.bf16.msra.mxu0 0
        %2751 = vmatprep.subr.bf16.mxu0 0
        %2752 = vmatpush1.bf16.msra.mxu0 0
        %2753 = vmatprep.subr.bf16.mxu0 0
        %2754 = vmatpush1.bf16.msra.mxu0 0
        %2755 = vmatprep.subr.bf16.mxu0 0
        %2756 = vmatpush1.bf16.msra.mxu0 0
        %2757 = vmatprep.subr.bf16.mxu0 0
        %2758 = vmatpush1.bf16.msra.mxu0 0
        %2759 = vmatprep.subr.bf16.mxu0 0
        %2760 = vmatpush1.bf16.msra.mxu0 0
        %2761 = vmatprep.subr.bf16.mxu0 0
        %2762 = vmatpush1.bf16.msra.mxu0 0
        %2763 = vmatprep.subr.bf16.mxu0 0
        %2764 = vmatpush1.bf16.msra.mxu0 0
        %2765 = vmatprep.subr.bf16.mxu0 0
        %2766 = vmatpush1.bf16.msra.mxu0 0
        %2767 = vmatprep.subr.bf16.mxu0 0
        %2768 = vmatpush1.bf16.msra.mxu0 0
        %2769 = vmatprep.mubr.bf16.mxu0 0
        %2770 = vmatmul.mubr.bf16.gmra.mrb[0].mxu0 %v2720
        %v2771 = vpop.f32.mrb[0].mxu0
        %v2772 = vadd.f32 0.0, %v2771
        %v2773 = vpop.f32.mrb[0].mxu0
        %v2774 = vpop.f32.mrb[0].mxu0
        %v2775 = vadd.f32 0.0, %v2774
        %v2776 = vpop.f32.mrb[0].mxu0
        %2777 = vmatprep.mubr.bf16.mxu0 0
        %2778 = vmatmul.mubr.bf16.gmra.mrb[0].mxu0 %v2723
        %v2779 = vpop.f32.mrb[0].mxu0
        %v2780 = vadd.f32 0.0, %v2779
        %v2781 = vpop.f32.mrb[0].mxu0
        %v2782 = vpop.f32.mrb[0].mxu0
        %v2783 = vadd.f32 0.0, %v2782
        %v2784 = vpop.f32.mrb[0].mxu0
        %2785 = vmatprep.mubr.bf16.mxu0 0
        %2786 = vmatmul.mubr.bf16.gmra.mrb[0].mxu0 %v2726
        %v2787 = vpop.f32.mrb[0].mxu0
        %v2788 = vadd.f32 0.0, %v2787
        %v2789 = vpop.f32.mrb[0].mxu0
        %v2790 = vpop.f32.mrb[0].mxu0
        %v2791 = vadd.f32 0.0, %v2790
        %v2792 = vpop.f32.mrb[0].mxu0
        %2793 = vmatprep.mubr.bf16.mxu0 0
        %2794 = vmatmul.mubr.bf16.gmra.mrb[0].mxu0 %v2729
        %v2795 = vpop.f32.mrb[0].mxu0
        %v2796 = vadd.f32 0.0, %v2795
        %v2797 = vpop.f32.mrb[0].mxu0
        %v2798 = vpop.f32.mrb[0].mxu0
        %v2799 = vadd.f32 0.0, %v2798
        %v2800 = vpop.f32.mrb[0].mxu0
        %2801 = vmatprep.mubr.bf16.mxu0 0
        %2802 = vmatmul.mubr.bf16.gmra.mrb[0].mxu0 %v2732
        %v2803 = vpop.f32.mrb[0].mxu0
        %v2804 = vadd.f32 0.0, %v2803
        %v2805 = vpop.f32.mrb[0].mxu0
        %v2806 = vpop.f32.mrb[0].mxu0
        %v2807 = vadd.f32 0.0, %v2806
        %v2808 = vpop.f32.mrb[0].mxu0
        %2809 = vdwg.mxu0
        %v2810 = vadd.f32 %v2650, %v2772
        %v2811 = vadd.f32 %v2651, %v2775
        %v2812 = vadd.f32 %v2652, %v2780
        %v2813 = vadd.f32 %v2653, %v2783
        %v2814 = vadd.f32 %v2654, %v2788
        %v2815 = vadd.f32 %v2655, %v2791
        %v2816 = vadd.f32 %v2656, %v2796
        %v2817 = vadd.f32 %v2657, %v2799
        %v2818 = vadd.f32 %v2658, %v2804
        %v2819 = vadd.f32 %v2659, %v2807
        %v2820 = vld [vmem:[%s325 + $0x8] sm:$0x8]
        %s2821 = scalar_lea.vmem [#allocation8], 34
        %v2822 = vld [vmem:[%s2821] sm:$0x3]
        %v2824 = vunpack.c.l.b16 %v2820
        %v2825 = vpack.c.b16 %v2532, %v2824
        %v2826 = vrot.slane %v2825, 3
        %v2827 = vrot.slane %v2543, 3
        %v2828 = vsel %vm1521, %v2826, %v2827
        %v2829 = vrot.slane %v2544, 3
        %v2830 = vsel %vm1521, %v2827, %v2829
        %v2831 = vrot.slane %v2545, 3
        %v2832 = vsel %vm1521, %v2829, %v2831
        %v2833 = vrot.slane %v2546, 3
        %v2834 = vsel %vm1521, %v2831, %v2833
        %v2835 = vrot.slane %v2665, 3
        %v2836 = vsel %vm1521, %v2833, %v2835
        %v2838 = vsel %vm470, %v2828, 0
        %v2841 = vsel %vm470, %v2830, 0
        %v2844 = vsel %vm470, %v2832, 0
        %v2847 = vsel %vm470, %v2834, 0
        %v2850 = vsel %vm470, %v2836, 0
        %v2853 = vsel %vm486, %v2822, 0
        %2855 = vmatprep.subr.bf16.mxu0 0
        %2856 = vmatpush1.bf16.msra.mxu0 %v2853
        %2857 = vmatprep.subr.bf16.mxu0 0
        %2858 = vmatpush1.bf16.msra.mxu0 0
        %2859 = vmatprep.subr.bf16.mxu0 0
        %2860 = vmatpush1.bf16.msra.mxu0 0
        %2861 = vmatprep.subr.bf16.mxu0 0
        %2862 = vmatpush1.bf16.msra.mxu0 0
        %2863 = vmatprep.subr.bf16.mxu0 0
        %2864 = vmatpush1.bf16.msra.mxu0 0
        %2865 = vmatprep.subr.bf16.mxu0 0
        %2866 = vmatpush1.bf16.msra.mxu0 0
        %2867 = vmatprep.subr.bf16.mxu0 0
        %2868 = vmatpush1.bf16.msra.mxu0 0
        %2869 = vmatprep.subr.bf16.mxu0 0
        %2870 = vmatpush1.bf16.msra.mxu0 0
        %2871 = vmatprep.subr.bf16.mxu0 0
        %2872 = vmatpush1.bf16.msra.mxu0 0
        %2873 = vmatprep.subr.bf16.mxu0 0
        %2874 = vmatpush1.bf16.msra.mxu0 0
        %2875 = vmatprep.subr.bf16.mxu0 0
        %2876 = vmatpush1.bf16.msra.mxu0 0
        %2877 = vmatprep.subr.bf16.mxu0 0
        %2878 = vmatpush1.bf16.msra.mxu0 0
        %2879 = vmatprep.subr.bf16.mxu0 0
        %2880 = vmatpush1.bf16.msra.mxu0 0
        %2881 = vmatprep.subr.bf16.mxu0 0
        %2882 = vmatpush1.bf16.msra.mxu0 0
        %2883 = vmatprep.subr.bf16.mxu0 0
        %2884 = vmatpush1.bf16.msra.mxu0 0
        %2885 = vmatprep.subr.bf16.mxu0 0
        %2886 = vmatpush1.bf16.msra.mxu0 0
        %2887 = vmatprep.mubr.bf16.mxu0 0
        %2888 = vmatmul.mubr.bf16.gmra.mrb[0].mxu0 %v2838
        %v2889 = vpop.f32.mrb[0].mxu0
        %v2890 = vadd.f32 0.0, %v2889
        %v2891 = vpop.f32.mrb[0].mxu0
        %v2892 = vpop.f32.mrb[0].mxu0
        %v2893 = vadd.f32 0.0, %v2892
        %v2894 = vpop.f32.mrb[0].mxu0
        %2895 = vmatprep.mubr.bf16.mxu0 0
        %2896 = vmatmul.mubr.bf16.gmra.mrb[0].mxu0 %v2841
        %v2897 = vpop.f32.mrb[0].mxu0
        %v2898 = vadd.f32 0.0, %v2897
        %v2899 = vpop.f32.mrb[0].mxu0
        %v2900 = vpop.f32.mrb[0].mxu0
        %v2901 = vadd.f32 0.0, %v2900
        %v2902 = vpop.f32.mrb[0].mxu0
        %2903 = vmatprep.mubr.bf16.mxu0 0
        %2904 = vmatmul.mubr.bf16.gmra.mrb[0].mxu0 %v2844
        %v2905 = vpop.f32.mrb[0].mxu0
        %v2906 = vadd.f32 0.0, %v2905
        %v2907 = vpop.f32.mrb[0].mxu0
        %v2908 = vpop.f32.mrb[0].mxu0
        %v2909 = vadd.f32 0.0, %v2908
        %v2910 = vpop.f32.mrb[0].mxu0
        %2911 = vmatprep.mubr.bf16.mxu0 0
        %2912 = vmatmul.mubr.bf16.gmra.mrb[0].mxu0 %v2847
        %v2913 = vpop.f32.mrb[0].mxu0
        %v2914 = vadd.f32 0.0, %v2913
        %v2915 = vpop.f32.mrb[0].mxu0
        %v2916 = vpop.f32.mrb[0].mxu0
        %v2917 = vadd.f32 0.0, %v2916
        %v2918 = vpop.f32.mrb[0].mxu0
        %2919 = vmatprep.mubr.bf16.mxu0 0
        %2920 = vmatmul.mubr.bf16.gmra.mrb[0].mxu0 %v2850
        %v2921 = vpop.f32.mrb[0].mxu0
        %v2922 = vadd.f32 0.0, %v2921
        %v2923 = vpop.f32.mrb[0].mxu0
        %v2924 = vpop.f32.mrb[0].mxu0
        %v2925 = vadd.f32 0.0, %v2924
        %v2926 = vpop.f32.mrb[0].mxu0
        %2927 = vdwg.mxu0
        %v2928 = vadd.f32 %v2810, %v2890
        %v2929 = vadd.f32 %v2811, %v2893
        %v2930 = vadd.f32 %v2812, %v2898
        %v2931 = vadd.f32 %v2813, %v2901
        %v2932 = vadd.f32 %v2814, %v2906
        %v2933 = vadd.f32 %v2815, %v2909
        %v2934 = vadd.f32 %v2816, %v2914
        %v2935 = vadd.f32 %v2817, %v2917
        %v2936 = vadd.f32 %v2818, %v2922
        %v2937 = vadd.f32 %v2819, %v2925
        %v2938 = vld [vmem:[%s334] sm:$0xf]
        %v2939 = vld [vmem:[%s334 + $0x4] sm:$0xf]
        %v2940 = vld [vmem:[%s334 + $0x8] sm:$0xf]
        %v2941 = vld [vmem:[%s334 + $0xc] sm:$0xf]
        %v2942 = vld [vmem:[%s334 + $0x10] sm:$0xf]
        %v2943 = vld [vmem:[%s334 + $0x14] sm:$0xf]
        %v2944 = vld [vmem:[%s334 + $0x18] sm:$0xf]
        %v2945 = vld [vmem:[%s334 + $0x1c] sm:$0xf]
        %v2946 = vld [vmem:[%s334 + $0x20] sm:$0xf]
        %v2947 = vld [vmem:[%s334 + $0x24] sm:$0xf]
        %s2948 = scalar_lea.vmem [#allocation8], 36
        %v2949 = vld [vmem:[%s2948] sm:$0x3]
        %v2960 = vunpack.c.l.b16 %v2938
        %v2961 = vunpack.c.l.b16 %v2939
        %v2962 = vunpack.c.l.b16 %v2940
        %v2963 = vunpack.c.l.b16 %v2941
        %v2964 = vunpack.c.l.b16 %v2942
        %v2965 = vunpack.c.l.b16 %v2943
        %v2966 = vunpack.c.l.b16 %v2944
        %v2967 = vunpack.c.l.b16 %v2945
        %v2968 = vunpack.c.l.b16 %v2946
        %v2969 = vunpack.c.l.b16 %v2947
        %v2970 = vpack.c.b16 %v2961, %v2960
        %v2971 = vpack.c.b16 %v2963, %v2962
        %v2972 = vpack.c.b16 %v2965, %v2964
        %v2973 = vpack.c.b16 %v2967, %v2966
        %v2974 = vpack.c.b16 %v2969, %v2968
        %v2976 = vsel %vm470, %v2970, 0
        %v2979 = vsel %vm470, %v2971, 0
        %v2982 = vsel %vm470, %v2972, 0
        %v2985 = vsel %vm470, %v2973, 0
        %v2988 = vsel %vm470, %v2974, 0
        %v2991 = vsel %vm486, %v2949, 0
        %2993 = vmatprep.subr.bf16.mxu0 0
        %2994 = vmatpush1.bf16.msra.mxu0 %v2991
        %2995 = vmatprep.subr.bf16.mxu0 0
        %2996 = vmatpush1.bf16.msra.mxu0 0
        %2997 = vmatprep.subr.bf16.mxu0 0
        %2998 = vmatpush1.bf16.msra.mxu0 0
        %2999 = vmatprep.subr.bf16.mxu0 0
        %3000 = vmatpush1.bf16.msra.mxu0 0
        %3001 = vmatprep.subr.bf16.mxu0 0
        %3002 = vmatpush1.bf16.msra.mxu0 0
        %3003 = vmatprep.subr.bf16.mxu0 0
        %3004 = vmatpush1.bf16.msra.mxu0 0
        %3005 = vmatprep.subr.bf16.mxu0 0
        %3006 = vmatpush1.bf16.msra.mxu0 0
        %3007 = vmatprep.subr.bf16.mxu0 0
        %3008 = vmatpush1.bf16.msra.mxu0 0
        %3009 = vmatprep.subr.bf16.mxu0 0
        %3010 = vmatpush1.bf16.msra.mxu0 0
        %3011 = vmatprep.subr.bf16.mxu0 0
        %3012 = vmatpush1.bf16.msra.mxu0 0
        %3013 = vmatprep.subr.bf16.mxu0 0
        %3014 = vmatpush1.bf16.msra.mxu0 0
        %3015 = vmatprep.subr.bf16.mxu0 0
        %3016 = vmatpush1.bf16.msra.mxu0 0
        %3017 = vmatprep.subr.bf16.mxu0 0
        %3018 = vmatpush1.bf16.msra.mxu0 0
        %3019 = vmatprep.subr.bf16.mxu0 0
        %3020 = vmatpush1.bf16.msra.mxu0 0
        %3021 = vmatprep.subr.bf16.mxu0 0
        %3022 = vmatpush1.bf16.msra.mxu0 0
        %3023 = vmatprep.subr.bf16.mxu0 0
        %3024 = vmatpush1.bf16.msra.mxu0 0
        %3025 = vmatprep.mubr.bf16.mxu0 0
        %3026 = vmatmul.mubr.bf16.gmra.mrb[0].mxu0 %v2976
        %v3027 = vpop.f32.mrb[0].mxu0
        %v3028 = vadd.f32 0.0, %v3027
        %v3029 = vpop.f32.mrb[0].mxu0
        %v3030 = vpop.f32.mrb[0].mxu0
        %v3031 = vadd.f32 0.0, %v3030
        %v3032 = vpop.f32.mrb[0].mxu0
        %3033 = vmatprep.mubr.bf16.mxu0 0
        %3034 = vmatmul.mubr.bf16.gmra.mrb[0].mxu0 %v2979
        %v3035 = vpop.f32.mrb[0].mxu0
        %v3036 = vadd.f32 0.0, %v3035
        %v3037 = vpop.f32.mrb[0].mxu0
        %v3038 = vpop.f32.mrb[0].mxu0
        %v3039 = vadd.f32 0.0, %v3038
        %v3040 = vpop.f32.mrb[0].mxu0
        %3041 = vmatprep.mubr.bf16.mxu0 0
        %3042 = vmatmul.mubr.bf16.gmra.mrb[0].mxu0 %v2982
        %v3043 = vpop.f32.mrb[0].mxu0
        %v3044 = vadd.f32 0.0, %v3043
        %v3045 = vpop.f32.mrb[0].mxu0
        %v3046 = vpop.f32.mrb[0].mxu0
        %v3047 = vadd.f32 0.0, %v3046
        %v3048 = vpop.f32.mrb[0].mxu0
        %3049 = vmatprep.mubr.bf16.mxu0 0
        %3050 = vmatmul.mubr.bf16.gmra.mrb[0].mxu0 %v2985
        %v3051 = vpop.f32.mrb[0].mxu0
        %v3052 = vadd.f32 0.0, %v3051
        %v3053 = vpop.f32.mrb[0].mxu0
        %v3054 = vpop.f32.mrb[0].mxu0
        %v3055 = vadd.f32 0.0, %v3054
        %v3056 = vpop.f32.mrb[0].mxu0
        %3057 = vmatprep.mubr.bf16.mxu0 0
        %3058 = vmatmul.mubr.bf16.gmra.mrb[0].mxu0 %v2988
        %v3059 = vpop.f32.mrb[0].mxu0
        %v3060 = vadd.f32 0.0, %v3059
        %v3061 = vpop.f32.mrb[0].mxu0
        %v3062 = vpop.f32.mrb[0].mxu0
        %v3063 = vadd.f32 0.0, %v3062
        %v3064 = vpop.f32.mrb[0].mxu0
        %3065 = vdwg.mxu0
        %v3066 = vadd.f32 %v2928, %v3028
        %v3067 = vadd.f32 %v2929, %v3031
        %v3068 = vadd.f32 %v2930, %v3036
        %v3069 = vadd.f32 %v2931, %v3039
        %v3070 = vadd.f32 %v2932, %v3044
        %v3071 = vadd.f32 %v2933, %v3047
        %v3072 = vadd.f32 %v2934, %v3052
        %v3073 = vadd.f32 %v2935, %v3055
        %v3074 = vadd.f32 %v2936, %v3060
        %v3075 = vadd.f32 %v2937, %v3063
        %v3076 = vld [vmem:[%s334] sm:$0xf]
        %v3077 = vld [vmem:[%s334 + $0x4] sm:$0xf]
        %v3078 = vld [vmem:[%s334 + $0x8] sm:$0xf]
        %v3079 = vld [vmem:[%s334 + $0xc] sm:$0xf]
        %v3080 = vld [vmem:[%s334 + $0x10] sm:$0xf]
        %v3081 = vld [vmem:[%s334 + $0x14] sm:$0xf]
        %v3082 = vld [vmem:[%s334 + $0x18] sm:$0xf]
        %v3083 = vld [vmem:[%s334 + $0x1c] sm:$0xf]
        %v3084 = vld [vmem:[%s334 + $0x20] sm:$0xf]
        %v3085 = vld [vmem:[%s334 + $0x24] sm:$0xf]
        %v3086 = vld [vmem:[%s334 + $0x28] sm:$0x1]
        %s3087 = scalar_lea.vmem [#allocation8], 38
        %v3088 = vld [vmem:[%s3087] sm:$0x3]
        %v3100 = vunpack.c.l.b16 %v3076
        %v3101 = vunpack.c.l.b16 %v3077
        %v3102 = vunpack.c.l.b16 %v3078
        %v3103 = vunpack.c.l.b16 %v3079
        %v3104 = vunpack.c.l.b16 %v3080
        %v3105 = vunpack.c.l.b16 %v3081
        %v3106 = vunpack.c.l.b16 %v3082
        %v3107 = vunpack.c.l.b16 %v3083
        %v3108 = vunpack.c.l.b16 %v3084
        %v3109 = vunpack.c.l.b16 %v3085
        %v3110 = vunpack.c.l.b16 %v3086
        %v3111 = vpack.c.b16 %v3101, %v3100
        %v3112 = vpack.c.b16 %v3103, %v3102
        %v3113 = vpack.c.b16 %v3105, %v3104
        %v3114 = vpack.c.b16 %v3107, %v3106
        %v3115 = vpack.c.b16 %v3109, %v3108
        %v3116 = vpack.c.b16 %v3110, %v3110
        %v3118 = vshrl.u32 %v3111, 16
        %v3120 = vshll.u32 %v3111, 16
        %v3122 = vrot.slane %v3120, 1
        %v3123 = vor.u32 %v3118, %v3122
        %v3125 = vshll.u32 %v3112, 16
        %v3127 = vrot.slane %v3125, 1
        %v3128 = vsel %vm425, %v3123, %v3127
        %v3129 = vshrl.u32 %v3112, 16
        %v3131 = vor.u32 %v3129, %v3127
        %v3133 = vshll.u32 %v3113, 16
        %v3135 = vrot.slane %v3133, 1
        %v3136 = vsel %vm425, %v3131, %v3135
        %v3137 = vshrl.u32 %v3113, 16
        %v3139 = vor.u32 %v3137, %v3135
        %v3141 = vshll.u32 %v3114, 16
        %v3143 = vrot.slane %v3141, 1
        %v3144 = vsel %vm425, %v3139, %v3143
        %v3145 = vshrl.u32 %v3114, 16
        %v3147 = vor.u32 %v3145, %v3143
        %v3149 = vshll.u32 %v3115, 16
        %v3151 = vrot.slane %v3149, 1
        %v3152 = vsel %vm425, %v3147, %v3151
        %v3153 = vshrl.u32 %v3115, 16
        %v3155 = vor.u32 %v3153, %v3151
        %v3157 = vshll.u32 %v3116, 16
        %v3159 = vrot.slane %v3157, 1
        %v3160 = vsel %vm425, %v3155, %v3159
        %v3162 = vsel %vm470, %v3128, 0
        %v3165 = vsel %vm470, %v3136, 0
        %v3168 = vsel %vm470, %v3144, 0
        %v3171 = vsel %vm470, %v3152, 0
        %v3174 = vsel %vm470, %v3160, 0
        %v3177 = vsel %vm486, %v3088, 0
        %3179 = vmatprep.subr.bf16.mxu0 0
        %3180 = vmatpush1.bf16.msra.mxu0 %v3177
        %3181 = vmatprep.subr.bf16.mxu0 0
        %3182 = vmatpush1.bf16.msra.mxu0 0
        %3183 = vmatprep.subr.bf16.mxu0 0
        %3184 = vmatpush1.bf16.msra.mxu0 0
        %3185 = vmatprep.subr.bf16.mxu0 0
        %3186 = vmatpush1.bf16.msra.mxu0 0
        %3187 = vmatprep.subr.bf16.mxu0 0
        %3188 = vmatpush1.bf16.msra.mxu0 0
        %3189 = vmatprep.subr.bf16.mxu0 0
        %3190 = vmatpush1.bf16.msra.mxu0 0
        %3191 = vmatprep.subr.bf16.mxu0 0
        %3192 = vmatpush1.bf16.msra.mxu0 0
        %3193 = vmatprep.subr.bf16.mxu0 0
        %3194 = vmatpush1.bf16.msra.mxu0 0
        %3195 = vmatprep.subr.bf16.mxu0 0
        %3196 = vmatpush1.bf16.msra.mxu0 0
        %3197 = vmatprep.subr.bf16.mxu0 0
        %3198 = vmatpush1.bf16.msra.mxu0 0
        %3199 = vmatprep.subr.bf16.mxu0 0
        %3200 = vmatpush1.bf16.msra.mxu0 0
        %3201 = vmatprep.subr.bf16.mxu0 0
        %3202 = vmatpush1.bf16.msra.mxu0 0
        %3203 = vmatprep.subr.bf16.mxu0 0
        %3204 = vmatpush1.bf16.msra.mxu0 0
        %3205 = vmatprep.subr.bf16.mxu0 0
        %3206 = vmatpush1.bf16.msra.mxu0 0
        %3207 = vmatprep.subr.bf16.mxu0 0
        %3208 = vmatpush1.bf16.msra.mxu0 0
        %3209 = vmatprep.subr.bf16.mxu0 0
        %3210 = vmatpush1.bf16.msra.mxu0 0
        %3211 = vmatprep.mubr.bf16.mxu0 0
        %3212 = vmatmul.mubr.bf16.gmra.mrb[0].mxu0 %v3162
        %v3213 = vpop.f32.mrb[0].mxu0
        %v3214 = vadd.f32 0.0, %v3213
        %v3215 = vpop.f32.mrb[0].mxu0
        %v3216 = vpop.f32.mrb[0].mxu0
        %v3217 = vadd.f32 0.0, %v3216
        %v3218 = vpop.f32.mrb[0].mxu0
        %3219 = vmatprep.mubr.bf16.mxu0 0
        %3220 = vmatmul.mubr.bf16.gmra.mrb[0].mxu0 %v3165
        %v3221 = vpop.f32.mrb[0].mxu0
        %v3222 = vadd.f32 0.0, %v3221
        %v3223 = vpop.f32.mrb[0].mxu0
        %v3224 = vpop.f32.mrb[0].mxu0
        %v3225 = vadd.f32 0.0, %v3224
        %v3226 = vpop.f32.mrb[0].mxu0
        %3227 = vmatprep.mubr.bf16.mxu0 0
        %3228 = vmatmul.mubr.bf16.gmra.mrb[0].mxu0 %v3168
        %v3229 = vpop.f32.mrb[0].mxu0
        %v3230 = vadd.f32 0.0, %v3229
        %v3231 = vpop.f32.mrb[0].mxu0
        %v3232 = vpop.f32.mrb[0].mxu0
        %v3233 = vadd.f32 0.0, %v3232
        %v3234 = vpop.f32.mrb[0].mxu0
        %3235 = vmatprep.mubr.bf16.mxu0 0
        %3236 = vmatmul.mubr.bf16.gmra.mrb[0].mxu0 %v3171
        %v3237 = vpop.f32.mrb[0].mxu0
        %v3238 = vadd.f32 0.0, %v3237
        %v3239 = vpop.f32.mrb[0].mxu0
        %v3240 = vpop.f32.mrb[0].mxu0
        %v3241 = vadd.f32 0.0, %v3240
        %v3242 = vpop.f32.mrb[0].mxu0
        %3243 = vmatprep.mubr.bf16.mxu0 0
        %3244 = vmatmul.mubr.bf16.gmra.mrb[0].mxu0 %v3174
        %v3245 = vpop.f32.mrb[0].mxu0
        %v3246 = vadd.f32 0.0, %v3245
        %v3247 = vpop.f32.mrb[0].mxu0
        %v3248 = vpop.f32.mrb[0].mxu0
        %v3249 = vadd.f32 0.0, %v3248
        %v3250 = vpop.f32.mrb[0].mxu0
        %3251 = vdwg.mxu0
        %v3252 = vadd.f32 %v3066, %v3214
        %v3253 = vadd.f32 %v3067, %v3217
        %v3254 = vadd.f32 %v3068, %v3222
        %v3255 = vadd.f32 %v3069, %v3225
        %v3256 = vadd.f32 %v3070, %v3230
        %v3257 = vadd.f32 %v3071, %v3233
        %v3258 = vadd.f32 %v3072, %v3238
        %v3259 = vadd.f32 %v3073, %v3241
        %v3260 = vadd.f32 %v3074, %v3246
        %v3261 = vadd.f32 %v3075, %v3249
        %v3262 = vld [vmem:[%s334] sm:$0xe]
        %s3263 = scalar_lea.vmem [#allocation8], 40
        %v3264 = vld [vmem:[%s3263] sm:$0x3]
        %v3266 = vunpack.c.l.b16 %v3262
        %v3267 = vpack.c.b16 %v3101, %v3266
        %v3268 = vrot.slane %v3267, 1
        %v3269 = vrot.slane %v3112, 1
        %v3270 = vsel %vm655, %v3268, %v3269
        %v3271 = vrot.slane %v3113, 1
        %v3272 = vsel %vm655, %v3269, %v3271
        %v3273 = vrot.slane %v3114, 1
        %v3274 = vsel %vm655, %v3271, %v3273
        %v3275 = vrot.slane %v3115, 1
        %v3276 = vsel %vm655, %v3273, %v3275
        %v3277 = vrot.slane %v3116, 1
        %v3278 = vsel %vm655, %v3275, %v3277
        %v3280 = vsel %vm470, %v3270, 0
        %v3283 = vsel %vm470, %v3272, 0
        %v3286 = vsel %vm470, %v3274, 0
        %v3289 = vsel %vm470, %v3276, 0
        %v3292 = vsel %vm470, %v3278, 0
        %v3295 = vsel %vm486, %v3264, 0
        %3297 = vmatprep.subr.bf16.mxu0 0
        %3298 = vmatpush1.bf16.msra.mxu0 %v3295
        %3299 = vmatprep.subr.bf16.mxu0 0
        %3300 = vmatpush1.bf16.msra.mxu0 0
        %3301 = vmatprep.subr.bf16.mxu0 0
        %3302 = vmatpush1.bf16.msra.mxu0 0
        %3303 = vmatprep.subr.bf16.mxu0 0
        %3304 = vmatpush1.bf16.msra.mxu0 0
        %3305 = vmatprep.subr.bf16.mxu0 0
        %3306 = vmatpush1.bf16.msra.mxu0 0
        %3307 = vmatprep.subr.bf16.mxu0 0
        %3308 = vmatpush1.bf16.msra.mxu0 0
        %3309 = vmatprep.subr.bf16.mxu0 0
        %3310 = vmatpush1.bf16.msra.mxu0 0
        %3311 = vmatprep.subr.bf16.mxu0 0
        %3312 = vmatpush1.bf16.msra.mxu0 0
        %3313 = vmatprep.subr.bf16.mxu0 0
        %3314 = vmatpush1.bf16.msra.mxu0 0
        %3315 = vmatprep.subr.bf16.mxu0 0
        %3316 = vmatpush1.bf16.msra.mxu0 0
        %3317 = vmatprep.subr.bf16.mxu0 0
        %3318 = vmatpush1.bf16.msra.mxu0 0
        %3319 = vmatprep.subr.bf16.mxu0 0
        %3320 = vmatpush1.bf16.msra.mxu0 0
        %3321 = vmatprep.subr.bf16.mxu0 0
        %3322 = vmatpush1.bf16.msra.mxu0 0
        %3323 = vmatprep.subr.bf16.mxu0 0
        %3324 = vmatpush1.bf16.msra.mxu0 0
        %3325 = vmatprep.subr.bf16.mxu0 0
        %3326 = vmatpush1.bf16.msra.mxu0 0
        %3327 = vmatprep.subr.bf16.mxu0 0
        %3328 = vmatpush1.bf16.msra.mxu0 0
        %3329 = vmatprep.mubr.bf16.mxu0 0
        %3330 = vmatmul.mubr.bf16.gmra.mrb[0].mxu0 %v3280
        %v3331 = vpop.f32.mrb[0].mxu0
        %v3332 = vadd.f32 0.0, %v3331
        %v3333 = vpop.f32.mrb[0].mxu0
        %v3334 = vpop.f32.mrb[0].mxu0
        %v3335 = vadd.f32 0.0, %v3334
        %v3336 = vpop.f32.mrb[0].mxu0
        %3337 = vmatprep.mubr.bf16.mxu0 0
        %3338 = vmatmul.mubr.bf16.gmra.mrb[0].mxu0 %v3283
        %v3339 = vpop.f32.mrb[0].mxu0
        %v3340 = vadd.f32 0.0, %v3339
        %v3341 = vpop.f32.mrb[0].mxu0
        %v3342 = vpop.f32.mrb[0].mxu0
        %v3343 = vadd.f32 0.0, %v3342
        %v3344 = vpop.f32.mrb[0].mxu0
        %3345 = vmatprep.mubr.bf16.mxu0 0
        %3346 = vmatmul.mubr.bf16.gmra.mrb[0].mxu0 %v3286
        %v3347 = vpop.f32.mrb[0].mxu0
        %v3348 = vadd.f32 0.0, %v3347
        %v3349 = vpop.f32.mrb[0].mxu0
        %v3350 = vpop.f32.mrb[0].mxu0
        %v3351 = vadd.f32 0.0, %v3350
        %v3352 = vpop.f32.mrb[0].mxu0
        %3353 = vmatprep.mubr.bf16.mxu0 0
        %3354 = vmatmul.mubr.bf16.gmra.mrb[0].mxu0 %v3289
        %v3355 = vpop.f32.mrb[0].mxu0
        %v3356 = vadd.f32 0.0, %v3355
        %v3357 = vpop.f32.mrb[0].mxu0
        %v3358 = vpop.f32.mrb[0].mxu0
        %v3359 = vadd.f32 0.0, %v3358
        %v3360 = vpop.f32.mrb[0].mxu0
        %3361 = vmatprep.mubr.bf16.mxu0 0
        %3362 = vmatmul.mubr.bf16.gmra.mrb[0].mxu0 %v3292
        %v3363 = vpop.f32.mrb[0].mxu0
        %v3364 = vadd.f32 0.0, %v3363
        %v3365 = vpop.f32.mrb[0].mxu0
        %v3366 = vpop.f32.mrb[0].mxu0
        %v3367 = vadd.f32 0.0, %v3366
        %v3368 = vpop.f32.mrb[0].mxu0
        %3369 = vdwg.mxu0
        %v3370 = vadd.f32 %v3252, %v3332
        %v3371 = vadd.f32 %v3253, %v3335
        %v3372 = vadd.f32 %v3254, %v3340
        %v3373 = vadd.f32 %v3255, %v3343
        %v3374 = vadd.f32 %v3256, %v3348
        %v3375 = vadd.f32 %v3257, %v3351
        %v3376 = vadd.f32 %v3258, %v3356
        %v3377 = vadd.f32 %v3259, %v3359
        %v3378 = vadd.f32 %v3260, %v3364
        %v3379 = vadd.f32 %v3261, %v3367
        %v3380 = vld [vmem:[%s334 + $0x4] sm:$0xe]
        %v3381 = vld [vmem:[%s334 + $0x8] sm:$0xf]
        %v3382 = vld [vmem:[%s334 + $0xc] sm:$0xf]
        %v3383 = vld [vmem:[%s334 + $0x10] sm:$0xf]
        %v3384 = vld [vmem:[%s334 + $0x14] sm:$0xf]
        %v3385 = vld [vmem:[%s334 + $0x18] sm:$0xf]
        %v3386 = vld [vmem:[%s334 + $0x1c] sm:$0xf]
        %v3387 = vld [vmem:[%s334 + $0x20] sm:$0xf]
        %v3388 = vld [vmem:[%s334 + $0x24] sm:$0xf]
        %v3389 = vld [vmem:[%s334 + $0x28] sm:$0xf]
        %v3390 = vld [vmem:[%s334 + $0x2c] sm:$0x1]
        %s3391 = scalar_lea.vmem [#allocation8], 42
        %v3392 = vld [vmem:[%s3391] sm:$0x3]
        %v3404 = vunpack.c.l.b16 %v3380
        %v3405 = vunpack.c.l.b16 %v3381
        %v3406 = vunpack.c.l.b16 %v3382
        %v3407 = vunpack.c.l.b16 %v3383
        %v3408 = vunpack.c.l.b16 %v3384
        %v3409 = vunpack.c.l.b16 %v3385
        %v3410 = vunpack.c.l.b16 %v3386
        %v3411 = vunpack.c.l.b16 %v3387
        %v3412 = vunpack.c.l.b16 %v3388
        %v3413 = vunpack.c.l.b16 %v3389
        %v3414 = vunpack.c.l.b16 %v3390
        %v3415 = vpack.c.b16 %v3405, %v3404
        %v3416 = vpack.c.b16 %v3407, %v3406
        %v3417 = vpack.c.b16 %v3409, %v3408
        %v3418 = vpack.c.b16 %v3411, %v3410
        %v3419 = vpack.c.b16 %v3413, %v3412
        %v3420 = vpack.c.b16 %v3414, %v3414
        %v3421 = vrot.slane %v3415, 1
        %v3422 = vrot.slane %v3416, 1
        %v3423 = vsel %vm655, %v3421, %v3422
        %v3424 = vrot.slane %v3417, 1
        %v3425 = vsel %vm655, %v3422, %v3424
        %v3426 = vrot.slane %v3418, 1
        %v3427 = vsel %vm655, %v3424, %v3426
        %v3428 = vrot.slane %v3419, 1
        %v3429 = vsel %vm655, %v3426, %v3428
        %v3430 = vrot.slane %v3420, 1
        %v3431 = vsel %vm655, %v3428, %v3430
        %v3433 = vsel %vm470, %v3423, 0
        %v3436 = vsel %vm470, %v3425, 0
        %v3439 = vsel %vm470, %v3427, 0
        %v3442 = vsel %vm470, %v3429, 0
        %v3445 = vsel %vm470, %v3431, 0
        %v3448 = vsel %vm486, %v3392, 0
        %3450 = vmatprep.subr.bf16.mxu0 0
        %3451 = vmatpush1.bf16.msra.mxu0 %v3448
        %3452 = vmatprep.subr.bf16.mxu0 0
        %3453 = vmatpush1.bf16.msra.mxu0 0
        %3454 = vmatprep.subr.bf16.mxu0 0
        %3455 = vmatpush1.bf16.msra.mxu0 0
        %3456 = vmatprep.subr.bf16.mxu0 0
        %3457 = vmatpush1.bf16.msra.mxu0 0
        %3458 = vmatprep.subr.bf16.mxu0 0
        %3459 = vmatpush1.bf16.msra.mxu0 0
        %3460 = vmatprep.subr.bf16.mxu0 0
        %3461 = vmatpush1.bf16.msra.mxu0 0
        %3462 = vmatprep.subr.bf16.mxu0 0
        %3463 = vmatpush1.bf16.msra.mxu0 0
        %3464 = vmatprep.subr.bf16.mxu0 0
        %3465 = vmatpush1.bf16.msra.mxu0 0
        %3466 = vmatprep.subr.bf16.mxu0 0
        %3467 = vmatpush1.bf16.msra.mxu0 0
        %3468 = vmatprep.subr.bf16.mxu0 0
        %3469 = vmatpush1.bf16.msra.mxu0 0
        %3470 = vmatprep.subr.bf16.mxu0 0
        %3471 = vmatpush1.bf16.msra.mxu0 0
        %3472 = vmatprep.subr.bf16.mxu0 0
        %3473 = vmatpush1.bf16.msra.mxu0 0
        %3474 = vmatprep.subr.bf16.mxu0 0
        %3475 = vmatpush1.bf16.msra.mxu0 0
        %3476 = vmatprep.subr.bf16.mxu0 0
        %3477 = vmatpush1.bf16.msra.mxu0 0
        %3478 = vmatprep.subr.bf16.mxu0 0
        %3479 = vmatpush1.bf16.msra.mxu0 0
        %3480 = vmatprep.subr.bf16.mxu0 0
        %3481 = vmatpush1.bf16.msra.mxu0 0
        %3482 = vmatprep.mubr.bf16.mxu0 0
        %3483 = vmatmul.mubr.bf16.gmra.mrb[0].mxu0 %v3433
        %v3484 = vpop.f32.mrb[0].mxu0
        %v3485 = vadd.f32 0.0, %v3484
        %v3486 = vpop.f32.mrb[0].mxu0
        %v3487 = vpop.f32.mrb[0].mxu0
        %v3488 = vadd.f32 0.0, %v3487
        %v3489 = vpop.f32.mrb[0].mxu0
        %3490 = vmatprep.mubr.bf16.mxu0 0
        %3491 = vmatmul.mubr.bf16.gmra.mrb[0].mxu0 %v3436
        %v3492 = vpop.f32.mrb[0].mxu0
        %v3493 = vadd.f32 0.0, %v3492
        %v3494 = vpop.f32.mrb[0].mxu0
        %v3495 = vpop.f32.mrb[0].mxu0
        %v3496 = vadd.f32 0.0, %v3495
        %v3497 = vpop.f32.mrb[0].mxu0
        %3498 = vmatprep.mubr.bf16.mxu0 0
        %3499 = vmatmul.mubr.bf16.gmra.mrb[0].mxu0 %v3439
        %v3500 = vpop.f32.mrb[0].mxu0
        %v3501 = vadd.f32 0.0, %v3500
        %v3502 = vpop.f32.mrb[0].mxu0
        %v3503 = vpop.f32.mrb[0].mxu0
        %v3504 = vadd.f32 0.0, %v3503
        %v3505 = vpop.f32.mrb[0].mxu0
        %3506 = vmatprep.mubr.bf16.mxu0 0
        %3507 = vmatmul.mubr.bf16.gmra.mrb[0].mxu0 %v3442
        %v3508 = vpop.f32.mrb[0].mxu0
        %v3509 = vadd.f32 0.0, %v3508
        %v3510 = vpop.f32.mrb[0].mxu0
        %v3511 = vpop.f32.mrb[0].mxu0
        %v3512 = vadd.f32 0.0, %v3511
        %v3513 = vpop.f32.mrb[0].mxu0
        %3514 = vmatprep.mubr.bf16.mxu0 0
        %3515 = vmatmul.mubr.bf16.gmra.mrb[0].mxu0 %v3445
        %v3516 = vpop.f32.mrb[0].mxu0
        %v3517 = vadd.f32 0.0, %v3516
        %v3518 = vpop.f32.mrb[0].mxu0
        %v3519 = vpop.f32.mrb[0].mxu0
        %v3520 = vadd.f32 0.0, %v3519
        %v3521 = vpop.f32.mrb[0].mxu0
        %3522 = vdwg.mxu0
        %v3523 = vadd.f32 %v3370, %v3485
        %v3524 = vadd.f32 %v3371, %v3488
        %v3525 = vadd.f32 %v3372, %v3493
        %v3526 = vadd.f32 %v3373, %v3496
        %v3527 = vadd.f32 %v3374, %v3501
        %v3528 = vadd.f32 %v3375, %v3504
        %v3529 = vadd.f32 %v3376, %v3509
        %v3530 = vadd.f32 %v3377, %v3512
        %v3531 = vadd.f32 %v3378, %v3517
        %v3532 = vadd.f32 %v3379, %v3520
        %v3533 = vld [vmem:[%s334 + $0x2c] sm:$0x3]
        %s3534 = scalar_lea.vmem [#allocation8], 44
        %v3535 = vld [vmem:[%s3534] sm:$0x3]
        %v3537 = vunpack.c.l.b16 %v3533
        %v3538 = vpack.c.b16 %v3537, %v3537
        %v3540 = vshrl.u32 %v3415, 16
        %v3542 = vrot.slane %v3540, 1
        %v3543 = vshll.u32 %v3415, 16
        %v3545 = vrot.slane %v3543, 2
        %v3546 = vor.u32 %v3542, %v3545
        %v3548 = vshrl.u32 %v3416, 16
        %v3550 = vrot.slane %v3548, 1
        %v3551 = vshll.u32 %v3416, 16
        %v3553 = vrot.slane %v3551, 2
        %v3554 = vor.u32 %v3550, %v3553
        %v3555 = vsel %vm927, %v3546, %v3554
        %v3557 = vshrl.u32 %v3417, 16
        %v3559 = vrot.slane %v3557, 1
        %v3560 = vshll.u32 %v3417, 16
        %v3562 = vrot.slane %v3560, 2
        %v3563 = vor.u32 %v3559, %v3562
        %v3564 = vsel %vm927, %v3554, %v3563
        %v3566 = vshrl.u32 %v3418, 16
        %v3568 = vrot.slane %v3566, 1
        %v3569 = vshll.u32 %v3418, 16
        %v3571 = vrot.slane %v3569, 2
        %v3572 = vor.u32 %v3568, %v3571
        %v3573 = vsel %vm927, %v3563, %v3572
        %v3575 = vshrl.u32 %v3419, 16
        %v3577 = vrot.slane %v3575, 1
        %v3578 = vshll.u32 %v3419, 16
        %v3580 = vrot.slane %v3578, 2
        %v3581 = vor.u32 %v3577, %v3580
        %v3582 = vsel %vm927, %v3572, %v3581
        %v3584 = vshrl.u32 %v3538, 16
        %v3586 = vrot.slane %v3584, 1
        %v3587 = vshll.u32 %v3538, 16
        %v3589 = vrot.slane %v3587, 2
        %v3590 = vor.u32 %v3586, %v3589
        %v3591 = vsel %vm927, %v3581, %v3590
        %v3593 = vsel %vm470, %v3555, 0
        %v3596 = vsel %vm470, %v3564, 0
        %v3599 = vsel %vm470, %v3573, 0
        %v3602 = vsel %vm470, %v3582, 0
        %v3605 = vsel %vm470, %v3591, 0
        %v3608 = vsel %vm486, %v3535, 0
        %3610 = vmatprep.subr.bf16.mxu0 0
        %3611 = vmatpush1.bf16.msra.mxu0 %v3608
        %3612 = vmatprep.subr.bf16.mxu0 0
        %3613 = vmatpush1.bf16.msra.mxu0 0
        %3614 = vmatprep.subr.bf16.mxu0 0
        %3615 = vmatpush1.bf16.msra.mxu0 0
        %3616 = vmatprep.subr.bf16.mxu0 0
        %3617 = vmatpush1.bf16.msra.mxu0 0
        %3618 = vmatprep.subr.bf16.mxu0 0
        %3619 = vmatpush1.bf16.msra.mxu0 0
        %3620 = vmatprep.subr.bf16.mxu0 0
        %3621 = vmatpush1.bf16.msra.mxu0 0
        %3622 = vmatprep.subr.bf16.mxu0 0
        %3623 = vmatpush1.bf16.msra.mxu0 0
        %3624 = vmatprep.subr.bf16.mxu0 0
        %3625 = vmatpush1.bf16.msra.mxu0 0
        %3626 = vmatprep.subr.bf16.mxu0 0
        %3627 = vmatpush1.bf16.msra.mxu0 0
        %3628 = vmatprep.subr.bf16.mxu0 0
        %3629 = vmatpush1.bf16.msra.mxu0 0
        %3630 = vmatprep.subr.bf16.mxu0 0
        %3631 = vmatpush1.bf16.msra.mxu0 0
        %3632 = vmatprep.subr.bf16.mxu0 0
        %3633 = vmatpush1.bf16.msra.mxu0 0
        %3634 = vmatprep.subr.bf16.mxu0 0
        %3635 = vmatpush1.bf16.msra.mxu0 0
        %3636 = vmatprep.subr.bf16.mxu0 0
        %3637 = vmatpush1.bf16.msra.mxu0 0
        %3638 = vmatprep.subr.bf16.mxu0 0
        %3639 = vmatpush1.bf16.msra.mxu0 0
        %3640 = vmatprep.subr.bf16.mxu0 0
        %3641 = vmatpush1.bf16.msra.mxu0 0
        %3642 = vmatprep.mubr.bf16.mxu0 0
        %3643 = vmatmul.mubr.bf16.gmra.mrb[0].mxu0 %v3593
        %v3644 = vpop.f32.mrb[0].mxu0
        %v3645 = vadd.f32 0.0, %v3644
        %v3646 = vpop.f32.mrb[0].mxu0
        %v3647 = vpop.f32.mrb[0].mxu0
        %v3648 = vadd.f32 0.0, %v3647
        %v3649 = vpop.f32.mrb[0].mxu0
        %3650 = vmatprep.mubr.bf16.mxu0 0
        %3651 = vmatmul.mubr.bf16.gmra.mrb[0].mxu0 %v3596
        %v3652 = vpop.f32.mrb[0].mxu0
        %v3653 = vadd.f32 0.0, %v3652
        %v3654 = vpop.f32.mrb[0].mxu0
        %v3655 = vpop.f32.mrb[0].mxu0
        %v3656 = vadd.f32 0.0, %v3655
        %v3657 = vpop.f32.mrb[0].mxu0
        %3658 = vmatprep.mubr.bf16.mxu0 0
        %3659 = vmatmul.mubr.bf16.gmra.mrb[0].mxu0 %v3599
        %v3660 = vpop.f32.mrb[0].mxu0
        %v3661 = vadd.f32 0.0, %v3660
        %v3662 = vpop.f32.mrb[0].mxu0
        %v3663 = vpop.f32.mrb[0].mxu0
        %v3664 = vadd.f32 0.0, %v3663
        %v3665 = vpop.f32.mrb[0].mxu0
        %3666 = vmatprep.mubr.bf16.mxu0 0
        %3667 = vmatmul.mubr.bf16.gmra.mrb[0].mxu0 %v3602
        %v3668 = vpop.f32.mrb[0].mxu0
        %v3669 = vadd.f32 0.0, %v3668
        %v3670 = vpop.f32.mrb[0].mxu0
        %v3671 = vpop.f32.mrb[0].mxu0
        %v3672 = vadd.f32 0.0, %v3671
        %v3673 = vpop.f32.mrb[0].mxu0
        %3674 = vmatprep.mubr.bf16.mxu0 0
        %3675 = vmatmul.mubr.bf16.gmra.mrb[0].mxu0 %v3605
        %v3676 = vpop.f32.mrb[0].mxu0
        %v3677 = vadd.f32 0.0, %v3676
        %v3678 = vpop.f32.mrb[0].mxu0
        %v3679 = vpop.f32.mrb[0].mxu0
        %v3680 = vadd.f32 0.0, %v3679
        %v3681 = vpop.f32.mrb[0].mxu0
        %3682 = vdwg.mxu0
        %v3683 = vadd.f32 %v3523, %v3645
        %v3684 = vadd.f32 %v3524, %v3648
        %v3685 = vadd.f32 %v3525, %v3653
        %v3686 = vadd.f32 %v3526, %v3656
        %v3687 = vadd.f32 %v3527, %v3661
        %v3688 = vadd.f32 %v3528, %v3664
        %v3689 = vadd.f32 %v3529, %v3669
        %v3690 = vadd.f32 %v3530, %v3672
        %v3691 = vadd.f32 %v3531, %v3677
        %v3692 = vadd.f32 %v3532, %v3680
        %v3693 = vld [vmem:[%s334 + $0x4] sm:$0xc]
        %s3694 = scalar_lea.vmem [#allocation8], 46
        %v3695 = vld [vmem:[%s3694] sm:$0x3]
        %v3697 = vunpack.c.l.b16 %v3693
        %v3698 = vpack.c.b16 %v3405, %v3697
        %v3699 = vrot.slane %v3698, 2
        %v3700 = vrot.slane %v3416, 2
        %v3701 = vsel %vm1088, %v3699, %v3700
        %v3702 = vrot.slane %v3417, 2
        %v3703 = vsel %vm1088, %v3700, %v3702
        %v3704 = vrot.slane %v3418, 2
        %v3705 = vsel %vm1088, %v3702, %v3704
        %v3706 = vrot.slane %v3419, 2
        %v3707 = vsel %vm1088, %v3704, %v3706
        %v3708 = vrot.slane %v3538, 2
        %v3709 = vsel %vm1088, %v3706, %v3708
        %v3711 = vsel %vm470, %v3701, 0
        %v3714 = vsel %vm470, %v3703, 0
        %v3717 = vsel %vm470, %v3705, 0
        %v3720 = vsel %vm470, %v3707, 0
        %v3723 = vsel %vm470, %v3709, 0
        %v3726 = vsel %vm486, %v3695, 0
        %3728 = vmatprep.subr.bf16.mxu0 0
        %3729 = vmatpush1.bf16.msra.mxu0 %v3726
        %3730 = vmatprep.subr.bf16.mxu0 0
        %3731 = vmatpush1.bf16.msra.mxu0 0
        %3732 = vmatprep.subr.bf16.mxu0 0
        %3733 = vmatpush1.bf16.msra.mxu0 0
        %3734 = vmatprep.subr.bf16.mxu0 0
        %3735 = vmatpush1.bf16.msra.mxu0 0
        %3736 = vmatprep.subr.bf16.mxu0 0
        %3737 = vmatpush1.bf16.msra.mxu0 0
        %3738 = vmatprep.subr.bf16.mxu0 0
        %3739 = vmatpush1.bf16.msra.mxu0 0
        %3740 = vmatprep.subr.bf16.mxu0 0
        %3741 = vmatpush1.bf16.msra.mxu0 0
        %3742 = vmatprep.subr.bf16.mxu0 0
        %3743 = vmatpush1.bf16.msra.mxu0 0
        %3744 = vmatprep.subr.bf16.mxu0 0
        %3745 = vmatpush1.bf16.msra.mxu0 0
        %3746 = vmatprep.subr.bf16.mxu0 0
        %3747 = vmatpush1.bf16.msra.mxu0 0
        %3748 = vmatprep.subr.bf16.mxu0 0
        %3749 = vmatpush1.bf16.msra.mxu0 0
        %3750 = vmatprep.subr.bf16.mxu0 0
        %3751 = vmatpush1.bf16.msra.mxu0 0
        %3752 = vmatprep.subr.bf16.mxu0 0
        %3753 = vmatpush1.bf16.msra.mxu0 0
        %3754 = vmatprep.subr.bf16.mxu0 0
        %3755 = vmatpush1.bf16.msra.mxu0 0
        %3756 = vmatprep.subr.bf16.mxu0 0
        %3757 = vmatpush1.bf16.msra.mxu0 0
        %3758 = vmatprep.subr.bf16.mxu0 0
        %3759 = vmatpush1.bf16.msra.mxu0 0
        %3760 = vmatprep.mubr.bf16.mxu0 0
        %3761 = vmatmul.mubr.bf16.gmra.mrb[0].mxu0 %v3711
        %v3762 = vpop.f32.mrb[0].mxu0
        %v3763 = vadd.f32 0.0, %v3762
        %v3764 = vpop.f32.mrb[0].mxu0
        %v3765 = vpop.f32.mrb[0].mxu0
        %v3766 = vadd.f32 0.0, %v3765
        %v3767 = vpop.f32.mrb[0].mxu0
        %3768 = vmatprep.mubr.bf16.mxu0 0
        %3769 = vmatmul.mubr.bf16.gmra.mrb[0].mxu0 %v3714
        %v3770 = vpop.f32.mrb[0].mxu0
        %v3771 = vadd.f32 0.0, %v3770
        %v3772 = vpop.f32.mrb[0].mxu0
        %v3773 = vpop.f32.mrb[0].mxu0
        %v3774 = vadd.f32 0.0, %v3773
        %v3775 = vpop.f32.mrb[0].mxu0
        %3776 = vmatprep.mubr.bf16.mxu0 0
        %3777 = vmatmul.mubr.bf16.gmra.mrb[0].mxu0 %v3717
        %v3778 = vpop.f32.mrb[0].mxu0
        %v3779 = vadd.f32 0.0, %v3778
        %v3780 = vpop.f32.mrb[0].mxu0
        %v3781 = vpop.f32.mrb[0].mxu0
        %v3782 = vadd.f32 0.0, %v3781
        %v3783 = vpop.f32.mrb[0].mxu0
        %3784 = vmatprep.mubr.bf16.mxu0 0
        %3785 = vmatmul.mubr.bf16.gmra.mrb[0].mxu0 %v3720
        %v3786 = vpop.f32.mrb[0].mxu0
        %v3787 = vadd.f32 0.0, %v3786
        %v3788 = vpop.f32.mrb[0].mxu0
        %v3789 = vpop.f32.mrb[0].mxu0
        %v3790 = vadd.f32 0.0, %v3789
        %v3791 = vpop.f32.mrb[0].mxu0
        %3792 = vmatprep.mubr.bf16.mxu0 0
        %3793 = vmatmul.mubr.bf16.gmra.mrb[0].mxu0 %v3723
        %v3794 = vpop.f32.mrb[0].mxu0
        %v3795 = vadd.f32 0.0, %v3794
        %v3796 = vpop.f32.mrb[0].mxu0
        %v3797 = vpop.f32.mrb[0].mxu0
        %v3798 = vadd.f32 0.0, %v3797
        %v3799 = vpop.f32.mrb[0].mxu0
        %3800 = vdwg.mxu0
        %v3801 = vadd.f32 %v3683, %v3763
        %v3802 = vadd.f32 %v3684, %v3766
        %v3803 = vadd.f32 %v3685, %v3771
        %v3804 = vadd.f32 %v3686, %v3774
        %v3805 = vadd.f32 %v3687, %v3779
        %v3806 = vadd.f32 %v3688, %v3782
        %v3807 = vadd.f32 %v3689, %v3787
        %v3808 = vadd.f32 %v3690, %v3790
        %v3809 = vadd.f32 %v3691, %v3795
        %v3810 = vadd.f32 %v3692, %v3798
        %v3811 = vld [vmem:[%s334 + $0x8] sm:$0xc]
        %v3812 = vld [vmem:[%s334 + $0xc] sm:$0xf]
        %v3813 = vld [vmem:[%s334 + $0x10] sm:$0xf]
        %v3814 = vld [vmem:[%s334 + $0x14] sm:$0xf]
        %v3815 = vld [vmem:[%s334 + $0x18] sm:$0xf]
        %v3816 = vld [vmem:[%s334 + $0x1c] sm:$0xf]
        %v3817 = vld [vmem:[%s334 + $0x20] sm:$0xf]
        %v3818 = vld [vmem:[%s334 + $0x24] sm:$0xf]
        %v3819 = vld [vmem:[%s334 + $0x28] sm:$0xf]
        %v3820 = vld [vmem:[%s334 + $0x2c] sm:$0xf]
        %v3821 = vld [vmem:[%s334 + $0x30] sm:$0x3]
        %s3822 = scalar_lea.vmem [#allocation8], 48
        %v3823 = vld [vmem:[%s3822] sm:$0x3]
        %v3835 = vunpack.c.l.b16 %v3811
        %v3836 = vunpack.c.l.b16 %v3812
        %v3837 = vunpack.c.l.b16 %v3813
        %v3838 = vunpack.c.l.b16 %v3814
        %v3839 = vunpack.c.l.b16 %v3815
        %v3840 = vunpack.c.l.b16 %v3816
        %v3841 = vunpack.c.l.b16 %v3817
        %v3842 = vunpack.c.l.b16 %v3818
        %v3843 = vunpack.c.l.b16 %v3819
        %v3844 = vunpack.c.l.b16 %v3820
        %v3845 = vunpack.c.l.b16 %v3821
        %v3846 = vpack.c.b16 %v3836, %v3835
        %v3847 = vpack.c.b16 %v3838, %v3837
        %v3848 = vpack.c.b16 %v3840, %v3839
        %v3849 = vpack.c.b16 %v3842, %v3841
        %v3850 = vpack.c.b16 %v3844, %v3843
        %v3851 = vpack.c.b16 %v3845, %v3845
        %v3852 = vrot.slane %v3846, 2
        %v3853 = vrot.slane %v3847, 2
        %v3854 = vsel %vm1088, %v3852, %v3853
        %v3855 = vrot.slane %v3848, 2
        %v3856 = vsel %vm1088, %v3853, %v3855
        %v3857 = vrot.slane %v3849, 2
        %v3858 = vsel %vm1088, %v3855, %v3857
        %v3859 = vrot.slane %v3850, 2
        %v3860 = vsel %vm1088, %v3857, %v3859
        %v3861 = vrot.slane %v3851, 2
        %v3862 = vsel %vm1088, %v3859, %v3861
        %v3864 = vsel %vm470, %v3854, 0
        %v3867 = vsel %vm470, %v3856, 0
        %v3870 = vsel %vm470, %v3858, 0
        %v3873 = vsel %vm470, %v3860, 0
        %v3876 = vsel %vm470, %v3862, 0
        %v3879 = vsel %vm486, %v3823, 0
        %3881 = vmatprep.subr.bf16.mxu0 0
        %3882 = vmatpush1.bf16.msra.mxu0 %v3879
        %3883 = vmatprep.subr.bf16.mxu0 0
        %3884 = vmatpush1.bf16.msra.mxu0 0
        %3885 = vmatprep.subr.bf16.mxu0 0
        %3886 = vmatpush1.bf16.msra.mxu0 0
        %3887 = vmatprep.subr.bf16.mxu0 0
        %3888 = vmatpush1.bf16.msra.mxu0 0
        %3889 = vmatprep.subr.bf16.mxu0 0
        %3890 = vmatpush1.bf16.msra.mxu0 0
        %3891 = vmatprep.subr.bf16.mxu0 0
        %3892 = vmatpush1.bf16.msra.mxu0 0
        %3893 = vmatprep.subr.bf16.mxu0 0
        %3894 = vmatpush1.bf16.msra.mxu0 0
        %3895 = vmatprep.subr.bf16.mxu0 0
        %3896 = vmatpush1.bf16.msra.mxu0 0
        %3897 = vmatprep.subr.bf16.mxu0 0
        %3898 = vmatpush1.bf16.msra.mxu0 0
        %3899 = vmatprep.subr.bf16.mxu0 0
        %3900 = vmatpush1.bf16.msra.mxu0 0
        %3901 = vmatprep.subr.bf16.mxu0 0
        %3902 = vmatpush1.bf16.msra.mxu0 0
        %3903 = vmatprep.subr.bf16.mxu0 0
        %3904 = vmatpush1.bf16.msra.mxu0 0
        %3905 = vmatprep.subr.bf16.mxu0 0
        %3906 = vmatpush1.bf16.msra.mxu0 0
        %3907 = vmatprep.subr.bf16.mxu0 0
        %3908 = vmatpush1.bf16.msra.mxu0 0
        %3909 = vmatprep.subr.bf16.mxu0 0
        %3910 = vmatpush1.bf16.msra.mxu0 0
        %3911 = vmatprep.subr.bf16.mxu0 0
        %3912 = vmatpush1.bf16.msra.mxu0 0
        %3913 = vmatprep.mubr.bf16.mxu0 0
        %3914 = vmatmul.mubr.bf16.gmra.mrb[0].mxu0 %v3864
        %v3915 = vpop.f32.mrb[0].mxu0
        %v3916 = vadd.f32 0.0, %v3915
        %v3917 = vpop.f32.mrb[0].mxu0
        %v3918 = vpop.f32.mrb[0].mxu0
        %v3919 = vadd.f32 0.0, %v3918
        %v3920 = vpop.f32.mrb[0].mxu0
        %3921 = vmatprep.mubr.bf16.mxu0 0
        %3922 = vmatmul.mubr.bf16.gmra.mrb[0].mxu0 %v3867
        %v3923 = vpop.f32.mrb[0].mxu0
        %v3924 = vadd.f32 0.0, %v3923
        %v3925 = vpop.f32.mrb[0].mxu0
        %v3926 = vpop.f32.mrb[0].mxu0
        %v3927 = vadd.f32 0.0, %v3926
        %v3928 = vpop.f32.mrb[0].mxu0
        %3929 = vmatprep.mubr.bf16.mxu0 0
        %3930 = vmatmul.mubr.bf16.gmra.mrb[0].mxu0 %v3870
        %v3931 = vpop.f32.mrb[0].mxu0
        %v3932 = vadd.f32 0.0, %v3931
        %v3933 = vpop.f32.mrb[0].mxu0
        %v3934 = vpop.f32.mrb[0].mxu0
        %v3935 = vadd.f32 0.0, %v3934
        %v3936 = vpop.f32.mrb[0].mxu0
        %3937 = vmatprep.mubr.bf16.mxu0 0
        %3938 = vmatmul.mubr.bf16.gmra.mrb[0].mxu0 %v3873
        %v3939 = vpop.f32.mrb[0].mxu0
        %v3940 = vadd.f32 0.0, %v3939
        %v3941 = vpop.f32.mrb[0].mxu0
        %v3942 = vpop.f32.mrb[0].mxu0
        %v3943 = vadd.f32 0.0, %v3942
        %v3944 = vpop.f32.mrb[0].mxu0
        %3945 = vmatprep.mubr.bf16.mxu0 0
        %3946 = vmatmul.mubr.bf16.gmra.mrb[0].mxu0 %v3876
        %v3947 = vpop.f32.mrb[0].mxu0
        %v3948 = vadd.f32 0.0, %v3947
        %v3949 = vpop.f32.mrb[0].mxu0
        %v3950 = vpop.f32.mrb[0].mxu0
        %v3951 = vadd.f32 0.0, %v3950
        %v3952 = vpop.f32.mrb[0].mxu0
        %3953 = vdwg.mxu0
        %v3954 = vadd.f32 %v3801, %v3916
        %v3955 = vadd.f32 %v3802, %v3919
        %v3956 = vadd.f32 %v3803, %v3924
        %v3957 = vadd.f32 %v3804, %v3927
        %v3958 = vadd.f32 %v3805, %v3932
        %v3959 = vadd.f32 %v3806, %v3935
        %v3960 = vadd.f32 %v3807, %v3940
        %v3961 = vadd.f32 %v3808, %v3943
        %v3962 = vadd.f32 %v3809, %v3948
        %v3963 = vadd.f32 %v3810, %v3951
        %v3964 = vld [vmem:[%s334 + $0x30] sm:$0x7]
        %s3965 = scalar_lea.vmem [#allocation8], 50
        %v3966 = vld [vmem:[%s3965] sm:$0x3]
        %v3968 = vunpack.c.l.b16 %v3964
        %v3969 = vpack.c.b16 %v3968, %v3968
        %v3971 = vshrl.u32 %v3846, 16
        %v3973 = vrot.slane %v3971, 2
        %v3974 = vshll.u32 %v3846, 16
        %v3976 = vrot.slane %v3974, 3
        %v3977 = vor.u32 %v3973, %v3976
        %v3979 = vshrl.u32 %v3847, 16
        %v3981 = vrot.slane %v3979, 2
        %v3982 = vshll.u32 %v3847, 16
        %v3984 = vrot.slane %v3982, 3
        %v3985 = vor.u32 %v3981, %v3984
        %v3986 = vsel %vm1360, %v3977, %v3985
        %v3988 = vshrl.u32 %v3848, 16
        %v3990 = vrot.slane %v3988, 2
        %v3991 = vshll.u32 %v3848, 16
        %v3993 = vrot.slane %v3991, 3
        %v3994 = vor.u32 %v3990, %v3993
        %v3995 = vsel %vm1360, %v3985, %v3994
        %v3997 = vshrl.u32 %v3849, 16
        %v3999 = vrot.slane %v3997, 2
        %v4000 = vshll.u32 %v3849, 16
        %v4002 = vrot.slane %v4000, 3
        %v4003 = vor.u32 %v3999, %v4002
        %v4004 = vsel %vm1360, %v3994, %v4003
        %v4006 = vshrl.u32 %v3850, 16
        %v4008 = vrot.slane %v4006, 2
        %v4009 = vshll.u32 %v3850, 16
        %v4011 = vrot.slane %v4009, 3
        %v4012 = vor.u32 %v4008, %v4011
        %v4013 = vsel %vm1360, %v4003, %v4012
        %v4015 = vshrl.u32 %v3969, 16
        %v4017 = vrot.slane %v4015, 2
        %v4018 = vshll.u32 %v3969, 16
        %v4020 = vrot.slane %v4018, 3
        %v4021 = vor.u32 %v4017, %v4020
        %v4022 = vsel %vm1360, %v4012, %v4021
        %v4024 = vsel %vm470, %v3986, 0
        %v4027 = vsel %vm470, %v3995, 0
        %v4030 = vsel %vm470, %v4004, 0
        %v4033 = vsel %vm470, %v4013, 0
        %v4036 = vsel %vm470, %v4022, 0
        %v4039 = vsel %vm486, %v3966, 0
        %4041 = vmatprep.subr.bf16.mxu0 0
        %4042 = vmatpush1.bf16.msra.mxu0 %v4039
        %4043 = vmatprep.subr.bf16.mxu0 0
        %4044 = vmatpush1.bf16.msra.mxu0 0
        %4045 = vmatprep.subr.bf16.mxu0 0
        %4046 = vmatpush1.bf16.msra.mxu0 0
        %4047 = vmatprep.subr.bf16.mxu0 0
        %4048 = vmatpush1.bf16.msra.mxu0 0
        %4049 = vmatprep.subr.bf16.mxu0 0
        %4050 = vmatpush1.bf16.msra.mxu0 0
        %4051 = vmatprep.subr.bf16.mxu0 0
        %4052 = vmatpush1.bf16.msra.mxu0 0
        %4053 = vmatprep.subr.bf16.mxu0 0
        %4054 = vmatpush1.bf16.msra.mxu0 0
        %4055 = vmatprep.subr.bf16.mxu0 0
        %4056 = vmatpush1.bf16.msra.mxu0 0
        %4057 = vmatprep.subr.bf16.mxu0 0
        %4058 = vmatpush1.bf16.msra.mxu0 0
        %4059 = vmatprep.subr.bf16.mxu0 0
        %4060 = vmatpush1.bf16.msra.mxu0 0
        %4061 = vmatprep.subr.bf16.mxu0 0
        %4062 = vmatpush1.bf16.msra.mxu0 0
        %4063 = vmatprep.subr.bf16.mxu0 0
        %4064 = vmatpush1.bf16.msra.mxu0 0
        %4065 = vmatprep.subr.bf16.mxu0 0
        %4066 = vmatpush1.bf16.msra.mxu0 0
        %4067 = vmatprep.subr.bf16.mxu0 0
        %4068 = vmatpush1.bf16.msra.mxu0 0
        %4069 = vmatprep.subr.bf16.mxu0 0
        %4070 = vmatpush1.bf16.msra.mxu0 0
        %4071 = vmatprep.subr.bf16.mxu0 0
        %4072 = vmatpush1.bf16.msra.mxu0 0
        %4073 = vmatprep.mubr.bf16.mxu0 0
        %4074 = vmatmul.mubr.bf16.gmra.mrb[0].mxu0 %v4024
        %v4075 = vpop.f32.mrb[0].mxu0
        %v4076 = vadd.f32 0.0, %v4075
        %v4077 = vpop.f32.mrb[0].mxu0
        %v4078 = vpop.f32.mrb[0].mxu0
        %v4079 = vadd.f32 0.0, %v4078
        %v4080 = vpop.f32.mrb[0].mxu0
        %4081 = vmatprep.mubr.bf16.mxu0 0
        %4082 = vmatmul.mubr.bf16.gmra.mrb[0].mxu0 %v4027
        %v4083 = vpop.f32.mrb[0].mxu0
        %v4084 = vadd.f32 0.0, %v4083
        %v4085 = vpop.f32.mrb[0].mxu0
        %v4086 = vpop.f32.mrb[0].mxu0
        %v4087 = vadd.f32 0.0, %v4086
        %v4088 = vpop.f32.mrb[0].mxu0
        %4089 = vmatprep.mubr.bf16.mxu0 0
        %4090 = vmatmul.mubr.bf16.gmra.mrb[0].mxu0 %v4030
        %v4091 = vpop.f32.mrb[0].mxu0
        %v4092 = vadd.f32 0.0, %v4091
        %v4093 = vpop.f32.mrb[0].mxu0
        %v4094 = vpop.f32.mrb[0].mxu0
        %v4095 = vadd.f32 0.0, %v4094
        %v4096 = vpop.f32.mrb[0].mxu0
        %4097 = vmatprep.mubr.bf16.mxu0 0
        %4098 = vmatmul.mubr.bf16.gmra.mrb[0].mxu0 %v4033
        %v4099 = vpop.f32.mrb[0].mxu0
        %v4100 = vadd.f32 0.0, %v4099
        %v4101 = vpop.f32.mrb[0].mxu0
        %v4102 = vpop.f32.mrb[0].mxu0
        %v4103 = vadd.f32 0.0, %v4102
        %v4104 = vpop.f32.mrb[0].mxu0
        %4105 = vmatprep.mubr.bf16.mxu0 0
        %4106 = vmatmul.mubr.bf16.gmra.mrb[0].mxu0 %v4036
        %v4107 = vpop.f32.mrb[0].mxu0
        %v4108 = vadd.f32 0.0, %v4107
        %v4109 = vpop.f32.mrb[0].mxu0
        %v4110 = vpop.f32.mrb[0].mxu0
        %v4111 = vadd.f32 0.0, %v4110
        %v4112 = vpop.f32.mrb[0].mxu0
        %4113 = vdwg.mxu0
        %v4114 = vadd.f32 %v3954, %v4076
        %v4115 = vadd.f32 %v3955, %v4079
        %v4116 = vadd.f32 %v3956, %v4084
        %v4117 = vadd.f32 %v3957, %v4087
        %v4118 = vadd.f32 %v3958, %v4092
        %v4119 = vadd.f32 %v3959, %v4095
        %v4120 = vadd.f32 %v3960, %v4100
        %v4121 = vadd.f32 %v3961, %v4103
        %v4122 = vadd.f32 %v3962, %v4108
        %v4123 = vadd.f32 %v3963, %v4111
        %v4124 = vld [vmem:[%s334 + $0x8] sm:$0x8]
        %s4125 = scalar_lea.vmem [#allocation8], 52
        %v4126 = vld [vmem:[%s4125] sm:$0x3]
        %v4128 = vunpack.c.l.b16 %v4124
        %v4129 = vpack.c.b16 %v3836, %v4128
        %v4130 = vrot.slane %v4129, 3
        %v4131 = vrot.slane %v3847, 3
        %v4132 = vsel %vm1521, %v4130, %v4131
        %v4133 = vrot.slane %v3848, 3
        %v4134 = vsel %vm1521, %v4131, %v4133
        %v4135 = vrot.slane %v3849, 3
        %v4136 = vsel %vm1521, %v4133, %v4135
        %v4137 = vrot.slane %v3850, 3
        %v4138 = vsel %vm1521, %v4135, %v4137
        %v4139 = vrot.slane %v3969, 3
        %v4140 = vsel %vm1521, %v4137, %v4139
        %v4142 = vsel %vm470, %v4132, 0
        %v4145 = vsel %vm470, %v4134, 0
        %v4148 = vsel %vm470, %v4136, 0
        %v4151 = vsel %vm470, %v4138, 0
        %v4154 = vsel %vm470, %v4140, 0
        %v4157 = vsel %vm486, %v4126, 0
        %4159 = vmatprep.subr.bf16.mxu0 0
        %4160 = vmatpush1.bf16.msra.mxu0 %v4157
        %4161 = vmatprep.subr.bf16.mxu0 0
        %4162 = vmatpush1.bf16.msra.mxu0 0
        %4163 = vmatprep.subr.bf16.mxu0 0
        %4164 = vmatpush1.bf16.msra.mxu0 0
        %4165 = vmatprep.subr.bf16.mxu0 0
        %4166 = vmatpush1.bf16.msra.mxu0 0
        %4167 = vmatprep.subr.bf16.mxu0 0
        %4168 = vmatpush1.bf16.msra.mxu0 0
        %4169 = vmatprep.subr.bf16.mxu0 0
        %4170 = vmatpush1.bf16.msra.mxu0 0
        %4171 = vmatprep.subr.bf16.mxu0 0
        %4172 = vmatpush1.bf16.msra.mxu0 0
        %4173 = vmatprep.subr.bf16.mxu0 0
        %4174 = vmatpush1.bf16.msra.mxu0 0
        %4175 = vmatprep.subr.bf16.mxu0 0
        %4176 = vmatpush1.bf16.msra.mxu0 0
        %4177 = vmatprep.subr.bf16.mxu0 0
        %4178 = vmatpush1.bf16.msra.mxu0 0
        %4179 = vmatprep.subr.bf16.mxu0 0
        %4180 = vmatpush1.bf16.msra.mxu0 0
        %4181 = vmatprep.subr.bf16.mxu0 0
        %4182 = vmatpush1.bf16.msra.mxu0 0
        %4183 = vmatprep.subr.bf16.mxu0 0
        %4184 = vmatpush1.bf16.msra.mxu0 0
        %4185 = vmatprep.subr.bf16.mxu0 0
        %4186 = vmatpush1.bf16.msra.mxu0 0
        %4187 = vmatprep.subr.bf16.mxu0 0
        %4188 = vmatpush1.bf16.msra.mxu0 0
        %4189 = vmatprep.subr.bf16.mxu0 0
        %4190 = vmatpush1.bf16.msra.mxu0 0
        %4191 = vmatprep.mubr.bf16.mxu0 0
        %4192 = vmatmul.mubr.bf16.gmra.mrb[0].mxu0 %v4142
        %v4193 = vpop.f32.mrb[0].mxu0
        %v4194 = vadd.f32 0.0, %v4193
        %v4195 = vpop.f32.mrb[0].mxu0
        %v4196 = vpop.f32.mrb[0].mxu0
        %v4197 = vadd.f32 0.0, %v4196
        %v4198 = vpop.f32.mrb[0].mxu0
        %4199 = vmatprep.mubr.bf16.mxu0 0
        %4200 = vmatmul.mubr.bf16.gmra.mrb[0].mxu0 %v4145
        %v4201 = vpop.f32.mrb[0].mxu0
        %v4202 = vadd.f32 0.0, %v4201
        %v4203 = vpop.f32.mrb[0].mxu0
        %v4204 = vpop.f32.mrb[0].mxu0
        %v4205 = vadd.f32 0.0, %v4204
        %v4206 = vpop.f32.mrb[0].mxu0
        %4207 = vmatprep.mubr.bf16.mxu0 0
        %4208 = vmatmul.mubr.bf16.gmra.mrb[0].mxu0 %v4148
        %v4209 = vpop.f32.mrb[0].mxu0
        %v4210 = vadd.f32 0.0, %v4209
        %v4211 = vpop.f32.mrb[0].mxu0
        %v4212 = vpop.f32.mrb[0].mxu0
        %v4213 = vadd.f32 0.0, %v4212
        %v4214 = vpop.f32.mrb[0].mxu0
        %4215 = vmatprep.mubr.bf16.mxu0 0
        %4216 = vmatmul.mubr.bf16.gmra.mrb[0].mxu0 %v4151
        %v4217 = vpop.f32.mrb[0].mxu0
        %v4218 = vadd.f32 0.0, %v4217
        %v4219 = vpop.f32.mrb[0].mxu0
        %v4220 = vpop.f32.mrb[0].mxu0
        %v4221 = vadd.f32 0.0, %v4220
        %v4222 = vpop.f32.mrb[0].mxu0
        %4223 = vmatprep.mubr.bf16.mxu0 0
        %4224 = vmatmul.mubr.bf16.gmra.mrb[0].mxu0 %v4154
        %v4225 = vpop.f32.mrb[0].mxu0
        %v4226 = vadd.f32 0.0, %v4225
        %v4227 = vpop.f32.mrb[0].mxu0
        %v4228 = vpop.f32.mrb[0].mxu0
        %v4229 = vadd.f32 0.0, %v4228
        %v4230 = vpop.f32.mrb[0].mxu0
        %4231 = vdwg.mxu0
        %v4232 = vadd.f32 %v4114, %v4194
        %v4233 = vadd.f32 %v4115, %v4197
        %v4234 = vadd.f32 %v4116, %v4202
        %v4235 = vadd.f32 %v4117, %v4205
        %v4236 = vadd.f32 %v4118, %v4210
        %v4237 = vadd.f32 %v4119, %v4213
        %v4238 = vadd.f32 %v4120, %v4218
        %v4239 = vadd.f32 %v4121, %v4221
        %v4240 = vadd.f32 %v4122, %v4226
        %v4241 = vadd.f32 %v4123, %v4229
        %v4242 = vpack.c.bf16 %v4233, %v4232
        %v4243 = vpack.c.bf16 %v4235, %v4234
        %v4244 = vpack.c.bf16 %v4237, %v4236
        %v4245 = vpack.c.bf16 %v4239, %v4238
        %v4246 = vpack.c.bf16 %v4241, %v4240
        %v4252 = vunpack.c.l.b16 %v4242
        %v4253 = vunpack.c.h.b16 %v4242
        %v4254 = vunpack.c.l.b16 %v4243
        %v4255 = vunpack.c.h.b16 %v4243
        %v4256 = vunpack.c.l.b16 %v4244
        %v4257 = vunpack.c.h.b16 %v4244
        %v4258 = vunpack.c.l.b16 %v4245
        %v4259 = vunpack.c.h.b16 %v4245
        %v4260 = vunpack.c.l.b16 %v4246
        %v4261 = vunpack.c.h.b16 %v4246
        %v4262 = vpack.c.b16 %v4252, %v4252
        %v4263 = vpack.c.b16 %v4253, %v4253
        %v4264 = vpack.c.b16 %v4254, %v4254
        %v4265 = vpack.c.b16 %v4255, %v4255
        %v4266 = vpack.c.b16 %v4256, %v4256
        %v4267 = vpack.c.b16 %v4257, %v4257
        %v4268 = vpack.c.b16 %v4258, %v4258
        %v4269 = vpack.c.b16 %v4259, %v4259
        %v4270 = vpack.c.b16 %v4260, %v4260
        %v4271 = vpack.c.b16 %v4261, %v4261
        %vm4282 = vcmask 27648
        %4283 = vst.msk [vmem:[%s372] sm:$0xf] %vm4282, %v4262
        %4284 = vst.msk [vmem:[%s372 + $0x4] sm:$0xf] %vm4282, %v4263
        %4285 = vst.msk [vmem:[%s372 + $0x8] sm:$0xf] %vm4282, %v4264
        %4286 = vst.msk [vmem:[%s372 + $0xc] sm:$0xf] %vm4282, %v4265
        %4287 = vst.msk [vmem:[%s372 + $0x10] sm:$0xf] %vm4282, %v4266
        %4288 = vst.msk [vmem:[%s372 + $0x14] sm:$0xf] %vm4282, %v4267
        %4289 = vst.msk [vmem:[%s372 + $0x18] sm:$0xf] %vm4282, %v4268
        %4290 = vst.msk [vmem:[%s372 + $0x1c] sm:$0xf] %vm4282, %v4269
        %4291 = vst.msk [vmem:[%s372 + $0x20] sm:$0xf] %vm4282, %v4270
        %4292 = vst.msk [vmem:[%s372 + $0x24] sm:$0xf] %vm4282, %v4271
        %v4293 = vlaneseq
        %v4294 = vshrl.u32 %v4293, 7
        %v4295 = vadd.s32 %v4294, 8
        %v4296 = vadd.s32 %v4294, 16
        %v4297 = vadd.s32 %v4294, 24
        %v4298 = vadd.s32 %v4294, 32
        %v4299 = vadd.s32 %v4294, 40
        %v4300 = vadd.s32 %v4294, 48
        %v4301 = vadd.s32 %v4294, 56
        %v4302 = vadd.s32 %v4294, 64
        %v4303 = vadd.s32 %v4294, 72
        %vm4304 = vcmp.lt.s32.totalorder %v4294, 0
        %v4305 = vsub.s32 0, %v4294
        %v4306 = vsel %vm4304, %v4305, %v4294
        %v4307 = vmul.u32.u64.compose %v4306, 3435973837
        %v4308 = vextract.low.u32 %v4307
        %v4309 = vextract.high.u32 %v4307
        %v4310 = vshrl.u32 %v4309, 3
        %v4311 = vmul.u32 %v4310, 10
        %v4312 = vsub.s32 %v4306, %v4311
        %v4313 = vsub.s32 0, %v4312
        %v4314 = vsel %vm4304, %v4313, %v4312
        %vm4315 = vcmp.lt.s32.totalorder %v4295, 0
        %v4316 = vsub.s32 0, %v4295
        %v4317 = vsel %vm4315, %v4316, %v4295
        %v4318 = vmul.u32.u64.compose %v4317, 3435973837
        %v4319 = vextract.low.u32 %v4318
        %v4320 = vextract.high.u32 %v4318
        %v4321 = vshrl.u32 %v4320, 3
        %v4322 = vmul.u32 %v4321, 10
        %v4323 = vsub.s32 %v4317, %v4322
        %v4324 = vsub.s32 0, %v4323
        %v4325 = vsel %vm4315, %v4324, %v4323
        %vm4326 = vcmp.lt.s32.totalorder %v4296, 0
        %v4327 = vsub.s32 0, %v4296
        %v4328 = vsel %vm4326, %v4327, %v4296
        %v4329 = vmul.u32.u64.compose %v4328, 3435973837
        %v4330 = vextract.low.u32 %v4329
        %v4331 = vextract.high.u32 %v4329
        %v4332 = vshrl.u32 %v4331, 3
        %v4333 = vmul.u32 %v4332, 10
        %v4334 = vsub.s32 %v4328, %v4333
        %v4335 = vsub.s32 0, %v4334
        %v4336 = vsel %vm4326, %v4335, %v4334
        %vm4337 = vcmp.lt.s32.totalorder %v4297, 0
        %v4338 = vsub.s32 0, %v4297
        %v4339 = vsel %vm4337, %v4338, %v4297
        %v4340 = vmul.u32.u64.compose %v4339, 3435973837
        %v4341 = vextract.low.u32 %v4340
        %v4342 = vextract.high.u32 %v4340
        %v4343 = vshrl.u32 %v4342, 3
        %v4344 = vmul.u32 %v4343, 10
        %v4345 = vsub.s32 %v4339, %v4344
        %v4346 = vsub.s32 0, %v4345
        %v4347 = vsel %vm4337, %v4346, %v4345
        %vm4348 = vcmp.lt.s32.totalorder %v4298, 0
        %v4349 = vsub.s32 0, %v4298
        %v4350 = vsel %vm4348, %v4349, %v4298
        %v4351 = vmul.u32.u64.compose %v4350, 3435973837
        %v4352 = vextract.low.u32 %v4351
        %v4353 = vextract.high.u32 %v4351
        %v4354 = vshrl.u32 %v4353, 3
        %v4355 = vmul.u32 %v4354, 10
        %v4356 = vsub.s32 %v4350, %v4355
        %v4357 = vsub.s32 0, %v4356
        %v4358 = vsel %vm4348, %v4357, %v4356
        %vm4359 = vcmp.lt.s32.totalorder %v4299, 0
        %v4360 = vsub.s32 0, %v4299
        %v4361 = vsel %vm4359, %v4360, %v4299
        %v4362 = vmul.u32.u64.compose %v4361, 3435973837
        %v4363 = vextract.low.u32 %v4362
        %v4364 = vextract.high.u32 %v4362
        %v4365 = vshrl.u32 %v4364, 3
        %v4366 = vmul.u32 %v4365, 10
        %v4367 = vsub.s32 %v4361, %v4366
        %v4368 = vsub.s32 0, %v4367
        %v4369 = vsel %vm4359, %v4368, %v4367
        %vm4370 = vcmp.lt.s32.totalorder %v4300, 0
        %v4371 = vsub.s32 0, %v4300
        %v4372 = vsel %vm4370, %v4371, %v4300
        %v4373 = vmul.u32.u64.compose %v4372, 3435973837
        %v4374 = vextract.low.u32 %v4373
        %v4375 = vextract.high.u32 %v4373
        %v4376 = vshrl.u32 %v4375, 3
        %v4377 = vmul.u32 %v4376, 10
        %v4378 = vsub.s32 %v4372, %v4377
        %v4379 = vsub.s32 0, %v4378
        %v4380 = vsel %vm4370, %v4379, %v4378
        %vm4381 = vcmp.lt.s32.totalorder %v4301, 0
        %v4382 = vsub.s32 0, %v4301
        %v4383 = vsel %vm4381, %v4382, %v4301
        %v4384 = vmul.u32.u64.compose %v4383, 3435973837
        %v4385 = vextract.low.u32 %v4384
        %v4386 = vextract.high.u32 %v4384
        %v4387 = vshrl.u32 %v4386, 3
        %v4388 = vmul.u32 %v4387, 10
        %v4389 = vsub.s32 %v4383, %v4388
        %v4390 = vsub.s32 0, %v4389
        %v4391 = vsel %vm4381, %v4390, %v4389
        %vm4392 = vcmp.lt.s32.totalorder %v4302, 0
        %v4393 = vsub.s32 0, %v4302
        %v4394 = vsel %vm4392, %v4393, %v4302
        %v4395 = vmul.u32.u64.compose %v4394, 3435973837
        %v4396 = vextract.low.u32 %v4395
        %v4397 = vextract.high.u32 %v4395
        %v4398 = vshrl.u32 %v4397, 3
        %v4399 = vmul.u32 %v4398, 10
        %v4400 = vsub.s32 %v4394, %v4399
        %v4401 = vsub.s32 0, %v4400
        %v4402 = vsel %vm4392, %v4401, %v4400
        %vm4403 = vcmp.lt.s32.totalorder %v4303, 0
        %v4404 = vsub.s32 0, %v4303
        %v4405 = vsel %vm4403, %v4404, %v4303
        %v4406 = vmul.u32.u64.compose %v4405, 3435973837
        %v4407 = vextract.low.u32 %v4406
        %v4408 = vextract.high.u32 %v4406
        %v4409 = vshrl.u32 %v4408, 3
        %v4410 = vmul.u32 %v4409, 10
        %v4411 = vsub.s32 %v4405, %v4410
        %v4412 = vsub.s32 0, %v4411
        %v4413 = vsel %vm4403, %v4412, %v4411
        %vm4414 = vcmp.ne.s32.totalorder %v4314, 0
        %vm4415 = vcmp.ne.s32.totalorder %v4325, 0
        %vm4416 = vcmp.ne.s32.totalorder %v4336, 0
        %vm4417 = vcmp.ne.s32.totalorder %v4347, 0
        %vm4418 = vcmp.ne.s32.totalorder %v4358, 0
        %vm4419 = vcmp.ne.s32.totalorder %v4369, 0
        %vm4420 = vcmp.ne.s32.totalorder %v4380, 0
        %vm4421 = vcmp.ne.s32.totalorder %v4391, 0
        %vm4422 = vcmp.ne.s32.totalorder %v4402, 0
        %vm4423 = vcmp.ne.s32.totalorder %v4413, 0
        %vm4424 = vcmp.lt.s32.totalorder %v4314, 0
        %vm4425 = vcmp.lt.s32.totalorder %v4325, 0
        %vm4426 = vcmp.lt.s32.totalorder %v4336, 0
        %vm4427 = vcmp.lt.s32.totalorder %v4347, 0
        %vm4428 = vcmp.lt.s32.totalorder %v4358, 0
        %vm4429 = vcmp.lt.s32.totalorder %v4369, 0
        %vm4430 = vcmp.lt.s32.totalorder %v4380, 0
        %vm4431 = vcmp.lt.s32.totalorder %v4391, 0
        %vm4432 = vcmp.lt.s32.totalorder %v4402, 0
        %vm4433 = vcmp.lt.s32.totalorder %v4413, 0
        %vm4434 = vmand %vm4424, %vm4414
        %vm4435 = vmand %vm4425, %vm4415
        %vm4436 = vmand %vm4426, %vm4416
        %vm4437 = vmand %vm4427, %vm4417
        %vm4438 = vmand %vm4428, %vm4418
        %vm4439 = vmand %vm4429, %vm4419
        %vm4440 = vmand %vm4430, %vm4420
        %vm4441 = vmand %vm4431, %vm4421
        %vm4442 = vmand %vm4432, %vm4422
        %vm4443 = vmand %vm4433, %vm4423
        %v4444 = vadd.s32 %v4314, 10
        %v4445 = vadd.s32 %v4325, 10
        %v4446 = vadd.s32 %v4336, 10
        %v4447 = vadd.s32 %v4347, 10
        %v4448 = vadd.s32 %v4358, 10
        %v4449 = vadd.s32 %v4369, 10
        %v4450 = vadd.s32 %v4380, 10
        %v4451 = vadd.s32 %v4391, 10
        %v4452 = vadd.s32 %v4402, 10
        %v4453 = vadd.s32 %v4413, 10
        %v4454 = vsel %vm4434, %v4444, %v4314
        %v4455 = vsel %vm4435, %v4445, %v4325
        %v4456 = vsel %vm4436, %v4446, %v4336
        %v4457 = vsel %vm4437, %v4447, %v4347
        %v4458 = vsel %vm4438, %v4448, %v4358
        %v4459 = vsel %vm4439, %v4449, %v4369
        %v4460 = vsel %vm4440, %v4450, %v4380
        %v4461 = vsel %vm4441, %v4451, %v4391
        %v4462 = vsel %vm4442, %v4452, %v4402
        %v4463 = vsel %vm4443, %v4453, %v4413
        %vm4464 = vcmp.lt.s32.totalorder %v4454, 8
        %vm4465 = vcmp.lt.s32.totalorder %v4455, 8
        %vm4466 = vcmp.lt.s32.totalorder %v4456, 8
        %vm4467 = vcmp.lt.s32.totalorder %v4457, 8
        %vm4468 = vcmp.lt.s32.totalorder %v4458, 8
        %vm4469 = vcmp.lt.s32.totalorder %v4459, 8
        %vm4470 = vcmp.lt.s32.totalorder %v4460, 8
        %vm4471 = vcmp.lt.s32.totalorder %v4461, 8
        %vm4472 = vcmp.lt.s32.totalorder %v4462, 8
        %vm4473 = vcmp.lt.s32.totalorder %v4463, 8
        %v4474 = vsel %vm4464, 1, 0
        %v4475 = vsel %vm4465, 1, 0
        %v4476 = vsel %vm4466, 1, 0
        %v4477 = vsel %vm4467, 1, 0
        %v4478 = vsel %vm4468, 1, 0
        %v4479 = vsel %vm4469, 1, 0
        %v4480 = vsel %vm4470, 1, 0
        %v4481 = vsel %vm4471, 1, 0
        %v4482 = vsel %vm4472, 1, 0
        %v4483 = vsel %vm4473, 1, 0
        %vm4484 = vcmp.eq.s32.totalorder %v4474, 1
        %vm4485 = vcmp.eq.s32.totalorder %v4475, 1
        %vm4486 = vcmp.eq.s32.totalorder %v4476, 1
        %vm4487 = vcmp.eq.s32.totalorder %v4477, 1
        %vm4488 = vcmp.eq.s32.totalorder %v4478, 1
        %vm4489 = vcmp.eq.s32.totalorder %v4479, 1
        %vm4490 = vcmp.eq.s32.totalorder %v4480, 1
        %vm4491 = vcmp.eq.s32.totalorder %v4481, 1
        %vm4492 = vcmp.eq.s32.totalorder %v4482, 1
        %vm4493 = vcmp.eq.s32.totalorder %v4483, 1
        %v4494 = vsel %vm4484, %v4232, 0.0
        %v4495 = vsel %vm4485, %v4233, 0.0
        %v4496 = vsel %vm4486, %v4234, 0.0
        %v4497 = vsel %vm4487, %v4235, 0.0
        %v4498 = vsel %vm4488, %v4236, 0.0
        %v4499 = vsel %vm4489, %v4237, 0.0
        %v4500 = vsel %vm4490, %v4238, 0.0
        %v4501 = vsel %vm4491, %v4239, 0.0
        %v4502 = vsel %vm4492, %v4240, 0.0
        %v4503 = vsel %vm4493, %v4241, 0.0
        %v4504 = vsel %vm470, %v4494, 0.0
        %v4505 = vsel %vm470, %v4495, 0.0
        %v4506 = vadd.f32 %v4504, %v4505
        %v4507 = vsel %vm470, %v4496, 0.0
        %v4508 = vadd.f32 %v4506, %v4507
        %v4509 = vsel %vm470, %v4497, 0.0
        %v4510 = vadd.f32 %v4508, %v4509
        %v4511 = vsel %vm470, %v4498, 0.0
        %v4512 = vadd.f32 %v4510, %v4511
        %v4513 = vsel %vm470, %v4499, 0.0
        %v4514 = vadd.f32 %v4512, %v4513
        %v4515 = vsel %vm470, %v4500, 0.0
        %v4516 = vadd.f32 %v4514, %v4515
        %v4517 = vsel %vm470, %v4501, 0.0
        %v4518 = vadd.f32 %v4516, %v4517
        %v4519 = vsel %vm470, %v4502, 0.0
        %v4520 = vadd.f32 %v4518, %v4519
        %v4521 = vsel %vm470, %v4503, 0.0
        %v4522 = vadd.f32 %v4520, %v4521
        %v4523 = vrot.slane %v4522, 4
        %v4524 = vadd.f32 %v4522, %v4523
        %v4525 = vrot.slane %v4524, 2
        %v4526 = vadd.f32 %v4524, %v4525
        %v4527 = vrot.slane %v4526, 1
        %v4528 = vadd.f32 %v4526, %v4527
        %vm4529 = vcmask 24576
        %4530 = vst.msk [vmem:[%s379] sm:$0x1] %vm4529, %v4528
        %v4531 = vmul.f32 %v4494, %v4232
        %v4532 = vmul.f32 %v4495, %v4233
        %v4533 = vmul.f32 %v4496, %v4234
        %v4534 = vmul.f32 %v4497, %v4235
        %v4535 = vmul.f32 %v4498, %v4236
        %v4536 = vmul.f32 %v4499, %v4237
        %v4537 = vmul.f32 %v4500, %v4238
        %v4538 = vmul.f32 %v4501, %v4239
        %v4539 = vmul.f32 %v4502, %v4240
        %v4540 = vmul.f32 %v4503, %v4241
        %v4541 = vsel %vm470, %v4531, 0.0
        %v4542 = vsel %vm470, %v4532, 0.0
        %v4543 = vadd.f32 %v4541, %v4542
        %v4544 = vsel %vm470, %v4533, 0.0
        %v4545 = vadd.f32 %v4543, %v4544
        %v4546 = vsel %vm470, %v4534, 0.0
        %v4547 = vadd.f32 %v4545, %v4546
        %v4548 = vsel %vm470, %v4535, 0.0
        %v4549 = vadd.f32 %v4547, %v4548
        %v4550 = vsel %vm470, %v4536, 0.0
        %v4551 = vadd.f32 %v4549, %v4550
        %v4552 = vsel %vm470, %v4537, 0.0
        %v4553 = vadd.f32 %v4551, %v4552
        %v4554 = vsel %vm470, %v4538, 0.0
        %v4555 = vadd.f32 %v4553, %v4554
        %v4556 = vsel %vm470, %v4539, 0.0
        %v4557 = vadd.f32 %v4555, %v4556
        %v4558 = vsel %vm470, %v4540, 0.0
        %v4559 = vadd.f32 %v4557, %v4558
        %v4560 = vrot.slane %v4559, 4
        %v4561 = vadd.f32 %v4559, %v4560
        %v4562 = vrot.slane %v4561, 2
        %v4563 = vadd.f32 %v4561, %v4562
        %v4564 = vrot.slane %v4563, 1
        %v4565 = vadd.f32 %v4563, %v4564
        %4566 = vst.msk [vmem:[%s379 + $0x1] sm:$0x1] %vm4529, %v4565
        %s4567 = sand.u32 %s161, 1
        %s4568 = scalar_lea.sflag [#allocation4], %s4567
        %s4569 = sand.u32 %s161, 1
        %s4570 = smul.addr %s4569, 40
        %s4571 = scalar_lea.vmem [#allocation10], %s4570
        %s4572 = sand.u32 %s189, 1
        %s4573 = scalar_lea.sflag [#allocation12], %s4572
        %s4574 = sand.u32 %s189, 1
        %s4575 = smul.addr %s4574, 2
        %s4576 = scalar_lea.vmem [#allocation11], %s4575
        // Predicated region
        $region53: #{down_forward.6} parent=35 // pred_check
          %p4577 = pneg %p171
        $region54: #{down_forward.6} parent=35 // pred_check_branch
          %4579 = sbr.rel (%p4577) target = $region56
        $region55: #{down_forward.6} parent=35 // pred_region
          %s4581 = ssub.s32 640, 640
          %4582 = vsyncadd %s4568, %s4581
          %s4583 = smul.addr %s35, 10
          %s4584 = smul.addr %s34, 80
          %s4585 = sadd.s32 %s4583, %s4584
          %s4586 = smul.addr %s4585, 64
          %s4587 = scalar_lea.hbm %s4, %s4586
          %s4588 = sshll.u32 %s4571, 4
          %s4589 = int_to_ptr.vmem [resolvable:$true] %s4588
          %4594 = dma.vmem_to_hbm [thread:$0]  %s4589, 640, %s4587, %s4568, 64, 64, 4
        $region56: #{down_forward.6} parent=35 // pred_fallthru
          _
        // Predicated region
        $region57: #{down_forward.6} parent=35 // pred_check
          %p4595 = pneg %p199
        $region58: #{down_forward.6} parent=35 // pred_check_branch
          %4597 = sbr.rel (%p4595) target = $region60
        $region59: #{down_forward.6} parent=35 // pred_region
          %s4599 = ssub.s32 32, 32
          %4600 = vsyncadd %s4573, %s4599
          %s4601 = smul.addr %s34, 8
          %s4602 = sadd.s32 %s35, %s4601
          %s4603 = smul.addr %s4602, 32
          %s4604 = scalar_lea.hbm %s5, %s4603
          %s4606 = sshll.u32 %s4576, 4
          %s4607 = int_to_ptr.vmem [resolvable:$true] %s4606
          %4609 = dma.vmem_to_hbm [thread:$0]  %s4607, 32, %s4604, %s4573
        $region60: #{down_forward.6} parent=35 // pred_fallthru
          _
      $region36: #{down_forward.6} parent=5 // pred_fallthru
        _
      %p4610 = scmp.le.s32.totalorder 2, %s25
      // Predicated region
      $region61: #{down_forward.6} parent=5 // pred_check
        %p4611 = pneg %p4610
      $region62: #{down_forward.6} parent=5 // pred_check_branch
        %4613 = sbr.rel (%p4611) target = $region64
      $region63: #{down_forward.6} parent=5 // pred_region
        %s4614 = ssub.s32 %s25, 2
        // Predicated region
        $region65: #{down_forward.6} parent=63 // pred_check
          %p4615 = pneg %p177
        $region66: #{down_forward.6} parent=63 // pred_check_branch
          %4617 = sbr.rel (%p4615) target = $region68
        $region67: #{down_forward.6} parent=63 // pred_region
          %s4618 = sand.u32 %s162, 1
          %s4619 = scalar_lea.sflag [#allocation4], %s4618
          %s4620 = sand.u32 %s162, 1
          %s4621 = smul.addr %s4620, 40
          %s4622 = scalar_lea.vmem [#allocation10], %s4621
          %4623 = dma.done %s4619, 640
        $region68: #{down_forward.6} parent=63 // pred_fallthru
          _
        // Predicated region
        $region69: #{down_forward.6} parent=63 // pred_check
          %p4624 = pneg %p205
        $region70: #{down_forward.6} parent=63 // pred_check_branch
          %4626 = sbr.rel (%p4624) target = $region72
        $region71: #{down_forward.6} parent=63 // pred_region
          %s4627 = sand.u32 %s190, 1
          %s4628 = scalar_lea.sflag [#allocation12], %s4627
          %s4629 = sand.u32 %s190, 1
          %s4630 = smul.addr %s4629, 2
          %s4631 = scalar_lea.vmem [#allocation11], %s4630
          %4632 = dma.done %s4628, 32
        $region72: #{down_forward.6} parent=63 // pred_fallthru
          _
      $region64: #{down_forward.6} parent=5 // pred_fallthru
        _
    $region6: #{down_forward.6} parent=1 // loop_footer
      %s29 = sadd.s32 1, %s25
    $region7: #{down_forward.6} parent=1 // loop_footer_branch
      %24 = sbr.rel target = $region3
    $region8: #{down_forward.6} parent=1 // loop_exit
      _
    %4633 = vsyncpa [#allocation3], 1
    %s4634 = scalar_lea.sflag [#allocation3], 1
    %4635 = vsyncpa %s4634, 1
    %4636 = vsyncpa [#allocation6], 1
    %s4637 = scalar_lea.sflag [#allocation6], 1
    %4638 = vsyncpa %s4637, 1
    %4639 = vsyncpa [#allocation9], 1
    %4640 = vsyncpa [#allocation4], 1
    %s4641 = scalar_lea.sflag [#allocation4], 1
    %4642 = vsyncpa %s4641, 1
    %4643 = vsyncpa [#allocation12], 1
    %s4644 = scalar_lea.sflag [#allocation12], 1
    %4645 = vsyncpa %s4644, 1

// kernel: down_forward.7
$region0: #{down_forward.7}
  #allocation0 [shape = 'u32[]', space=smem, size = 0x4, offset = 0x4, fixed_abs, tag = 'smem constant byte address 0x4 - core index']
  #allocation1 [shape = 'u32[144,128]{1,0:T(1,128)}', space=vmem, size = 0x12000, scoped, tag = 'internal scratch']
  %s0 = inlined_call_operand.hbm [shape: bf16[2,8,80,4], index: 0, kind: input, shape index: {}]
  %s1 = inlined_call_operand.vmem [shape: f32[2,4], index: 1, kind: input, shape index: {}]
  %s2 = inlined_call_operand.vmem [shape: f32[2,8,80,4], index: 2, kind: output, shape index: {}]
  %s3 = sld [smem:[#allocation0]]
  $region45: #{down_forward.7} parent=0
    _
  %s5 = ssub.s32 1, %s3
  %s6 = scalar_select 0, %s5, %s3
  $region1: #{down_forward.7} parent=0
    #allocation2 [shape = 'u8[40960]{0}', space=vmem, size = 0xa000, scoped, tag = 'input window, operand 0']
    #allocation3 [shape = 's32[2]{0}', space=sflag, size = 0x8, scoped, tag = 'scoped memory for down_forward.7']
    %7 = vsyncpa [#allocation3], 0
    %s8 = scalar_lea.sflag [#allocation3], 1
    %9 = vsyncpa %s8, 0
    loop: start=0, step=1, limit=18
    $region2: #{down_forward.7} parent=1 // loop_pre_header
      _
    $region3: #{down_forward.7} parent=1 // loop_header
      %s11 = sphi 0, %s15
      %p12 = scmp.ge.s32.totalorder %s11, 18
      %s18 = sphi 0, %s30
      %s19 = sphi 0, %s26
      %s20 = sphi 0, %s18
      %s21 = sphi 0, %s19
      %s22 = sphi 0, %s20
      %s23 = sphi 0, %s21
      %s35 = sphi 0, %s37
      %s38 = sphi 0, %s35
      %s39 = sphi 0, %s38
      %s55 = sphi 0, %s39
      %s59 = sphi 0, %s59
      %s61 = sphi 0, %s59
      %s62 = sphi 0, %s61
      %s76 = sphi 0, %s62
      %s84 = sphi 0, %s86
      %s87 = sphi 0, %s84
      %s88 = sphi 0, %s87
      %s104 = sphi 0, %s88
    $region4: #{down_forward.7} parent=1 // loop_header_branch
      %14 = sbr.rel (%p12) target = $region8
    $region5: #{down_forward.7} parent=1 // loop_body
      %s16 = ssub.s32 %s11, 1
      %s17 = ssub.s32 %s11, 2
      %s24 = sadd.s32 1, %s19
      %p25 = scmp.ge.s32.totalorder %s24, 8
      %s26 = scalar_select %p25, 0, %s24
      %s27 = sadd.s32 1, %s18
      %s28 = scalar_select %p25, %s27, %s18
      %p29 = scmp.ge.s32.totalorder %s28, 2
      %s30 = scalar_select %p29, 0, %s28
      %s31 = ssub.s32 %s18, %s30
      %s32 = ssub.s32 %s19, %s26
      %s33 = sor.u32 %s31, %s32
      %p34 = scmp.eq.s32.totalorder %s33, 0
      %s36 = sadd.s32 %s35, 1
      %s37 = scalar_select %p34, %s35, %s36
      %p40 = pneg %p34
      %p41 = scmp.eq.s32.totalorder %s11, 15
      %p42 = por %p40, %p41
      %p43 = scmp.ne.s32.totalorder %s35, %s38
      %p44 = scmp.eq.s32.totalorder %s11, 0
      %p45 = por %p43, %p44
      %p46 = scmp.ne.s32.totalorder %s35, %s38
      %p47 = scmp.eq.s32.totalorder %s16, 15
      %p48 = por %p46, %p47
      %p49 = scmp.ne.s32.totalorder %s38, %s39
      %p50 = scmp.eq.s32.totalorder %s16, 0
      %p51 = por %p49, %p50
      %p52 = scmp.ne.s32.totalorder %s38, %s39
      %p53 = scmp.eq.s32.totalorder %s17, 15
      %p54 = por %p52, %p53
      %p56 = scmp.ne.s32.totalorder %s39, %s55
      %p57 = scmp.eq.s32.totalorder %s17, 0
      %p58 = por %p56, %p57
      %s60 = sadd.s32 %s59, 1
      %p63 = scmp.eq.s32.totalorder %s11, 15
      %p64 = scmp.ne.s32.totalorder %s59, %s61
      %p65 = scmp.eq.s32.totalorder %s11, 0
      %p66 = por %p64, %p65
      %p67 = scmp.ne.s32.totalorder %s59, %s61
      %p68 = scmp.eq.s32.totalorder %s16, 15
      %p69 = por %p67, %p68
      %p70 = scmp.ne.s32.totalorder %s61, %s62
      %p71 = scmp.eq.s32.totalorder %s16, 0
      %p72 = por %p70, %p71
      %p73 = scmp.ne.s32.totalorder %s61, %s62
      %p74 = scmp.eq.s32.totalorder %s17, 15
      %p75 = por %p73, %p74
      %p77 = scmp.ne.s32.totalorder %s62, %s76
      %p78 = scmp.eq.s32.totalorder %s17, 0
      %p79 = por %p77, %p78
      %s80 = ssub.s32 %s18, %s30
      %s81 = ssub.s32 %s19, %s26
      %s82 = sor.u32 %s80, %s81
      %p83 = scmp.eq.s32.totalorder %s82, 0
      %s85 = sadd.s32 %s84, 1
      %s86 = scalar_select %p83, %s84, %s85
      %p89 = pneg %p83
      %p90 = scmp.eq.s32.totalorder %s11, 15
      %p91 = por %p89, %p90
      %p92 = scmp.ne.s32.totalorder %s84, %s87
      %p93 = scmp.eq.s32.totalorder %s11, 0
      %p94 = por %p92, %p93
      %p95 = scmp.ne.s32.totalorder %s84, %s87
      %p96 = scmp.eq.s32.totalorder %s16, 15
      %p97 = por %p95, %p96
      %p98 = scmp.ne.s32.totalorder %s87, %s88
      %p99 = scmp.eq.s32.totalorder %s16, 0
      %p100 = por %p98, %p99
      %p101 = scmp.ne.s32.totalorder %s87, %s88
      %p102 = scmp.eq.s32.totalorder %s17, 15
      %p103 = por %p101, %p102
      %p105 = scmp.ne.s32.totalorder %s88, %s104
      %p106 = scmp.eq.s32.totalorder %s17, 0
      %p107 = por %p105, %p106
      %p108 = scmp.le.s32.totalorder 1, %s11
      %p109 = scmp.lt.s32.totalorder %s11, 17
      %p110 = pnand %p108, %p109
      %p111 = pneg %p110
      // Predicated region
      $region9: #{down_forward.7} parent=5 // pred_check
        _
      $region10: #{down_forward.7} parent=5 // pred_check_branch
        %113 = sbr.rel (%p110) target = $region12
      $region11: #{down_forward.7} parent=5 // pred_region
        %s114 = ssub.s32 %s11, 1
        // Predicated region
        $region13: #{down_forward.7} parent=11 // pred_check
          %p115 = pneg %p72
        $region14: #{down_forward.7} parent=11 // pred_check_branch
          %117 = sbr.rel (%p115) target = $region16
        $region15: #{down_forward.7} parent=11 // pred_region
          _
        $region16: #{down_forward.7} parent=11 // pred_fallthru
          _
      $region12: #{down_forward.7} parent=5 // pred_fallthru
        _
      %p118 = scmp.lt.s32.totalorder %s11, 16
      // Predicated region
      $region17: #{down_forward.7} parent=5 // pred_check
        %p119 = pneg %p118
      $region18: #{down_forward.7} parent=5 // pred_check_branch
        %121 = sbr.rel (%p119) target = $region20
      $region19: #{down_forward.7} parent=5 // pred_region
        // Predicated region
        $region21: #{down_forward.7} parent=19 // pred_check
          %p122 = pneg %p45
        $region22: #{down_forward.7} parent=19 // pred_check_branch
          %124 = sbr.rel (%p122) target = $region24
        $region23: #{down_forward.7} parent=19 // pred_region
          %s125 = sand.u32 %s35, 1
          %s126 = scalar_lea.sflag [#allocation3], %s125
          %s127 = sand.u32 %s35, 1
          %s128 = smul.addr %s127, 40
          %s129 = scalar_lea.vmem [#allocation2], %s128
          %s131 = ssub.s32 640, 640
          %132 = vsyncadd %s126, %s131
          %s133 = smul.addr %s19, 10
          %s134 = smul.addr %s18, 80
          %s135 = sadd.s32 %s133, %s134
          %s136 = smul.addr %s135, 64
          %s137 = scalar_lea.hbm %s0, %s136
          %s138 = sshll.u32 %s129, 4
          %s139 = int_to_ptr.vmem [resolvable:$true] %s138
          %144 = dma.hbm_to_vmem [thread:$0]  %s137, 640, %s139, %s126, 64, 64, 4
        $region24: #{down_forward.7} parent=19 // pred_fallthru
          _
      $region20: #{down_forward.7} parent=5 // pred_fallthru
        _
      %p145 = scmp.le.s32.totalorder 1, %s11
      %p146 = scmp.lt.s32.totalorder %s11, 17
      %p147 = pnand %p145, %p146
      %p148 = pneg %p147
      // Predicated region
      $region25: #{down_forward.7} parent=5 // pred_check
        _
      $region26: #{down_forward.7} parent=5 // pred_check_branch
        %150 = sbr.rel (%p147) target = $region28
      $region27: #{down_forward.7} parent=5 // pred_region
        %s151 = ssub.s32 %s11, 1
        %s152 = sand.u32 %s38, 1
        %s153 = scalar_lea.sflag [#allocation3], %s152
        %s154 = sand.u32 %s38, 1
        %s155 = smul.addr %s154, 40
        %s156 = scalar_lea.vmem [#allocation2], %s155
        // Predicated region
        $region29: #{down_forward.7} parent=27 // pred_check
          %p157 = pneg %p51
        $region30: #{down_forward.7} parent=27 // pred_check_branch
          %159 = sbr.rel (%p157) target = $region32
        $region31: #{down_forward.7} parent=27 // pred_region
          %160 = dma.done %s153, 640
        $region32: #{down_forward.7} parent=27 // pred_fallthru
          _
        %s161 = sand.u32 %s38, 1
        %s162 = scalar_lea.sflag [#allocation3], %s161
        %s163 = sand.u32 %s38, 1
        %s164 = smul.addr %s163, 40
        %s165 = scalar_lea.vmem [#allocation2], %s164
        %p166 = pneg %p51
        %p167 = pneg %p48
        %p168 = pneg %p72
        %p169 = pneg %p69
        %p170 = pneg %p100
        %p171 = pneg %p97
        %p172 = scmp.lt.s32.totalorder %s20, 1
        %s173 = scalar_select %p172, %s20, 1
        %p174 = scmp.lt.s32.totalorder %s21, 7
        %s175 = scalar_select %p174, %s21, 7
        %s176 = smul.addr %s175, 10
        %s177 = smul.addr %s173, 80
        %s178 = sadd.s32 %s176, %s177
        %s179 = smul.addr %s178, 8
        %s180 = scalar_lea.vmem %s2, %s179
        %p181 = scmp.lt.s32.totalorder %s20, 1
        %s182 = scalar_select %p181, %s20, 1
        %p183 = scmp.lt.s32.totalorder %s21, 7
        %s184 = scalar_select %p183, %s21, 7
        %s185 = smul.addr %s184, 10
        %s186 = smul.addr %s182, 80
        %s187 = sadd.s32 %s185, %s186
        %s188 = smul.addr %s187, 8
        %s189 = scalar_lea.vmem %s2, %s188
        %v190 = vld [vmem:[%s156] sm:$0xf]
        %v191 = vld [vmem:[%s156 + $0x4] sm:$0xf]
        %v192 = vld [vmem:[%s156 + $0x8] sm:$0xf]
        %v193 = vld [vmem:[%s156 + $0xc] sm:$0xf]
        %v194 = vld [vmem:[%s156 + $0x10] sm:$0xf]
        %v195 = vld [vmem:[%s156 + $0x14] sm:$0xf]
        %v196 = vld [vmem:[%s156 + $0x18] sm:$0xf]
        %v197 = vld [vmem:[%s156 + $0x1c] sm:$0xf]
        %v198 = vld [vmem:[%s156 + $0x20] sm:$0xf]
        %v199 = vld [vmem:[%s156 + $0x24] sm:$0xf]
        %v200 = vunpack.c.l.bf16 %v190
        %v201 = vunpack.c.l.bf16 %v191
        %v202 = vunpack.c.l.bf16 %v192
        %v203 = vunpack.c.l.bf16 %v193
        %v204 = vunpack.c.l.bf16 %v194
        %v205 = vunpack.c.l.bf16 %v195
        %v206 = vunpack.c.l.bf16 %v196
        %v207 = vunpack.c.l.bf16 %v197
        %v208 = vunpack.c.l.bf16 %v198
        %v209 = vunpack.c.l.bf16 %v199
        %v210 = vld [vmem:[%s1] sm:$0x1]
        %v211 = vld [vmem:[%s1 + $0x1] sm:$0x1]
        %v212 = vlaneseq
        %v213 = vshrl.u32 %v212, 7
        %v214 = vsub.s32 0, %v213
        %v215 = vrot.slane %v210, %v214
        %v216 = vmul.f32 %v200, %v215
        %v217 = vmul.f32 %v201, %v215
        %v218 = vmul.f32 %v202, %v215
        %v219 = vmul.f32 %v203, %v215
        %v220 = vmul.f32 %v204, %v215
        %v221 = vmul.f32 %v205, %v215
        %v222 = vmul.f32 %v206, %v215
        %v223 = vmul.f32 %v207, %v215
        %v224 = vmul.f32 %v208, %v215
        %v225 = vmul.f32 %v209, %v215
        %v226 = vlaneseq
        %v227 = vshrl.u32 %v226, 7
        %v228 = vsub.s32 0, %v227
        %v229 = vrot.slane %v211, %v228
        %v230 = vadd.f32 %v216, %v229
        %v231 = vadd.f32 %v217, %v229
        %v232 = vadd.f32 %v218, %v229
        %v233 = vadd.f32 %v219, %v229
        %v234 = vadd.f32 %v220, %v229
        %v235 = vadd.f32 %v221, %v229
        %v236 = vadd.f32 %v222, %v229
        %v237 = vadd.f32 %v223, %v229
        %v238 = vadd.f32 %v224, %v229
        %v239 = vadd.f32 %v225, %v229
        %v240 = vmax.f32 %v230, 0.0
        %v241 = vmax.f32 %v231, 0.0
        %v242 = vmax.f32 %v232, 0.0
        %v243 = vmax.f32 %v233, 0.0
        %v244 = vmax.f32 %v234, 0.0
        %v245 = vmax.f32 %v235, 0.0
        %v246 = vmax.f32 %v236, 0.0
        %v247 = vmax.f32 %v237, 0.0
        %v248 = vmax.f32 %v238, 0.0
        %v249 = vmax.f32 %v239, 0.0
        %vm250 = vcmask 31744
        %251 = vst.msk [vmem:[%s189] sm:$0xff] %vm250, %v240
        %252 = vst.msk [vmem:[%s189 + $0x8] sm:$0xff] %vm250, %v241
        %253 = vst.msk [vmem:[%s189 + $0x10] sm:$0xff] %vm250, %v242
        %254 = vst.msk [vmem:[%s189 + $0x18] sm:$0xff] %vm250, %v243
        %255 = vst.msk [vmem:[%s189 + $0x20] sm:$0xff] %vm250, %v244
        %256 = vst.msk [vmem:[%s189 + $0x28] sm:$0xff] %vm250, %v245
        %257 = vst.msk [vmem:[%s189 + $0x30] sm:$0xff] %vm250, %v246
        %258 = vst.msk [vmem:[%s189 + $0x38] sm:$0xff] %vm250, %v247
        %259 = vst.msk [vmem:[%s189 + $0x40] sm:$0xff] %vm250, %v248
        %260 = vst.msk [vmem:[%s189 + $0x48] sm:$0xff] %vm250, %v249
        %p261 = scmp.lt.s32.totalorder %s20, 1
        %s262 = scalar_select %p261, %s20, 1
        %p263 = scmp.lt.s32.totalorder %s21, 7
        %s264 = scalar_select %p263, %s21, 7
        %s265 = smul.addr %s264, 10
        %s266 = smul.addr %s262, 80
        %s267 = sadd.s32 %s265, %s266
        %s268 = smul.addr %s267, 8
        %s269 = scalar_lea.vmem %s2, %s268
        // Predicated region
        $region33: #{down_forward.7} parent=27 // pred_check
          %p270 = pneg %p97
        $region34: #{down_forward.7} parent=27 // pred_check_branch
          %272 = sbr.rel (%p270) target = $region36
        $region35: #{down_forward.7} parent=27 // pred_region
          _
        $region36: #{down_forward.7} parent=27 // pred_fallthru
          _
      $region28: #{down_forward.7} parent=5 // pred_fallthru
        _
      %p273 = scmp.le.s32.totalorder 2, %s11
      // Predicated region
      $region37: #{down_forward.7} parent=5 // pred_check
        %p274 = pneg %p273
      $region38: #{down_forward.7} parent=5 // pred_check_branch
        %276 = sbr.rel (%p274) target = $region40
      $region39: #{down_forward.7} parent=5 // pred_region
        %s277 = ssub.s32 %s11, 2
        // Predicated region
        $region41: #{down_forward.7} parent=39 // pred_check
          %p278 = pneg %p103
        $region42: #{down_forward.7} parent=39 // pred_check_branch
          %280 = sbr.rel (%p278) target = $region44
        $region43: #{down_forward.7} parent=39 // pred_region
          %p281 = scmp.lt.s32.totalorder %s22, 1
          %s282 = scalar_select %p281, %s22, 1
          %p283 = scmp.lt.s32.totalorder %s23, 7
          %s284 = scalar_select %p283, %s23, 7
          %s285 = smul.addr %s284, 10
          %s286 = smul.addr %s282, 80
          %s287 = sadd.s32 %s285, %s286
          %s288 = smul.addr %s287, 8
          %s289 = scalar_lea.vmem %s2, %s288
        $region44: #{down_forward.7} parent=39 // pred_fallthru
          _
      $region40: #{down_forward.7} parent=5 // pred_fallthru
        _
    $region6: #{down_forward.7} parent=1 // loop_footer
      %s15 = sadd.s32 1, %s11
    $region7: #{down_forward.7} parent=1 // loop_footer_branch
      %10 = sbr.rel target = $region3
    $region8: #{down_forward.7} parent=1 // loop_exit
      _
    %290 = vsyncpa [#allocation3], 1
    %s291 = scalar_lea.sflag [#allocation3], 1
    %292 = vsyncpa %s291, 1

// kernel: down_forward.9
$region0: #{down_forward.9}
  #allocation0 [shape = 'u32[]', space=smem, size = 0x4, offset = 0x4, fixed_abs, tag = 'smem constant byte address 0x4 - core index']
  #allocation1 [shape = 'u32[144,128]{1,0:T(1,128)}', space=vmem, size = 0x12000, scoped, tag = 'internal scratch']
  %s0 = inlined_call_operand.hbm [shape: bf16[2,8,80,8], index: 0, kind: input, shape index: {}]
  %s1 = inlined_call_operand.vmem [shape: f32[2,8], index: 1, kind: input, shape index: {}]
  %s2 = inlined_call_operand.vmem [shape: f32[2,8,80,8], index: 2, kind: output, shape index: {}]
  %s3 = sld [smem:[#allocation0]]
  $region45: #{down_forward.9} parent=0
    _
  %s5 = ssub.s32 1, %s3
  %s6 = scalar_select 0, %s5, %s3
  $region1: #{down_forward.9} parent=0
    #allocation2 [shape = 'u8[40960]{0}', space=vmem, size = 0xa000, scoped, tag = 'input window, operand 0']
    #allocation3 [shape = 's32[2]{0}', space=sflag, size = 0x8, scoped, tag = 'scoped memory for down_forward.9']
    %7 = vsyncpa [#allocation3], 0
    %s8 = scalar_lea.sflag [#allocation3], 1
    %9 = vsyncpa %s8, 0
    loop: start=0, step=1, limit=18
    $region2: #{down_forward.9} parent=1 // loop_pre_header
      _
    $region3: #{down_forward.9} parent=1 // loop_header
      %s11 = sphi 0, %s15
      %p12 = scmp.ge.s32.totalorder %s11, 18
      %s18 = sphi 0, %s30
      %s19 = sphi 0, %s26
      %s20 = sphi 0, %s18
      %s21 = sphi 0, %s19
      %s22 = sphi 0, %s20
      %s23 = sphi 0, %s21
      %s35 = sphi 0, %s37
      %s38 = sphi 0, %s35
      %s39 = sphi 0, %s38
      %s55 = sphi 0, %s39
      %s59 = sphi 0, %s59
      %s61 = sphi 0, %s59
      %s62 = sphi 0, %s61
      %s76 = sphi 0, %s62
      %s84 = sphi 0, %s86
      %s87 = sphi 0, %s84
      %s88 = sphi 0, %s87
      %s104 = sphi 0, %s88
    $region4: #{down_forward.9} parent=1 // loop_header_branch
      %14 = sbr.rel (%p12) target = $region8
    $region5: #{down_forward.9} parent=1 // loop_body
      %s16 = ssub.s32 %s11, 1
      %s17 = ssub.s32 %s11, 2
      %s24 = sadd.s32 1, %s19
      %p25 = scmp.ge.s32.totalorder %s24, 8
      %s26 = scalar_select %p25, 0, %s24
      %s27 = sadd.s32 1, %s18
      %s28 = scalar_select %p25, %s27, %s18
      %p29 = scmp.ge.s32.totalorder %s28, 2
      %s30 = scalar_select %p29, 0, %s28
      %s31 = ssub.s32 %s18, %s30
      %s32 = ssub.s32 %s19, %s26
      %s33 = sor.u32 %s31, %s32
      %p34 = scmp.eq.s32.totalorder %s33, 0
      %s36 = sadd.s32 %s35, 1
      %s37 = scalar_select %p34, %s35, %s36
      %p40 = pneg %p34
      %p41 = scmp.eq.s32.totalorder %s11, 15
      %p42 = por %p40, %p41
      %p43 = scmp.ne.s32.totalorder %s35, %s38
      %p44 = scmp.eq.s32.totalorder %s11, 0
      %p45 = por %p43, %p44
      %p46 = scmp.ne.s32.totalorder %s35, %s38
      %p47 = scmp.eq.s32.totalorder %s16, 15
      %p48 = por %p46, %p47
      %p49 = scmp.ne.s32.totalorder %s38, %s39
      %p50 = scmp.eq.s32.totalorder %s16, 0
      %p51 = por %p49, %p50
      %p52 = scmp.ne.s32.totalorder %s38, %s39
      %p53 = scmp.eq.s32.totalorder %s17, 15
      %p54 = por %p52, %p53
      %p56 = scmp.ne.s32.totalorder %s39, %s55
      %p57 = scmp.eq.s32.totalorder %s17, 0
      %p58 = por %p56, %p57
      %s60 = sadd.s32 %s59, 1
      %p63 = scmp.eq.s32.totalorder %s11, 15
      %p64 = scmp.ne.s32.totalorder %s59, %s61
      %p65 = scmp.eq.s32.totalorder %s11, 0
      %p66 = por %p64, %p65
      %p67 = scmp.ne.s32.totalorder %s59, %s61
      %p68 = scmp.eq.s32.totalorder %s16, 15
      %p69 = por %p67, %p68
      %p70 = scmp.ne.s32.totalorder %s61, %s62
      %p71 = scmp.eq.s32.totalorder %s16, 0
      %p72 = por %p70, %p71
      %p73 = scmp.ne.s32.totalorder %s61, %s62
      %p74 = scmp.eq.s32.totalorder %s17, 15
      %p75 = por %p73, %p74
      %p77 = scmp.ne.s32.totalorder %s62, %s76
      %p78 = scmp.eq.s32.totalorder %s17, 0
      %p79 = por %p77, %p78
      %s80 = ssub.s32 %s18, %s30
      %s81 = ssub.s32 %s19, %s26
      %s82 = sor.u32 %s80, %s81
      %p83 = scmp.eq.s32.totalorder %s82, 0
      %s85 = sadd.s32 %s84, 1
      %s86 = scalar_select %p83, %s84, %s85
      %p89 = pneg %p83
      %p90 = scmp.eq.s32.totalorder %s11, 15
      %p91 = por %p89, %p90
      %p92 = scmp.ne.s32.totalorder %s84, %s87
      %p93 = scmp.eq.s32.totalorder %s11, 0
      %p94 = por %p92, %p93
      %p95 = scmp.ne.s32.totalorder %s84, %s87
      %p96 = scmp.eq.s32.totalorder %s16, 15
      %p97 = por %p95, %p96
      %p98 = scmp.ne.s32.totalorder %s87, %s88
      %p99 = scmp.eq.s32.totalorder %s16, 0
      %p100 = por %p98, %p99
      %p101 = scmp.ne.s32.totalorder %s87, %s88
      %p102 = scmp.eq.s32.totalorder %s17, 15
      %p103 = por %p101, %p102
      %p105 = scmp.ne.s32.totalorder %s88, %s104
      %p106 = scmp.eq.s32.totalorder %s17, 0
      %p107 = por %p105, %p106
      %p108 = scmp.le.s32.totalorder 1, %s11
      %p109 = scmp.lt.s32.totalorder %s11, 17
      %p110 = pnand %p108, %p109
      %p111 = pneg %p110
      // Predicated region
      $region9: #{down_forward.9} parent=5 // pred_check
        _
      $region10: #{down_forward.9} parent=5 // pred_check_branch
        %113 = sbr.rel (%p110) target = $region12
      $region11: #{down_forward.9} parent=5 // pred_region
        %s114 = ssub.s32 %s11, 1
        // Predicated region
        $region13: #{down_forward.9} parent=11 // pred_check
          %p115 = pneg %p72
        $region14: #{down_forward.9} parent=11 // pred_check_branch
          %117 = sbr.rel (%p115) target = $region16
        $region15: #{down_forward.9} parent=11 // pred_region
          _
        $region16: #{down_forward.9} parent=11 // pred_fallthru
          _
      $region12: #{down_forward.9} parent=5 // pred_fallthru
        _
      %p118 = scmp.lt.s32.totalorder %s11, 16
      // Predicated region
      $region17: #{down_forward.9} parent=5 // pred_check
        %p119 = pneg %p118
      $region18: #{down_forward.9} parent=5 // pred_check_branch
        %121 = sbr.rel (%p119) target = $region20
      $region19: #{down_forward.9} parent=5 // pred_region
        // Predicated region
        $region21: #{down_forward.9} parent=19 // pred_check
          %p122 = pneg %p45
        $region22: #{down_forward.9} parent=19 // pred_check_branch
          %124 = sbr.rel (%p122) target = $region24
        $region23: #{down_forward.9} parent=19 // pred_region
          %s125 = sand.u32 %s35, 1
          %s126 = scalar_lea.sflag [#allocation3], %s125
          %s127 = sand.u32 %s35, 1
          %s128 = smul.addr %s127, 40
          %s129 = scalar_lea.vmem [#allocation2], %s128
          %s131 = ssub.s32 640, 640
          %132 = vsyncadd %s126, %s131
          %s133 = smul.addr %s19, 10
          %s134 = smul.addr %s18, 80
          %s135 = sadd.s32 %s133, %s134
          %s136 = smul.addr %s135, 64
          %s137 = scalar_lea.hbm %s0, %s136
          %s138 = sshll.u32 %s129, 4
          %s139 = int_to_ptr.vmem [resolvable:$true] %s138
          %144 = dma.hbm_to_vmem [thread:$0]  %s137, 640, %s139, %s126, 64, 64, 4
        $region24: #{down_forward.9} parent=19 // pred_fallthru
          _
      $region20: #{down_forward.9} parent=5 // pred_fallthru
        _
      %p145 = scmp.le.s32.totalorder 1, %s11
      %p146 = scmp.lt.s32.totalorder %s11, 17
      %p147 = pnand %p145, %p146
      %p148 = pneg %p147
      // Predicated region
      $region25: #{down_forward.9} parent=5 // pred_check
        _
      $region26: #{down_forward.9} parent=5 // pred_check_branch
        %150 = sbr.rel (%p147) target = $region28
      $region27: #{down_forward.9} parent=5 // pred_region
        %s151 = ssub.s32 %s11, 1
        %s152 = sand.u32 %s38, 1
        %s153 = scalar_lea.sflag [#allocation3], %s152
        %s154 = sand.u32 %s38, 1
        %s155 = smul.addr %s154, 40
        %s156 = scalar_lea.vmem [#allocation2], %s155
        // Predicated region
        $region29: #{down_forward.9} parent=27 // pred_check
          %p157 = pneg %p51
        $region30: #{down_forward.9} parent=27 // pred_check_branch
          %159 = sbr.rel (%p157) target = $region32
        $region31: #{down_forward.9} parent=27 // pred_region
          %160 = dma.done %s153, 640
        $region32: #{down_forward.9} parent=27 // pred_fallthru
          _
        %s161 = sand.u32 %s38, 1
        %s162 = scalar_lea.sflag [#allocation3], %s161
        %s163 = sand.u32 %s38, 1
        %s164 = smul.addr %s163, 40
        %s165 = scalar_lea.vmem [#allocation2], %s164
        %p166 = pneg %p51
        %p167 = pneg %p48
        %p168 = pneg %p72
        %p169 = pneg %p69
        %p170 = pneg %p100
        %p171 = pneg %p97
        %p172 = scmp.lt.s32.totalorder %s20, 1
        %s173 = scalar_select %p172, %s20, 1
        %p174 = scmp.lt.s32.totalorder %s21, 7
        %s175 = scalar_select %p174, %s21, 7
        %s176 = smul.addr %s175, 10
        %s177 = smul.addr %s173, 80
        %s178 = sadd.s32 %s176, %s177
        %s179 = smul.addr %s178, 8
        %s180 = scalar_lea.vmem %s2, %s179
        %p181 = scmp.lt.s32.totalorder %s20, 1
        %s182 = scalar_select %p181, %s20, 1
        %p183 = scmp.lt.s32.totalorder %s21, 7
        %s184 = scalar_select %p183, %s21, 7
        %s185 = smul.addr %s184, 10
        %s186 = smul.addr %s182, 80
        %s187 = sadd.s32 %s185, %s186
        %s188 = smul.addr %s187, 8
        %s189 = scalar_lea.vmem %s2, %s188
        %v190 = vld [vmem:[%s156] sm:$0xf]
        %v191 = vld [vmem:[%s156 + $0x4] sm:$0xf]
        %v192 = vld [vmem:[%s156 + $0x8] sm:$0xf]
        %v193 = vld [vmem:[%s156 + $0xc] sm:$0xf]
        %v194 = vld [vmem:[%s156 + $0x10] sm:$0xf]
        %v195 = vld [vmem:[%s156 + $0x14] sm:$0xf]
        %v196 = vld [vmem:[%s156 + $0x18] sm:$0xf]
        %v197 = vld [vmem:[%s156 + $0x1c] sm:$0xf]
        %v198 = vld [vmem:[%s156 + $0x20] sm:$0xf]
        %v199 = vld [vmem:[%s156 + $0x24] sm:$0xf]
        %v200 = vunpack.c.l.bf16 %v190
        %v201 = vunpack.c.l.bf16 %v191
        %v202 = vunpack.c.l.bf16 %v192
        %v203 = vunpack.c.l.bf16 %v193
        %v204 = vunpack.c.l.bf16 %v194
        %v205 = vunpack.c.l.bf16 %v195
        %v206 = vunpack.c.l.bf16 %v196
        %v207 = vunpack.c.l.bf16 %v197
        %v208 = vunpack.c.l.bf16 %v198
        %v209 = vunpack.c.l.bf16 %v199
        %v210 = vld [vmem:[%s1] sm:$0x1]
        %v211 = vld [vmem:[%s1 + $0x1] sm:$0x1]
        %v212 = vlaneseq
        %v213 = vshrl.u32 %v212, 7
        %v214 = vsub.s32 0, %v213
        %v215 = vrot.slane %v210, %v214
        %v216 = vmul.f32 %v200, %v215
        %v217 = vmul.f32 %v201, %v215
        %v218 = vmul.f32 %v202, %v215
        %v219 = vmul.f32 %v203, %v215
        %v220 = vmul.f32 %v204, %v215
        %v221 = vmul.f32 %v205, %v215
        %v222 = vmul.f32 %v206, %v215
        %v223 = vmul.f32 %v207, %v215
        %v224 = vmul.f32 %v208, %v215
        %v225 = vmul.f32 %v209, %v215
        %v226 = vlaneseq
        %v227 = vshrl.u32 %v226, 7
        %v228 = vsub.s32 0, %v227
        %v229 = vrot.slane %v211, %v228
        %v230 = vadd.f32 %v216, %v229
        %v231 = vadd.f32 %v217, %v229
        %v232 = vadd.f32 %v218, %v229
        %v233 = vadd.f32 %v219, %v229
        %v234 = vadd.f32 %v220, %v229
        %v235 = vadd.f32 %v221, %v229
        %v236 = vadd.f32 %v222, %v229
        %v237 = vadd.f32 %v223, %v229
        %v238 = vadd.f32 %v224, %v229
        %v239 = vadd.f32 %v225, %v229
        %v240 = vmax.f32 %v230, 0.0
        %v241 = vmax.f32 %v231, 0.0
        %v242 = vmax.f32 %v232, 0.0
        %v243 = vmax.f32 %v233, 0.0
        %v244 = vmax.f32 %v234, 0.0
        %v245 = vmax.f32 %v235, 0.0
        %v246 = vmax.f32 %v236, 0.0
        %v247 = vmax.f32 %v237, 0.0
        %v248 = vmax.f32 %v238, 0.0
        %v249 = vmax.f32 %v239, 0.0
        %vm250 = vcmask 64512
        %251 = vst.msk [vmem:[%s189] sm:$0xff] %vm250, %v240
        %252 = vst.msk [vmem:[%s189 + $0x8] sm:$0xff] %vm250, %v241
        %253 = vst.msk [vmem:[%s189 + $0x10] sm:$0xff] %vm250, %v242
        %254 = vst.msk [vmem:[%s189 + $0x18] sm:$0xff] %vm250, %v243
        %255 = vst.msk [vmem:[%s189 + $0x20] sm:$0xff] %vm250, %v244
        %256 = vst.msk [vmem:[%s189 + $0x28] sm:$0xff] %vm250, %v245
        %257 = vst.msk [vmem:[%s189 + $0x30] sm:$0xff] %vm250, %v246
        %258 = vst.msk [vmem:[%s189 + $0x38] sm:$0xff] %vm250, %v247
        %259 = vst.msk [vmem:[%s189 + $0x40] sm:$0xff] %vm250, %v248
        %260 = vst.msk [vmem:[%s189 + $0x48] sm:$0xff] %vm250, %v249
        %p261 = scmp.lt.s32.totalorder %s20, 1
        %s262 = scalar_select %p261, %s20, 1
        %p263 = scmp.lt.s32.totalorder %s21, 7
        %s264 = scalar_select %p263, %s21, 7
        %s265 = smul.addr %s264, 10
        %s266 = smul.addr %s262, 80
        %s267 = sadd.s32 %s265, %s266
        %s268 = smul.addr %s267, 8
        %s269 = scalar_lea.vmem %s2, %s268
        // Predicated region
        $region33: #{down_forward.9} parent=27 // pred_check
          %p270 = pneg %p97
        $region34: #{down_forward.9} parent=27 // pred_check_branch
          %272 = sbr.rel (%p270) target = $region36
        $region35: #{down_forward.9} parent=27 // pred_region
          _
        $region36: #{down_forward.9} parent=27 // pred_fallthru
          _
      $region28: #{down_forward.9} parent=5 // pred_fallthru
        _
      %p273 = scmp.le.s32.totalorder 2, %s11
      // Predicated region
      $region37: #{down_forward.9} parent=5 // pred_check
        %p274 = pneg %p273
      $region38: #{down_forward.9} parent=5 // pred_check_branch
        %276 = sbr.rel (%p274) target = $region40
      $region39: #{down_forward.9} parent=5 // pred_region
        %s277 = ssub.s32 %s11, 2
        // Predicated region
        $region41: #{down_forward.9} parent=39 // pred_check
          %p278 = pneg %p103
        $region42: #{down_forward.9} parent=39 // pred_check_branch
          %280 = sbr.rel (%p278) target = $region44
        $region43: #{down_forward.9} parent=39 // pred_region
          %p281 = scmp.lt.s32.totalorder %s22, 1
          %s282 = scalar_select %p281, %s22, 1
          %p283 = scmp.lt.s32.totalorder %s23, 7
          %s284 = scalar_select %p283, %s23, 7
          %s285 = smul.addr %s284, 10
          %s286 = smul.addr %s282, 80
          %s287 = sadd.s32 %s285, %s286
          %s288 = smul.addr %s287, 8
          %s289 = scalar_lea.vmem %s2, %s288
        $region44: #{down_forward.9} parent=39 // pred_fallthru
          _
      $region40: #{down_forward.9} parent=5 // pred_fallthru
        _
    $region6: #{down_forward.9} parent=1 // loop_footer
      %s15 = sadd.s32 1, %s11
    $region7: #{down_forward.9} parent=1 // loop_footer_branch
      %10 = sbr.rel target = $region3
    $region8: #{down_forward.9} parent=1 // loop_exit
      _
    %290 = vsyncpa [#allocation3], 1
    %s291 = scalar_lea.sflag [#allocation3], 1
    %292 = vsyncpa %s291, 1

// kernel: down_forward.8
$region0: #{down_forward.8}
  #allocation0 [shape = 'u32[]', space=smem, size = 0x4, offset = 0x4, fixed_abs, tag = 'smem constant byte address 0x4 - core index']
  #allocation1 [shape = 'u32[144,128]{1,0:T(1,128)}', space=vmem, size = 0x12000, scoped, tag = 'internal scratch']
  %s0 = inlined_call_operand.hbm [shape: bf16[2,10,110,4], index: 0, kind: input, shape index: {}, may-alias: {0,1,2}]
  %s1 = inlined_call_operand.hbm [shape: bf16[2,10,110,4], index: 1, kind: input, shape index: {}, may-alias: {0,1,2}]
  %s2 = inlined_call_operand.hbm [shape: bf16[2,10,110,4], index: 2, kind: input, shape index: {}, may-alias: {0,1,2}]
  %s3 = inlined_call_operand.hbm [shape: bf16[27,4,8], index: 3, kind: input, shape index: {}]
  %s4 = inlined_call_operand.hbm [shape: bf16[2,8,80,8], index: 4, kind: output, shape index: {0}]
  %s5 = inlined_call_operand.hbm [shape: f32[2,8,2,8], index: 5, kind: output, shape index: {1}]
  %6 = xla_tuple %s4, %s5
  %s7 = sld [smem:[#allocation0]]
  $region73: #{down_forward.8} parent=0
    _
  %s9 = ssub.s32 1, %s7
  %s10 = scalar_select 0, %s9, %s7
  $region1: #{down_forward.8} parent=0
    #allocation2 [shape = 'u8[57344]{0}', space=vmem, size = 0xe000, scoped, tag = 'input window, operand 0']
    #allocation3 [shape = 's32[2]{0}', space=sflag, size = 0x8, scoped, tag = 'scoped memory for down_forward.8']
    #allocation4 [shape = 's32[2]{0}', space=sflag, size = 0x8, scoped, tag = 'scoped memory for down_forward.8']
    #allocation5 [shape = 'u8[57344]{0}', space=vmem, size = 0xe000, scoped, tag = 'input window, operand 1']
    #allocation6 [shape = 's32[2]{0}', space=sflag, size = 0x8, scoped, tag = 'scoped memory for down_forward.8']
    #allocation7 [shape = 'u8[57344]{0}', space=vmem, size = 0xe000, scoped, tag = 'input window, operand 2']
    #allocation8 [shape = 'u8[27648]{0}', space=vmem, size = 0x6c00, scoped, tag = 'input window, operand 3, single buffered']
    #allocation9 [shape = 's32[1]{0}', space=sflag, size = 0x4, scoped, tag = 'scoped memory for down_forward.8']
    #allocation10 [shape = 'u8[40960]{0}', space=vmem, size = 0xa000, scoped, tag = 'output window, operand 0']
    #allocation11 [shape = 'u8[2048]{0}', space=vmem, size = 0x800, scoped, tag = 'output window, operand 1']
    #allocation12 [shape = 's32[2]{0}', space=sflag, size = 0x8, scoped, tag = 'scoped memory for down_forward.8']
    %11 = vsyncpa [#allocation3], 0
    %s12 = scalar_lea.sflag [#allocation3], 1
    %13 = vsyncpa %s12, 0
    %14 = vsyncpa [#allocation6], 0
    %s15 = scalar_lea.sflag [#allocation6], 1
    %16 = vsyncpa %s15, 0
    %17 = vsyncpa [#allocation9], 0
    %18 = vsyncpa [#allocation4], 0
    %s19 = scalar_lea.sflag [#allocation4], 1
    %20 = vsyncpa %s19, 0
    %21 = vsyncpa [#allocation12], 0
    %s22 = scalar_lea.sflag [#allocation12], 1
    %23 = vsyncpa %s22, 0
    loop: start=0, step=1, limit=18
    $region2: #{down_forward.8} parent=1 // loop_pre_header
      _
    $region3: #{down_forward.8} parent=1 // loop_header
      %s25 = sphi 0, %s29
      %p26 = scmp.ge.s32.totalorder %s25, 18
      %s32 = sphi 0, %s44
      %s33 = sphi 0, %s40
      %s34 = sphi 0, %s32
      %s35 = sphi 0, %s33
      %s36 = sphi 0, %s34
      %s37 = sphi 0, %s35
      %s49 = sphi 0, %s51
      %s52 = sphi 0, %s49
      %s53 = sphi 0, %s52
      %s69 = sphi 0, %s53
      %s79 = sphi 0, %s81
      %s82 = sphi 0, %s79
      %s83 = sphi 0, %s82
      %s99 = sphi 0, %s83
      %s109 = sphi 0, %s111
      %s112 = sphi 0, %s109
      %s113 = sphi 0, %s112
      %s129 = sphi 0, %s113
      %s133 = sphi 0, %s133
      %s135 = sphi 0, %s133
      %s136 = sphi 0, %s135
      %s150 = sphi 0, %s136
      %s158 = sphi 0, %s160
      %s161 = sphi 0, %s158
      %s162 = sphi 0, %s161
      %s178 = sphi 0, %s162
      %s186 = sphi 0, %s188
      %s189 = sphi 0, %s186
      %s190 = sphi 0, %s189
      %s206 = sphi 0, %s190
    $region4: #{down_forward.8} parent=1 // loop_header_branch
      %28 = sbr.rel (%p26) target = $region8
    $region5: #{down_forward.8} parent=1 // loop_body
      %s30 = ssub.s32 %s25, 1
      %s31 = ssub.s32 %s25, 2
      %s38 = sadd.s32 1, %s33
      %p39 = scmp.ge.s32.totalorder %s38, 8
      %s40 = scalar_select %p39, 0, %s38
      %s41 = sadd.s32 1, %s32
      %s42 = scalar_select %p39, %s41, %s32
      %p43 = scmp.ge.s32.totalorder %s42, 2
      %s44 = scalar_select %p43, 0, %s42
      %s45 = ssub.s32 %s32, %s44
      %s46 = ssub.s32 %s33, %s40
      %s47 = sor.u32 %s45, %s46
      %p48 = scmp.eq.s32.totalorder %s47, 0
      %s50 = sadd.s32 %s49, 1
      %s51 = scalar_select %p48, %s49, %s50
      %p54 = pneg %p48
      %p55 = scmp.eq.s32.totalorder %s25, 15
      %p56 = por %p54, %p55
      %p57 = scmp.ne.s32.totalorder %s49, %s52
      %p58 = scmp.eq.s32.totalorder %s25, 0
      %p59 = por %p57, %p58
      %p60 = scmp.ne.s32.totalorder %s49, %s52
      %p61 = scmp.eq.s32.totalorder %s30, 15
      %p62 = por %p60, %p61
      %p63 = scmp.ne.s32.totalorder %s52, %s53
      %p64 = scmp.eq.s32.totalorder %s30, 0
      %p65 = por %p63, %p64
      %p66 = scmp.ne.s32.totalorder %s52, %s53
      %p67 = scmp.eq.s32.totalorder %s31, 15
      %p68 = por %p66, %p67
      %p70 = scmp.ne.s32.totalorder %s53, %s69
      %p71 = scmp.eq.s32.totalorder %s31, 0
      %p72 = por %p70, %p71
      %s73 = sadd.s32 %s33, 1
      %s74 = sadd.s32 %s40, 1
      %s75 = ssub.s32 %s32, %s44
      %s76 = ssub.s32 %s73, %s74
      %s77 = sor.u32 %s75, %s76
      %p78 = scmp.eq.s32.totalorder %s77, 0
      %s80 = sadd.s32 %s79, 1
      %s81 = scalar_select %p78, %s79, %s80
      %p84 = pneg %p78
      %p85 = scmp.eq.s32.totalorder %s25, 15
      %p86 = por %p84, %p85
      %p87 = scmp.ne.s32.totalorder %s79, %s82
      %p88 = scmp.eq.s32.totalorder %s25, 0
      %p89 = por %p87, %p88
      %p90 = scmp.ne.s32.totalorder %s79, %s82
      %p91 = scmp.eq.s32.totalorder %s30, 15
      %p92 = por %p90, %p91
      %p93 = scmp.ne.s32.totalorder %s82, %s83
      %p94 = scmp.eq.s32.totalorder %s30, 0
      %p95 = por %p93, %p94
      %p96 = scmp.ne.s32.totalorder %s82, %s83
      %p97 = scmp.eq.s32.totalorder %s31, 15
      %p98 = por %p96, %p97
      %p100 = scmp.ne.s32.totalorder %s83, %s99
      %p101 = scmp.eq.s32.totalorder %s31, 0
      %p102 = por %p100, %p101
      %s103 = sadd.s32 %s33, 2
      %s104 = sadd.s32 %s40, 2
      %s105 = ssub.s32 %s32, %s44
      %s106 = ssub.s32 %s103, %s104
      %s107 = sor.u32 %s105, %s106
      %p108 = scmp.eq.s32.totalorder %s107, 0
      %s110 = sadd.s32 %s109, 1
      %s111 = scalar_select %p108, %s109, %s110
      %p114 = pneg %p108
      %p115 = scmp.eq.s32.totalorder %s25, 15
      %p116 = por %p114, %p115
      %p117 = scmp.ne.s32.totalorder %s109, %s112
      %p118 = scmp.eq.s32.totalorder %s25, 0
      %p119 = por %p117, %p118
      %p120 = scmp.ne.s32.totalorder %s109, %s112
      %p121 = scmp.eq.s32.totalorder %s30, 15
      %p122 = por %p120, %p121
      %p123 = scmp.ne.s32.totalorder %s112, %s113
      %p124 = scmp.eq.s32.totalorder %s30, 0
      %p125 = por %p123, %p124
      %p126 = scmp.ne.s32.totalorder %s112, %s113
      %p127 = scmp.eq.s32.totalorder %s31, 15
      %p128 = por %p126, %p127
      %p130 = scmp.ne.s32.totalorder %s113, %s129
      %p131 = scmp.eq.s32.totalorder %s31, 0
      %p132 = por %p130, %p131
      %s134 = sadd.s32 %s133, 1
      %p137 = scmp.eq.s32.totalorder %s25, 15
      %p138 = scmp.ne.s32.totalorder %s133, %s135
      %p139 = scmp.eq.s32.totalorder %s25, 0
      %p140 = por %p138, %p139
      %p141 = scmp.ne.s32.totalorder %s133, %s135
      %p142 = scmp.eq.s32.totalorder %s30, 15
      %p143 = por %p141, %p142
      %p144 = scmp.ne.s32.totalorder %s135, %s136
      %p145 = scmp.eq.s32.totalorder %s30, 0
      %p146 = por %p144, %p145
      %p147 = scmp.ne.s32.totalorder %s135, %s136
      %p148 = scmp.eq.s32.totalorder %s31, 15
      %p149 = por %p147, %p148
      %p151 = scmp.ne.s32.totalorder %s136, %s150
      %p152 = scmp.eq.s32.totalorder %s31, 0
      %p153 = por %p151, %p152
      %s154 = ssub.s32 %s32, %s44
      %s155 = ssub.s32 %s33, %s40
      %s156 = sor.u32 %s154, %s155
      %p157 = scmp.eq.s32.totalorder %s156, 0
      %s159 = sadd.s32 %s158, 1
      %s160 = scalar_select %p157, %s158, %s159
      %p163 = pneg %p157
      %p164 = scmp.eq.s32.totalorder %s25, 15
      %p165 = por %p163, %p164
      %p166 = scmp.ne.s32.totalorder %s158, %s161
      %p167 = scmp.eq.s32.totalorder %s25, 0
      %p168 = por %p166, %p167
      %p169 = scmp.ne.s32.totalorder %s158, %s161
      %p170 = scmp.eq.s32.totalorder %s30, 15
      %p171 = por %p169, %p170
      %p172 = scmp.ne.s32.totalorder %s161, %s162
      %p173 = scmp.eq.s32.totalorder %s30, 0
      %p174 = por %p172, %p173
      %p175 = scmp.ne.s32.totalorder %s161, %s162
      %p176 = scmp.eq.s32.totalorder %s31, 15
      %p177 = por %p175, %p176
      %p179 = scmp.ne.s32.totalorder %s162, %s178
      %p180 = scmp.eq.s32.totalorder %s31, 0
      %p181 = por %p179, %p180
      %s182 = ssub.s32 %s32, %s44
      %s183 = ssub.s32 %s33, %s40
      %s184 = sor.u32 %s182, %s183
      %p185 = scmp.eq.s32.totalorder %s184, 0
      %s187 = sadd.s32 %s186, 1
      %s188 = scalar_select %p185, %s186, %s187
      %p191 = pneg %p185
      %p192 = scmp.eq.s32.totalorder %s25, 15
      %p193 = por %p191, %p192
      %p194 = scmp.ne.s32.totalorder %s186, %s189
      %p195 = scmp.eq.s32.totalorder %s25, 0
      %p196 = por %p194, %p195
      %p197 = scmp.ne.s32.totalorder %s186, %s189
      %p198 = scmp.eq.s32.totalorder %s30, 15
      %p199 = por %p197, %p198
      %p200 = scmp.ne.s32.totalorder %s189, %s190
      %p201 = scmp.eq.s32.totalorder %s30, 0
      %p202 = por %p200, %p201
      %p203 = scmp.ne.s32.totalorder %s189, %s190
      %p204 = scmp.eq.s32.totalorder %s31, 15
      %p205 = por %p203, %p204
      %p207 = scmp.ne.s32.totalorder %s190, %s206
      %p208 = scmp.eq.s32.totalorder %s31, 0
      %p209 = por %p207, %p208
      %p210 = scmp.le.s32.totalorder 1, %s25
      %p211 = scmp.lt.s32.totalorder %s25, 17
      %p212 = pnand %p210, %p211
      %p213 = pneg %p212
      // Predicated region
      $region9: #{down_forward.8} parent=5 // pred_check
        _
      $region10: #{down_forward.8} parent=5 // pred_check_branch
        %215 = sbr.rel (%p212) target = $region12
      $region11: #{down_forward.8} parent=5 // pred_region
        %s216 = ssub.s32 %s25, 1
        // Predicated region
        $region13: #{down_forward.8} parent=11 // pred_check
          %p217 = pneg %p146
        $region14: #{down_forward.8} parent=11 // pred_check_branch
          %219 = sbr.rel (%p217) target = $region16
        $region15: #{down_forward.8} parent=11 // pred_region
          %s221 = ssub.s32 864, 864
          %222 = vsyncadd [#allocation9], %s221
          %s223 = sshll.u32 [#allocation8], 4
          %s224 = int_to_ptr.vmem [resolvable:$true] %s223
          %229 = dma.hbm_to_vmem [thread:$0]  %s3, 864, %s224, [#allocation9], 32, 32, 2
        $region16: #{down_forward.8} parent=11 // pred_fallthru
          _
      $region12: #{down_forward.8} parent=5 // pred_fallthru
        _
      %p230 = scmp.lt.s32.totalorder %s25, 16
      // Predicated region
      $region17: #{down_forward.8} parent=5 // pred_check
        %p231 = pneg %p230
      $region18: #{down_forward.8} parent=5 // pred_check_branch
        %233 = sbr.rel (%p231) target = $region20
      $region19: #{down_forward.8} parent=5 // pred_region
        // Predicated region
        $region21: #{down_forward.8} parent=19 // pred_check
          %p234 = pneg %p59
        $region22: #{down_forward.8} parent=19 // pred_check_branch
          %236 = sbr.rel (%p234) target = $region24
        $region23: #{down_forward.8} parent=19 // pred_region
          %s237 = sand.u32 %s49, 1
          %s238 = scalar_lea.sflag [#allocation3], %s237
          %s239 = sand.u32 %s49, 1
          %s240 = smul.addr %s239, 56
          %s241 = scalar_lea.vmem [#allocation2], %s240
          %s243 = ssub.s32 896, 896
          %244 = vsyncadd %s238, %s243
          %s245 = smul.addr %s33, 14
          %s246 = smul.addr %s32, 140
          %s247 = sadd.s32 %s245, %s246
          %s248 = smul.addr %s247, 64
          %s249 = scalar_lea.hbm %s0, %s248
          %s250 = sshll.u32 %s241, 4
          %s251 = int_to_ptr.vmem [resolvable:$true] %s250
          %256 = dma.hbm_to_vmem [thread:$0]  %s249, 896, %s251, %s238, 64, 64, 4
        $region24: #{down_forward.8} parent=19 // pred_fallthru
          _
        // Predicated region
        $region25: #{down_forward.8} parent=19 // pred_check
          %p257 = pneg %p89
        $region26: #{down_forward.8} parent=19 // pred_check_branch
          %259 = sbr.rel (%p257) target = $region28
        $region27: #{down_forward.8} parent=19 // pred_region
          %s260 = sand.u32 %s25, 1
          %s261 = scalar_lea.sflag [#allocation6], %s260
          %s262 = sand.u32 %s79, 1
          %s263 = smul.addr %s262, 56
          %s264 = scalar_lea.vmem [#allocation5], %s263
          %s265 = sadd.s32 %s33, 1
          %s267 = ssub.s32 896, 896
          %268 = vsyncadd %s261, %s267
          %s269 = smul.addr %s265, 14
          %s270 = smul.addr %s32, 140
          %s271 = sadd.s32 %s269, %s270
          %s272 = smul.addr %s271, 64
          %s273 = scalar_lea.hbm %s1, %s272
          %s274 = sshll.u32 %s264, 4
          %s275 = int_to_ptr.vmem [resolvable:$true] %s274
          %280 = dma.hbm_to_vmem [thread:$0]  %s273, 896, %s275, %s261, 64, 64, 4
        $region28: #{down_forward.8} parent=19 // pred_fallthru
          _
        // Predicated region
        $region29: #{down_forward.8} parent=19 // pred_check
          %p281 = pneg %p119
        $region30: #{down_forward.8} parent=19 // pred_check_branch
          %283 = sbr.rel (%p281) target = $region32
        $region31: #{down_forward.8} parent=19 // pred_region
          %s284 = sand.u32 %s25, 1
          %s285 = scalar_lea.sflag [#allocation6], %s284
          %s286 = sand.u32 %s109, 1
          %s287 = smul.addr %s286, 56
          %s288 = scalar_lea.vmem [#allocation7], %s287
          %s289 = sadd.s32 %s33, 2
          %s291 = ssub.s32 896, 896
          %292 = vsyncadd %s285, %s291
          %s293 = smul.addr %s289, 14
          %s294 = smul.addr %s32, 140
          %s295 = sadd.s32 %s293, %s294
          %s296 = smul.addr %s295, 64
          %s297 = scalar_lea.hbm %s2, %s296
          %s298 = sshll.u32 %s288, 4
          %s299 = int_to_ptr.vmem [resolvable:$true] %s298
          %304 = dma.hbm_to_vmem [thread:$0]  %s297, 896, %s299, %s285, 64, 64, 4
        $region32: #{down_forward.8} parent=19 // pred_fallthru
          _
      $region20: #{down_forward.8} parent=5 // pred_fallthru
        _
      %p305 = scmp.le.s32.totalorder 1, %s25
      %p306 = scmp.lt.s32.totalorder %s25, 17
      %p307 = pnand %p305, %p306
      %p308 = pneg %p307
      // Predicated region
      $region33: #{down_forward.8} parent=5 // pred_check
        _
      $region34: #{down_forward.8} parent=5 // pred_check_branch
        %310 = sbr.rel (%p307) target = $region36
      $region35: #{down_forward.8} parent=5 // pred_region
        %s311 = ssub.s32 %s25, 1
        %s312 = sand.u32 %s52, 1
        %s313 = scalar_lea.sflag [#allocation3], %s312
        %s314 = sand.u32 %s52, 1
        %s315 = smul.addr %s314, 56
        %s316 = scalar_lea.vmem [#allocation2], %s315
        // Predicated region
        $region37: #{down_forward.8} parent=35 // pred_check
          %p317 = pneg %p65
        $region38: #{down_forward.8} parent=35 // pred_check_branch
          %319 = sbr.rel (%p317) target = $region40
        $region39: #{down_forward.8} parent=35 // pred_region
          %320 = dma.done %s313, 896
        $region40: #{down_forward.8} parent=35 // pred_fallthru
          _
        %s321 = sand.u32 %s30, 1
        %s322 = scalar_lea.sflag [#allocation6], %s321
        %s323 = sand.u32 %s82, 1
        %s324 = smul.addr %s323, 56
        %s325 = scalar_lea.vmem [#allocation5], %s324
        // Predicated region
        $region41: #{down_forward.8} parent=35 // pred_check
          %p326 = pneg %p95
        $region42: #{down_forward.8} parent=35 // pred_check_branch
          %328 = sbr.rel (%p326) target = $region44
        $region43: #{down_forward.8} parent=35 // pred_region
          %329 = dma.done %s322, 896
        $region44: #{down_forward.8} parent=35 // pred_fallthru
          _
        %s330 = sand.u32 %s30, 1
        %s331 = scalar_lea.sflag [#allocation6], %s330
        %s332 = sand.u32 %s112, 1
        %s333 = smul.addr %s332, 56
        %s334 = scalar_lea.vmem [#allocation7], %s333
        // Predicated region
        $region45: #{down_forward.8} parent=35 // pred_check
          %p335 = pneg %p125
        $region46: #{down_forward.8} parent=35 // pred_check_branch
          %337 = sbr.rel (%p335) target = $region48
        $region47: #{down_forward.8} parent=35 // pred_region
          %338 = dma.done %s331, 896
        $region48: #{down_forward.8} parent=35 // pred_fallthru
          _
        // Predicated region
        $region49: #{down_forward.8} parent=35 // pred_check
          %p339 = pneg %p146
        $region50: #{down_forward.8} parent=35 // pred_check_branch
          %341 = sbr.rel (%p339) target = $region52
        $region51: #{down_forward.8} parent=35 // pred_region
          %342 = dma.done [#allocation9], 864
        $region52: #{down_forward.8} parent=35 // pred_fallthru
          _
        %s343 = sand.u32 %s52, 1
        %s344 = scalar_lea.sflag [#allocation3], %s343
        %s345 = sand.u32 %s52, 1
        %s346 = smul.addr %s345, 56
        %s347 = scalar_lea.vmem [#allocation2], %s346
        %p348 = pneg %p65
        %p349 = pneg %p62
        %s350 = sand.u32 %s30, 1
        %s351 = scalar_lea.sflag [#allocation6], %s350
        %s352 = sand.u32 %s82, 1
        %s353 = smul.addr %s352, 56
        %s354 = scalar_lea.vmem [#allocation5], %s353
        %p355 = pneg %p95
        %p356 = pneg %p92
        %s357 = sand.u32 %s30, 1
        %s358 = scalar_lea.sflag [#allocation6], %s357
        %s359 = sand.u32 %s112, 1
        %s360 = smul.addr %s359, 56
        %s361 = scalar_lea.vmem [#allocation7], %s360
        %p362 = pneg %p125
        %p363 = pneg %p122
        %p364 = pneg %p146
        %p365 = pneg %p143
        %p366 = pneg %p174
        %p367 = pneg %p171
        %s368 = sand.u32 %s161, 1
        %s369 = scalar_lea.sflag [#allocation4], %s368
        %s370 = sand.u32 %s161, 1
        %s371 = smul.addr %s370, 40
        %s372 = scalar_lea.vmem [#allocation10], %s371
        %p373 = pneg %p202
        %p374 = pneg %p199
        %s375 = sand.u32 %s189, 1
        %s376 = scalar_lea.sflag [#allocation12], %s375
        %s377 = sand.u32 %s189, 1
        %s378 = smul.addr %s377, 2
        %s379 = scalar_lea.vmem [#allocation11], %s378
        %s380 = sadd.s32 %s35, 1
        %s381 = sadd.s32 %s35, 2
        %v383 = vld [vmem:[%s316] sm:$0xf]
        %v384 = vld [vmem:[%s316 + $0x4] sm:$0xf]
        %v385 = vld [vmem:[%s316 + $0x8] sm:$0xf]
        %v386 = vld [vmem:[%s316 + $0xc] sm:$0xf]
        %v387 = vld [vmem:[%s316 + $0x10] sm:$0xf]
        %v388 = vld [vmem:[%s316 + $0x14] sm:$0xf]
        %v389 = vld [vmem:[%s316 + $0x18] sm:$0xf]
        %v390 = vld [vmem:[%s316 + $0x1c] sm:$0xf]
        %v391 = vld [vmem:[%s316 + $0x20] sm:$0xf]
        %v392 = vld [vmem:[%s316 + $0x24] sm:$0xf]
        %v393 = vld [vmem:[#allocation8] sm:$0x3]
        %v394 = vld [vmem:[%s316 + $0x28] sm:$0x1]
        %s395 = scalar_lea.vmem [#allocation8], 2
        %v396 = vld [vmem:[%s395] sm:$0x3]
        %v408 = vunpack.c.l.b16 %v383
        %v409 = vunpack.c.l.b16 %v384
        %v410 = vunpack.c.l.b16 %v385
        %v411 = vunpack.c.l.b16 %v386
        %v412 = vunpack.c.l.b16 %v387
        %v413 = vunpack.c.l.b16 %v388
        %v414 = vunpack.c.l.b16 %v389
        %v415 = vunpack.c.l.b16 %v390
        %v416 = vunpack.c.l.b16 %v391
        %v417 = vunpack.c.l.b16 %v392
        %v418 = vunpack.c.l.b16 %v394
        %v419 = vpack.c.b16 %v409, %v408
        %v420 = vpack.c.b16 %v411, %v410
        %v421 = vpack.c.b16 %v413, %v412
        %v422 = vpack.c.b16 %v415, %v414
        %v423 = vpack.c.b16 %v417, %v416
        %v424 = vpack.c.b16 %v418, %v418
        %vm425 = vsmask.f32 7424
        %v427 = vshrl.u32 %v419, 16
        %v429 = vshll.u32 %v419, 16
        %v431 = vrot.slane %v429, 1
        %v432 = vor.u32 %v427, %v431
        %v434 = vshll.u32 %v420, 16
        %v436 = vrot.slane %v434, 1
        %v437 = vsel %vm425, %v432, %v436
        %v438 = vshrl.u32 %v420, 16
        %v440 = vor.u32 %v438, %v436
        %v442 = vshll.u32 %v421, 16
        %v444 = vrot.slane %v442, 1
        %v445 = vsel %vm425, %v440, %v444
        %v446 = vshrl.u32 %v421, 16
        %v448 = vor.u32 %v446, %v444
        %v450 = vshll.u32 %v422, 16
        %v452 = vrot.slane %v450, 1
        %v453 = vsel %vm425, %v448, %v452
        %v454 = vshrl.u32 %v422, 16
        %v456 = vor.u32 %v454, %v452
        %v458 = vshll.u32 %v423, 16
        %v460 = vrot.slane %v458, 1
        %v461 = vsel %vm425, %v456, %v460
        %v462 = vshrl.u32 %v423, 16
        %v464 = vor.u32 %v462, %v460
        %v466 = vshll.u32 %v424, 16
        %v468 = vrot.slane %v466, 1
        %v469 = vsel %vm425, %v464, %v468
        %vm470 = vcmask 31744
        %v472 = vsel %vm470, %v437, 0
        %v475 = vsel %vm470, %v445, 0
        %v478 = vsel %vm470, %v453, 0
        %v481 = vsel %vm470, %v461, 0
        %v484 = vsel %vm470, %v469, 0
        %vm486 = vcmask 1041408
        %v488 = vsel %vm486, %v396, 0
        %490 = vmatprep.subr.bf16.mxu0 0
        %491 = vmatpush1.bf16.msra.mxu0 %v488
        %492 = vmatprep.subr.bf16.mxu0 0
        %493 = vmatpush1.bf16.msra.mxu0 0
        %494 = vmatprep.subr.bf16.mxu0 0
        %495 = vmatpush1.bf16.msra.mxu0 0
        %496 = vmatprep.subr.bf16.mxu0 0
        %497 = vmatpush1.bf16.msra.mxu0 0
        %498 = vmatprep.subr.bf16.mxu0 0
        %499 = vmatpush1.bf16.msra.mxu0 0
        %500 = vmatprep.subr.bf16.mxu0 0
        %501 = vmatpush1.bf16.msra.mxu0 0
        %502 = vmatprep.subr.bf16.mxu0 0
        %503 = vmatpush1.bf16.msra.mxu0 0
        %504 = vmatprep.subr.bf16.mxu0 0
        %505 = vmatpush1.bf16.msra.mxu0 0
        %506 = vmatprep.subr.bf16.mxu0 0
        %507 = vmatpush1.bf16.msra.mxu0 0
        %508 = vmatprep.subr.bf16.mxu0 0
        %509 = vmatpush1.bf16.msra.mxu0 0
        %510 = vmatprep.subr.bf16.mxu0 0
        %511 = vmatpush1.bf16.msra.mxu0 0
        %512 = vmatprep.subr.bf16.mxu0 0
        %513 = vmatpush1.bf16.msra.mxu0 0
        %514 = vmatprep.subr.bf16.mxu0 0
        %515 = vmatpush1.bf16.msra.mxu0 0
        %516 = vmatprep.subr.bf16.mxu0 0
        %517 = vmatpush1.bf16.msra.mxu0 0
        %518 = vmatprep.subr.bf16.mxu0 0
        %519 = vmatpush1.bf16.msra.mxu0 0
        %520 = vmatprep.subr.bf16.mxu0 0
        %521 = vmatpush1.bf16.msra.mxu0 0
        %522 = vmatprep.mubr.bf16.mxu0 0
        %523 = vmatmul.mubr.bf16.gmra.mrb[0].mxu0 %v472
        %v524 = vpop.f32.mrb[0].mxu0
        %v525 = vadd.f32 0.0, %v524
        %v526 = vpop.f32.mrb[0].mxu0
        %v527 = vpop.f32.mrb[0].mxu0
        %v528 = vadd.f32 0.0, %v527
        %v529 = vpop.f32.mrb[0].mxu0
        %530 = vmatprep.mubr.bf16.mxu0 0
        %531 = vmatmul.mubr.bf16.gmra.mrb[0].mxu0 %v475
        %v532 = vpop.f32.mrb[0].mxu0
        %v533 = vadd.f32 0.0, %v532
        %v534 = vpop.f32.mrb[0].mxu0
        %v535 = vpop.f32.mrb[0].mxu0
        %v536 = vadd.f32 0.0, %v535
        %v537 = vpop.f32.mrb[0].mxu0
        %538 = vmatprep.mubr.bf16.mxu0 0
        %539 = vmatmul.mubr.bf16.gmra.mrb[0].mxu0 %v478
        %v540 = vpop.f32.mrb[0].mxu0
        %v541 = vadd.f32 0.0, %v540
        %v542 = vpop.f32.mrb[0].mxu0
        %v543 = vpop.f32.mrb[0].mxu0
        %v544 = vadd.f32 0.0, %v543
        %v545 = vpop.f32.mrb[0].mxu0
        %546 = vmatprep.mubr.bf16.mxu0 0
        %547 = vmatmul.mubr.bf16.gmra.mrb[0].mxu0 %v481
        %v548 = vpop.f32.mrb[0].mxu0
        %v549 = vadd.f32 0.0, %v548
        %v550 = vpop.f32.mrb[0].mxu0
        %v551 = vpop.f32.mrb[0].mxu0
        %v552 = vadd.f32 0.0, %v551
        %v553 = vpop.f32.mrb[0].mxu0
        %554 = vmatprep.mubr.bf16.mxu0 0
        %555 = vmatmul.mubr.bf16.gmra.mrb[0].mxu0 %v484
        %v556 = vpop.f32.mrb[0].mxu0
        %v557 = vadd.f32 0.0, %v556
        %v558 = vpop.f32.mrb[0].mxu0
        %v559 = vpop.f32.mrb[0].mxu0
        %v560 = vadd.f32 0.0, %v559
        %v561 = vpop.f32.mrb[0].mxu0
        %562 = vdwg.mxu0
        %v563 = vsel %vm470, %v419, 0
        %v565 = vsel %vm470, %v420, 0
        %v567 = vsel %vm470, %v421, 0
        %v569 = vsel %vm470, %v422, 0
        %v571 = vsel %vm470, %v423, 0
        %v574 = vsel %vm486, %v393, 0
        %576 = vmatprep.subr.bf16.mxu0 0
        %577 = vmatpush1.bf16.msra.mxu0 %v574
        %578 = vmatprep.subr.bf16.mxu0 0
        %579 = vmatpush1.bf16.msra.mxu0 0
        %580 = vmatprep.subr.bf16.mxu0 0
        %581 = vmatpush1.bf16.msra.mxu0 0
        %582 = vmatprep.subr.bf16.mxu0 0
        %583 = vmatpush1.bf16.msra.mxu0 0
        %584 = vmatprep.subr.bf16.mxu0 0
        %585 = vmatpush1.bf16.msra.mxu0 0
        %586 = vmatprep.subr.bf16.mxu0 0
        %587 = vmatpush1.bf16.msra.mxu0 0
        %588 = vmatprep.subr.bf16.mxu0 0
        %589 = vmatpush1.bf16.msra.mxu0 0
        %590 = vmatprep.subr.bf16.mxu0 0
        %591 = vmatpush1.bf16.msra.mxu0 0
        %592 = vmatprep.subr.bf16.mxu0 0
        %593 = vmatpush1.bf16.msra.mxu0 0
        %594 = vmatprep.subr.bf16.mxu0 0
        %595 = vmatpush1.bf16.msra.mxu0 0
        %596 = vmatprep.subr.bf16.mxu0 0
        %597 = vmatpush1.bf16.msra.mxu0 0
        %598 = vmatprep.subr.bf16.mxu0 0
        %599 = vmatpush1.bf16.msra.mxu0 0
        %600 = vmatprep.subr.bf16.mxu0 0
        %601 = vmatpush1.bf16.msra.mxu0 0
        %602 = vmatprep.subr.bf16.mxu0 0
        %603 = vmatpush1.bf16.msra.mxu0 0
        %604 = vmatprep.subr.bf16.mxu0 0
        %605 = vmatpush1.bf16.msra.mxu0 0
        %606 = vmatprep.subr.bf16.mxu0 0
        %607 = vmatpush1.bf16.msra.mxu0 0
        %608 = vmatprep.mubr.bf16.mxu0 0
        %609 = vmatmul.mubr.bf16.gmra.mrb[0].mxu0 %v563
        %v610 = vpop.f32.mrb[0].mxu0
        %v611 = vadd.f32 %v525, %v610
        %v612 = vpop.f32.mrb[0].mxu0
        %v613 = vpop.f32.mrb[0].mxu0
        %v614 = vadd.f32 %v528, %v613
        %v615 = vpop.f32.mrb[0].mxu0
        %616 = vmatprep.mubr.bf16.mxu0 0
        %617 = vmatmul.mubr.bf16.gmra.mrb[0].mxu0 %v565
        %v618 = vpop.f32.mrb[0].mxu0
        %v619 = vadd.f32 %v533, %v618
        %v620 = vpop.f32.mrb[0].mxu0
        %v621 = vpop.f32.mrb[0].mxu0
        %v622 = vadd.f32 %v536, %v621
        %v623 = vpop.f32.mrb[0].mxu0
        %624 = vmatprep.mubr.bf16.mxu0 0
        %625 = vmatmul.mubr.bf16.gmra.mrb[0].mxu0 %v567
        %v626 = vpop.f32.mrb[0].mxu0
        %v627 = vadd.f32 %v541, %v626
        %v628 = vpop.f32.mrb[0].mxu0
        %v629 = vpop.f32.mrb[0].mxu0
        %v630 = vadd.f32 %v544, %v629
        %v631 = vpop.f32.mrb[0].mxu0
        %632 = vmatprep.mubr.bf16.mxu0 0
        %633 = vmatmul.mubr.bf16.gmra.mrb[0].mxu0 %v569
        %v634 = vpop.f32.mrb[0].mxu0
        %v635 = vadd.f32 %v549, %v634
        %v636 = vpop.f32.mrb[0].mxu0
        %v637 = vpop.f32.mrb[0].mxu0
        %v638 = vadd.f32 %v552, %v637
        %v639 = vpop.f32.mrb[0].mxu0
        %640 = vmatprep.mubr.bf16.mxu0 0
        %641 = vmatmul.mubr.bf16.gmra.mrb[0].mxu0 %v571
        %v642 = vpop.f32.mrb[0].mxu0
        %v643 = vadd.f32 %v557, %v642
        %v644 = vpop.f32.mrb[0].mxu0
        %v645 = vpop.f32.mrb[0].mxu0
        %v646 = vadd.f32 %v560, %v645
        %v647 = vpop.f32.mrb[0].mxu0
        %648 = vdwg.mxu0
        %v649 = vld [vmem:[%s316] sm:$0xe]
        %s650 = scalar_lea.vmem [#allocation8], 4
        %v651 = vld [vmem:[%s650] sm:$0x3]
        %v653 = vunpack.c.l.b16 %v649
        %v654 = vpack.c.b16 %v409, %v653
        %vm655 = vcmask 1046528
        %v656 = vrot.slane %v654, 1
        %v657 = vrot.slane %v420, 1
        %v658 = vsel %vm655, %v656, %v657
        %v659 = vrot.slane %v421, 1
        %v660 = vsel %vm655, %v657, %v659
        %v661 = vrot.slane %v422, 1
        %v662 = vsel %vm655, %v659, %v661
        %v663 = vrot.slane %v423, 1
        %v664 = vsel %vm655, %v661, %v663
        %v665 = vrot.slane %v424, 1
        %v666 = vsel %vm655, %v663, %v665
        %v668 = vsel %vm470, %v658, 0
        %v671 = vsel %vm470, %v660, 0
        %v674 = vsel %vm470, %v662, 0
        %v677 = vsel %vm470, %v664, 0
        %v680 = vsel %vm470, %v666, 0
        %v683 = vsel %vm486, %v651, 0
        %685 = vmatprep.subr.bf16.mxu0 0
        %686 = vmatpush1.bf16.msra.mxu0 %v683
        %687 = vmatprep.subr.bf16.mxu0 0
        %688 = vmatpush1.bf16.msra.mxu0 0
        %689 = vmatprep.subr.bf16.mxu0 0
        %690 = vmatpush1.bf16.msra.mxu0 0
        %691 = vmatprep.subr.bf16.mxu0 0
        %692 = vmatpush1.bf16.msra.mxu0 0
        %693 = vmatprep.subr.bf16.mxu0 0
        %694 = vmatpush1.bf16.msra.mxu0 0
        %695 = vmatprep.subr.bf16.mxu0 0
        %696 = vmatpush1.bf16.msra.mxu0 0
        %697 = vmatprep.subr.bf16.mxu0 0
        %698 = vmatpush1.bf16.msra.mxu0 0
        %699 = vmatprep.subr.bf16.mxu0 0
        %700 = vmatpush1.bf16.msra.mxu0 0
        %701 = vmatprep.subr.bf16.mxu0 0
        %702 = vmatpush1.bf16.msra.mxu0 0
        %703 = vmatprep.subr.bf16.mxu0 0
        %704 = vmatpush1.bf16.msra.mxu0 0
        %705 = vmatprep.subr.bf16.mxu0 0
        %706 = vmatpush1.bf16.msra.mxu0 0
        %707 = vmatprep.subr.bf16.mxu0 0
        %708 = vmatpush1.bf16.msra.mxu0 0
        %709 = vmatprep.subr.bf16.mxu0 0
        %710 = vmatpush1.bf16.msra.mxu0 0
        %711 = vmatprep.subr.bf16.mxu0 0
        %712 = vmatpush1.bf16.msra.mxu0 0
        %713 = vmatprep.subr.bf16.mxu0 0
        %714 = vmatpush1.bf16.msra.mxu0 0
        %715 = vmatprep.subr.bf16.mxu0 0
        %716 = vmatpush1.bf16.msra.mxu0 0
        %717 = vmatprep.mubr.bf16.mxu0 0
        %718 = vmatmul.mubr.bf16.gmra.mrb[0].mxu0 %v668
        %v719 = vpop.f32.mrb[0].mxu0
        %v720 = vadd.f32 0.0, %v719
        %v721 = vpop.f32.mrb[0].mxu0
        %v722 = vpop.f32.mrb[0].mxu0
        %v723 = vadd.f32 0.0, %v722
        %v724 = vpop.f32.mrb[0].mxu0
        %725 = vmatprep.mubr.bf16.mxu0 0
        %726 = vmatmul.mubr.bf16.gmra.mrb[0].mxu0 %v671
        %v727 = vpop.f32.mrb[0].mxu0
        %v728 = vadd.f32 0.0, %v727
        %v729 = vpop.f32.mrb[0].mxu0
        %v730 = vpop.f32.mrb[0].mxu0
        %v731 = vadd.f32 0.0, %v730
        %v732 = vpop.f32.mrb[0].mxu0
        %733 = vmatprep.mubr.bf16.mxu0 0
        %734 = vmatmul.mubr.bf16.gmra.mrb[0].mxu0 %v674
        %v735 = vpop.f32.mrb[0].mxu0
        %v736 = vadd.f32 0.0, %v735
        %v737 = vpop.f32.mrb[0].mxu0
        %v738 = vpop.f32.mrb[0].mxu0
        %v739 = vadd.f32 0.0, %v738
        %v740 = vpop.f32.mrb[0].mxu0
        %741 = vmatprep.mubr.bf16.mxu0 0
        %742 = vmatmul.mubr.bf16.gmra.mrb[0].mxu0 %v677
        %v743 = vpop.f32.mrb[0].mxu0
        %v744 = vadd.f32 0.0, %v743
        %v745 = vpop.f32.mrb[0].mxu0
        %v746 = vpop.f32.mrb[0].mxu0
        %v747 = vadd.f32 0.0, %v746
        %v748 = vpop.f32.mrb[0].mxu0
        %749 = vmatprep.mubr.bf16.mxu0 0
        %750 = vmatmul.mubr.bf16.gmra.mrb[0].mxu0 %v680
        %v751 = vpop.f32.mrb[0].mxu0
        %v752 = vadd.f32 0.0, %v751
        %v753 = vpop.f32.mrb[0].mxu0
        %v754 = vpop.f32.mrb[0].mxu0
        %v755 = vadd.f32 0.0, %v754
        %v756 = vpop.f32.mrb[0].mxu0
        %757 = vdwg.mxu0
        %v758 = vadd.f32 %v611, %v720
        %v759 = vadd.f32 %v614, %v723
        %v760 = vadd.f32 %v619, %v728
        %v761 = vadd.f32 %v622, %v731
        %v762 = vadd.f32 %v627, %v736
        %v763 = vadd.f32 %v630, %v739
        %v764 = vadd.f32 %v635, %v744
        %v765 = vadd.f32 %v638, %v747
        %v766 = vadd.f32 %v643, %v752
        %v767 = vadd.f32 %v646, %v755
        %v768 = vld [vmem:[%s316 + $0x4] sm:$0xe]
        %v769 = vld [vmem:[%s316 + $0x8] sm:$0xf]
        %v770 = vld [vmem:[%s316 + $0xc] sm:$0xf]
        %v771 = vld [vmem:[%s316 + $0x10] sm:$0xf]
        %v772 = vld [vmem:[%s316 + $0x14] sm:$0xf]
        %v773 = vld [vmem:[%s316 + $0x18] sm:$0xf]
        %v774 = vld [vmem:[%s316 + $0x1c] sm:$0xf]
        %v775 = vld [vmem:[%s316 + $0x20] sm:$0xf]
        %v776 = vld [vmem:[%s316 + $0x24] sm:$0xf]
        %v777 = vld [vmem:[%s316 + $0x28] sm:$0xf]
        %v778 = vld [vmem:[%s316 + $0x2c] sm:$0x1]
        %s779 = scalar_lea.vmem [#allocation8], 6
        %v780 = vld [vmem:[%s779] sm:$0x3]
        %v792 = vunpack.c.l.b16 %v768
        %v793 = vunpack.c.l.b16 %v769
        %v794 = vunpack.c.l.b16 %v770
        %v795 = vunpack.c.l.b16 %v771
        %v796 = vunpack.c.l.b16 %v772
        %v797 = vunpack.c.l.b16 %v773
        %v798 = vunpack.c.l.b16 %v774
        %v799 = vunpack.c.l.b16 %v775
        %v800 = vunpack.c.l.b16 %v776
        %v801 = vunpack.c.l.b16 %v777
        %v802 = vunpack.c.l.b16 %v778
        %v803 = vpack.c.b16 %v793, %v792
        %v804 = vpack.c.b16 %v795, %v794
        %v805 = vpack.c.b16 %v797, %v796
        %v806 = vpack.c.b16 %v799, %v798
        %v807 = vpack.c.b16 %v801, %v800
        %v808 = vpack.c.b16 %v802, %v802
        %v809 = vrot.slane %v803, 1
        %v810 = vrot.slane %v804, 1
        %v811 = vsel %vm655, %v809, %v810
        %v812 = vrot.slane %v805, 1
        %v813 = vsel %vm655, %v810, %v812
        %v814 = vrot.slane %v806, 1
        %v815 = vsel %vm655, %v812, %v814
        %v816 = vrot.slane %v807, 1
        %v817 = vsel %vm655, %v814, %v816
        %v818 = vrot.slane %v808, 1
        %v819 = vsel %vm655, %v816, %v818
        %v821 = vsel %vm470, %v811, 0
        %v824 = vsel %vm470, %v813, 0
        %v827 = vsel %vm470, %v815, 0
        %v830 = vsel %vm470, %v817, 0
        %v833 = vsel %vm470, %v819, 0
        %v836 = vsel %vm486, %v780, 0
        %838 = vmatprep.subr.bf16.mxu0 0
        %839 = vmatpush1.bf16.msra.mxu0 %v836
        %840 = vmatprep.subr.bf16.mxu0 0
        %841 = vmatpush1.bf16.msra.mxu0 0
        %842 = vmatprep.subr.bf16.mxu0 0
        %843 = vmatpush1.bf16.msra.mxu0 0
        %844 = vmatprep.subr.bf16.mxu0 0
        %845 = vmatpush1.bf16.msra.mxu0 0
        %846 = vmatprep.subr.bf16.mxu0 0
        %847 = vmatpush1.bf16.msra.mxu0 0
        %848 = vmatprep.subr.bf16.mxu0 0
        %849 = vmatpush1.bf16.msra.mxu0 0
        %850 = vmatprep.subr.bf16.mxu0 0
        %851 = vmatpush1.bf16.msra.mxu0 0
        %852 = vmatprep.subr.bf16.mxu0 0
        %853 = vmatpush1.bf16.msra.mxu0 0
        %854 = vmatprep.subr.bf16.mxu0 0
        %855 = vmatpush1.bf16.msra.mxu0 0
        %856 = vmatprep.subr.bf16.mxu0 0
        %857 = vmatpush1.bf16.msra.mxu0 0
        %858 = vmatprep.subr.bf16.mxu0 0
        %859 = vmatpush1.bf16.msra.mxu0 0
        %860 = vmatprep.subr.bf16.mxu0 0
        %861 = vmatpush1.bf16.msra.mxu0 0
        %862 = vmatprep.subr.bf16.mxu0 0
        %863 = vmatpush1.bf16.msra.mxu0 0
        %864 = vmatprep.subr.bf16.mxu0 0
        %865 = vmatpush1.bf16.msra.mxu0 0
        %866 = vmatprep.subr.bf16.mxu0 0
        %867 = vmatpush1.bf16.msra.mxu0 0
        %868 = vmatprep.subr.bf16.mxu0 0
        %869 = vmatpush1.bf16.msra.mxu0 0
        %870 = vmatprep.mubr.bf16.mxu0 0
        %871 = vmatmul.mubr.bf16.gmra.mrb[0].mxu0 %v821
        %v872 = vpop.f32.mrb[0].mxu0
        %v873 = vadd.f32 0.0, %v872
        %v874 = vpop.f32.mrb[0].mxu0
        %v875 = vpop.f32.mrb[0].mxu0
        %v876 = vadd.f32 0.0, %v875
        %v877 = vpop.f32.mrb[0].mxu0
        %878 = vmatprep.mubr.bf16.mxu0 0
        %879 = vmatmul.mubr.bf16.gmra.mrb[0].mxu0 %v824
        %v880 = vpop.f32.mrb[0].mxu0
        %v881 = vadd.f32 0.0, %v880
        %v882 = vpop.f32.mrb[0].mxu0
        %v883 = vpop.f32.mrb[0].mxu0
        %v884 = vadd.f32 0.0, %v883
        %v885 = vpop.f32.mrb[0].mxu0
        %886 = vmatprep.mubr.bf16.mxu0 0
        %887 = vmatmul.mubr.bf16.gmra.mrb[0].mxu0 %v827
        %v888 = vpop.f32.mrb[0].mxu0
        %v889 = vadd.f32 0.0, %v888
        %v890 = vpop.f32.mrb[0].mxu0
        %v891 = vpop.f32.mrb[0].mxu0
        %v892 = vadd.f32 0.0, %v891
        %v893 = vpop.f32.mrb[0].mxu0
        %894 = vmatprep.mubr.bf16.mxu0 0
        %895 = vmatmul.mubr.bf16.gmra.mrb[0].mxu0 %v830
        %v896 = vpop.f32.mrb[0].mxu0
        %v897 = vadd.f32 0.0, %v896
        %v898 = vpop.f32.mrb[0].mxu0
        %v899 = vpop.f32.mrb[0].mxu0
        %v900 = vadd.f32 0.0, %v899
        %v901 = vpop.f32.mrb[0].mxu0
        %902 = vmatprep.mubr.bf16.mxu0 0
        %903 = vmatmul.mubr.bf16.gmra.mrb[0].mxu0 %v833
        %v904 = vpop.f32.mrb[0].mxu0
        %v905 = vadd.f32 0.0, %v904
        %v906 = vpop.f32.mrb[0].mxu0
        %v907 = vpop.f32.mrb[0].mxu0
        %v908 = vadd.f32 0.0, %v907
        %v909 = vpop.f32.mrb[0].mxu0
        %910 = vdwg.mxu0
        %v911 = vadd.f32 %v758, %v873
        %v912 = vadd.f32 %v759, %v876
        %v913 = vadd.f32 %v760, %v881
        %v914 = vadd.f32 %v761, %v884
        %v915 = vadd.f32 %v762, %v889
        %v916 = vadd.f32 %v763, %v892
        %v917 = vadd.f32 %v764, %v897
        %v918 = vadd.f32 %v765, %v900
        %v919 = vadd.f32 %v766, %v905
        %v920 = vadd.f32 %v767, %v908
        %v921 = vld [vmem:[%s316 + $0x2c] sm:$0x3]
        %s922 = scalar_lea.vmem [#allocation8], 8
        %v923 = vld [vmem:[%s922] sm:$0x3]
        %v925 = vunpack.c.l.b16 %v921
        %v926 = vpack.c.b16 %v925, %v925
        %vm927 = vsmask.f32 6400
        %v929 = vshrl.u32 %v803, 16
        %v931 = vrot.slane %v929, 1
        %v932 = vshll.u32 %v803, 16
        %v934 = vrot.slane %v932, 2
        %v935 = vor.u32 %v931, %v934
        %v937 = vshrl.u32 %v804, 16
        %v939 = vrot.slane %v937, 1
        %v940 = vshll.u32 %v804, 16
        %v942 = vrot.slane %v940, 2
        %v943 = vor.u32 %v939, %v942
        %v944 = vsel %vm927, %v935, %v943
        %v946 = vshrl.u32 %v805, 16
        %v948 = vrot.slane %v946, 1
        %v949 = vshll.u32 %v805, 16
        %v951 = vrot.slane %v949, 2
        %v952 = vor.u32 %v948, %v951
        %v953 = vsel %vm927, %v943, %v952
        %v955 = vshrl.u32 %v806, 16
        %v957 = vrot.slane %v955, 1
        %v958 = vshll.u32 %v806, 16
        %v960 = vrot.slane %v958, 2
        %v961 = vor.u32 %v957, %v960
        %v962 = vsel %vm927, %v952, %v961
        %v964 = vshrl.u32 %v807, 16
        %v966 = vrot.slane %v964, 1
        %v967 = vshll.u32 %v807, 16
        %v969 = vrot.slane %v967, 2
        %v970 = vor.u32 %v966, %v969
        %v971 = vsel %vm927, %v961, %v970
        %v973 = vshrl.u32 %v926, 16
        %v975 = vrot.slane %v973, 1
        %v976 = vshll.u32 %v926, 16
        %v978 = vrot.slane %v976, 2
        %v979 = vor.u32 %v975, %v978
        %v980 = vsel %vm927, %v970, %v979
        %v982 = vsel %vm470, %v944, 0
        %v985 = vsel %vm470, %v953, 0
        %v988 = vsel %vm470, %v962, 0
        %v991 = vsel %vm470, %v971, 0
        %v994 = vsel %vm470, %v980, 0
        %v997 = vsel %vm486, %v923, 0
        %999 = vmatprep.subr.bf16.mxu0 0
        %1000 = vmatpush1.bf16.msra.mxu0 %v997
        %1001 = vmatprep.subr.bf16.mxu0 0
        %1002 = vmatpush1.bf16.msra.mxu0 0
        %1003 = vmatprep.subr.bf16.mxu0 0
        %1004 = vmatpush1.bf16.msra.mxu0 0
        %1005 = vmatprep.subr.bf16.mxu0 0
        %1006 = vmatpush1.bf16.msra.mxu0 0
        %1007 = vmatprep.subr.bf16.mxu0 0
        %1008 = vmatpush1.bf16.msra.mxu0 0
        %1009 = vmatprep.subr.bf16.mxu0 0
        %1010 = vmatpush1.bf16.msra.mxu0 0
        %1011 = vmatprep.subr.bf16.mxu0 0
        %1012 = vmatpush1.bf16.msra.mxu0 0
        %1013 = vmatprep.subr.bf16.mxu0 0
        %1014 = vmatpush1.bf16.msra.mxu0 0
        %1015 = vmatprep.subr.bf16.mxu0 0
        %1016 = vmatpush1.bf16.msra.mxu0 0
        %1017 = vmatprep.subr.bf16.mxu0 0
        %1018 = vmatpush1.bf16.msra.mxu0 0
        %1019 = vmatprep.subr.bf16.mxu0 0
        %1020 = vmatpush1.bf16.msra.mxu0 0
        %1021 = vmatprep.subr.bf16.mxu0 0
        %1022 = vmatpush1.bf16.msra.mxu0 0
        %1023 = vmatprep.subr.bf16.mxu0 0
        %1024 = vmatpush1.bf16.msra.mxu0 0
        %1025 = vmatprep.subr.bf16.mxu0 0
        %1026 = vmatpush1.bf16.msra.mxu0 0
        %1027 = vmatprep.subr.bf16.mxu0 0
        %1028 = vmatpush1.bf16.msra.mxu0 0
        %1029 = vmatprep.subr.bf16.mxu0 0
        %1030 = vmatpush1.bf16.msra.mxu0 0
        %1031 = vmatprep.mubr.bf16.mxu0 0
        %1032 = vmatmul.mubr.bf16.gmra.mrb[0].mxu0 %v982
        %v1033 = vpop.f32.mrb[0].mxu0
        %v1034 = vadd.f32 0.0, %v1033
        %v1035 = vpop.f32.mrb[0].mxu0
        %v1036 = vpop.f32.mrb[0].mxu0
        %v1037 = vadd.f32 0.0, %v1036
        %v1038 = vpop.f32.mrb[0].mxu0
        %1039 = vmatprep.mubr.bf16.mxu0 0
        %1040 = vmatmul.mubr.bf16.gmra.mrb[0].mxu0 %v985
        %v1041 = vpop.f32.mrb[0].mxu0
        %v1042 = vadd.f32 0.0, %v1041
        %v1043 = vpop.f32.mrb[0].mxu0
        %v1044 = vpop.f32.mrb[0].mxu0
        %v1045 = vadd.f32 0.0, %v1044
        %v1046 = vpop.f32.mrb[0].mxu0
        %1047 = vmatprep.mubr.bf16.mxu0 0
        %1048 = vmatmul.mubr.bf16.gmra.mrb[0].mxu0 %v988
        %v1049 = vpop.f32.mrb[0].mxu0
        %v1050 = vadd.f32 0.0, %v1049
        %v1051 = vpop.f32.mrb[0].mxu0
        %v1052 = vpop.f32.mrb[0].mxu0
        %v1053 = vadd.f32 0.0, %v1052
        %v1054 = vpop.f32.mrb[0].mxu0
        %1055 = vmatprep.mubr.bf16.mxu0 0
        %1056 = vmatmul.mubr.bf16.gmra.mrb[0].mxu0 %v991
        %v1057 = vpop.f32.mrb[0].mxu0
        %v1058 = vadd.f32 0.0, %v1057
        %v1059 = vpop.f32.mrb[0].mxu0
        %v1060 = vpop.f32.mrb[0].mxu0
        %v1061 = vadd.f32 0.0, %v1060
        %v1062 = vpop.f32.mrb[0].mxu0
        %1063 = vmatprep.mubr.bf16.mxu0 0
        %1064 = vmatmul.mubr.bf16.gmra.mrb[0].mxu0 %v994
        %v1065 = vpop.f32.mrb[0].mxu0
        %v1066 = vadd.f32 0.0, %v1065
        %v1067 = vpop.f32.mrb[0].mxu0
        %v1068 = vpop.f32.mrb[0].mxu0
        %v1069 = vadd.f32 0.0, %v1068
        %v1070 = vpop.f32.mrb[0].mxu0
        %1071 = vdwg.mxu0
        %v1072 = vadd.f32 %v911, %v1034
        %v1073 = vadd.f32 %v912, %v1037
        %v1074 = vadd.f32 %v913, %v1042
        %v1075 = vadd.f32 %v914, %v1045
        %v1076 = vadd.f32 %v915, %v1050
        %v1077 = vadd.f32 %v916, %v1053
        %v1078 = vadd.f32 %v917, %v1058
        %v1079 = vadd.f32 %v918, %v1061
        %v1080 = vadd.f32 %v919, %v1066
        %v1081 = vadd.f32 %v920, %v1069
        %v1082 = vld [vmem:[%s316 + $0x4] sm:$0xc]
        %s1083 = scalar_lea.vmem [#allocation8], 10
        %v1084 = vld [vmem:[%s1083] sm:$0x3]
        %v1086 = vunpack.c.l.b16 %v1082
        %v1087 = vpack.c.b16 %v793, %v1086
        %vm1088 = vcmask 1045504
        %v1089 = vrot.slane %v1087, 2
        %v1090 = vrot.slane %v804, 2
        %v1091 = vsel %vm1088, %v1089, %v1090
        %v1092 = vrot.slane %v805, 2
        %v1093 = vsel %vm1088, %v1090, %v1092
        %v1094 = vrot.slane %v806, 2
        %v1095 = vsel %vm1088, %v1092, %v1094
        %v1096 = vrot.slane %v807, 2
        %v1097 = vsel %vm1088, %v1094, %v1096
        %v1098 = vrot.slane %v926, 2
        %v1099 = vsel %vm1088, %v1096, %v1098
        %v1101 = vsel %vm470, %v1091, 0
        %v1104 = vsel %vm470, %v1093, 0
        %v1107 = vsel %vm470, %v1095, 0
        %v1110 = vsel %vm470, %v1097, 0
        %v1113 = vsel %vm470, %v1099, 0
        %v1116 = vsel %vm486, %v1084, 0
        %1118 = vmatprep.subr.bf16.mxu0 0
        %1119 = vmatpush1.bf16.msra.mxu0 %v1116
        %1120 = vmatprep.subr.bf16.mxu0 0
        %1121 = vmatpush1.bf16.msra.mxu0 0
        %1122 = vmatprep.subr.bf16.mxu0 0
        %1123 = vmatpush1.bf16.msra.mxu0 0
        %1124 = vmatprep.subr.bf16.mxu0 0
        %1125 = vmatpush1.bf16.msra.mxu0 0
        %1126 = vmatprep.subr.bf16.mxu0 0
        %1127 = vmatpush1.bf16.msra.mxu0 0
        %1128 = vmatprep.subr.bf16.mxu0 0
        %1129 = vmatpush1.bf16.msra.mxu0 0
        %1130 = vmatprep.subr.bf16.mxu0 0
        %1131 = vmatpush1.bf16.msra.mxu0 0
        %1132 = vmatprep.subr.bf16.mxu0 0
        %1133 = vmatpush1.bf16.msra.mxu0 0
        %1134 = vmatprep.subr.bf16.mxu0 0
        %1135 = vmatpush1.bf16.msra.mxu0 0
        %1136 = vmatprep.subr.bf16.mxu0 0
        %1137 = vmatpush1.bf16.msra.mxu0 0
        %1138 = vmatprep.subr.bf16.mxu0 0
        %1139 = vmatpush1.bf16.msra.mxu0 0
        %1140 = vmatprep.subr.bf16.mxu0 0
        %1141 = vmatpush1.bf16.msra.mxu0 0
        %1142 = vmatprep.subr.bf16.mxu0 0
        %1143 = vmatpush1.bf16.msra.mxu0 0
        %1144 = vmatprep.subr.bf16.mxu0 0
        %1145 = vmatpush1.bf16.msra.mxu0 0
        %1146 = vmatprep.subr.bf16.mxu0 0
        %1147 = vmatpush1.bf16.msra.mxu0 0
        %1148 = vmatprep.subr.bf16.mxu0 0
        %1149 = vmatpush1.bf16.msra.mxu0 0
        %1150 = vmatprep.mubr.bf16.mxu0 0
        %1151 = vmatmul.mubr.bf16.gmra.mrb[0].mxu0 %v1101
        %v1152 = vpop.f32.mrb[0].mxu0
        %v1153 = vadd.f32 0.0, %v1152
        %v1154 = vpop.f32.mrb[0].mxu0
        %v1155 = vpop.f32.mrb[0].mxu0
        %v1156 = vadd.f32 0.0, %v1155
        %v1157 = vpop.f32.mrb[0].mxu0
        %1158 = vmatprep.mubr.bf16.mxu0 0
        %1159 = vmatmul.mubr.bf16.gmra.mrb[0].mxu0 %v1104
        %v1160 = vpop.f32.mrb[0].mxu0
        %v1161 = vadd.f32 0.0, %v1160
        %v1162 = vpop.f32.mrb[0].mxu0
        %v1163 = vpop.f32.mrb[0].mxu0
        %v1164 = vadd.f32 0.0, %v1163
        %v1165 = vpop.f32.mrb[0].mxu0
        %1166 = vmatprep.mubr.bf16.mxu0 0
        %1167 = vmatmul.mubr.bf16.gmra.mrb[0].mxu0 %v1107
        %v1168 = vpop.f32.mrb[0].mxu0
        %v1169 = vadd.f32 0.0, %v1168
        %v1170 = vpop.f32.mrb[0].mxu0
        %v1171 = vpop.f32.mrb[0].mxu0
        %v1172 = vadd.f32 0.0, %v1171
        %v1173 = vpop.f32.mrb[0].mxu0
        %1174 = vmatprep.mubr.bf16.mxu0 0
        %1175 = vmatmul.mubr.bf16.gmra.mrb[0].mxu0 %v1110
        %v1176 = vpop.f32.mrb[0].mxu0
        %v1177 = vadd.f32 0.0, %v1176
        %v1178 = vpop.f32.mrb[0].mxu0
        %v1179 = vpop.f32.mrb[0].mxu0
        %v1180 = vadd.f32 0.0, %v1179
        %v1181 = vpop.f32.mrb[0].mxu0
        %1182 = vmatprep.mubr.bf16.mxu0 0
        %1183 = vmatmul.mubr.bf16.gmra.mrb[0].mxu0 %v1113
        %v1184 = vpop.f32.mrb[0].mxu0
        %v1185 = vadd.f32 0.0, %v1184
        %v1186 = vpop.f32.mrb[0].mxu0
        %v1187 = vpop.f32.mrb[0].mxu0
        %v1188 = vadd.f32 0.0, %v1187
        %v1189 = vpop.f32.mrb[0].mxu0
        %1190 = vdwg.mxu0
        %v1191 = vadd.f32 %v1072, %v1153
        %v1192 = vadd.f32 %v1073, %v1156
        %v1193 = vadd.f32 %v1074, %v1161
        %v1194 = vadd.f32 %v1075, %v1164
        %v1195 = vadd.f32 %v1076, %v1169
        %v1196 = vadd.f32 %v1077, %v1172
        %v1197 = vadd.f32 %v1078, %v1177
        %v1198 = vadd.f32 %v1079, %v1180
        %v1199 = vadd.f32 %v1080, %v1185
        %v1200 = vadd.f32 %v1081, %v1188
        %v1201 = vld [vmem:[%s316 + $0x8] sm:$0xc]
        %v1202 = vld [vmem:[%s316 + $0xc] sm:$0xf]
        %v1203 = vld [vmem:[%s316 + $0x10] sm:$0xf]
        %v1204 = vld [vmem:[%s316 + $0x14] sm:$0xf]
        %v1205 = vld [vmem:[%s316 + $0x18] sm:$0xf]
        %v1206 = vld [vmem:[%s316 + $0x1c] sm:$0xf]
        %v1207 = vld [vmem:[%s316 + $0x20] sm:$0xf]
        %v1208 = vld [vmem:[%s316 + $0x24] sm:$0xf]
        %v1209 = vld [vmem:[%s316 + $0x28] sm:$0xf]
        %v1210 = vld [vmem:[%s316 + $0x2c] sm:$0xf]
        %v1211 = vld [vmem:[%s316 + $0x30] sm:$0x3]
        %s1212 = scalar_lea.vmem [#allocation8], 12
        %v1213 = vld [vmem:[%s1212] sm:$0x3]
        %v1225 = vunpack.c.l.b16 %v1201
        %v1226 = vunpack.c.l.b16 %v1202
        %v1227 = vunpack.c.l.b16 %v1203
        %v1228 = vunpack.c.l.b16 %v1204
        %v1229 = vunpack.c.l.b16 %v1205
        %v1230 = vunpack.c.l.b16 %v1206
        %v1231 = vunpack.c.l.b16 %v1207
        %v1232 = vunpack.c.l.b16 %v1208
        %v1233 = vunpack.c.l.b16 %v1209
        %v1234 = vunpack.c.l.b16 %v1210
        %v1235 = vunpack.c.l.b16 %v1211
        %v1236 = vpack.c.b16 %v1226, %v1225
        %v1237 = vpack.c.b16 %v1228, %v1227
        %v1238 = vpack.c.b16 %v1230, %v1229
        %v1239 = vpack.c.b16 %v1232, %v1231
        %v1240 = vpack.c.b16 %v1234, %v1233
        %v1241 = vpack.c.b16 %v1235, %v1235
        %v1242 = vrot.slane %v1236, 2
        %v1243 = vrot.slane %v1237, 2
        %v1244 = vsel %vm1088, %v1242, %v1243
        %v1245 = vrot.slane %v1238, 2
        %v1246 = vsel %vm1088, %v1243, %v1245
        %v1247 = vrot.slane %v1239, 2
        %v1248 = vsel %vm1088, %v1245, %v1247
        %v1249 = vrot.slane %v1240, 2
        %v1250 = vsel %vm1088, %v1247, %v1249
        %v1251 = vrot.slane %v1241, 2
        %v1252 = vsel %vm1088, %v1249, %v1251
        %v1254 = vsel %vm470, %v1244, 0
        %v1257 = vsel %vm470, %v1246, 0
        %v1260 = vsel %vm470, %v1248, 0
        %v1263 = vsel %vm470, %v1250, 0
        %v1266 = vsel %vm470, %v1252, 0
        %v1269 = vsel %vm486, %v1213, 0
        %1271 = vmatprep.subr.bf16.mxu0 0
        %1272 = vmatpush1.bf16.msra.mxu0 %v1269
        %1273 = vmatprep.subr.bf16.mxu0 0
        %1274 = vmatpush1.bf16.msra.mxu0 0
        %1275 = vmatprep.subr.bf16.mxu0 0
        %1276 = vmatpush1.bf16.msra.mxu0 0
        %1277 = vmatprep.subr.bf16.mxu0 0
        %1278 = vmatpush1.bf16.msra.mxu0 0
        %1279 = vmatprep.subr.bf16.mxu0 0
        %1280 = vmatpush1.bf16.msra.mxu0 0
        %1281 = vmatprep.subr.bf16.mxu0 0
        %1282 = vmatpush1.bf16.msra.mxu0 0
        %1283 = vmatprep.subr.bf16.mxu0 0
        %1284 = vmatpush1.bf16.msra.mxu0 0
        %1285 = vmatprep.subr.bf16.mxu0 0
        %1286 = vmatpush1.bf16.msra.mxu0 0
        %1287 = vmatprep.subr.bf16.mxu0 0
        %1288 = vmatpush1.bf16.msra.mxu0 0
        %1289 = vmatprep.subr.bf16.mxu0 0
        %1290 = vmatpush1.bf16.msra.mxu0 0
        %1291 = vmatprep.subr.bf16.mxu0 0
        %1292 = vmatpush1.bf16.msra.mxu0 0
        %1293 = vmatprep.subr.bf16.mxu0 0
        %1294 = vmatpush1.bf16.msra.mxu0 0
        %1295 = vmatprep.subr.bf16.mxu0 0
        %1296 = vmatpush1.bf16.msra.mxu0 0
        %1297 = vmatprep.subr.bf16.mxu0 0
        %1298 = vmatpush1.bf16.msra.mxu0 0
        %1299 = vmatprep.subr.bf16.mxu0 0
        %1300 = vmatpush1.bf16.msra.mxu0 0
        %1301 = vmatprep.subr.bf16.mxu0 0
        %1302 = vmatpush1.bf16.msra.mxu0 0
        %1303 = vmatprep.mubr.bf16.mxu0 0
        %1304 = vmatmul.mubr.bf16.gmra.mrb[0].mxu0 %v1254
        %v1305 = vpop.f32.mrb[0].mxu0
        %v1306 = vadd.f32 0.0, %v1305
        %v1307 = vpop.f32.mrb[0].mxu0
        %v1308 = vpop.f32.mrb[0].mxu0
        %v1309 = vadd.f32 0.0, %v1308
        %v1310 = vpop.f32.mrb[0].mxu0
        %1311 = vmatprep.mubr.bf16.mxu0 0
        %1312 = vmatmul.mubr.bf16.gmra.mrb[0].mxu0 %v1257
        %v1313 = vpop.f32.mrb[0].mxu0
        %v1314 = vadd.f32 0.0, %v1313
        %v1315 = vpop.f32.mrb[0].mxu0
        %v1316 = vpop.f32.mrb[0].mxu0
        %v1317 = vadd.f32 0.0, %v1316
        %v1318 = vpop.f32.mrb[0].mxu0
        %1319 = vmatprep.mubr.bf16.mxu0 0
        %1320 = vmatmul.mubr.bf16.gmra.mrb[0].mxu0 %v1260
        %v1321 = vpop.f32.mrb[0].mxu0
        %v1322 = vadd.f32 0.0, %v1321
        %v1323 = vpop.f32.mrb[0].mxu0
        %v1324 = vpop.f32.mrb[0].mxu0
        %v1325 = vadd.f32 0.0, %v1324
        %v1326 = vpop.f32.mrb[0].mxu0
        %1327 = vmatprep.mubr.bf16.mxu0 0
        %1328 = vmatmul.mubr.bf16.gmra.mrb[0].mxu0 %v1263
        %v1329 = vpop.f32.mrb[0].mxu0
        %v1330 = vadd.f32 0.0, %v1329
        %v1331 = vpop.f32.mrb[0].mxu0
        %v1332 = vpop.f32.mrb[0].mxu0
        %v1333 = vadd.f32 0.0, %v1332
        %v1334 = vpop.f32.mrb[0].mxu0
        %1335 = vmatprep.mubr.bf16.mxu0 0
        %1336 = vmatmul.mubr.bf16.gmra.mrb[0].mxu0 %v1266
        %v1337 = vpop.f32.mrb[0].mxu0
        %v1338 = vadd.f32 0.0, %v1337
        %v1339 = vpop.f32.mrb[0].mxu0
        %v1340 = vpop.f32.mrb[0].mxu0
        %v1341 = vadd.f32 0.0, %v1340
        %v1342 = vpop.f32.mrb[0].mxu0
        %1343 = vdwg.mxu0
        %v1344 = vadd.f32 %v1191, %v1306
        %v1345 = vadd.f32 %v1192, %v1309
        %v1346 = vadd.f32 %v1193, %v1314
        %v1347 = vadd.f32 %v1194, %v1317
        %v1348 = vadd.f32 %v1195, %v1322
        %v1349 = vadd.f32 %v1196, %v1325
        %v1350 = vadd.f32 %v1197, %v1330
        %v1351 = vadd.f32 %v1198, %v1333
        %v1352 = vadd.f32 %v1199, %v1338
        %v1353 = vadd.f32 %v1200, %v1341
        %v1354 = vld [vmem:[%s316 + $0x30] sm:$0x7]
        %s1355 = scalar_lea.vmem [#allocation8], 14
        %v1356 = vld [vmem:[%s1355] sm:$0x3]
        %v1358 = vunpack.c.l.b16 %v1354
        %v1359 = vpack.c.b16 %v1358, %v1358
        %vm1360 = vsmask.f32 5376
        %v1362 = vshrl.u32 %v1236, 16
        %v1364 = vrot.slane %v1362, 2
        %v1365 = vshll.u32 %v1236, 16
        %v1367 = vrot.slane %v1365, 3
        %v1368 = vor.u32 %v1364, %v1367
        %v1370 = vshrl.u32 %v1237, 16
        %v1372 = vrot.slane %v1370, 2
        %v1373 = vshll.u32 %v1237, 16
        %v1375 = vrot.slane %v1373, 3
        %v1376 = vor.u32 %v1372, %v1375
        %v1377 = vsel %vm1360, %v1368, %v1376
        %v1379 = vshrl.u32 %v1238, 16
        %v1381 = vrot.slane %v1379, 2
        %v1382 = vshll.u32 %v1238, 16
        %v1384 = vrot.slane %v1382, 3
        %v1385 = vor.u32 %v1381, %v1384
        %v1386 = vsel %vm1360, %v1376, %v1385
        %v1388 = vshrl.u32 %v1239, 16
        %v1390 = vrot.slane %v1388, 2
        %v1391 = vshll.u32 %v1239, 16
        %v1393 = vrot.slane %v1391, 3
        %v1394 = vor.u32 %v1390, %v1393
        %v1395 = vsel %vm1360, %v1385, %v1394
        %v1397 = vshrl.u32 %v1240, 16
        %v1399 = vrot.slane %v1397, 2
        %v1400 = vshll.u32 %v1240, 16
        %v1402 = vrot.slane %v1400, 3
        %v1403 = vor.u32 %v1399, %v1402
        %v1404 = vsel %vm1360, %v1394, %v1403
        %v1406 = vshrl.u32 %v1359, 16
        %v1408 = vrot.slane %v1406, 2
        %v1409 = vshll.u32 %v1359, 16
        %v1411 = vrot.slane %v1409, 3
        %v1412 = vor.u32 %v1408, %v1411
        %v1413 = vsel %vm1360, %v1403, %v1412
        %v1415 = vsel %vm470, %v1377, 0
        %v1418 = vsel %vm470, %v1386, 0
        %v1421 = vsel %vm470, %v1395, 0
        %v1424 = vsel %vm470, %v1404, 0
        %v1427 = vsel %vm470, %v1413, 0
        %v1430 = vsel %vm486, %v1356, 0
        %1432 = vmatprep.subr.bf16.mxu0 0
        %1433 = vmatpush1.bf16.msra.mxu0 %v1430
        %1434 = vmatprep.subr.bf16.mxu0 0
        %1435 = vmatpush1.bf16.msra.mxu0 0
        %1436 = vmatprep.subr.bf16.mxu0 0
        %1437 = vmatpush1.bf16.msra.mxu0 0
        %1438 = vmatprep.subr.bf16.mxu0 0
        %1439 = vmatpush1.bf16.msra.mxu0 0
        %1440 = vmatprep.subr.bf16.mxu0 0
        %1441 = vmatpush1.bf16.msra.mxu0 0
        %1442 = vmatprep.subr.bf16.mxu0 0
        %1443 = vmatpush1.bf16.msra.mxu0 0
        %1444 = vmatprep.subr.bf16.mxu0 0
        %1445 = vmatpush1.bf16.msra.mxu0 0
        %1446 = vmatprep.subr.bf16.mxu0 0
        %1447 = vmatpush1.bf16.msra.mxu0 0
        %1448 = vmatprep.subr.bf16.mxu0 0
        %1449 = vmatpush1.bf16.msra.mxu0 0
        %1450 = vmatprep.subr.bf16.mxu0 0
        %1451 = vmatpush1.bf16.msra.mxu0 0
        %1452 = vmatprep.subr.bf16.mxu0 0
        %1453 = vmatpush1.bf16.msra.mxu0 0
        %1454 = vmatprep.subr.bf16.mxu0 0
        %1455 = vmatpush1.bf16.msra.mxu0 0
        %1456 = vmatprep.subr.bf16.mxu0 0
        %1457 = vmatpush1.bf16.msra.mxu0 0
        %1458 = vmatprep.subr.bf16.mxu0 0
        %1459 = vmatpush1.bf16.msra.mxu0 0
        %1460 = vmatprep.subr.bf16.mxu0 0
        %1461 = vmatpush1.bf16.msra.mxu0 0
        %1462 = vmatprep.subr.bf16.mxu0 0
        %1463 = vmatpush1.bf16.msra.mxu0 0
        %1464 = vmatprep.mubr.bf16.mxu0 0
        %1465 = vmatmul.mubr.bf16.gmra.mrb[0].mxu0 %v1415
        %v1466 = vpop.f32.mrb[0].mxu0
        %v1467 = vadd.f32 0.0, %v1466
        %v1468 = vpop.f32.mrb[0].mxu0
        %v1469 = vpop.f32.mrb[0].mxu0
        %v1470 = vadd.f32 0.0, %v1469
        %v1471 = vpop.f32.mrb[0].mxu0
        %1472 = vmatprep.mubr.bf16.mxu0 0
        %1473 = vmatmul.mubr.bf16.gmra.mrb[0].mxu0 %v1418
        %v1474 = vpop.f32.mrb[0].mxu0
        %v1475 = vadd.f32 0.0, %v1474
        %v1476 = vpop.f32.mrb[0].mxu0
        %v1477 = vpop.f32.mrb[0].mxu0
        %v1478 = vadd.f32 0.0, %v1477
        %v1479 = vpop.f32.mrb[0].mxu0
        %1480 = vmatprep.mubr.bf16.mxu0 0
        %1481 = vmatmul.mubr.bf16.gmra.mrb[0].mxu0 %v1421
        %v1482 = vpop.f32.mrb[0].mxu0
        %v1483 = vadd.f32 0.0, %v1482
        %v1484 = vpop.f32.mrb[0].mxu0
        %v1485 = vpop.f32.mrb[0].mxu0
        %v1486 = vadd.f32 0.0, %v1485
        %v1487 = vpop.f32.mrb[0].mxu0
        %1488 = vmatprep.mubr.bf16.mxu0 0
        %1489 = vmatmul.mubr.bf16.gmra.mrb[0].mxu0 %v1424
        %v1490 = vpop.f32.mrb[0].mxu0
        %v1491 = vadd.f32 0.0, %v1490
        %v1492 = vpop.f32.mrb[0].mxu0
        %v1493 = vpop.f32.mrb[0].mxu0
        %v1494 = vadd.f32 0.0, %v1493
        %v1495 = vpop.f32.mrb[0].mxu0
        %1496 = vmatprep.mubr.bf16.mxu0 0
        %1497 = vmatmul.mubr.bf16.gmra.mrb[0].mxu0 %v1427
        %v1498 = vpop.f32.mrb[0].mxu0
        %v1499 = vadd.f32 0.0, %v1498
        %v1500 = vpop.f32.mrb[0].mxu0
        %v1501 = vpop.f32.mrb[0].mxu0
        %v1502 = vadd.f32 0.0, %v1501
        %v1503 = vpop.f32.mrb[0].mxu0
        %1504 = vdwg.mxu0
        %v1505 = vadd.f32 %v1344, %v1467
        %v1506 = vadd.f32 %v1345, %v1470
        %v1507 = vadd.f32 %v1346, %v1475
        %v1508 = vadd.f32 %v1347, %v1478
        %v1509 = vadd.f32 %v1348, %v1483
        %v1510 = vadd.f32 %v1349, %v1486
        %v1511 = vadd.f32 %v1350, %v1491
        %v1512 = vadd.f32 %v1351, %v1494
        %v1513 = vadd.f32 %v1352, %v1499
        %v1514 = vadd.f32 %v1353, %v1502
        %v1515 = vld [vmem:[%s316 + $0x8] sm:$0x8]
        %s1516 = scalar_lea.vmem [#allocation8], 16
        %v1517 = vld [vmem:[%s1516] sm:$0x3]
        %v1519 = vunpack.c.l.b16 %v1515
        %v1520 = vpack.c.b16 %v1226, %v1519
        %vm1521 = vcmask 1044480
        %v1522 = vrot.slane %v1520, 3
        %v1523 = vrot.slane %v1237, 3
        %v1524 = vsel %vm1521, %v1522, %v1523
        %v1525 = vrot.slane %v1238, 3
        %v1526 = vsel %vm1521, %v1523, %v1525
        %v1527 = vrot.slane %v1239, 3
        %v1528 = vsel %vm1521, %v1525, %v1527
        %v1529 = vrot.slane %v1240, 3
        %v1530 = vsel %vm1521, %v1527, %v1529
        %v1531 = vrot.slane %v1359, 3
        %v1532 = vsel %vm1521, %v1529, %v1531
        %v1534 = vsel %vm470, %v1524, 0
        %v1537 = vsel %vm470, %v1526, 0
        %v1540 = vsel %vm470, %v1528, 0
        %v1543 = vsel %vm470, %v1530, 0
        %v1546 = vsel %vm470, %v1532, 0
        %v1549 = vsel %vm486, %v1517, 0
        %1551 = vmatprep.subr.bf16.mxu0 0
        %1552 = vmatpush1.bf16.msra.mxu0 %v1549
        %1553 = vmatprep.subr.bf16.mxu0 0
        %1554 = vmatpush1.bf16.msra.mxu0 0
        %1555 = vmatprep.subr.bf16.mxu0 0
        %1556 = vmatpush1.bf16.msra.mxu0 0
        %1557 = vmatprep.subr.bf16.mxu0 0
        %1558 = vmatpush1.bf16.msra.mxu0 0
        %1559 = vmatprep.subr.bf16.mxu0 0
        %1560 = vmatpush1.bf16.msra.mxu0 0
        %1561 = vmatprep.subr.bf16.mxu0 0
        %1562 = vmatpush1.bf16.msra.mxu0 0
        %1563 = vmatprep.subr.bf16.mxu0 0
        %1564 = vmatpush1.bf16.msra.mxu0 0
        %1565 = vmatprep.subr.bf16.mxu0 0
        %1566 = vmatpush1.bf16.msra.mxu0 0
        %1567 = vmatprep.subr.bf16.mxu0 0
        %1568 = vmatpush1.bf16.msra.mxu0 0
        %1569 = vmatprep.subr.bf16.mxu0 0
        %1570 = vmatpush1.bf16.msra.mxu0 0
        %1571 = vmatprep.subr.bf16.mxu0 0
        %1572 = vmatpush1.bf16.msra.mxu0 0
        %1573 = vmatprep.subr.bf16.mxu0 0
        %1574 = vmatpush1.bf16.msra.mxu0 0
        %1575 = vmatprep.subr.bf16.mxu0 0
        %1576 = vmatpush1.bf16.msra.mxu0 0
        %1577 = vmatprep.subr.bf16.mxu0 0
        %1578 = vmatpush1.bf16.msra.mxu0 0
        %1579 = vmatprep.subr.bf16.mxu0 0
        %1580 = vmatpush1.bf16.msra.mxu0 0
        %1581 = vmatprep.subr.bf16.mxu0 0
        %1582 = vmatpush1.bf16.msra.mxu0 0
        %1583 = vmatprep.mubr.bf16.mxu0 0
        %1584 = vmatmul.mubr.bf16.gmra.mrb[0].mxu0 %v1534
        %v1585 = vpop.f32.mrb[0].mxu0
        %v1586 = vadd.f32 0.0, %v1585
        %v1587 = vpop.f32.mrb[0].mxu0
        %v1588 = vpop.f32.mrb[0].mxu0
        %v1589 = vadd.f32 0.0, %v1588
        %v1590 = vpop.f32.mrb[0].mxu0
        %1591 = vmatprep.mubr.bf16.mxu0 0
        %1592 = vmatmul.mubr.bf16.gmra.mrb[0].mxu0 %v1537
        %v1593 = vpop.f32.mrb[0].mxu0
        %v1594 = vadd.f32 0.0, %v1593
        %v1595 = vpop.f32.mrb[0].mxu0
        %v1596 = vpop.f32.mrb[0].mxu0
        %v1597 = vadd.f32 0.0, %v1596
        %v1598 = vpop.f32.mrb[0].mxu0
        %1599 = vmatprep.mubr.bf16.mxu0 0
        %1600 = vmatmul.mubr.bf16.gmra.mrb[0].mxu0 %v1540
        %v1601 = vpop.f32.mrb[0].mxu0
        %v1602 = vadd.f32 0.0, %v1601
        %v1603 = vpop.f32.mrb[0].mxu0
        %v1604 = vpop.f32.mrb[0].mxu0
        %v1605 = vadd.f32 0.0, %v1604
        %v1606 = vpop.f32.mrb[0].mxu0
        %1607 = vmatprep.mubr.bf16.mxu0 0
        %1608 = vmatmul.mubr.bf16.gmra.mrb[0].mxu0 %v1543
        %v1609 = vpop.f32.mrb[0].mxu0
        %v1610 = vadd.f32 0.0, %v1609
        %v1611 = vpop.f32.mrb[0].mxu0
        %v1612 = vpop.f32.mrb[0].mxu0
        %v1613 = vadd.f32 0.0, %v1612
        %v1614 = vpop.f32.mrb[0].mxu0
        %1615 = vmatprep.mubr.bf16.mxu0 0
        %1616 = vmatmul.mubr.bf16.gmra.mrb[0].mxu0 %v1546
        %v1617 = vpop.f32.mrb[0].mxu0
        %v1618 = vadd.f32 0.0, %v1617
        %v1619 = vpop.f32.mrb[0].mxu0
        %v1620 = vpop.f32.mrb[0].mxu0
        %v1621 = vadd.f32 0.0, %v1620
        %v1622 = vpop.f32.mrb[0].mxu0
        %1623 = vdwg.mxu0
        %v1624 = vadd.f32 %v1505, %v1586
        %v1625 = vadd.f32 %v1506, %v1589
        %v1626 = vadd.f32 %v1507, %v1594
        %v1627 = vadd.f32 %v1508, %v1597
        %v1628 = vadd.f32 %v1509, %v1602
        %v1629 = vadd.f32 %v1510, %v1605
        %v1630 = vadd.f32 %v1511, %v1610
        %v1631 = vadd.f32 %v1512, %v1613
        %v1632 = vadd.f32 %v1513, %v1618
        %v1633 = vadd.f32 %v1514, %v1621
        %v1634 = vld [vmem:[%s325] sm:$0xf]
        %v1635 = vld [vmem:[%s325 + $0x4] sm:$0xf]
        %v1636 = vld [vmem:[%s325 + $0x8] sm:$0xf]
        %v1637 = vld [vmem:[%s325 + $0xc] sm:$0xf]
        %v1638 = vld [vmem:[%s325 + $0x10] sm:$0xf]
        %v1639 = vld [vmem:[%s325 + $0x14] sm:$0xf]
        %v1640 = vld [vmem:[%s325 + $0x18] sm:$0xf]
        %v1641 = vld [vmem:[%s325 + $0x1c] sm:$0xf]
        %v1642 = vld [vmem:[%s325 + $0x20] sm:$0xf]
        %v1643 = vld [vmem:[%s325 + $0x24] sm:$0xf]
        %s1644 = scalar_lea.vmem [#allocation8], 18
        %v1645 = vld [vmem:[%s1644] sm:$0x3]
        %v1656 = vunpack.c.l.b16 %v1634
        %v1657 = vunpack.c.l.b16 %v1635
        %v1658 = vunpack.c.l.b16 %v1636
        %v1659 = vunpack.c.l.b16 %v1637
        %v1660 = vunpack.c.l.b16 %v1638
        %v1661 = vunpack.c.l.b16 %v1639
        %v1662 = vunpack.c.l.b16 %v1640
        %v1663 = vunpack.c.l.b16 %v1641
        %v1664 = vunpack.c.l.b16 %v1642
        %v1665 = vunpack.c.l.b16 %v1643
        %v1666 = vpack.c.b16 %v1657, %v1656
        %v1667 = vpack.c.b16 %v1659, %v1658
        %v1668 = vpack.c.b16 %v1661, %v1660
        %v1669 = vpack.c.b16 %v1663, %v1662
        %v1670 = vpack.c.b16 %v1665, %v1664
        %v1672 = vsel %vm470, %v1666, 0
        %v1675 = vsel %vm470, %v1667, 0
        %v1678 = vsel %vm470, %v1668, 0
        %v1681 = vsel %vm470, %v1669, 0
        %v1684 = vsel %vm470, %v1670, 0
        %v1687 = vsel %vm486, %v1645, 0
        %1689 = vmatprep.subr.bf16.mxu0 0
        %1690 = vmatpush1.bf16.msra.mxu0 %v1687
        %1691 = vmatprep.subr.bf16.mxu0 0
        %1692 = vmatpush1.bf16.msra.mxu0 0
        %1693 = vmatprep.subr.bf16.mxu0 0
        %1694 = vmatpush1.bf16.msra.mxu0 0
        %1695 = vmatprep.subr.bf16.mxu0 0
        %1696 = vmatpush1.bf16.msra.mxu0 0
        %1697 = vmatprep.subr.bf16.mxu0 0
        %1698 = vmatpush1.bf16.msra.mxu0 0
        %1699 = vmatprep.subr.bf16.mxu0 0
        %1700 = vmatpush1.bf16.msra.mxu0 0
        %1701 = vmatprep.subr.bf16.mxu0 0
        %1702 = vmatpush1.bf16.msra.mxu0 0
        %1703 = vmatprep.subr.bf16.mxu0 0
        %1704 = vmatpush1.bf16.msra.mxu0 0
        %1705 = vmatprep.subr.bf16.mxu0 0
        %1706 = vmatpush1.bf16.msra.mxu0 0
        %1707 = vmatprep.subr.bf16.mxu0 0
        %1708 = vmatpush1.bf16.msra.mxu0 0
        %1709 = vmatprep.subr.bf16.mxu0 0
        %1710 = vmatpush1.bf16.msra.mxu0 0
        %1711 = vmatprep.subr.bf16.mxu0 0
        %1712 = vmatpush1.bf16.msra.mxu0 0
        %1713 = vmatprep.subr.bf16.mxu0 0
        %1714 = vmatpush1.bf16.msra.mxu0 0
        %1715 = vmatprep.subr.bf16.mxu0 0
        %1716 = vmatpush1.bf16.msra.mxu0 0
        %1717 = vmatprep.subr.bf16.mxu0 0
        %1718 = vmatpush1.bf16.msra.mxu0 0
        %1719 = vmatprep.subr.bf16.mxu0 0
        %1720 = vmatpush1.bf16.msra.mxu0 0
        %1721 = vmatprep.mubr.bf16.mxu0 0
        %1722 = vmatmul.mubr.bf16.gmra.mrb[0].mxu0 %v1672
        %v1723 = vpop.f32.mrb[0].mxu0
        %v1724 = vadd.f32 0.0, %v1723
        %v1725 = vpop.f32.mrb[0].mxu0
        %v1726 = vpop.f32.mrb[0].mxu0
        %v1727 = vadd.f32 0.0, %v1726
        %v1728 = vpop.f32.mrb[0].mxu0
        %1729 = vmatprep.mubr.bf16.mxu0 0
        %1730 = vmatmul.mubr.bf16.gmra.mrb[0].mxu0 %v1675
        %v1731 = vpop.f32.mrb[0].mxu0
        %v1732 = vadd.f32 0.0, %v1731
        %v1733 = vpop.f32.mrb[0].mxu0
        %v1734 = vpop.f32.mrb[0].mxu0
        %v1735 = vadd.f32 0.0, %v1734
        %v1736 = vpop.f32.mrb[0].mxu0
        %1737 = vmatprep.mubr.bf16.mxu0 0
        %1738 = vmatmul.mubr.bf16.gmra.mrb[0].mxu0 %v1678
        %v1739 = vpop.f32.mrb[0].mxu0
        %v1740 = vadd.f32 0.0, %v1739
        %v1741 = vpop.f32.mrb[0].mxu0
        %v1742 = vpop.f32.mrb[0].mxu0
        %v1743 = vadd.f32 0.0, %v1742
        %v1744 = vpop.f32.mrb[0].mxu0
        %1745 = vmatprep.mubr.bf16.mxu0 0
        %1746 = vmatmul.mubr.bf16.gmra.mrb[0].mxu0 %v1681
        %v1747 = vpop.f32.mrb[0].mxu0
        %v1748 = vadd.f32 0.0, %v1747
        %v1749 = vpop.f32.mrb[0].mxu0
        %v1750 = vpop.f32.mrb[0].mxu0
        %v1751 = vadd.f32 0.0, %v1750
        %v1752 = vpop.f32.mrb[0].mxu0
        %1753 = vmatprep.mubr.bf16.mxu0 0
        %1754 = vmatmul.mubr.bf16.gmra.mrb[0].mxu0 %v1684
        %v1755 = vpop.f32.mrb[0].mxu0
        %v1756 = vadd.f32 0.0, %v1755
        %v1757 = vpop.f32.mrb[0].mxu0
        %v1758 = vpop.f32.mrb[0].mxu0
        %v1759 = vadd.f32 0.0, %v1758
        %v1760 = vpop.f32.mrb[0].mxu0
        %1761 = vdwg.mxu0
        %v1762 = vadd.f32 %v1624, %v1724
        %v1763 = vadd.f32 %v1625, %v1727
        %v1764 = vadd.f32 %v1626, %v1732
        %v1765 = vadd.f32 %v1627, %v1735
        %v1766 = vadd.f32 %v1628, %v1740
        %v1767 = vadd.f32 %v1629, %v1743
        %v1768 = vadd.f32 %v1630, %v1748
        %v1769 = vadd.f32 %v1631, %v1751
        %v1770 = vadd.f32 %v1632, %v1756
        %v1771 = vadd.f32 %v1633, %v1759
        %v1772 = vld [vmem:[%s325] sm:$0xf]
        %v1773 = vld [vmem:[%s325 + $0x4] sm:$0xf]
        %v1774 = vld [vmem:[%s325 + $0x8] sm:$0xf]
        %v1775 = vld [vmem:[%s325 + $0xc] sm:$0xf]
        %v1776 = vld [vmem:[%s325 + $0x10] sm:$0xf]
        %v1777 = vld [vmem:[%s325 + $0x14] sm:$0xf]
        %v1778 = vld [vmem:[%s325 + $0x18] sm:$0xf]
        %v1779 = vld [vmem:[%s325 + $0x1c] sm:$0xf]
        %v1780 = vld [vmem:[%s325 + $0x20] sm:$0xf]
        %v1781 = vld [vmem:[%s325 + $0x24] sm:$0xf]
        %v1782 = vld [vmem:[%s325 + $0x28] sm:$0x1]
        %s1783 = scalar_lea.vmem [#allocation8], 20
        %v1784 = vld [vmem:[%s1783] sm:$0x3]
        %v1796 = vunpack.c.l.b16 %v1772
        %v1797 = vunpack.c.l.b16 %v1773
        %v1798 = vunpack.c.l.b16 %v1774
        %v1799 = vunpack.c.l.b16 %v1775
        %v1800 = vunpack.c.l.b16 %v1776
        %v1801 = vunpack.c.l.b16 %v1777
        %v1802 = vunpack.c.l.b16 %v1778
        %v1803 = vunpack.c.l.b16 %v1779
        %v1804 = vunpack.c.l.b16 %v1780
        %v1805 = vunpack.c.l.b16 %v1781
        %v1806 = vunpack.c.l.b16 %v1782
        %v1807 = vpack.c.b16 %v1797, %v1796
        %v1808 = vpack.c.b16 %v1799, %v1798
        %v1809 = vpack.c.b16 %v1801, %v1800
        %v1810 = vpack.c.b16 %v1803, %v1802
        %v1811 = vpack.c.b16 %v1805, %v1804
        %v1812 = vpack.c.b16 %v1806, %v1806
        %v1814 = vshrl.u32 %v1807, 16
        %v1816 = vshll.u32 %v1807, 16
        %v1818 = vrot.slane %v1816, 1
        %v1819 = vor.u32 %v1814, %v1818
        %v1821 = vshll.u32 %v1808, 16
        %v1823 = vrot.slane %v1821, 1
        %v1824 = vsel %vm425, %v1819, %v1823
        %v1825 = vshrl.u32 %v1808, 16
        %v1827 = vor.u32 %v1825, %v1823
        %v1829 = vshll.u32 %v1809, 16
        %v1831 = vrot.slane %v1829, 1
        %v1832 = vsel %vm425, %v1827, %v1831
        %v1833 = vshrl.u32 %v1809, 16
        %v1835 = vor.u32 %v1833, %v1831
        %v1837 = vshll.u32 %v1810, 16
        %v1839 = vrot.slane %v1837, 1
        %v1840 = vsel %vm425, %v1835, %v1839
        %v1841 = vshrl.u32 %v1810, 16
        %v1843 = vor.u32 %v1841, %v1839
        %v1845 = vshll.u32 %v1811, 16
        %v1847 = vrot.slane %v1845, 1
        %v1848 = vsel %vm425, %v1843, %v1847
        %v1849 = vshrl.u32 %v1811, 16
        %v1851 = vor.u32 %v1849, %v1847
        %v1853 = vshll.u32 %v1812, 16
        %v1855 = vrot.slane %v1853, 1
        %v1856 = vsel %vm425, %v1851, %v1855
        %v1858 = vsel %vm470, %v1824, 0
        %v1861 = vsel %vm470, %v1832, 0
        %v1864 = vsel %vm470, %v1840, 0
        %v1867 = vsel %vm470, %v1848, 0
        %v1870 = vsel %vm470, %v1856, 0
        %v1873 = vsel %vm486, %v1784, 0
        %1875 = vmatprep.subr.bf16.mxu0 0
        %1876 = vmatpush1.bf16.msra.mxu0 %v1873
        %1877 = vmatprep.subr.bf16.mxu0 0
        %1878 = vmatpush1.bf16.msra.mxu0 0
        %1879 = vmatprep.subr.bf16.mxu0 0
        %1880 = vmatpush1.bf16.msra.mxu0 0
        %1881 = vmatprep.subr.bf16.mxu0 0
        %1882 = vmatpush1.bf16.msra.mxu0 0
        %1883 = vmatprep.subr.bf16.mxu0 0
        %1884 = vmatpush1.bf16.msra.mxu0 0
        %1885 = vmatprep.subr.bf16.mxu0 0
        %1886 = vmatpush1.bf16.msra.mxu0 0
        %1887 = vmatprep.subr.bf16.mxu0 0
        %1888 = vmatpush1.bf16.msra.mxu0 0
        %1889 = vmatprep.subr.bf16.mxu0 0
        %1890 = vmatpush1.bf16.msra.mxu0 0
        %1891 = vmatprep.subr.bf16.mxu0 0
        %1892 = vmatpush1.bf16.msra.mxu0 0
        %1893 = vmatprep.subr.bf16.mxu0 0
        %1894 = vmatpush1.bf16.msra.mxu0 0
        %1895 = vmatprep.subr.bf16.mxu0 0
        %1896 = vmatpush1.bf16.msra.mxu0 0
        %1897 = vmatprep.subr.bf16.mxu0 0
        %1898 = vmatpush1.bf16.msra.mxu0 0
        %1899 = vmatprep.subr.bf16.mxu0 0
        %1900 = vmatpush1.bf16.msra.mxu0 0
        %1901 = vmatprep.subr.bf16.mxu0 0
        %1902 = vmatpush1.bf16.msra.mxu0 0
        %1903 = vmatprep.subr.bf16.mxu0 0
        %1904 = vmatpush1.bf16.msra.mxu0 0
        %1905 = vmatprep.subr.bf16.mxu0 0
        %1906 = vmatpush1.bf16.msra.mxu0 0
        %1907 = vmatprep.mubr.bf16.mxu0 0
        %1908 = vmatmul.mubr.bf16.gmra.mrb[0].mxu0 %v1858
        %v1909 = vpop.f32.mrb[0].mxu0
        %v1910 = vadd.f32 0.0, %v1909
        %v1911 = vpop.f32.mrb[0].mxu0
        %v1912 = vpop.f32.mrb[0].mxu0
        %v1913 = vadd.f32 0.0, %v1912
        %v1914 = vpop.f32.mrb[0].mxu0
        %1915 = vmatprep.mubr.bf16.mxu0 0
        %1916 = vmatmul.mubr.bf16.gmra.mrb[0].mxu0 %v1861
        %v1917 = vpop.f32.mrb[0].mxu0
        %v1918 = vadd.f32 0.0, %v1917
        %v1919 = vpop.f32.mrb[0].mxu0
        %v1920 = vpop.f32.mrb[0].mxu0
        %v1921 = vadd.f32 0.0, %v1920
        %v1922 = vpop.f32.mrb[0].mxu0
        %1923 = vmatprep.mubr.bf16.mxu0 0
        %1924 = vmatmul.mubr.bf16.gmra.mrb[0].mxu0 %v1864
        %v1925 = vpop.f32.mrb[0].mxu0
        %v1926 = vadd.f32 0.0, %v1925
        %v1927 = vpop.f32.mrb[0].mxu0
        %v1928 = vpop.f32.mrb[0].mxu0
        %v1929 = vadd.f32 0.0, %v1928
        %v1930 = vpop.f32.mrb[0].mxu0
        %1931 = vmatprep.mubr.bf16.mxu0 0
        %1932 = vmatmul.mubr.bf16.gmra.mrb[0].mxu0 %v1867
        %v1933 = vpop.f32.mrb[0].mxu0
        %v1934 = vadd.f32 0.0, %v1933
        %v1935 = vpop.f32.mrb[0].mxu0
        %v1936 = vpop.f32.mrb[0].mxu0
        %v1937 = vadd.f32 0.0, %v1936
        %v1938 = vpop.f32.mrb[0].mxu0
        %1939 = vmatprep.mubr.bf16.mxu0 0
        %1940 = vmatmul.mubr.bf16.gmra.mrb[0].mxu0 %v1870
        %v1941 = vpop.f32.mrb[0].mxu0
        %v1942 = vadd.f32 0.0, %v1941
        %v1943 = vpop.f32.mrb[0].mxu0
        %v1944 = vpop.f32.mrb[0].mxu0
        %v1945 = vadd.f32 0.0, %v1944
        %v1946 = vpop.f32.mrb[0].mxu0
        %1947 = vdwg.mxu0
        %v1948 = vadd.f32 %v1762, %v1910
        %v1949 = vadd.f32 %v1763, %v1913
        %v1950 = vadd.f32 %v1764, %v1918
        %v1951 = vadd.f32 %v1765, %v1921
        %v1952 = vadd.f32 %v1766, %v1926
        %v1953 = vadd.f32 %v1767, %v1929
        %v1954 = vadd.f32 %v1768, %v1934
        %v1955 = vadd.f32 %v1769, %v1937
        %v1956 = vadd.f32 %v1770, %v1942
        %v1957 = vadd.f32 %v1771, %v1945
        %v1958 = vld [vmem:[%s325] sm:$0xe]
        %s1959 = scalar_lea.vmem [#allocation8], 22
        %v1960 = vld [vmem:[%s1959] sm:$0x3]
        %v1962 = vunpack.c.l.b16 %v1958
        %v1963 = vpack.c.b16 %v1797, %v1962
        %v1964 = vrot.slane %v1963, 1
        %v1965 = vrot.slane %v1808, 1
        %v1966 = vsel %vm655, %v1964, %v1965
        %v1967 = vrot.slane %v1809, 1
        %v1968 = vsel %vm655, %v1965, %v1967
        %v1969 = vrot.slane %v1810, 1
        %v1970 = vsel %vm655, %v1967, %v1969
        %v1971 = vrot.slane %v1811, 1
        %v1972 = vsel %vm655, %v1969, %v1971
        %v1973 = vrot.slane %v1812, 1
        %v1974 = vsel %vm655, %v1971, %v1973
        %v1976 = vsel %vm470, %v1966, 0
        %v1979 = vsel %vm470, %v1968, 0
        %v1982 = vsel %vm470, %v1970, 0
        %v1985 = vsel %vm470, %v1972, 0
        %v1988 = vsel %vm470, %v1974, 0
        %v1991 = vsel %vm486, %v1960, 0
        %1993 = vmatprep.subr.bf16.mxu0 0
        %1994 = vmatpush1.bf16.msra.mxu0 %v1991
        %1995 = vmatprep.subr.bf16.mxu0 0
        %1996 = vmatpush1.bf16.msra.mxu0 0
        %1997 = vmatprep.subr.bf16.mxu0 0
        %1998 = vmatpush1.bf16.msra.mxu0 0
        %1999 = vmatprep.subr.bf16.mxu0 0
        %2000 = vmatpush1.bf16.msra.mxu0 0
        %2001 = vmatprep.subr.bf16.mxu0 0
        %2002 = vmatpush1.bf16.msra.mxu0 0
        %2003 = vmatprep.subr.bf16.mxu0 0
        %2004 = vmatpush1.bf16.msra.mxu0 0
        %2005 = vmatprep.subr.bf16.mxu0 0
        %2006 = vmatpush1.bf16.msra.mxu0 0
        %2007 = vmatprep.subr.bf16.mxu0 0
        %2008 = vmatpush1.bf16.msra.mxu0 0
        %2009 = vmatprep.subr.bf16.mxu0 0
        %2010 = vmatpush1.bf16.msra.mxu0 0
        %2011 = vmatprep.subr.bf16.mxu0 0
        %2012 = vmatpush1.bf16.msra.mxu0 0
        %2013 = vmatprep.subr.bf16.mxu0 0
        %2014 = vmatpush1.bf16.msra.mxu0 0
        %2015 = vmatprep.subr.bf16.mxu0 0
        %2016 = vmatpush1.bf16.msra.mxu0 0
        %2017 = vmatprep.subr.bf16.mxu0 0
        %2018 = vmatpush1.bf16.msra.mxu0 0
        %2019 = vmatprep.subr.bf16.mxu0 0
        %2020 = vmatpush1.bf16.msra.mxu0 0
        %2021 = vmatprep.subr.bf16.mxu0 0
        %2022 = vmatpush1.bf16.msra.mxu0 0
        %2023 = vmatprep.subr.bf16.mxu0 0
        %2024 = vmatpush1.bf16.msra.mxu0 0
        %2025 = vmatprep.mubr.bf16.mxu0 0
        %2026 = vmatmul.mubr.bf16.gmra.mrb[0].mxu0 %v1976
        %v2027 = vpop.f32.mrb[0].mxu0
        %v2028 = vadd.f32 0.0, %v2027
        %v2029 = vpop.f32.mrb[0].mxu0
        %v2030 = vpop.f32.mrb[0].mxu0
        %v2031 = vadd.f32 0.0, %v2030
        %v2032 = vpop.f32.mrb[0].mxu0
        %2033 = vmatprep.mubr.bf16.mxu0 0
        %2034 = vmatmul.mubr.bf16.gmra.mrb[0].mxu0 %v1979
        %v2035 = vpop.f32.mrb[0].mxu0
        %v2036 = vadd.f32 0.0, %v2035
        %v2037 = vpop.f32.mrb[0].mxu0
        %v2038 = vpop.f32.mrb[0].mxu0
        %v2039 = vadd.f32 0.0, %v2038
        %v2040 = vpop.f32.mrb[0].mxu0
        %2041 = vmatprep.mubr.bf16.mxu0 0
        %2042 = vmatmul.mubr.bf16.gmra.mrb[0].mxu0 %v1982
        %v2043 = vpop.f32.mrb[0].mxu0
        %v2044 = vadd.f32 0.0, %v2043
        %v2045 = vpop.f32.mrb[0].mxu0
        %v2046 = vpop.f32.mrb[0].mxu0
        %v2047 = vadd.f32 0.0, %v2046
        %v2048 = vpop.f32.mrb[0].mxu0
        %2049 = vmatprep.mubr.bf16.mxu0 0
        %2050 = vmatmul.mubr.bf16.gmra.mrb[0].mxu0 %v1985
        %v2051 = vpop.f32.mrb[0].mxu0
        %v2052 = vadd.f32 0.0, %v2051
        %v2053 = vpop.f32.mrb[0].mxu0
        %v2054 = vpop.f32.mrb[0].mxu0
        %v2055 = vadd.f32 0.0, %v2054
        %v2056 = vpop.f32.mrb[0].mxu0
        %2057 = vmatprep.mubr.bf16.mxu0 0
        %2058 = vmatmul.mubr.bf16.gmra.mrb[0].mxu0 %v1988
        %v2059 = vpop.f32.mrb[0].mxu0
        %v2060 = vadd.f32 0.0, %v2059
        %v2061 = vpop.f32.mrb[0].mxu0
        %v2062 = vpop.f32.mrb[0].mxu0
        %v2063 = vadd.f32 0.0, %v2062
        %v2064 = vpop.f32.mrb[0].mxu0
        %2065 = vdwg.mxu0
        %v2066 = vadd.f32 %v1948, %v2028
        %v2067 = vadd.f32 %v1949, %v2031
        %v2068 = vadd.f32 %v1950, %v2036
        %v2069 = vadd.f32 %v1951, %v2039
        %v2070 = vadd.f32 %v1952, %v2044
        %v2071 = vadd.f32 %v1953, %v2047
        %v2072 = vadd.f32 %v1954, %v2052
        %v2073 = vadd.f32 %v1955, %v2055
        %v2074 = vadd.f32 %v1956, %v2060
        %v2075 = vadd.f32 %v1957, %v2063
        %v2076 = vld [vmem:[%s325 + $0x4] sm:$0xe]
        %v2077 = vld [vmem:[%s325 + $0x8] sm:$0xf]
        %v2078 = vld [vmem:[%s325 + $0xc] sm:$0xf]
        %v2079 = vld [vmem:[%s325 + $0x10] sm:$0xf]
        %v2080 = vld [vmem:[%s325 + $0x14] sm:$0xf]
        %v2081 = vld [vmem:[%s325 + $0x18] sm:$0xf]
        %v2082 = vld [vmem:[%s325 + $0x1c] sm:$0xf]
        %v2083 = vld [vmem:[%s325 + $0x20] sm:$0xf]
        %v2084 = vld [vmem:[%s325 + $0x24] sm:$0xf]
        %v2085 = vld [vmem:[%s325 + $0x28] sm:$0xf]
        %v2086 = vld [vmem:[%s325 + $0x2c] sm:$0x1]
        %s2087 = scalar_lea.vmem [#allocation8], 24
        %v2088 = vld [vmem:[%s2087] sm:$0x3]
        %v2100 = vunpack.c.l.b16 %v2076
        %v2101 = vunpack.c.l.b16 %v2077
        %v2102 = vunpack.c.l.b16 %v2078
        %v2103 = vunpack.c.l.b16 %v2079
        %v2104 = vunpack.c.l.b16 %v2080
        %v2105 = vunpack.c.l.b16 %v2081
        %v2106 = vunpack.c.l.b16 %v2082
        %v2107 = vunpack.c.l.b16 %v2083
        %v2108 = vunpack.c.l.b16 %v2084
        %v2109 = vunpack.c.l.b16 %v2085
        %v2110 = vunpack.c.l.b16 %v2086
        %v2111 = vpack.c.b16 %v2101, %v2100
        %v2112 = vpack.c.b16 %v2103, %v2102
        %v2113 = vpack.c.b16 %v2105, %v2104
        %v2114 = vpack.c.b16 %v2107, %v2106
        %v2115 = vpack.c.b16 %v2109, %v2108
        %v2116 = vpack.c.b16 %v2110, %v2110
        %v2117 = vrot.slane %v2111, 1
        %v2118 = vrot.slane %v2112, 1
        %v2119 = vsel %vm655, %v2117, %v2118
        %v2120 = vrot.slane %v2113, 1
        %v2121 = vsel %vm655, %v2118, %v2120
        %v2122 = vrot.slane %v2114, 1
        %v2123 = vsel %vm655, %v2120, %v2122
        %v2124 = vrot.slane %v2115, 1
        %v2125 = vsel %vm655, %v2122, %v2124
        %v2126 = vrot.slane %v2116, 1
        %v2127 = vsel %vm655, %v2124, %v2126
        %v2129 = vsel %vm470, %v2119, 0
        %v2132 = vsel %vm470, %v2121, 0
        %v2135 = vsel %vm470, %v2123, 0
        %v2138 = vsel %vm470, %v2125, 0
        %v2141 = vsel %vm470, %v2127, 0
        %v2144 = vsel %vm486, %v2088, 0
        %2146 = vmatprep.subr.bf16.mxu0 0
        %2147 = vmatpush1.bf16.msra.mxu0 %v2144
        %2148 = vmatprep.subr.bf16.mxu0 0
        %2149 = vmatpush1.bf16.msra.mxu0 0
        %2150 = vmatprep.subr.bf16.mxu0 0
        %2151 = vmatpush1.bf16.msra.mxu0 0
        %2152 = vmatprep.subr.bf16.mxu0 0
        %2153 = vmatpush1.bf16.msra.mxu0 0
        %2154 = vmatprep.subr.bf16.mxu0 0
        %2155 = vmatpush1.bf16.msra.mxu0 0
        %2156 = vmatprep.subr.bf16.mxu0 0
        %2157 = vmatpush1.bf16.msra.mxu0 0
        %2158 = vmatprep.subr.bf16.mxu0 0
        %2159 = vmatpush1.bf16.msra.mxu0 0
        %2160 = vmatprep.subr.bf16.mxu0 0
        %2161 = vmatpush1.bf16.msra.mxu0 0
        %2162 = vmatprep.subr.bf16.mxu0 0
        %2163 = vmatpush1.bf16.msra.mxu0 0
        %2164 = vmatprep.subr.bf16.mxu0 0
        %2165 = vmatpush1.bf16.msra.mxu0 0
        %2166 = vmatprep.subr.bf16.mxu0 0
        %2167 = vmatpush1.bf16.msra.mxu0 0
        %2168 = vmatprep.subr.bf16.mxu0 0
        %2169 = vmatpush1.bf16.msra.mxu0 0
        %2170 = vmatprep.subr.bf16.mxu0 0
        %2171 = vmatpush1.bf16.msra.mxu0 0
        %2172 = vmatprep.subr.bf16.mxu0 0
        %2173 = vmatpush1.bf16.msra.mxu0 0
        %2174 = vmatprep.subr.bf16.mxu0 0
        %2175 = vmatpush1.bf16.msra.mxu0 0
        %2176 = vmatprep.subr.bf16.mxu0 0
        %2177 = vmatpush1.bf16.msra.mxu0 0
        %2178 = vmatprep.mubr.bf16.mxu0 0
        %2179 = vmatmul.mubr.bf16.gmra.mrb[0].mxu0 %v2129
        %v2180 = vpop.f32.mrb[0].mxu0
        %v2181 = vadd.f32 0.0, %v2180
        %v2182 = vpop.f32.mrb[0].mxu0
        %v2183 = vpop.f32.mrb[0].mxu0
        %v2184 = vadd.f32 0.0, %v2183
        %v2185 = vpop.f32.mrb[0].mxu0
        %2186 = vmatprep.mubr.bf16.mxu0 0
        %2187 = vmatmul.mubr.bf16.gmra.mrb[0].mxu0 %v2132
        %v2188 = vpop.f32.mrb[0].mxu0
        %v2189 = vadd.f32 0.0, %v2188
        %v2190 = vpop.f32.mrb[0].mxu0
        %v2191 = vpop.f32.mrb[0].mxu0
        %v2192 = vadd.f32 0.0, %v2191
        %v2193 = vpop.f32.mrb[0].mxu0
        %2194 = vmatprep.mubr.bf16.mxu0 0
        %2195 = vmatmul.mubr.bf16.gmra.mrb[0].mxu0 %v2135
        %v2196 = vpop.f32.mrb[0].mxu0
        %v2197 = vadd.f32 0.0, %v2196
        %v2198 = vpop.f32.mrb[0].mxu0
        %v2199 = vpop.f32.mrb[0].mxu0
        %v2200 = vadd.f32 0.0, %v2199
        %v2201 = vpop.f32.mrb[0].mxu0
        %2202 = vmatprep.mubr.bf16.mxu0 0
        %2203 = vmatmul.mubr.bf16.gmra.mrb[0].mxu0 %v2138
        %v2204 = vpop.f32.mrb[0].mxu0
        %v2205 = vadd.f32 0.0, %v2204
        %v2206 = vpop.f32.mrb[0].mxu0
        %v2207 = vpop.f32.mrb[0].mxu0
        %v2208 = vadd.f32 0.0, %v2207
        %v2209 = vpop.f32.mrb[0].mxu0
        %2210 = vmatprep.mubr.bf16.mxu0 0
        %2211 = vmatmul.mubr.bf16.gmra.mrb[0].mxu0 %v2141
        %v2212 = vpop.f32.mrb[0].mxu0
        %v2213 = vadd.f32 0.0, %v2212
        %v2214 = vpop.f32.mrb[0].mxu0
        %v2215 = vpop.f32.mrb[0].mxu0
        %v2216 = vadd.f32 0.0, %v2215
        %v2217 = vpop.f32.mrb[0].mxu0
        %2218 = vdwg.mxu0
        %v2219 = vadd.f32 %v2066, %v2181
        %v2220 = vadd.f32 %v2067, %v2184
        %v2221 = vadd.f32 %v2068, %v2189
        %v2222 = vadd.f32 %v2069, %v2192
        %v2223 = vadd.f32 %v2070, %v2197
        %v2224 = vadd.f32 %v2071, %v2200
        %v2225 = vadd.f32 %v2072, %v2205
        %v2226 = vadd.f32 %v2073, %v2208
        %v2227 = vadd.f32 %v2074, %v2213
        %v2228 = vadd.f32 %v2075, %v2216
        %v2229 = vld [vmem:[%s325 + $0x2c] sm:$0x3]
        %s2230 = scalar_lea.vmem [#allocation8], 26
        %v2231 = vld [vmem:[%s2230] sm:$0x3]
        %v2233 = vunpack.c.l.b16 %v2229
        %v2234 = vpack.c.b16 %v2233, %v2233
        %v2236 = vshrl.u32 %v2111, 16
        %v2238 = vrot.slane %v2236, 1
        %v2239 = vshll.u32 %v2111, 16
        %v2241 = vrot.slane %v2239, 2
        %v2242 = vor.u32 %v2238, %v2241
        %v2244 = vshrl.u32 %v2112, 16
        %v2246 = vrot.slane %v2244, 1
        %v2247 = vshll.u32 %v2112, 16
        %v2249 = vrot.slane %v2247, 2
        %v2250 = vor.u32 %v2246, %v2249
        %v2251 = vsel %vm927, %v2242, %v2250
        %v2253 = vshrl.u32 %v2113, 16
        %v2255 = vrot.slane %v2253, 1
        %v2256 = vshll.u32 %v2113, 16
        %v2258 = vrot.slane %v2256, 2
        %v2259 = vor.u32 %v2255, %v2258
        %v2260 = vsel %vm927, %v2250, %v2259
        %v2262 = vshrl.u32 %v2114, 16
        %v2264 = vrot.slane %v2262, 1
        %v2265 = vshll.u32 %v2114, 16
        %v2267 = vrot.slane %v2265, 2
        %v2268 = vor.u32 %v2264, %v2267
        %v2269 = vsel %vm927, %v2259, %v2268
        %v2271 = vshrl.u32 %v2115, 16
        %v2273 = vrot.slane %v2271, 1
        %v2274 = vshll.u32 %v2115, 16
        %v2276 = vrot.slane %v2274, 2
        %v2277 = vor.u32 %v2273, %v2276
        %v2278 = vsel %vm927, %v2268, %v2277
        %v2280 = vshrl.u32 %v2234, 16
        %v2282 = vrot.slane %v2280, 1
        %v2283 = vshll.u32 %v2234, 16
        %v2285 = vrot.slane %v2283, 2
        %v2286 = vor.u32 %v2282, %v2285
        %v2287 = vsel %vm927, %v2277, %v2286
        %v2289 = vsel %vm470, %v2251, 0
        %v2292 = vsel %vm470, %v2260, 0
        %v2295 = vsel %vm470, %v2269, 0
        %v2298 = vsel %vm470, %v2278, 0
        %v2301 = vsel %vm470, %v2287, 0
        %v2304 = vsel %vm486, %v2231, 0
        %2306 = vmatprep.subr.bf16.mxu0 0
        %2307 = vmatpush1.bf16.msra.mxu0 %v2304
        %2308 = vmatprep.subr.bf16.mxu0 0
        %2309 = vmatpush1.bf16.msra.mxu0 0
        %2310 = vmatprep.subr.bf16.mxu0 0
        %2311 = vmatpush1.bf16.msra.mxu0 0
        %2312 = vmatprep.subr.bf16.mxu0 0
        %2313 = vmatpush1.bf16.msra.mxu0 0
        %2314 = vmatprep.subr.bf16.mxu0 0
        %2315 = vmatpush1.bf16.msra.mxu0 0
        %2316 = vmatprep.subr.bf16.mxu0 0
        %2317 = vmatpush1.bf16.msra.mxu0 0
        %2318 = vmatprep.subr.bf16.mxu0 0
        %2319 = vmatpush1.bf16.msra.mxu0 0
        %2320 = vmatprep.subr.bf16.mxu0 0
        %2321 = vmatpush1.bf16.msra.mxu0 0
        %2322 = vmatprep.subr.bf16.mxu0 0
        %2323 = vmatpush1.bf16.msra.mxu0 0
        %2324 = vmatprep.subr.bf16.mxu0 0
        %2325 = vmatpush1.bf16.msra.mxu0 0
        %2326 = vmatprep.subr.bf16.mxu0 0
        %2327 = vmatpush1.bf16.msra.mxu0 0
        %2328 = vmatprep.subr.bf16.mxu0 0
        %2329 = vmatpush1.bf16.msra.mxu0 0
        %2330 = vmatprep.subr.bf16.mxu0 0
        %2331 = vmatpush1.bf16.msra.mxu0 0
        %2332 = vmatprep.subr.bf16.mxu0 0
        %2333 = vmatpush1.bf16.msra.mxu0 0
        %2334 = vmatprep.subr.bf16.mxu0 0
        %2335 = vmatpush1.bf16.msra.mxu0 0
        %2336 = vmatprep.subr.bf16.mxu0 0
        %2337 = vmatpush1.bf16.msra.mxu0 0
        %2338 = vmatprep.mubr.bf16.mxu0 0
        %2339 = vmatmul.mubr.bf16.gmra.mrb[0].mxu0 %v2289
        %v2340 = vpop.f32.mrb[0].mxu0
        %v2341 = vadd.f32 0.0, %v2340
        %v2342 = vpop.f32.mrb[0].mxu0
        %v2343 = vpop.f32.mrb[0].mxu0
        %v2344 = vadd.f32 0.0, %v2343
        %v2345 = vpop.f32.mrb[0].mxu0
        %2346 = vmatprep.mubr.bf16.mxu0 0
        %2347 = vmatmul.mubr.bf16.gmra.mrb[0].mxu0 %v2292
        %v2348 = vpop.f32.mrb[0].mxu0
        %v2349 = vadd.f32 0.0, %v2348
        %v2350 = vpop.f32.mrb[0].mxu0
        %v2351 = vpop.f32.mrb[0].mxu0
        %v2352 = vadd.f32 0.0, %v2351
        %v2353 = vpop.f32.mrb[0].mxu0
        %2354 = vmatprep.mubr.bf16.mxu0 0
        %2355 = vmatmul.mubr.bf16.gmra.mrb[0].mxu0 %v2295
        %v2356 = vpop.f32.mrb[0].mxu0
        %v2357 = vadd.f32 0.0, %v2356
        %v2358 = vpop.f32.mrb[0].mxu0
        %v2359 = vpop.f32.mrb[0].mxu0
        %v2360 = vadd.f32 0.0, %v2359
        %v2361 = vpop.f32.mrb[0].mxu0
        %2362 = vmatprep.mubr.bf16.mxu0 0
        %2363 = vmatmul.mubr.bf16.gmra.mrb[0].mxu0 %v2298
        %v2364 = vpop.f32.mrb[0].mxu0
        %v2365 = vadd.f32 0.0, %v2364
        %v2366 = vpop.f32.mrb[0].mxu0
        %v2367 = vpop.f32.mrb[0].mxu0
        %v2368 = vadd.f32 0.0, %v2367
        %v2369 = vpop.f32.mrb[0].mxu0
        %2370 = vmatprep.mubr.bf16.mxu0 0
        %2371 = vmatmul.mubr.bf16.gmra.mrb[0].mxu0 %v2301
        %v2372 = vpop.f32.mrb[0].mxu0
        %v2373 = vadd.f32 0.0, %v2372
        %v2374 = vpop.f32.mrb[0].mxu0
        %v2375 = vpop.f32.mrb[0].mxu0
        %v2376 = vadd.f32 0.0, %v2375
        %v2377 = vpop.f32.mrb[0].mxu0
        %2378 = vdwg.mxu0
        %v2379 = vadd.f32 %v2219, %v2341
        %v2380 = vadd.f32 %v2220, %v2344
        %v2381 = vadd.f32 %v2221, %v2349
        %v2382 = vadd.f32 %v2222, %v2352
        %v2383 = vadd.f32 %v2223, %v2357
        %v2384 = vadd.f32 %v2224, %v2360
        %v2385 = vadd.f32 %v2225, %v2365
        %v2386 = vadd.f32 %v2226, %v2368
        %v2387 = vadd.f32 %v2227, %v2373
        %v2388 = vadd.f32 %v2228, %v2376
        %v2389 = vld [vmem:[%s325 + $0x4] sm:$0xc]
        %s2390 = scalar_lea.vmem [#allocation8], 28
        %v2391 = vld [vmem:[%s2390] sm:$0x3]
        %v2393 = vunpack.c.l.b16 %v2389
        %v2394 = vpack.c.b16 %v2101, %v2393
        %v2395 = vrot.slane %v2394, 2
        %v2396 = vrot.slane %v2112, 2
        %v2397 = vsel %vm1088, %v2395, %v2396
        %v2398 = vrot.slane %v2113, 2
        %v2399 = vsel %vm1088, %v2396, %v2398
        %v2400 = vrot.slane %v2114, 2
        %v2401 = vsel %vm1088, %v2398, %v2400
        %v2402 = vrot.slane %v2115, 2
        %v2403 = vsel %vm1088, %v2400, %v2402
        %v2404 = vrot.slane %v2234, 2
        %v2405 = vsel %vm1088, %v2402, %v2404
        %v2407 = vsel %vm470, %v2397, 0
        %v2410 = vsel %vm470, %v2399, 0
        %v2413 = vsel %vm470, %v2401, 0
        %v2416 = vsel %vm470, %v2403, 0
        %v2419 = vsel %vm470, %v2405, 0
        %v2422 = vsel %vm486, %v2391, 0
        %2424 = vmatprep.subr.bf16.mxu0 0
        %2425 = vmatpush1.bf16.msra.mxu0 %v2422
        %2426 = vmatprep.subr.bf16.mxu0 0
        %2427 = vmatpush1.bf16.msra.mxu0 0
        %2428 = vmatprep.subr.bf16.mxu0 0
        %2429 = vmatpush1.bf16.msra.mxu0 0
        %2430 = vmatprep.subr.bf16.mxu0 0
        %2431 = vmatpush1.bf16.msra.mxu0 0
        %2432 = vmatprep.subr.bf16.mxu0 0
        %2433 = vmatpush1.bf16.msra.mxu0 0
        %2434 = vmatprep.subr.bf16.mxu0 0
        %2435 = vmatpush1.bf16.msra.mxu0 0
        %2436 = vmatprep.subr.bf16.mxu0 0
        %2437 = vmatpush1.bf16.msra.mxu0 0
        %2438 = vmatprep.subr.bf16.mxu0 0
        %2439 = vmatpush1.bf16.msra.mxu0 0
        %2440 = vmatprep.subr.bf16.mxu0 0
        %2441 = vmatpush1.bf16.msra.mxu0 0
        %2442 = vmatprep.subr.bf16.mxu0 0
        %2443 = vmatpush1.bf16.msra.mxu0 0
        %2444 = vmatprep.subr.bf16.mxu0 0
        %2445 = vmatpush1.bf16.msra.mxu0 0
        %2446 = vmatprep.subr.bf16.mxu0 0
        %2447 = vmatpush1.bf16.msra.mxu0 0
        %2448 = vmatprep.subr.bf16.mxu0 0
        %2449 = vmatpush1.bf16.msra.mxu0 0
        %2450 = vmatprep.subr.bf16.mxu0 0
        %2451 = vmatpush1.bf16.msra.mxu0 0
        %2452 = vmatprep.subr.bf16.mxu0 0
        %2453 = vmatpush1.bf16.msra.mxu0 0
        %2454 = vmatprep.subr.bf16.mxu0 0
        %2455 = vmatpush1.bf16.msra.mxu0 0
        %2456 = vmatprep.mubr.bf16.mxu0 0
        %2457 = vmatmul.mubr.bf16.gmra.mrb[0].mxu0 %v2407
        %v2458 = vpop.f32.mrb[0].mxu0
        %v2459 = vadd.f32 0.0, %v2458
        %v2460 = vpop.f32.mrb[0].mxu0
        %v2461 = vpop.f32.mrb[0].mxu0
        %v2462 = vadd.f32 0.0, %v2461
        %v2463 = vpop.f32.mrb[0].mxu0
        %2464 = vmatprep.mubr.bf16.mxu0 0
        %2465 = vmatmul.mubr.bf16.gmra.mrb[0].mxu0 %v2410
        %v2466 = vpop.f32.mrb[0].mxu0
        %v2467 = vadd.f32 0.0, %v2466
        %v2468 = vpop.f32.mrb[0].mxu0
        %v2469 = vpop.f32.mrb[0].mxu0
        %v2470 = vadd.f32 0.0, %v2469
        %v2471 = vpop.f32.mrb[0].mxu0
        %2472 = vmatprep.mubr.bf16.mxu0 0
        %2473 = vmatmul.mubr.bf16.gmra.mrb[0].mxu0 %v2413
        %v2474 = vpop.f32.mrb[0].mxu0
        %v2475 = vadd.f32 0.0, %v2474
        %v2476 = vpop.f32.mrb[0].mxu0
        %v2477 = vpop.f32.mrb[0].mxu0
        %v2478 = vadd.f32 0.0, %v2477
        %v2479 = vpop.f32.mrb[0].mxu0
        %2480 = vmatprep.mubr.bf16.mxu0 0
        %2481 = vmatmul.mubr.bf16.gmra.mrb[0].mxu0 %v2416
        %v2482 = vpop.f32.mrb[0].mxu0
        %v2483 = vadd.f32 0.0, %v2482
        %v2484 = vpop.f32.mrb[0].mxu0
        %v2485 = vpop.f32.mrb[0].mxu0
        %v2486 = vadd.f32 0.0, %v2485
        %v2487 = vpop.f32.mrb[0].mxu0
        %2488 = vmatprep.mubr.bf16.mxu0 0
        %2489 = vmatmul.mubr.bf16.gmra.mrb[0].mxu0 %v2419
        %v2490 = vpop.f32.mrb[0].mxu0
        %v2491 = vadd.f32 0.0, %v2490
        %v2492 = vpop.f32.mrb[0].mxu0
        %v2493 = vpop.f32.mrb[0].mxu0
        %v2494 = vadd.f32 0.0, %v2493
        %v2495 = vpop.f32.mrb[0].mxu0
        %2496 = vdwg.mxu0
        %v2497 = vadd.f32 %v2379, %v2459
        %v2498 = vadd.f32 %v2380, %v2462
        %v2499 = vadd.f32 %v2381, %v2467
        %v2500 = vadd.f32 %v2382, %v2470
        %v2501 = vadd.f32 %v2383, %v2475
        %v2502 = vadd.f32 %v2384, %v2478
        %v2503 = vadd.f32 %v2385, %v2483
        %v2504 = vadd.f32 %v2386, %v2486
        %v2505 = vadd.f32 %v2387, %v2491
        %v2506 = vadd.f32 %v2388, %v2494
        %v2507 = vld [vmem:[%s325 + $0x8] sm:$0xc]
        %v2508 = vld [vmem:[%s325 + $0xc] sm:$0xf]
        %v2509 = vld [vmem:[%s325 + $0x10] sm:$0xf]
        %v2510 = vld [vmem:[%s325 + $0x14] sm:$0xf]
        %v2511 = vld [vmem:[%s325 + $0x18] sm:$0xf]
        %v2512 = vld [vmem:[%s325 + $0x1c] sm:$0xf]
        %v2513 = vld [vmem:[%s325 + $0x20] sm:$0xf]
        %v2514 = vld [vmem:[%s325 + $0x24] sm:$0xf]
        %v2515 = vld [vmem:[%s325 + $0x28] sm:$0xf]
        %v2516 = vld [vmem:[%s325 + $0x2c] sm:$0xf]
        %v2517 = vld [vmem:[%s325 + $0x30] sm:$0x3]
        %s2518 = scalar_lea.vmem [#allocation8], 30
        %v2519 = vld [vmem:[%s2518] sm:$0x3]
        %v2531 = vunpack.c.l.b16 %v2507
        %v2532 = vunpack.c.l.b16 %v2508
        %v2533 = vunpack.c.l.b16 %v2509
        %v2534 = vunpack.c.l.b16 %v2510
        %v2535 = vunpack.c.l.b16 %v2511
        %v2536 = vunpack.c.l.b16 %v2512
        %v2537 = vunpack.c.l.b16 %v2513
        %v2538 = vunpack.c.l.b16 %v2514
        %v2539 = vunpack.c.l.b16 %v2515
        %v2540 = vunpack.c.l.b16 %v2516
        %v2541 = vunpack.c.l.b16 %v2517
        %v2542 = vpack.c.b16 %v2532, %v2531
        %v2543 = vpack.c.b16 %v2534, %v2533
        %v2544 = vpack.c.b16 %v2536, %v2535
        %v2545 = vpack.c.b16 %v2538, %v2537
        %v2546 = vpack.c.b16 %v2540, %v2539
        %v2547 = vpack.c.b16 %v2541, %v2541
        %v2548 = vrot.slane %v2542, 2
        %v2549 = vrot.slane %v2543, 2
        %v2550 = vsel %vm1088, %v2548, %v2549
        %v2551 = vrot.slane %v2544, 2
        %v2552 = vsel %vm1088, %v2549, %v2551
        %v2553 = vrot.slane %v2545, 2
        %v2554 = vsel %vm1088, %v2551, %v2553
        %v2555 = vrot.slane %v2546, 2
        %v2556 = vsel %vm1088, %v2553, %v2555
        %v2557 = vrot.slane %v2547, 2
        %v2558 = vsel %vm1088, %v2555, %v2557
        %v2560 = vsel %vm470, %v2550, 0
        %v2563 = vsel %vm470, %v2552, 0
        %v2566 = vsel %vm470, %v2554, 0
        %v2569 = vsel %vm470, %v2556, 0
        %v2572 = vsel %vm470, %v2558, 0
        %v2575 = vsel %vm486, %v2519, 0
        %2577 = vmatprep.subr.bf16.mxu0 0
        %2578 = vmatpush1.bf16.msra.mxu0 %v2575
        %2579 = vmatprep.subr.bf16.mxu0 0
        %2580 = vmatpush1.bf16.msra.mxu0 0
        %2581 = vmatprep.subr.bf16.mxu0 0
        %2582 = vmatpush1.bf16.msra.mxu0 0
        %2583 = vmatprep.subr.bf16.mxu0 0
        %2584 = vmatpush1.bf16.msra.mxu0 0
        %2585 = vmatprep.subr.bf16.mxu0 0
        %2586 = vmatpush1.bf16.msra.mxu0 0
        %2587 = vmatprep.subr.bf16.mxu0 0
        %2588 = vmatpush1.bf16.msra.mxu0 0
        %2589 = vmatprep.subr.bf16.mxu0 0
        %2590 = vmatpush1.bf16.msra.mxu0 0
        %2591 = vmatprep.subr.bf16.mxu0 0
        %2592 = vmatpush1.bf16.msra.mxu0 0
        %2593 = vmatprep.subr.bf16.mxu0 0
        %2594 = vmatpush1.bf16.msra.mxu0 0
        %2595 = vmatprep.subr.bf16.mxu0 0
        %2596 = vmatpush1.bf16.msra.mxu0 0
        %2597 = vmatprep.subr.bf16.mxu0 0
        %2598 = vmatpush1.bf16.msra.mxu0 0
        %2599 = vmatprep.subr.bf16.mxu0 0
        %2600 = vmatpush1.bf16.msra.mxu0 0
        %2601 = vmatprep.subr.bf16.mxu0 0
        %2602 = vmatpush1.bf16.msra.mxu0 0
        %2603 = vmatprep.subr.bf16.mxu0 0
        %2604 = vmatpush1.bf16.msra.mxu0 0
        %2605 = vmatprep.subr.bf16.mxu0 0
        %2606 = vmatpush1.bf16.msra.mxu0 0
        %2607 = vmatprep.subr.bf16.mxu0 0
        %2608 = vmatpush1.bf16.msra.mxu0 0
        %2609 = vmatprep.mubr.bf16.mxu0 0
        %2610 = vmatmul.mubr.bf16.gmra.mrb[0].mxu0 %v2560
        %v2611 = vpop.f32.mrb[0].mxu0
        %v2612 = vadd.f32 0.0, %v2611
        %v2613 = vpop.f32.mrb[0].mxu0
        %v2614 = vpop.f32.mrb[0].mxu0
        %v2615 = vadd.f32 0.0, %v2614
        %v2616 = vpop.f32.mrb[0].mxu0
        %2617 = vmatprep.mubr.bf16.mxu0 0
        %2618 = vmatmul.mubr.bf16.gmra.mrb[0].mxu0 %v2563
        %v2619 = vpop.f32.mrb[0].mxu0
        %v2620 = vadd.f32 0.0, %v2619
        %v2621 = vpop.f32.mrb[0].mxu0
        %v2622 = vpop.f32.mrb[0].mxu0
        %v2623 = vadd.f32 0.0, %v2622
        %v2624 = vpop.f32.mrb[0].mxu0
        %2625 = vmatprep.mubr.bf16.mxu0 0
        %2626 = vmatmul.mubr.bf16.gmra.mrb[0].mxu0 %v2566
        %v2627 = vpop.f32.mrb[0].mxu0
        %v2628 = vadd.f32 0.0, %v2627
        %v2629 = vpop.f32.mrb[0].mxu0
        %v2630 = vpop.f32.mrb[0].mxu0
        %v2631 = vadd.f32 0.0, %v2630
        %v2632 = vpop.f32.mrb[0].mxu0
        %2633 = vmatprep.mubr.bf16.mxu0 0
        %2634 = vmatmul.mubr.bf16.gmra.mrb[0].mxu0 %v2569
        %v2635 = vpop.f32.mrb[0].mxu0
        %v2636 = vadd.f32 0.0, %v2635
        %v2637 = vpop.f32.mrb[0].mxu0
        %v2638 = vpop.f32.mrb[0].mxu0
        %v2639 = vadd.f32 0.0, %v2638
        %v2640 = vpop.f32.mrb[0].mxu0
        %2641 = vmatprep.mubr.bf16.mxu0 0
        %2642 = vmatmul.mubr.bf16.gmra.mrb[0].mxu0 %v2572
        %v2643 = vpop.f32.mrb[0].mxu0
        %v2644 = vadd.f32 0.0, %v2643
        %v2645 = vpop.f32.mrb[0].mxu0
        %v2646 = vpop.f32.mrb[0].mxu0
        %v2647 = vadd.f32 0.0, %v2646
        %v2648 = vpop.f32.mrb[0].mxu0
        %2649 = vdwg.mxu0
        %v2650 = vadd.f32 %v2497, %v2612
        %v2651 = vadd.f32 %v2498, %v2615
        %v2652 = vadd.f32 %v2499, %v2620
        %v2653 = vadd.f32 %v2500, %v2623
        %v2654 = vadd.f32 %v2501, %v2628
        %v2655 = vadd.f32 %v2502, %v2631
        %v2656 = vadd.f32 %v2503, %v2636
        %v2657 = vadd.f32 %v2504, %v2639
        %v2658 = vadd.f32 %v2505, %v2644
        %v2659 = vadd.f32 %v2506, %v2647
        %v2660 = vld [vmem:[%s325 + $0x30] sm:$0x7]
        %s2661 = scalar_lea.vmem [#allocation8], 32
        %v2662 = vld [vmem:[%s2661] sm:$0x3]
        %v2664 = vunpack.c.l.b16 %v2660
        %v2665 = vpack.c.b16 %v2664, %v2664
        %v2667 = vshrl.u32 %v2542, 16
        %v2669 = vrot.slane %v2667, 2
        %v2670 = vshll.u32 %v2542, 16
        %v2672 = vrot.slane %v2670, 3
        %v2673 = vor.u32 %v2669, %v2672
        %v2675 = vshrl.u32 %v2543, 16
        %v2677 = vrot.slane %v2675, 2
        %v2678 = vshll.u32 %v2543, 16
        %v2680 = vrot.slane %v2678, 3
        %v2681 = vor.u32 %v2677, %v2680
        %v2682 = vsel %vm1360, %v2673, %v2681
        %v2684 = vshrl.u32 %v2544, 16
        %v2686 = vrot.slane %v2684, 2
        %v2687 = vshll.u32 %v2544, 16
        %v2689 = vrot.slane %v2687, 3
        %v2690 = vor.u32 %v2686, %v2689
        %v2691 = vsel %vm1360, %v2681, %v2690
        %v2693 = vshrl.u32 %v2545, 16
        %v2695 = vrot.slane %v2693, 2
        %v2696 = vshll.u32 %v2545, 16
        %v2698 = vrot.slane %v2696, 3
        %v2699 = vor.u32 %v2695, %v2698
        %v2700 = vsel %vm1360, %v2690, %v2699
        %v2702 = vshrl.u32 %v2546, 16
        %v2704 = vrot.slane %v2702, 2
        %v2705 = vshll.u32 %v2546, 16
        %v2707 = vrot.slane %v2705, 3
        %v2708 = vor.u32 %v2704, %v2707
        %v2709 = vsel %vm1360, %v2699, %v2708
        %v2711 = vshrl.u32 %v2665, 16
        %v2713 = vrot.slane %v2711, 2
        %v2714 = vshll.u32 %v2665, 16
        %v2716 = vrot.slane %v2714, 3
        %v2717 = vor.u32 %v2713, %v2716
        %v2718 = vsel %vm1360, %v2708, %v2717
        %v2720 = vsel %vm470, %v2682, 0
        %v2723 = vsel %vm470, %v2691, 0
        %v2726 = vsel %vm470, %v2700, 0
        %v2729 = vsel %vm470, %v2709, 0
        %v2732 = vsel %vm470, %v2718, 0
        %v2735 = vsel %vm486, %v2662, 0
        %2737 = vmatprep.subr.bf16.mxu0 0
        %2738 = vmatpush1.bf16.msra.mxu0 %v2735
        %2739 = vmatprep.subr.bf16.mxu0 0
        %2740 = vmatpush1.bf16.msra.mxu0 0
        %2741 = vmatprep.subr.bf16.mxu0 0
        %2742 = vmatpush1.bf16.msra.mxu0 0
        %2743 = vmatprep.subr.bf16.mxu0 0
        %2744 = vmatpush1.bf16.msra.mxu0 0
        %2745 = vmatprep.subr.bf16.mxu0 0
        %2746 = vmatpush1.bf16.msra.mxu0 0
        %2747 = vmatprep.subr.bf16.mxu0 0
        %2748 = vmatpush1.bf16.msra.mxu0 0
        %2749 = vmatprep.subr.bf16.mxu0 0
        %2750 = vmatpush1.bf16.msra.mxu0 0
        %2751 = vmatprep.subr.bf16.mxu0 0
        %2752 = vmatpush1.bf16.msra.mxu0 0
        %2753 = vmatprep.subr.bf16.mxu0 0
        %2754 = vmatpush1.bf16.msra.mxu0 0
        %2755 = vmatprep.subr.bf16.mxu0 0
        %2756 = vmatpush1.bf16.msra.mxu0 0
        %2757 = vmatprep.subr.bf16.mxu0 0
        %2758 = vmatpush1.bf16.msra.mxu0 0
        %2759 = vmatprep.subr.bf16.mxu0 0
        %2760 = vmatpush1.bf16.msra.mxu0 0
        %2761 = vmatprep.subr.bf16.mxu0 0
        %2762 = vmatpush1.bf16.msra.mxu0 0
        %2763 = vmatprep.subr.bf16.mxu0 0
        %2764 = vmatpush1.bf16.msra.mxu0 0
        %2765 = vmatprep.subr.bf16.mxu0 0
        %2766 = vmatpush1.bf16.msra.mxu0 0
        %2767 = vmatprep.subr.bf16.mxu0 0
        %2768 = vmatpush1.bf16.msra.mxu0 0
        %2769 = vmatprep.mubr.bf16.mxu0 0
        %2770 = vmatmul.mubr.bf16.gmra.mrb[0].mxu0 %v2720
        %v2771 = vpop.f32.mrb[0].mxu0
        %v2772 = vadd.f32 0.0, %v2771
        %v2773 = vpop.f32.mrb[0].mxu0
        %v2774 = vpop.f32.mrb[0].mxu0
        %v2775 = vadd.f32 0.0, %v2774
        %v2776 = vpop.f32.mrb[0].mxu0
        %2777 = vmatprep.mubr.bf16.mxu0 0
        %2778 = vmatmul.mubr.bf16.gmra.mrb[0].mxu0 %v2723
        %v2779 = vpop.f32.mrb[0].mxu0
        %v2780 = vadd.f32 0.0, %v2779
        %v2781 = vpop.f32.mrb[0].mxu0
        %v2782 = vpop.f32.mrb[0].mxu0
        %v2783 = vadd.f32 0.0, %v2782
        %v2784 = vpop.f32.mrb[0].mxu0
        %2785 = vmatprep.mubr.bf16.mxu0 0
        %2786 = vmatmul.mubr.bf16.gmra.mrb[0].mxu0 %v2726
        %v2787 = vpop.f32.mrb[0].mxu0
        %v2788 = vadd.f32 0.0, %v2787
        %v2789 = vpop.f32.mrb[0].mxu0
        %v2790 = vpop.f32.mrb[0].mxu0
        %v2791 = vadd.f32 0.0, %v2790
        %v2792 = vpop.f32.mrb[0].mxu0
        %2793 = vmatprep.mubr.bf16.mxu0 0
        %2794 = vmatmul.mubr.bf16.gmra.mrb[0].mxu0 %v2729
        %v2795 = vpop.f32.mrb[0].mxu0
        %v2796 = vadd.f32 0.0, %v2795
        %v2797 = vpop.f32.mrb[0].mxu0
        %v2798 = vpop.f32.mrb[0].mxu0
        %v2799 = vadd.f32 0.0, %v2798
        %v2800 = vpop.f32.mrb[0].mxu0
        %2801 = vmatprep.mubr.bf16.mxu0 0
        %2802 = vmatmul.mubr.bf16.gmra.mrb[0].mxu0 %v2732
        %v2803 = vpop.f32.mrb[0].mxu0
        %v2804 = vadd.f32 0.0, %v2803
        %v2805 = vpop.f32.mrb[0].mxu0
        %v2806 = vpop.f32.mrb[0].mxu0
        %v2807 = vadd.f32 0.0, %v2806
        %v2808 = vpop.f32.mrb[0].mxu0
        %2809 = vdwg.mxu0
        %v2810 = vadd.f32 %v2650, %v2772
        %v2811 = vadd.f32 %v2651, %v2775
        %v2812 = vadd.f32 %v2652, %v2780
        %v2813 = vadd.f32 %v2653, %v2783
        %v2814 = vadd.f32 %v2654, %v2788
        %v2815 = vadd.f32 %v2655, %v2791
        %v2816 = vadd.f32 %v2656, %v2796
        %v2817 = vadd.f32 %v2657, %v2799
        %v2818 = vadd.f32 %v2658, %v2804
        %v2819 = vadd.f32 %v2659, %v2807
        %v2820 = vld [vmem:[%s325 + $0x8] sm:$0x8]
        %s2821 = scalar_lea.vmem [#allocation8], 34
        %v2822 = vld [vmem:[%s2821] sm:$0x3]
        %v2824 = vunpack.c.l.b16 %v2820
        %v2825 = vpack.c.b16 %v2532, %v2824
        %v2826 = vrot.slane %v2825, 3
        %v2827 = vrot.slane %v2543, 3
        %v2828 = vsel %vm1521, %v2826, %v2827
        %v2829 = vrot.slane %v2544, 3
        %v2830 = vsel %vm1521, %v2827, %v2829
        %v2831 = vrot.slane %v2545, 3
        %v2832 = vsel %vm1521, %v2829, %v2831
        %v2833 = vrot.slane %v2546, 3
        %v2834 = vsel %vm1521, %v2831, %v2833
        %v2835 = vrot.slane %v2665, 3
        %v2836 = vsel %vm1521, %v2833, %v2835
        %v2838 = vsel %vm470, %v2828, 0
        %v2841 = vsel %vm470, %v2830, 0
        %v2844 = vsel %vm470, %v2832, 0
        %v2847 = vsel %vm470, %v2834, 0
        %v2850 = vsel %vm470, %v2836, 0
        %v2853 = vsel %vm486, %v2822, 0
        %2855 = vmatprep.subr.bf16.mxu0 0
        %2856 = vmatpush1.bf16.msra.mxu0 %v2853
        %2857 = vmatprep.subr.bf16.mxu0 0
        %2858 = vmatpush1.bf16.msra.mxu0 0
        %2859 = vmatprep.subr.bf16.mxu0 0
        %2860 = vmatpush1.bf16.msra.mxu0 0
        %2861 = vmatprep.subr.bf16.mxu0 0
        %2862 = vmatpush1.bf16.msra.mxu0 0
        %2863 = vmatprep.subr.bf16.mxu0 0
        %2864 = vmatpush1.bf16.msra.mxu0 0
        %2865 = vmatprep.subr.bf16.mxu0 0
        %2866 = vmatpush1.bf16.msra.mxu0 0
        %2867 = vmatprep.subr.bf16.mxu0 0
        %2868 = vmatpush1.bf16.msra.mxu0 0
        %2869 = vmatprep.subr.bf16.mxu0 0
        %2870 = vmatpush1.bf16.msra.mxu0 0
        %2871 = vmatprep.subr.bf16.mxu0 0
        %2872 = vmatpush1.bf16.msra.mxu0 0
        %2873 = vmatprep.subr.bf16.mxu0 0
        %2874 = vmatpush1.bf16.msra.mxu0 0
        %2875 = vmatprep.subr.bf16.mxu0 0
        %2876 = vmatpush1.bf16.msra.mxu0 0
        %2877 = vmatprep.subr.bf16.mxu0 0
        %2878 = vmatpush1.bf16.msra.mxu0 0
        %2879 = vmatprep.subr.bf16.mxu0 0
        %2880 = vmatpush1.bf16.msra.mxu0 0
        %2881 = vmatprep.subr.bf16.mxu0 0
        %2882 = vmatpush1.bf16.msra.mxu0 0
        %2883 = vmatprep.subr.bf16.mxu0 0
        %2884 = vmatpush1.bf16.msra.mxu0 0
        %2885 = vmatprep.subr.bf16.mxu0 0
        %2886 = vmatpush1.bf16.msra.mxu0 0
        %2887 = vmatprep.mubr.bf16.mxu0 0
        %2888 = vmatmul.mubr.bf16.gmra.mrb[0].mxu0 %v2838
        %v2889 = vpop.f32.mrb[0].mxu0
        %v2890 = vadd.f32 0.0, %v2889
        %v2891 = vpop.f32.mrb[0].mxu0
        %v2892 = vpop.f32.mrb[0].mxu0
        %v2893 = vadd.f32 0.0, %v2892
        %v2894 = vpop.f32.mrb[0].mxu0
        %2895 = vmatprep.mubr.bf16.mxu0 0
        %2896 = vmatmul.mubr.bf16.gmra.mrb[0].mxu0 %v2841
        %v2897 = vpop.f32.mrb[0].mxu0
        %v2898 = vadd.f32 0.0, %v2897
        %v2899 = vpop.f32.mrb[0].mxu0
        %v2900 = vpop.f32.mrb[0].mxu0
        %v2901 = vadd.f32 0.0, %v2900
        %v2902 = vpop.f32.mrb[0].mxu0
        %2903 = vmatprep.mubr.bf16.mxu0 0
        %2904 = vmatmul.mubr.bf16.gmra.mrb[0].mxu0 %v2844
        %v2905 = vpop.f32.mrb[0].mxu0
        %v2906 = vadd.f32 0.0, %v2905
        %v2907 = vpop.f32.mrb[0].mxu0
        %v2908 = vpop.f32.mrb[0].mxu0
        %v2909 = vadd.f32 0.0, %v2908
        %v2910 = vpop.f32.mrb[0].mxu0
        %2911 = vmatprep.mubr.bf16.mxu0 0
        %2912 = vmatmul.mubr.bf16.gmra.mrb[0].mxu0 %v2847
        %v2913 = vpop.f32.mrb[0].mxu0
        %v2914 = vadd.f32 0.0, %v2913
        %v2915 = vpop.f32.mrb[0].mxu0
        %v2916 = vpop.f32.mrb[0].mxu0
        %v2917 = vadd.f32 0.0, %v2916
        %v2918 = vpop.f32.mrb[0].mxu0
        %2919 = vmatprep.mubr.bf16.mxu0 0
        %2920 = vmatmul.mubr.bf16.gmra.mrb[0].mxu0 %v2850
        %v2921 = vpop.f32.mrb[0].mxu0
        %v2922 = vadd.f32 0.0, %v2921
        %v2923 = vpop.f32.mrb[0].mxu0
        %v2924 = vpop.f32.mrb[0].mxu0
        %v2925 = vadd.f32 0.0, %v2924
        %v2926 = vpop.f32.mrb[0].mxu0
        %2927 = vdwg.mxu0
        %v2928 = vadd.f32 %v2810, %v2890
        %v2929 = vadd.f32 %v2811, %v2893
        %v2930 = vadd.f32 %v2812, %v2898
        %v2931 = vadd.f32 %v2813, %v2901
        %v2932 = vadd.f32 %v2814, %v2906
        %v2933 = vadd.f32 %v2815, %v2909
        %v2934 = vadd.f32 %v2816, %v2914
        %v2935 = vadd.f32 %v2817, %v2917
        %v2936 = vadd.f32 %v2818, %v2922
        %v2937 = vadd.f32 %v2819, %v2925
        %v2938 = vld [vmem:[%s334] sm:$0xf]
        %v2939 = vld [vmem:[%s334 + $0x4] sm:$0xf]
        %v2940 = vld [vmem:[%s334 + $0x8] sm:$0xf]
        %v2941 = vld [vmem:[%s334 + $0xc] sm:$0xf]
        %v2942 = vld [vmem:[%s334 + $0x10] sm:$0xf]
        %v2943 = vld [vmem:[%s334 + $0x14] sm:$0xf]
        %v2944 = vld [vmem:[%s334 + $0x18] sm:$0xf]
        %v2945 = vld [vmem:[%s334 + $0x1c] sm:$0xf]
        %v2946 = vld [vmem:[%s334 + $0x20] sm:$0xf]
        %v2947 = vld [vmem:[%s334 + $0x24] sm:$0xf]
        %s2948 = scalar_lea.vmem [#allocation8], 36
        %v2949 = vld [vmem:[%s2948] sm:$0x3]
        %v2960 = vunpack.c.l.b16 %v2938
        %v2961 = vunpack.c.l.b16 %v2939
        %v2962 = vunpack.c.l.b16 %v2940
        %v2963 = vunpack.c.l.b16 %v2941
        %v2964 = vunpack.c.l.b16 %v2942
        %v2965 = vunpack.c.l.b16 %v2943
        %v2966 = vunpack.c.l.b16 %v2944
        %v2967 = vunpack.c.l.b16 %v2945
        %v2968 = vunpack.c.l.b16 %v2946
        %v2969 = vunpack.c.l.b16 %v2947
        %v2970 = vpack.c.b16 %v2961, %v2960
        %v2971 = vpack.c.b16 %v2963, %v2962
        %v2972 = vpack.c.b16 %v2965, %v2964
        %v2973 = vpack.c.b16 %v2967, %v2966
        %v2974 = vpack.c.b16 %v2969, %v2968
        %v2976 = vsel %vm470, %v2970, 0
        %v2979 = vsel %vm470, %v2971, 0
        %v2982 = vsel %vm470, %v2972, 0
        %v2985 = vsel %vm470, %v2973, 0
        %v2988 = vsel %vm470, %v2974, 0
        %v2991 = vsel %vm486, %v2949, 0
        %2993 = vmatprep.subr.bf16.mxu0 0
        %2994 = vmatpush1.bf16.msra.mxu0 %v2991
        %2995 = vmatprep.subr.bf16.mxu0 0
        %2996 = vmatpush1.bf16.msra.mxu0 0
        %2997 = vmatprep.subr.bf16.mxu0 0
        %2998 = vmatpush1.bf16.msra.mxu0 0
        %2999 = vmatprep.subr.bf16.mxu0 0
        %3000 = vmatpush1.bf16.msra.mxu0 0
        %3001 = vmatprep.subr.bf16.mxu0 0
        %3002 = vmatpush1.bf16.msra.mxu0 0
        %3003 = vmatprep.subr.bf16.mxu0 0
        %3004 = vmatpush1.bf16.msra.mxu0 0
        %3005 = vmatprep.subr.bf16.mxu0 0
        %3006 = vmatpush1.bf16.msra.mxu0 0
        %3007 = vmatprep.subr.bf16.mxu0 0
        %3008 = vmatpush1.bf16.msra.mxu0 0
        %3009 = vmatprep.subr.bf16.mxu0 0
        %3010 = vmatpush1.bf16.msra.mxu0 0
        %3011 = vmatprep.subr.bf16.mxu0 0
        %3012 = vmatpush1.bf16.msra.mxu0 0
        %3013 = vmatprep.subr.bf16.mxu0 0
        %3014 = vmatpush1.bf16.msra.mxu0 0
        %3015 = vmatprep.subr.bf16.mxu0 0
        %3016 = vmatpush1.bf16.msra.mxu0 0
        %3017 = vmatprep.subr.bf16.mxu0 0
        %3018 = vmatpush1.bf16.msra.mxu0 0
        %3019 = vmatprep.subr.bf16.mxu0 0
        %3020 = vmatpush1.bf16.msra.mxu0 0
        %3021 = vmatprep.subr.bf16.mxu0 0
        %3022 = vmatpush1.bf16.msra.mxu0 0
        %3023 = vmatprep.subr.bf16.mxu0 0
        %3024 = vmatpush1.bf16.msra.mxu0 0
        %3025 = vmatprep.mubr.bf16.mxu0 0
        %3026 = vmatmul.mubr.bf16.gmra.mrb[0].mxu0 %v2976
        %v3027 = vpop.f32.mrb[0].mxu0
        %v3028 = vadd.f32 0.0, %v3027
        %v3029 = vpop.f32.mrb[0].mxu0
        %v3030 = vpop.f32.mrb[0].mxu0
        %v3031 = vadd.f32 0.0, %v3030
        %v3032 = vpop.f32.mrb[0].mxu0
        %3033 = vmatprep.mubr.bf16.mxu0 0
        %3034 = vmatmul.mubr.bf16.gmra.mrb[0].mxu0 %v2979
        %v3035 = vpop.f32.mrb[0].mxu0
        %v3036 = vadd.f32 0.0, %v3035
        %v3037 = vpop.f32.mrb[0].mxu0
        %v3038 = vpop.f32.mrb[0].mxu0
        %v3039 = vadd.f32 0.0, %v3038
        %v3040 = vpop.f32.mrb[0].mxu0
        %3041 = vmatprep.mubr.bf16.mxu0 0
        %3042 = vmatmul.mubr.bf16.gmra.mrb[0].mxu0 %v2982
        %v3043 = vpop.f32.mrb[0].mxu0
        %v3044 = vadd.f32 0.0, %v3043
        %v3045 = vpop.f32.mrb[0].mxu0
        %v3046 = vpop.f32.mrb[0].mxu0
        %v3047 = vadd.f32 0.0, %v3046
        %v3048 = vpop.f32.mrb[0].mxu0
        %3049 = vmatprep.mubr.bf16.mxu0 0
        %3050 = vmatmul.mubr.bf16.gmra.mrb[0].mxu0 %v2985
        %v3051 = vpop.f32.mrb[0].mxu0
        %v3052 = vadd.f32 0.0, %v3051
        %v3053 = vpop.f32.mrb[0].mxu0
        %v3054 = vpop.f32.mrb[0].mxu0
        %v3055 = vadd.f32 0.0, %v3054
        %v3056 = vpop.f32.mrb[0].mxu0
        %3057 = vmatprep.mubr.bf16.mxu0 0
        %3058 = vmatmul.mubr.bf16.gmra.mrb[0].mxu0 %v2988
        %v3059 = vpop.f32.mrb[0].mxu0
        %v3060 = vadd.f32 0.0, %v3059
        %v3061 = vpop.f32.mrb[0].mxu0
        %v3062 = vpop.f32.mrb[0].mxu0
        %v3063 = vadd.f32 0.0, %v3062
        %v3064 = vpop.f32.mrb[0].mxu0
        %3065 = vdwg.mxu0
        %v3066 = vadd.f32 %v2928, %v3028
        %v3067 = vadd.f32 %v2929, %v3031
        %v3068 = vadd.f32 %v2930, %v3036
        %v3069 = vadd.f32 %v2931, %v3039
        %v3070 = vadd.f32 %v2932, %v3044
        %v3071 = vadd.f32 %v2933, %v3047
        %v3072 = vadd.f32 %v2934, %v3052
        %v3073 = vadd.f32 %v2935, %v3055
        %v3074 = vadd.f32 %v2936, %v3060
        %v3075 = vadd.f32 %v2937, %v3063
        %v3076 = vld [vmem:[%s334] sm:$0xf]
        %v3077 = vld [vmem:[%s334 + $0x4] sm:$0xf]
        %v3078 = vld [vmem:[%s334 + $0x8] sm:$0xf]
        %v3079 = vld [vmem:[%s334 + $0xc] sm:$0xf]
        %v3080 = vld [vmem:[%s334 + $0x10] sm:$0xf]
        %v3081 = vld [vmem:[%s334 + $0x14] sm:$0xf]
        %v3082 = vld [vmem:[%s334 + $0x18] sm:$0xf]
        %v3083 = vld [vmem:[%s334 + $0x1c] sm:$0xf]
        %v3084 = vld [vmem:[%s334 + $0x20] sm:$0xf]
        %v3085 = vld [vmem:[%s334 + $0x24] sm:$0xf]
        %v3086 = vld [vmem:[%s334 + $0x28] sm:$0x1]
        %s3087 = scalar_lea.vmem [#allocation8], 38
        %v3088 = vld [vmem:[%s3087] sm:$0x3]
        %v3100 = vunpack.c.l.b16 %v3076
        %v3101 = vunpack.c.l.b16 %v3077
        %v3102 = vunpack.c.l.b16 %v3078
        %v3103 = vunpack.c.l.b16 %v3079
        %v3104 = vunpack.c.l.b16 %v3080
        %v3105 = vunpack.c.l.b16 %v3081
        %v3106 = vunpack.c.l.b16 %v3082
        %v3107 = vunpack.c.l.b16 %v3083
        %v3108 = vunpack.c.l.b16 %v3084
        %v3109 = vunpack.c.l.b16 %v3085
        %v3110 = vunpack.c.l.b16 %v3086
        %v3111 = vpack.c.b16 %v3101, %v3100
        %v3112 = vpack.c.b16 %v3103, %v3102
        %v3113 = vpack.c.b16 %v3105, %v3104
        %v3114 = vpack.c.b16 %v3107, %v3106
        %v3115 = vpack.c.b16 %v3109, %v3108
        %v3116 = vpack.c.b16 %v3110, %v3110
        %v3118 = vshrl.u32 %v3111, 16
        %v3120 = vshll.u32 %v3111, 16
        %v3122 = vrot.slane %v3120, 1
        %v3123 = vor.u32 %v3118, %v3122
        %v3125 = vshll.u32 %v3112, 16
        %v3127 = vrot.slane %v3125, 1
        %v3128 = vsel %vm425, %v3123, %v3127
        %v3129 = vshrl.u32 %v3112, 16
        %v3131 = vor.u32 %v3129, %v3127
        %v3133 = vshll.u32 %v3113, 16
        %v3135 = vrot.slane %v3133, 1
        %v3136 = vsel %vm425, %v3131, %v3135
        %v3137 = vshrl.u32 %v3113, 16
        %v3139 = vor.u32 %v3137, %v3135
        %v3141 = vshll.u32 %v3114, 16
        %v3143 = vrot.slane %v3141, 1
        %v3144 = vsel %vm425, %v3139, %v3143
        %v3145 = vshrl.u32 %v3114, 16
        %v3147 = vor.u32 %v3145, %v3143
        %v3149 = vshll.u32 %v3115, 16
        %v3151 = vrot.slane %v3149, 1
        %v3152 = vsel %vm425, %v3147, %v3151
        %v3153 = vshrl.u32 %v3115, 16
        %v3155 = vor.u32 %v3153, %v3151
        %v3157 = vshll.u32 %v3116, 16
        %v3159 = vrot.slane %v3157, 1
        %v3160 = vsel %vm425, %v3155, %v3159
        %v3162 = vsel %vm470, %v3128, 0
        %v3165 = vsel %vm470, %v3136, 0
        %v3168 = vsel %vm470, %v3144, 0
        %v3171 = vsel %vm470, %v3152, 0
        %v3174 = vsel %vm470, %v3160, 0
        %v3177 = vsel %vm486, %v3088, 0
        %3179 = vmatprep.subr.bf16.mxu0 0
        %3180 = vmatpush1.bf16.msra.mxu0 %v3177
        %3181 = vmatprep.subr.bf16.mxu0 0
        %3182 = vmatpush1.bf16.msra.mxu0 0
        %3183 = vmatprep.subr.bf16.mxu0 0
        %3184 = vmatpush1.bf16.msra.mxu0 0
        %3185 = vmatprep.subr.bf16.mxu0 0
        %3186 = vmatpush1.bf16.msra.mxu0 0
        %3187 = vmatprep.subr.bf16.mxu0 0
        %3188 = vmatpush1.bf16.msra.mxu0 0
        %3189 = vmatprep.subr.bf16.mxu0 0
        %3190 = vmatpush1.bf16.msra.mxu0 0
        %3191 = vmatprep.subr.bf16.mxu0 0
        %3192 = vmatpush1.bf16.msra.mxu0 0
        %3193 = vmatprep.subr.bf16.mxu0 0
        %3194 = vmatpush1.bf16.msra.mxu0 0
        %3195 = vmatprep.subr.bf16.mxu0 0
        %3196 = vmatpush1.bf16.msra.mxu0 0
        %3197 = vmatprep.subr.bf16.mxu0 0
        %3198 = vmatpush1.bf16.msra.mxu0 0
        %3199 = vmatprep.subr.bf16.mxu0 0
        %3200 = vmatpush1.bf16.msra.mxu0 0
        %3201 = vmatprep.subr.bf16.mxu0 0
        %3202 = vmatpush1.bf16.msra.mxu0 0
        %3203 = vmatprep.subr.bf16.mxu0 0
        %3204 = vmatpush1.bf16.msra.mxu0 0
        %3205 = vmatprep.subr.bf16.mxu0 0
        %3206 = vmatpush1.bf16.msra.mxu0 0
        %3207 = vmatprep.subr.bf16.mxu0 0
        %3208 = vmatpush1.bf16.msra.mxu0 0
        %3209 = vmatprep.subr.bf16.mxu0 0
        %3210 = vmatpush1.bf16.msra.mxu0 0
        %3211 = vmatprep.mubr.bf16.mxu0 0
        %3212 = vmatmul.mubr.bf16.gmra.mrb[0].mxu0 %v3162
        %v3213 = vpop.f32.mrb[0].mxu0
        %v3214 = vadd.f32 0.0, %v3213
        %v3215 = vpop.f32.mrb[0].mxu0
        %v3216 = vpop.f32.mrb[0].mxu0
        %v3217 = vadd.f32 0.0, %v3216
        %v3218 = vpop.f32.mrb[0].mxu0
        %3219 = vmatprep.mubr.bf16.mxu0 0
        %3220 = vmatmul.mubr.bf16.gmra.mrb[0].mxu0 %v3165
        %v3221 = vpop.f32.mrb[0].mxu0
        %v3222 = vadd.f32 0.0, %v3221
        %v3223 = vpop.f32.mrb[0].mxu0
        %v3224 = vpop.f32.mrb[0].mxu0
        %v3225 = vadd.f32 0.0, %v3224
        %v3226 = vpop.f32.mrb[0].mxu0
        %3227 = vmatprep.mubr.bf16.mxu0 0
        %3228 = vmatmul.mubr.bf16.gmra.mrb[0].mxu0 %v3168
        %v3229 = vpop.f32.mrb[0].mxu0
        %v3230 = vadd.f32 0.0, %v3229
        %v3231 = vpop.f32.mrb[0].mxu0
        %v3232 = vpop.f32.mrb[0].mxu0
        %v3233 = vadd.f32 0.0, %v3232
        %v3234 = vpop.f32.mrb[0].mxu0
        %3235 = vmatprep.mubr.bf16.mxu0 0
        %3236 = vmatmul.mubr.bf16.gmra.mrb[0].mxu0 %v3171
        %v3237 = vpop.f32.mrb[0].mxu0
        %v3238 = vadd.f32 0.0, %v3237
        %v3239 = vpop.f32.mrb[0].mxu0
        %v3240 = vpop.f32.mrb[0].mxu0
        %v3241 = vadd.f32 0.0, %v3240
        %v3242 = vpop.f32.mrb[0].mxu0
        %3243 = vmatprep.mubr.bf16.mxu0 0
        %3244 = vmatmul.mubr.bf16.gmra.mrb[0].mxu0 %v3174
        %v3245 = vpop.f32.mrb[0].mxu0
        %v3246 = vadd.f32 0.0, %v3245
        %v3247 = vpop.f32.mrb[0].mxu0
        %v3248 = vpop.f32.mrb[0].mxu0
        %v3249 = vadd.f32 0.0, %v3248
        %v3250 = vpop.f32.mrb[0].mxu0
        %3251 = vdwg.mxu0
        %v3252 = vadd.f32 %v3066, %v3214
        %v3253 = vadd.f32 %v3067, %v3217
        %v3254 = vadd.f32 %v3068, %v3222
        %v3255 = vadd.f32 %v3069, %v3225
        %v3256 = vadd.f32 %v3070, %v3230
        %v3257 = vadd.f32 %v3071, %v3233
        %v3258 = vadd.f32 %v3072, %v3238
        %v3259 = vadd.f32 %v3073, %v3241
        %v3260 = vadd.f32 %v3074, %v3246
        %v3261 = vadd.f32 %v3075, %v3249
        %v3262 = vld [vmem:[%s334] sm:$0xe]
        %s3263 = scalar_lea.vmem [#allocation8], 40
        %v3264 = vld [vmem:[%s3263] sm:$0x3]
        %v3266 = vunpack.c.l.b16 %v3262
        %v3267 = vpack.c.b16 %v3101, %v3266
        %v3268 = vrot.slane %v3267, 1
        %v3269 = vrot.slane %v3112, 1
        %v3270 = vsel %vm655, %v3268, %v3269
        %v3271 = vrot.slane %v3113, 1
        %v3272 = vsel %vm655, %v3269, %v3271
        %v3273 = vrot.slane %v3114, 1
        %v3274 = vsel %vm655, %v3271, %v3273
        %v3275 = vrot.slane %v3115, 1
        %v3276 = vsel %vm655, %v3273, %v3275
        %v3277 = vrot.slane %v3116, 1
        %v3278 = vsel %vm655, %v3275, %v3277
        %v3280 = vsel %vm470, %v3270, 0
        %v3283 = vsel %vm470, %v3272, 0
        %v3286 = vsel %vm470, %v3274, 0
        %v3289 = vsel %vm470, %v3276, 0
        %v3292 = vsel %vm470, %v3278, 0
        %v3295 = vsel %vm486, %v3264, 0
        %3297 = vmatprep.subr.bf16.mxu0 0
        %3298 = vmatpush1.bf16.msra.mxu0 %v3295
        %3299 = vmatprep.subr.bf16.mxu0 0
        %3300 = vmatpush1.bf16.msra.mxu0 0
        %3301 = vmatprep.subr.bf16.mxu0 0
        %3302 = vmatpush1.bf16.msra.mxu0 0
        %3303 = vmatprep.subr.bf16.mxu0 0
        %3304 = vmatpush1.bf16.msra.mxu0 0
        %3305 = vmatprep.subr.bf16.mxu0 0
        %3306 = vmatpush1.bf16.msra.mxu0 0
        %3307 = vmatprep.subr.bf16.mxu0 0
        %3308 = vmatpush1.bf16.msra.mxu0 0
        %3309 = vmatprep.subr.bf16.mxu0 0
        %3310 = vmatpush1.bf16.msra.mxu0 0
        %3311 = vmatprep.subr.bf16.mxu0 0
        %3312 = vmatpush1.bf16.msra.mxu0 0
        %3313 = vmatprep.subr.bf16.mxu0 0
        %3314 = vmatpush1.bf16.msra.mxu0 0
        %3315 = vmatprep.subr.bf16.mxu0 0
        %3316 = vmatpush1.bf16.msra.mxu0 0
        %3317 = vmatprep.subr.bf16.mxu0 0
        %3318 = vmatpush1.bf16.msra.mxu0 0
        %3319 = vmatprep.subr.bf16.mxu0 0
        %3320 = vmatpush1.bf16.msra.mxu0 0
        %3321 = vmatprep.subr.bf16.mxu0 0
        %3322 = vmatpush1.bf16.msra.mxu0 0
        %3323 = vmatprep.subr.bf16.mxu0 0
        %3324 = vmatpush1.bf16.msra.mxu0 0
        %3325 = vmatprep.subr.bf16.mxu0 0
        %3326 = vmatpush1.bf16.msra.mxu0 0
        %3327 = vmatprep.subr.bf16.mxu0 0
        %3328 = vmatpush1.bf16.msra.mxu0 0
        %3329 = vmatprep.mubr.bf16.mxu0 0
        %3330 = vmatmul.mubr.bf16.gmra.mrb[0].mxu0 %v3280
        %v3331 = vpop.f32.mrb[0].mxu0
        %v3332 = vadd.f32 0.0, %v3331
        %v3333 = vpop.f32.mrb[0].mxu0
        %v3334 = vpop.f32.mrb[0].mxu0
        %v3335 = vadd.f32 0.0, %v3334
        %v3336 = vpop.f32.mrb[0].mxu0
        %3337 = vmatprep.mubr.bf16.mxu0 0
        %3338 = vmatmul.mubr.bf16.gmra.mrb[0].mxu0 %v3283
        %v3339 = vpop.f32.mrb[0].mxu0
        %v3340 = vadd.f32 0.0, %v3339
        %v3341 = vpop.f32.mrb[0].mxu0
        %v3342 = vpop.f32.mrb[0].mxu0
        %v3343 = vadd.f32 0.0, %v3342
        %v3344 = vpop.f32.mrb[0].mxu0
        %3345 = vmatprep.mubr.bf16.mxu0 0
        %3346 = vmatmul.mubr.bf16.gmra.mrb[0].mxu0 %v3286
        %v3347 = vpop.f32.mrb[0].mxu0
        %v3348 = vadd.f32 0.0, %v3347
        %v3349 = vpop.f32.mrb[0].mxu0
        %v3350 = vpop.f32.mrb[0].mxu0
        %v3351 = vadd.f32 0.0, %v3350
        %v3352 = vpop.f32.mrb[0].mxu0
        %3353 = vmatprep.mubr.bf16.mxu0 0
        %3354 = vmatmul.mubr.bf16.gmra.mrb[0].mxu0 %v3289
        %v3355 = vpop.f32.mrb[0].mxu0
        %v3356 = vadd.f32 0.0, %v3355
        %v3357 = vpop.f32.mrb[0].mxu0
        %v3358 = vpop.f32.mrb[0].mxu0
        %v3359 = vadd.f32 0.0, %v3358
        %v3360 = vpop.f32.mrb[0].mxu0
        %3361 = vmatprep.mubr.bf16.mxu0 0
        %3362 = vmatmul.mubr.bf16.gmra.mrb[0].mxu0 %v3292
        %v3363 = vpop.f32.mrb[0].mxu0
        %v3364 = vadd.f32 0.0, %v3363
        %v3365 = vpop.f32.mrb[0].mxu0
        %v3366 = vpop.f32.mrb[0].mxu0
        %v3367 = vadd.f32 0.0, %v3366
        %v3368 = vpop.f32.mrb[0].mxu0
        %3369 = vdwg.mxu0
        %v3370 = vadd.f32 %v3252, %v3332
        %v3371 = vadd.f32 %v3253, %v3335
        %v3372 = vadd.f32 %v3254, %v3340
        %v3373 = vadd.f32 %v3255, %v3343
        %v3374 = vadd.f32 %v3256, %v3348
        %v3375 = vadd.f32 %v3257, %v3351
        %v3376 = vadd.f32 %v3258, %v3356
        %v3377 = vadd.f32 %v3259, %v3359
        %v3378 = vadd.f32 %v3260, %v3364
        %v3379 = vadd.f32 %v3261, %v3367
        %v3380 = vld [vmem:[%s334 + $0x4] sm:$0xe]
        %v3381 = vld [vmem:[%s334 + $0x8] sm:$0xf]
        %v3382 = vld [vmem:[%s334 + $0xc] sm:$0xf]
        %v3383 = vld [vmem:[%s334 + $0x10] sm:$0xf]
        %v3384 = vld [vmem:[%s334 + $0x14] sm:$0xf]
        %v3385 = vld [vmem:[%s334 + $0x18] sm:$0xf]
        %v3386 = vld [vmem:[%s334 + $0x1c] sm:$0xf]
        %v3387 = vld [vmem:[%s334 + $0x20] sm:$0xf]
        %v3388 = vld [vmem:[%s334 + $0x24] sm:$0xf]
        %v3389 = vld [vmem:[%s334 + $0x28] sm:$0xf]
        %v3390 = vld [vmem:[%s334 + $0x2c] sm:$0x1]
        %s3391 = scalar_lea.vmem [#allocation8], 42
        %v3392 = vld [vmem:[%s3391] sm:$0x3]
        %v3404 = vunpack.c.l.b16 %v3380
        %v3405 = vunpack.c.l.b16 %v3381
        %v3406 = vunpack.c.l.b16 %v3382
        %v3407 = vunpack.c.l.b16 %v3383
        %v3408 = vunpack.c.l.b16 %v3384
        %v3409 = vunpack.c.l.b16 %v3385
        %v3410 = vunpack.c.l.b16 %v3386
        %v3411 = vunpack.c.l.b16 %v3387
        %v3412 = vunpack.c.l.b16 %v3388
        %v3413 = vunpack.c.l.b16 %v3389
        %v3414 = vunpack.c.l.b16 %v3390
        %v3415 = vpack.c.b16 %v3405, %v3404
        %v3416 = vpack.c.b16 %v3407, %v3406
        %v3417 = vpack.c.b16 %v3409, %v3408
        %v3418 = vpack.c.b16 %v3411, %v3410
        %v3419 = vpack.c.b16 %v3413, %v3412
        %v3420 = vpack.c.b16 %v3414, %v3414
        %v3421 = vrot.slane %v3415, 1
        %v3422 = vrot.slane %v3416, 1
        %v3423 = vsel %vm655, %v3421, %v3422
        %v3424 = vrot.slane %v3417, 1
        %v3425 = vsel %vm655, %v3422, %v3424
        %v3426 = vrot.slane %v3418, 1
        %v3427 = vsel %vm655, %v3424, %v3426
        %v3428 = vrot.slane %v3419, 1
        %v3429 = vsel %vm655, %v3426, %v3428
        %v3430 = vrot.slane %v3420, 1
        %v3431 = vsel %vm655, %v3428, %v3430
        %v3433 = vsel %vm470, %v3423, 0
        %v3436 = vsel %vm470, %v3425, 0
        %v3439 = vsel %vm470, %v3427, 0
        %v3442 = vsel %vm470, %v3429, 0
        %v3445 = vsel %vm470, %v3431, 0
        %v3448 = vsel %vm486, %v3392, 0
        %3450 = vmatprep.subr.bf16.mxu0 0
        %3451 = vmatpush1.bf16.msra.mxu0 %v3448
        %3452 = vmatprep.subr.bf16.mxu0 0
        %3453 = vmatpush1.bf16.msra.mxu0 0
        %3454 = vmatprep.subr.bf16.mxu0 0
        %3455 = vmatpush1.bf16.msra.mxu0 0
        %3456 = vmatprep.subr.bf16.mxu0 0
        %3457 = vmatpush1.bf16.msra.mxu0 0
        %3458 = vmatprep.subr.bf16.mxu0 0
        %3459 = vmatpush1.bf16.msra.mxu0 0
        %3460 = vmatprep.subr.bf16.mxu0 0
        %3461 = vmatpush1.bf16.msra.mxu0 0
        %3462 = vmatprep.subr.bf16.mxu0 0
        %3463 = vmatpush1.bf16.msra.mxu0 0
        %3464 = vmatprep.subr.bf16.mxu0 0
        %3465 = vmatpush1.bf16.msra.mxu0 0
        %3466 = vmatprep.subr.bf16.mxu0 0
        %3467 = vmatpush1.bf16.msra.mxu0 0
        %3468 = vmatprep.subr.bf16.mxu0 0
        %3469 = vmatpush1.bf16.msra.mxu0 0
        %3470 = vmatprep.subr.bf16.mxu0 0
        %3471 = vmatpush1.bf16.msra.mxu0 0
        %3472 = vmatprep.subr.bf16.mxu0 0
        %3473 = vmatpush1.bf16.msra.mxu0 0
        %3474 = vmatprep.subr.bf16.mxu0 0
        %3475 = vmatpush1.bf16.msra.mxu0 0
        %3476 = vmatprep.subr.bf16.mxu0 0
        %3477 = vmatpush1.bf16.msra.mxu0 0
        %3478 = vmatprep.subr.bf16.mxu0 0
        %3479 = vmatpush1.bf16.msra.mxu0 0
        %3480 = vmatprep.subr.bf16.mxu0 0
        %3481 = vmatpush1.bf16.msra.mxu0 0
        %3482 = vmatprep.mubr.bf16.mxu0 0
        %3483 = vmatmul.mubr.bf16.gmra.mrb[0].mxu0 %v3433
        %v3484 = vpop.f32.mrb[0].mxu0
        %v3485 = vadd.f32 0.0, %v3484
        %v3486 = vpop.f32.mrb[0].mxu0
        %v3487 = vpop.f32.mrb[0].mxu0
        %v3488 = vadd.f32 0.0, %v3487
        %v3489 = vpop.f32.mrb[0].mxu0
        %3490 = vmatprep.mubr.bf16.mxu0 0
        %3491 = vmatmul.mubr.bf16.gmra.mrb[0].mxu0 %v3436
        %v3492 = vpop.f32.mrb[0].mxu0
        %v3493 = vadd.f32 0.0, %v3492
        %v3494 = vpop.f32.mrb[0].mxu0
        %v3495 = vpop.f32.mrb[0].mxu0
        %v3496 = vadd.f32 0.0, %v3495
        %v3497 = vpop.f32.mrb[0].mxu0
        %3498 = vmatprep.mubr.bf16.mxu0 0
        %3499 = vmatmul.mubr.bf16.gmra.mrb[0].mxu0 %v3439
        %v3500 = vpop.f32.mrb[0].mxu0
        %v3501 = vadd.f32 0.0, %v3500
        %v3502 = vpop.f32.mrb[0].mxu0
        %v3503 = vpop.f32.mrb[0].mxu0
        %v3504 = vadd.f32 0.0, %v3503
        %v3505 = vpop.f32.mrb[0].mxu0
        %3506 = vmatprep.mubr.bf16.mxu0 0
        %3507 = vmatmul.mubr.bf16.gmra.mrb[0].mxu0 %v3442
        %v3508 = vpop.f32.mrb[0].mxu0
        %v3509 = vadd.f32 0.0, %v3508
        %v3510 = vpop.f32.mrb[0].mxu0
        %v3511 = vpop.f32.mrb[0].mxu0
        %v3512 = vadd.f32 0.0, %v3511
        %v3513 = vpop.f32.mrb[0].mxu0
        %3514 = vmatprep.mubr.bf16.mxu0 0
        %3515 = vmatmul.mubr.bf16.gmra.mrb[0].mxu0 %v3445
        %v3516 = vpop.f32.mrb[0].mxu0
        %v3517 = vadd.f32 0.0, %v3516
        %v3518 = vpop.f32.mrb[0].mxu0
        %v3519 = vpop.f32.mrb[0].mxu0
        %v3520 = vadd.f32 0.0, %v3519
        %v3521 = vpop.f32.mrb[0].mxu0
        %3522 = vdwg.mxu0
        %v3523 = vadd.f32 %v3370, %v3485
        %v3524 = vadd.f32 %v3371, %v3488
        %v3525 = vadd.f32 %v3372, %v3493
        %v3526 = vadd.f32 %v3373, %v3496
        %v3527 = vadd.f32 %v3374, %v3501
        %v3528 = vadd.f32 %v3375, %v3504
        %v3529 = vadd.f32 %v3376, %v3509
        %v3530 = vadd.f32 %v3377, %v3512
        %v3531 = vadd.f32 %v3378, %v3517
        %v3532 = vadd.f32 %v3379, %v3520
        %v3533 = vld [vmem:[%s334 + $0x2c] sm:$0x3]
        %s3534 = scalar_lea.vmem [#allocation8], 44
        %v3535 = vld [vmem:[%s3534] sm:$0x3]
        %v3537 = vunpack.c.l.b16 %v3533
        %v3538 = vpack.c.b16 %v3537, %v3537
        %v3540 = vshrl.u32 %v3415, 16
        %v3542 = vrot.slane %v3540, 1
        %v3543 = vshll.u32 %v3415, 16
        %v3545 = vrot.slane %v3543, 2
        %v3546 = vor.u32 %v3542, %v3545
        %v3548 = vshrl.u32 %v3416, 16
        %v3550 = vrot.slane %v3548, 1
        %v3551 = vshll.u32 %v3416, 16
        %v3553 = vrot.slane %v3551, 2
        %v3554 = vor.u32 %v3550, %v3553
        %v3555 = vsel %vm927, %v3546, %v3554
        %v3557 = vshrl.u32 %v3417, 16
        %v3559 = vrot.slane %v3557, 1
        %v3560 = vshll.u32 %v3417, 16
        %v3562 = vrot.slane %v3560, 2
        %v3563 = vor.u32 %v3559, %v3562
        %v3564 = vsel %vm927, %v3554, %v3563
        %v3566 = vshrl.u32 %v3418, 16
        %v3568 = vrot.slane %v3566, 1
        %v3569 = vshll.u32 %v3418, 16
        %v3571 = vrot.slane %v3569, 2
        %v3572 = vor.u32 %v3568, %v3571
        %v3573 = vsel %vm927, %v3563, %v3572
        %v3575 = vshrl.u32 %v3419, 16
        %v3577 = vrot.slane %v3575, 1
        %v3578 = vshll.u32 %v3419, 16
        %v3580 = vrot.slane %v3578, 2
        %v3581 = vor.u32 %v3577, %v3580
        %v3582 = vsel %vm927, %v3572, %v3581
        %v3584 = vshrl.u32 %v3538, 16
        %v3586 = vrot.slane %v3584, 1
        %v3587 = vshll.u32 %v3538, 16
        %v3589 = vrot.slane %v3587, 2
        %v3590 = vor.u32 %v3586, %v3589
        %v3591 = vsel %vm927, %v3581, %v3590
        %v3593 = vsel %vm470, %v3555, 0
        %v3596 = vsel %vm470, %v3564, 0
        %v3599 = vsel %vm470, %v3573, 0
        %v3602 = vsel %vm470, %v3582, 0
        %v3605 = vsel %vm470, %v3591, 0
        %v3608 = vsel %vm486, %v3535, 0
        %3610 = vmatprep.subr.bf16.mxu0 0
        %3611 = vmatpush1.bf16.msra.mxu0 %v3608
        %3612 = vmatprep.subr.bf16.mxu0 0
        %3613 = vmatpush1.bf16.msra.mxu0 0
        %3614 = vmatprep.subr.bf16.mxu0 0
        %3615 = vmatpush1.bf16.msra.mxu0 0
        %3616 = vmatprep.subr.bf16.mxu0 0
        %3617 = vmatpush1.bf16.msra.mxu0 0
        %3618 = vmatprep.subr.bf16.mxu0 0
        %3619 = vmatpush1.bf16.msra.mxu0 0
        %3620 = vmatprep.subr.bf16.mxu0 0
        %3621 = vmatpush1.bf16.msra.mxu0 0
        %3622 = vmatprep.subr.bf16.mxu0 0
        %3623 = vmatpush1.bf16.msra.mxu0 0
        %3624 = vmatprep.subr.bf16.mxu0 0
        %3625 = vmatpush1.bf16.msra.mxu0 0
        %3626 = vmatprep.subr.bf16.mxu0 0
        %3627 = vmatpush1.bf16.msra.mxu0 0
        %3628 = vmatprep.subr.bf16.mxu0 0
        %3629 = vmatpush1.bf16.msra.mxu0 0
        %3630 = vmatprep.subr.bf16.mxu0 0
        %3631 = vmatpush1.bf16.msra.mxu0 0
        %3632 = vmatprep.subr.bf16.mxu0 0
        %3633 = vmatpush1.bf16.msra.mxu0 0
        %3634 = vmatprep.subr.bf16.mxu0 0
        %3635 = vmatpush1.bf16.msra.mxu0 0
        %3636 = vmatprep.subr.bf16.mxu0 0
        %3637 = vmatpush1.bf16.msra.mxu0 0
        %3638 = vmatprep.subr.bf16.mxu0 0
        %3639 = vmatpush1.bf16.msra.mxu0 0
        %3640 = vmatprep.subr.bf16.mxu0 0
        %3641 = vmatpush1.bf16.msra.mxu0 0
        %3642 = vmatprep.mubr.bf16.mxu0 0
        %3643 = vmatmul.mubr.bf16.gmra.mrb[0].mxu0 %v3593
        %v3644 = vpop.f32.mrb[0].mxu0
        %v3645 = vadd.f32 0.0, %v3644
        %v3646 = vpop.f32.mrb[0].mxu0
        %v3647 = vpop.f32.mrb[0].mxu0
        %v3648 = vadd.f32 0.0, %v3647
        %v3649 = vpop.f32.mrb[0].mxu0
        %3650 = vmatprep.mubr.bf16.mxu0 0
        %3651 = vmatmul.mubr.bf16.gmra.mrb[0].mxu0 %v3596
        %v3652 = vpop.f32.mrb[0].mxu0
        %v3653 = vadd.f32 0.0, %v3652
        %v3654 = vpop.f32.mrb[0].mxu0
        %v3655 = vpop.f32.mrb[0].mxu0
        %v3656 = vadd.f32 0.0, %v3655
        %v3657 = vpop.f32.mrb[0].mxu0
        %3658 = vmatprep.mubr.bf16.mxu0 0
        %3659 = vmatmul.mubr.bf16.gmra.mrb[0].mxu0 %v3599
        %v3660 = vpop.f32.mrb[0].mxu0
        %v3661 = vadd.f32 0.0, %v3660
        %v3662 = vpop.f32.mrb[0].mxu0
        %v3663 = vpop.f32.mrb[0].mxu0
        %v3664 = vadd.f32 0.0, %v3663
        %v3665 = vpop.f32.mrb[0].mxu0
        %3666 = vmatprep.mubr.bf16.mxu0 0
        %3667 = vmatmul.mubr.bf16.gmra.mrb[0].mxu0 %v3602
        %v3668 = vpop.f32.mrb[0].mxu0
        %v3669 = vadd.f32 0.0, %v3668
        %v3670 = vpop.f32.mrb[0].mxu0
        %v3671 = vpop.f32.mrb[0].mxu0
        %v3672 = vadd.f32 0.0, %v3671
        %v3673 = vpop.f32.mrb[0].mxu0
        %3674 = vmatprep.mubr.bf16.mxu0 0
        %3675 = vmatmul.mubr.bf16.gmra.mrb[0].mxu0 %v3605
        %v3676 = vpop.f32.mrb[0].mxu0
        %v3677 = vadd.f32 0.0, %v3676
        %v3678 = vpop.f32.mrb[0].mxu0
        %v3679 = vpop.f32.mrb[0].mxu0
        %v3680 = vadd.f32 0.0, %v3679
        %v3681 = vpop.f32.mrb[0].mxu0
        %3682 = vdwg.mxu0
        %v3683 = vadd.f32 %v3523, %v3645
        %v3684 = vadd.f32 %v3524, %v3648
        %v3685 = vadd.f32 %v3525, %v3653
        %v3686 = vadd.f32 %v3526, %v3656
        %v3687 = vadd.f32 %v3527, %v3661
        %v3688 = vadd.f32 %v3528, %v3664
        %v3689 = vadd.f32 %v3529, %v3669
        %v3690 = vadd.f32 %v3530, %v3672
        %v3691 = vadd.f32 %v3531, %v3677
        %v3692 = vadd.f32 %v3532, %v3680
        %v3693 = vld [vmem:[%s334 + $0x4] sm:$0xc]
        %s3694 = scalar_lea.vmem [#allocation8], 46
        %v3695 = vld [vmem:[%s3694] sm:$0x3]
        %v3697 = vunpack.c.l.b16 %v3693
        %v3698 = vpack.c.b16 %v3405, %v3697
        %v3699 = vrot.slane %v3698, 2
        %v3700 = vrot.slane %v3416, 2
        %v3701 = vsel %vm1088, %v3699, %v3700
        %v3702 = vrot.slane %v3417, 2
        %v3703 = vsel %vm1088, %v3700, %v3702
        %v3704 = vrot.slane %v3418, 2
        %v3705 = vsel %vm1088, %v3702, %v3704
        %v3706 = vrot.slane %v3419, 2
        %v3707 = vsel %vm1088, %v3704, %v3706
        %v3708 = vrot.slane %v3538, 2
        %v3709 = vsel %vm1088, %v3706, %v3708
        %v3711 = vsel %vm470, %v3701, 0
        %v3714 = vsel %vm470, %v3703, 0
        %v3717 = vsel %vm470, %v3705, 0
        %v3720 = vsel %vm470, %v3707, 0
        %v3723 = vsel %vm470, %v3709, 0
        %v3726 = vsel %vm486, %v3695, 0
        %3728 = vmatprep.subr.bf16.mxu0 0
        %3729 = vmatpush1.bf16.msra.mxu0 %v3726
        %3730 = vmatprep.subr.bf16.mxu0 0
        %3731 = vmatpush1.bf16.msra.mxu0 0
        %3732 = vmatprep.subr.bf16.mxu0 0
        %3733 = vmatpush1.bf16.msra.mxu0 0
        %3734 = vmatprep.subr.bf16.mxu0 0
        %3735 = vmatpush1.bf16.msra.mxu0 0
        %3736 = vmatprep.subr.bf16.mxu0 0
        %3737 = vmatpush1.bf16.msra.mxu0 0
        %3738 = vmatprep.subr.bf16.mxu0 0
        %3739 = vmatpush1.bf16.msra.mxu0 0
        %3740 = vmatprep.subr.bf16.mxu0 0
        %3741 = vmatpush1.bf16.msra.mxu0 0
        %3742 = vmatprep.subr.bf16.mxu0 0
        %3743 = vmatpush1.bf16.msra.mxu0 0
        %3744 = vmatprep.subr.bf16.mxu0 0
        %3745 = vmatpush1.bf16.msra.mxu0 0
        %3746 = vmatprep.subr.bf16.mxu0 0
        %3747 = vmatpush1.bf16.msra.mxu0 0
        %3748 = vmatprep.subr.bf16.mxu0 0
        %3749 = vmatpush1.bf16.msra.mxu0 0
        %3750 = vmatprep.subr.bf16.mxu0 0
        %3751 = vmatpush1.bf16.msra.mxu0 0
        %3752 = vmatprep.subr.bf16.mxu0 0
        %3753 = vmatpush1.bf16.msra.mxu0 0
        %3754 = vmatprep.subr.bf16.mxu0 0
        %3755 = vmatpush1.bf16.msra.mxu0 0
        %3756 = vmatprep.subr.bf16.mxu0 0
        %3757 = vmatpush1.bf16.msra.mxu0 0
        %3758 = vmatprep.subr.bf16.mxu0 0
        %3759 = vmatpush1.bf16.msra.mxu0 0
        %3760 = vmatprep.mubr.bf16.mxu0 0
        %3761 = vmatmul.mubr.bf16.gmra.mrb[0].mxu0 %v3711
        %v3762 = vpop.f32.mrb[0].mxu0
        %v3763 = vadd.f32 0.0, %v3762
        %v3764 = vpop.f32.mrb[0].mxu0
        %v3765 = vpop.f32.mrb[0].mxu0
        %v3766 = vadd.f32 0.0, %v3765
        %v3767 = vpop.f32.mrb[0].mxu0
        %3768 = vmatprep.mubr.bf16.mxu0 0
        %3769 = vmatmul.mubr.bf16.gmra.mrb[0].mxu0 %v3714
        %v3770 = vpop.f32.mrb[0].mxu0
        %v3771 = vadd.f32 0.0, %v3770
        %v3772 = vpop.f32.mrb[0].mxu0
        %v3773 = vpop.f32.mrb[0].mxu0
        %v3774 = vadd.f32 0.0, %v3773
        %v3775 = vpop.f32.mrb[0].mxu0
        %3776 = vmatprep.mubr.bf16.mxu0 0
        %3777 = vmatmul.mubr.bf16.gmra.mrb[0].mxu0 %v3717
        %v3778 = vpop.f32.mrb[0].mxu0
        %v3779 = vadd.f32 0.0, %v3778
        %v3780 = vpop.f32.mrb[0].mxu0
        %v3781 = vpop.f32.mrb[0].mxu0
        %v3782 = vadd.f32 0.0, %v3781
        %v3783 = vpop.f32.mrb[0].mxu0
        %3784 = vmatprep.mubr.bf16.mxu0 0
        %3785 = vmatmul.mubr.bf16.gmra.mrb[0].mxu0 %v3720
        %v3786 = vpop.f32.mrb[0].mxu0
        %v3787 = vadd.f32 0.0, %v3786
        %v3788 = vpop.f32.mrb[0].mxu0
        %v3789 = vpop.f32.mrb[0].mxu0
        %v3790 = vadd.f32 0.0, %v3789
        %v3791 = vpop.f32.mrb[0].mxu0
        %3792 = vmatprep.mubr.bf16.mxu0 0
        %3793 = vmatmul.mubr.bf16.gmra.mrb[0].mxu0 %v3723
        %v3794 = vpop.f32.mrb[0].mxu0
        %v3795 = vadd.f32 0.0, %v3794
        %v3796 = vpop.f32.mrb[0].mxu0
        %v3797 = vpop.f32.mrb[0].mxu0
        %v3798 = vadd.f32 0.0, %v3797
        %v3799 = vpop.f32.mrb[0].mxu0
        %3800 = vdwg.mxu0
        %v3801 = vadd.f32 %v3683, %v3763
        %v3802 = vadd.f32 %v3684, %v3766
        %v3803 = vadd.f32 %v3685, %v3771
        %v3804 = vadd.f32 %v3686, %v3774
        %v3805 = vadd.f32 %v3687, %v3779
        %v3806 = vadd.f32 %v3688, %v3782
        %v3807 = vadd.f32 %v3689, %v3787
        %v3808 = vadd.f32 %v3690, %v3790
        %v3809 = vadd.f32 %v3691, %v3795
        %v3810 = vadd.f32 %v3692, %v3798
        %v3811 = vld [vmem:[%s334 + $0x8] sm:$0xc]
        %v3812 = vld [vmem:[%s334 + $0xc] sm:$0xf]
        %v3813 = vld [vmem:[%s334 + $0x10] sm:$0xf]
        %v3814 = vld [vmem:[%s334 + $0x14] sm:$0xf]
        %v3815 = vld [vmem:[%s334 + $0x18] sm:$0xf]
        %v3816 = vld [vmem:[%s334 + $0x1c] sm:$0xf]
        %v3817 = vld [vmem:[%s334 + $0x20] sm:$0xf]
        %v3818 = vld [vmem:[%s334 + $0x24] sm:$0xf]
        %v3819 = vld [vmem:[%s334 + $0x28] sm:$0xf]
        %v3820 = vld [vmem:[%s334 + $0x2c] sm:$0xf]
        %v3821 = vld [vmem:[%s334 + $0x30] sm:$0x3]
        %s3822 = scalar_lea.vmem [#allocation8], 48
        %v3823 = vld [vmem:[%s3822] sm:$0x3]
        %v3835 = vunpack.c.l.b16 %v3811
        %v3836 = vunpack.c.l.b16 %v3812
        %v3837 = vunpack.c.l.b16 %v3813
        %v3838 = vunpack.c.l.b16 %v3814
        %v3839 = vunpack.c.l.b16 %v3815
        %v3840 = vunpack.c.l.b16 %v3816
        %v3841 = vunpack.c.l.b16 %v3817
        %v3842 = vunpack.c.l.b16 %v3818
        %v3843 = vunpack.c.l.b16 %v3819
        %v3844 = vunpack.c.l.b16 %v3820
        %v3845 = vunpack.c.l.b16 %v3821
        %v3846 = vpack.c.b16 %v3836, %v3835
        %v3847 = vpack.c.b16 %v3838, %v3837
        %v3848 = vpack.c.b16 %v3840, %v3839
        %v3849 = vpack.c.b16 %v3842, %v3841
        %v3850 = vpack.c.b16 %v3844, %v3843
        %v3851 = vpack.c.b16 %v3845, %v3845
        %v3852 = vrot.slane %v3846, 2
        %v3853 = vrot.slane %v3847, 2
        %v3854 = vsel %vm1088, %v3852, %v3853
        %v3855 = vrot.slane %v3848, 2
        %v3856 = vsel %vm1088, %v3853, %v3855
        %v3857 = vrot.slane %v3849, 2
        %v3858 = vsel %vm1088, %v3855, %v3857
        %v3859 = vrot.slane %v3850, 2
        %v3860 = vsel %vm1088, %v3857, %v3859
        %v3861 = vrot.slane %v3851, 2
        %v3862 = vsel %vm1088, %v3859, %v3861
        %v3864 = vsel %vm470, %v3854, 0
        %v3867 = vsel %vm470, %v3856, 0
        %v3870 = vsel %vm470, %v3858, 0
        %v3873 = vsel %vm470, %v3860, 0
        %v3876 = vsel %vm470, %v3862, 0
        %v3879 = vsel %vm486, %v3823, 0
        %3881 = vmatprep.subr.bf16.mxu0 0
        %3882 = vmatpush1.bf16.msra.mxu0 %v3879
        %3883 = vmatprep.subr.bf16.mxu0 0
        %3884 = vmatpush1.bf16.msra.mxu0 0
        %3885 = vmatprep.subr.bf16.mxu0 0
        %3886 = vmatpush1.bf16.msra.mxu0 0
        %3887 = vmatprep.subr.bf16.mxu0 0
        %3888 = vmatpush1.bf16.msra.mxu0 0
        %3889 = vmatprep.subr.bf16.mxu0 0
        %3890 = vmatpush1.bf16.msra.mxu0 0
        %3891 = vmatprep.subr.bf16.mxu0 0
        %3892 = vmatpush1.bf16.msra.mxu0 0
        %3893 = vmatprep.subr.bf16.mxu0 0
        %3894 = vmatpush1.bf16.msra.mxu0 0
        %3895 = vmatprep.subr.bf16.mxu0 0
        %3896 = vmatpush1.bf16.msra.mxu0 0
        %3897 = vmatprep.subr.bf16.mxu0 0
        %3898 = vmatpush1.bf16.msra.mxu0 0
        %3899 = vmatprep.subr.bf16.mxu0 0
        %3900 = vmatpush1.bf16.msra.mxu0 0
        %3901 = vmatprep.subr.bf16.mxu0 0
        %3902 = vmatpush1.bf16.msra.mxu0 0
        %3903 = vmatprep.subr.bf16.mxu0 0
        %3904 = vmatpush1.bf16.msra.mxu0 0
        %3905 = vmatprep.subr.bf16.mxu0 0
        %3906 = vmatpush1.bf16.msra.mxu0 0
        %3907 = vmatprep.subr.bf16.mxu0 0
        %3908 = vmatpush1.bf16.msra.mxu0 0
        %3909 = vmatprep.subr.bf16.mxu0 0
        %3910 = vmatpush1.bf16.msra.mxu0 0
        %3911 = vmatprep.subr.bf16.mxu0 0
        %3912 = vmatpush1.bf16.msra.mxu0 0
        %3913 = vmatprep.mubr.bf16.mxu0 0
        %3914 = vmatmul.mubr.bf16.gmra.mrb[0].mxu0 %v3864
        %v3915 = vpop.f32.mrb[0].mxu0
        %v3916 = vadd.f32 0.0, %v3915
        %v3917 = vpop.f32.mrb[0].mxu0
        %v3918 = vpop.f32.mrb[0].mxu0
        %v3919 = vadd.f32 0.0, %v3918
        %v3920 = vpop.f32.mrb[0].mxu0
        %3921 = vmatprep.mubr.bf16.mxu0 0
        %3922 = vmatmul.mubr.bf16.gmra.mrb[0].mxu0 %v3867
        %v3923 = vpop.f32.mrb[0].mxu0
        %v3924 = vadd.f32 0.0, %v3923
        %v3925 = vpop.f32.mrb[0].mxu0
        %v3926 = vpop.f32.mrb[0].mxu0
        %v3927 = vadd.f32 0.0, %v3926
        %v3928 = vpop.f32.mrb[0].mxu0
        %3929 = vmatprep.mubr.bf16.mxu0 0
        %3930 = vmatmul.mubr.bf16.gmra.mrb[0].mxu0 %v3870
        %v3931 = vpop.f32.mrb[0].mxu0
        %v3932 = vadd.f32 0.0, %v3931
        %v3933 = vpop.f32.mrb[0].mxu0
        %v3934 = vpop.f32.mrb[0].mxu0
        %v3935 = vadd.f32 0.0, %v3934
        %v3936 = vpop.f32.mrb[0].mxu0
        %3937 = vmatprep.mubr.bf16.mxu0 0
        %3938 = vmatmul.mubr.bf16.gmra.mrb[0].mxu0 %v3873
        %v3939 = vpop.f32.mrb[0].mxu0
        %v3940 = vadd.f32 0.0, %v3939
        %v3941 = vpop.f32.mrb[0].mxu0
        %v3942 = vpop.f32.mrb[0].mxu0
        %v3943 = vadd.f32 0.0, %v3942
        %v3944 = vpop.f32.mrb[0].mxu0
        %3945 = vmatprep.mubr.bf16.mxu0 0
        %3946 = vmatmul.mubr.bf16.gmra.mrb[0].mxu0 %v3876
        %v3947 = vpop.f32.mrb[0].mxu0
        %v3948 = vadd.f32 0.0, %v3947
        %v3949 = vpop.f32.mrb[0].mxu0
        %v3950 = vpop.f32.mrb[0].mxu0
        %v3951 = vadd.f32 0.0, %v3950
        %v3952 = vpop.f32.mrb[0].mxu0
        %3953 = vdwg.mxu0
        %v3954 = vadd.f32 %v3801, %v3916
        %v3955 = vadd.f32 %v3802, %v3919
        %v3956 = vadd.f32 %v3803, %v3924
        %v3957 = vadd.f32 %v3804, %v3927
        %v3958 = vadd.f32 %v3805, %v3932
        %v3959 = vadd.f32 %v3806, %v3935
        %v3960 = vadd.f32 %v3807, %v3940
        %v3961 = vadd.f32 %v3808, %v3943
        %v3962 = vadd.f32 %v3809, %v3948
        %v3963 = vadd.f32 %v3810, %v3951
        %v3964 = vld [vmem:[%s334 + $0x30] sm:$0x7]
        %s3965 = scalar_lea.vmem [#allocation8], 50
        %v3966 = vld [vmem:[%s3965] sm:$0x3]
        %v3968 = vunpack.c.l.b16 %v3964
        %v3969 = vpack.c.b16 %v3968, %v3968
        %v3971 = vshrl.u32 %v3846, 16
        %v3973 = vrot.slane %v3971, 2
        %v3974 = vshll.u32 %v3846, 16
        %v3976 = vrot.slane %v3974, 3
        %v3977 = vor.u32 %v3973, %v3976
        %v3979 = vshrl.u32 %v3847, 16
        %v3981 = vrot.slane %v3979, 2
        %v3982 = vshll.u32 %v3847, 16
        %v3984 = vrot.slane %v3982, 3
        %v3985 = vor.u32 %v3981, %v3984
        %v3986 = vsel %vm1360, %v3977, %v3985
        %v3988 = vshrl.u32 %v3848, 16
        %v3990 = vrot.slane %v3988, 2
        %v3991 = vshll.u32 %v3848, 16
        %v3993 = vrot.slane %v3991, 3
        %v3994 = vor.u32 %v3990, %v3993
        %v3995 = vsel %vm1360, %v3985, %v3994
        %v3997 = vshrl.u32 %v3849, 16
        %v3999 = vrot.slane %v3997, 2
        %v4000 = vshll.u32 %v3849, 16
        %v4002 = vrot.slane %v4000, 3
        %v4003 = vor.u32 %v3999, %v4002
        %v4004 = vsel %vm1360, %v3994, %v4003
        %v4006 = vshrl.u32 %v3850, 16
        %v4008 = vrot.slane %v4006, 2
        %v4009 = vshll.u32 %v3850, 16
        %v4011 = vrot.slane %v4009, 3
        %v4012 = vor.u32 %v4008, %v4011
        %v4013 = vsel %vm1360, %v4003, %v4012
        %v4015 = vshrl.u32 %v3969, 16
        %v4017 = vrot.slane %v4015, 2
        %v4018 = vshll.u32 %v3969, 16
        %v4020 = vrot.slane %v4018, 3
        %v4021 = vor.u32 %v4017, %v4020
        %v4022 = vsel %vm1360, %v4012, %v4021
        %v4024 = vsel %vm470, %v3986, 0
        %v4027 = vsel %vm470, %v3995, 0
        %v4030 = vsel %vm470, %v4004, 0
        %v4033 = vsel %vm470, %v4013, 0
        %v4036 = vsel %vm470, %v4022, 0
        %v4039 = vsel %vm486, %v3966, 0
        %4041 = vmatprep.subr.bf16.mxu0 0
        %4042 = vmatpush1.bf16.msra.mxu0 %v4039
        %4043 = vmatprep.subr.bf16.mxu0 0
        %4044 = vmatpush1.bf16.msra.mxu0 0
        %4045 = vmatprep.subr.bf16.mxu0 0
        %4046 = vmatpush1.bf16.msra.mxu0 0
        %4047 = vmatprep.subr.bf16.mxu0 0
        %4048 = vmatpush1.bf16.msra.mxu0 0
        %4049 = vmatprep.subr.bf16.mxu0 0
        %4050 = vmatpush1.bf16.msra.mxu0 0
        %4051 = vmatprep.subr.bf16.mxu0 0
        %4052 = vmatpush1.bf16.msra.mxu0 0
        %4053 = vmatprep.subr.bf16.mxu0 0
        %4054 = vmatpush1.bf16.msra.mxu0 0
        %4055 = vmatprep.subr.bf16.mxu0 0
        %4056 = vmatpush1.bf16.msra.mxu0 0
        %4057 = vmatprep.subr.bf16.mxu0 0
        %4058 = vmatpush1.bf16.msra.mxu0 0
        %4059 = vmatprep.subr.bf16.mxu0 0
        %4060 = vmatpush1.bf16.msra.mxu0 0
        %4061 = vmatprep.subr.bf16.mxu0 0
        %4062 = vmatpush1.bf16.msra.mxu0 0
        %4063 = vmatprep.subr.bf16.mxu0 0
        %4064 = vmatpush1.bf16.msra.mxu0 0
        %4065 = vmatprep.subr.bf16.mxu0 0
        %4066 = vmatpush1.bf16.msra.mxu0 0
        %4067 = vmatprep.subr.bf16.mxu0 0
        %4068 = vmatpush1.bf16.msra.mxu0 0
        %4069 = vmatprep.subr.bf16.mxu0 0
        %4070 = vmatpush1.bf16.msra.mxu0 0
        %4071 = vmatprep.subr.bf16.mxu0 0
        %4072 = vmatpush1.bf16.msra.mxu0 0
        %4073 = vmatprep.mubr.bf16.mxu0 0
        %4074 = vmatmul.mubr.bf16.gmra.mrb[0].mxu0 %v4024
        %v4075 = vpop.f32.mrb[0].mxu0
        %v4076 = vadd.f32 0.0, %v4075
        %v4077 = vpop.f32.mrb[0].mxu0
        %v4078 = vpop.f32.mrb[0].mxu0
        %v4079 = vadd.f32 0.0, %v4078
        %v4080 = vpop.f32.mrb[0].mxu0
        %4081 = vmatprep.mubr.bf16.mxu0 0
        %4082 = vmatmul.mubr.bf16.gmra.mrb[0].mxu0 %v4027
        %v4083 = vpop.f32.mrb[0].mxu0
        %v4084 = vadd.f32 0.0, %v4083
        %v4085 = vpop.f32.mrb[0].mxu0
        %v4086 = vpop.f32.mrb[0].mxu0
        %v4087 = vadd.f32 0.0, %v4086
        %v4088 = vpop.f32.mrb[0].mxu0
        %4089 = vmatprep.mubr.bf16.mxu0 0
        %4090 = vmatmul.mubr.bf16.gmra.mrb[0].mxu0 %v4030
        %v4091 = vpop.f32.mrb[0].mxu0
        %v4092 = vadd.f32 0.0, %v4091
        %v4093 = vpop.f32.mrb[0].mxu0
        %v4094 = vpop.f32.mrb[0].mxu0
        %v4095 = vadd.f32 0.0, %v4094
        %v4096 = vpop.f32.mrb[0].mxu0
        %4097 = vmatprep.mubr.bf16.mxu0 0
        %4098 = vmatmul.mubr.bf16.gmra.mrb[0].mxu0 %v4033
        %v4099 = vpop.f32.mrb[0].mxu0
        %v4100 = vadd.f32 0.0, %v4099
        %v4101 = vpop.f32.mrb[0].mxu0
        %v4102 = vpop.f32.mrb[0].mxu0
        %v4103 = vadd.f32 0.0, %v4102
        %v4104 = vpop.f32.mrb[0].mxu0
        %4105 = vmatprep.mubr.bf16.mxu0 0
        %4106 = vmatmul.mubr.bf16.gmra.mrb[0].mxu0 %v4036
        %v4107 = vpop.f32.mrb[0].mxu0
        %v4108 = vadd.f32 0.0, %v4107
        %v4109 = vpop.f32.mrb[0].mxu0
        %v4110 = vpop.f32.mrb[0].mxu0
        %v4111 = vadd.f32 0.0, %v4110
        %v4112 = vpop.f32.mrb[0].mxu0
        %4113 = vdwg.mxu0
        %v4114 = vadd.f32 %v3954, %v4076
        %v4115 = vadd.f32 %v3955, %v4079
        %v4116 = vadd.f32 %v3956, %v4084
        %v4117 = vadd.f32 %v3957, %v4087
        %v4118 = vadd.f32 %v3958, %v4092
        %v4119 = vadd.f32 %v3959, %v4095
        %v4120 = vadd.f32 %v3960, %v4100
        %v4121 = vadd.f32 %v3961, %v4103
        %v4122 = vadd.f32 %v3962, %v4108
        %v4123 = vadd.f32 %v3963, %v4111
        %v4124 = vld [vmem:[%s334 + $0x8] sm:$0x8]
        %s4125 = scalar_lea.vmem [#allocation8], 52
        %v4126 = vld [vmem:[%s4125] sm:$0x3]
        %v4128 = vunpack.c.l.b16 %v4124
        %v4129 = vpack.c.b16 %v3836, %v4128
        %v4130 = vrot.slane %v4129, 3
        %v4131 = vrot.slane %v3847, 3
        %v4132 = vsel %vm1521, %v4130, %v4131
        %v4133 = vrot.slane %v3848, 3
        %v4134 = vsel %vm1521, %v4131, %v4133
        %v4135 = vrot.slane %v3849, 3
        %v4136 = vsel %vm1521, %v4133, %v4135
        %v4137 = vrot.slane %v3850, 3
        %v4138 = vsel %vm1521, %v4135, %v4137
        %v4139 = vrot.slane %v3969, 3
        %v4140 = vsel %vm1521, %v4137, %v4139
        %v4142 = vsel %vm470, %v4132, 0
        %v4145 = vsel %vm470, %v4134, 0
        %v4148 = vsel %vm470, %v4136, 0
        %v4151 = vsel %vm470, %v4138, 0
        %v4154 = vsel %vm470, %v4140, 0
        %v4157 = vsel %vm486, %v4126, 0
        %4159 = vmatprep.subr.bf16.mxu0 0
        %4160 = vmatpush1.bf16.msra.mxu0 %v4157
        %4161 = vmatprep.subr.bf16.mxu0 0
        %4162 = vmatpush1.bf16.msra.mxu0 0
        %4163 = vmatprep.subr.bf16.mxu0 0
        %4164 = vmatpush1.bf16.msra.mxu0 0
        %4165 = vmatprep.subr.bf16.mxu0 0
        %4166 = vmatpush1.bf16.msra.mxu0 0
        %4167 = vmatprep.subr.bf16.mxu0 0
        %4168 = vmatpush1.bf16.msra.mxu0 0
        %4169 = vmatprep.subr.bf16.mxu0 0
        %4170 = vmatpush1.bf16.msra.mxu0 0
        %4171 = vmatprep.subr.bf16.mxu0 0
        %4172 = vmatpush1.bf16.msra.mxu0 0
        %4173 = vmatprep.subr.bf16.mxu0 0
        %4174 = vmatpush1.bf16.msra.mxu0 0
        %4175 = vmatprep.subr.bf16.mxu0 0
        %4176 = vmatpush1.bf16.msra.mxu0 0
        %4177 = vmatprep.subr.bf16.mxu0 0
        %4178 = vmatpush1.bf16.msra.mxu0 0
        %4179 = vmatprep.subr.bf16.mxu0 0
        %4180 = vmatpush1.bf16.msra.mxu0 0
        %4181 = vmatprep.subr.bf16.mxu0 0
        %4182 = vmatpush1.bf16.msra.mxu0 0
        %4183 = vmatprep.subr.bf16.mxu0 0
        %4184 = vmatpush1.bf16.msra.mxu0 0
        %4185 = vmatprep.subr.bf16.mxu0 0
        %4186 = vmatpush1.bf16.msra.mxu0 0
        %4187 = vmatprep.subr.bf16.mxu0 0
        %4188 = vmatpush1.bf16.msra.mxu0 0
        %4189 = vmatprep.subr.bf16.mxu0 0
        %4190 = vmatpush1.bf16.msra.mxu0 0
        %4191 = vmatprep.mubr.bf16.mxu0 0
        %4192 = vmatmul.mubr.bf16.gmra.mrb[0].mxu0 %v4142
        %v4193 = vpop.f32.mrb[0].mxu0
        %v4194 = vadd.f32 0.0, %v4193
        %v4195 = vpop.f32.mrb[0].mxu0
        %v4196 = vpop.f32.mrb[0].mxu0
        %v4197 = vadd.f32 0.0, %v4196
        %v4198 = vpop.f32.mrb[0].mxu0
        %4199 = vmatprep.mubr.bf16.mxu0 0
        %4200 = vmatmul.mubr.bf16.gmra.mrb[0].mxu0 %v4145
        %v4201 = vpop.f32.mrb[0].mxu0
        %v4202 = vadd.f32 0.0, %v4201
        %v4203 = vpop.f32.mrb[0].mxu0
        %v4204 = vpop.f32.mrb[0].mxu0
        %v4205 = vadd.f32 0.0, %v4204
        %v4206 = vpop.f32.mrb[0].mxu0
        %4207 = vmatprep.mubr.bf16.mxu0 0
        %4208 = vmatmul.mubr.bf16.gmra.mrb[0].mxu0 %v4148
        %v4209 = vpop.f32.mrb[0].mxu0
        %v4210 = vadd.f32 0.0, %v4209
        %v4211 = vpop.f32.mrb[0].mxu0
        %v4212 = vpop.f32.mrb[0].mxu0
        %v4213 = vadd.f32 0.0, %v4212
        %v4214 = vpop.f32.mrb[0].mxu0
        %4215 = vmatprep.mubr.bf16.mxu0 0
        %4216 = vmatmul.mubr.bf16.gmra.mrb[0].mxu0 %v4151
        %v4217 = vpop.f32.mrb[0].mxu0
        %v4218 = vadd.f32 0.0, %v4217
        %v4219 = vpop.f32.mrb[0].mxu0
        %v4220 = vpop.f32.mrb[0].mxu0
        %v4221 = vadd.f32 0.0, %v4220
        %v4222 = vpop.f32.mrb[0].mxu0
        %4223 = vmatprep.mubr.bf16.mxu0 0
        %4224 = vmatmul.mubr.bf16.gmra.mrb[0].mxu0 %v4154
        %v4225 = vpop.f32.mrb[0].mxu0
        %v4226 = vadd.f32 0.0, %v4225
        %v4227 = vpop.f32.mrb[0].mxu0
        %v4228 = vpop.f32.mrb[0].mxu0
        %v4229 = vadd.f32 0.0, %v4228
        %v4230 = vpop.f32.mrb[0].mxu0
        %4231 = vdwg.mxu0
        %v4232 = vadd.f32 %v4114, %v4194
        %v4233 = vadd.f32 %v4115, %v4197
        %v4234 = vadd.f32 %v4116, %v4202
        %v4235 = vadd.f32 %v4117, %v4205
        %v4236 = vadd.f32 %v4118, %v4210
        %v4237 = vadd.f32 %v4119, %v4213
        %v4238 = vadd.f32 %v4120, %v4218
        %v4239 = vadd.f32 %v4121, %v4221
        %v4240 = vadd.f32 %v4122, %v4226
        %v4241 = vadd.f32 %v4123, %v4229
        %v4242 = vpack.c.bf16 %v4233, %v4232
        %v4243 = vpack.c.bf16 %v4235, %v4234
        %v4244 = vpack.c.bf16 %v4237, %v4236
        %v4245 = vpack.c.bf16 %v4239, %v4238
        %v4246 = vpack.c.bf16 %v4241, %v4240
        %v4252 = vunpack.c.l.b16 %v4242
        %v4253 = vunpack.c.h.b16 %v4242
        %v4254 = vunpack.c.l.b16 %v4243
        %v4255 = vunpack.c.h.b16 %v4243
        %v4256 = vunpack.c.l.b16 %v4244
        %v4257 = vunpack.c.h.b16 %v4244
        %v4258 = vunpack.c.l.b16 %v4245
        %v4259 = vunpack.c.h.b16 %v4245
        %v4260 = vunpack.c.l.b16 %v4246
        %v4261 = vunpack.c.h.b16 %v4246
        %v4262 = vpack.c.b16 %v4252, %v4252
        %v4263 = vpack.c.b16 %v4253, %v4253
        %v4264 = vpack.c.b16 %v4254, %v4254
        %v4265 = vpack.c.b16 %v4255, %v4255
        %v4266 = vpack.c.b16 %v4256, %v4256
        %v4267 = vpack.c.b16 %v4257, %v4257
        %v4268 = vpack.c.b16 %v4258, %v4258
        %v4269 = vpack.c.b16 %v4259, %v4259
        %v4270 = vpack.c.b16 %v4260, %v4260
        %v4271 = vpack.c.b16 %v4261, %v4261
        %vm4282 = vcmask 60416
        %4283 = vst.msk [vmem:[%s372] sm:$0xf] %vm4282, %v4262
        %4284 = vst.msk [vmem:[%s372 + $0x4] sm:$0xf] %vm4282, %v4263
        %4285 = vst.msk [vmem:[%s372 + $0x8] sm:$0xf] %vm4282, %v4264
        %4286 = vst.msk [vmem:[%s372 + $0xc] sm:$0xf] %vm4282, %v4265
        %4287 = vst.msk [vmem:[%s372 + $0x10] sm:$0xf] %vm4282, %v4266
        %4288 = vst.msk [vmem:[%s372 + $0x14] sm:$0xf] %vm4282, %v4267
        %4289 = vst.msk [vmem:[%s372 + $0x18] sm:$0xf] %vm4282, %v4268
        %4290 = vst.msk [vmem:[%s372 + $0x1c] sm:$0xf] %vm4282, %v4269
        %4291 = vst.msk [vmem:[%s372 + $0x20] sm:$0xf] %vm4282, %v4270
        %4292 = vst.msk [vmem:[%s372 + $0x24] sm:$0xf] %vm4282, %v4271
        %v4293 = vlaneseq
        %v4294 = vshrl.u32 %v4293, 7
        %v4295 = vadd.s32 %v4294, 8
        %v4296 = vadd.s32 %v4294, 16
        %v4297 = vadd.s32 %v4294, 24
        %v4298 = vadd.s32 %v4294, 32
        %v4299 = vadd.s32 %v4294, 40
        %v4300 = vadd.s32 %v4294, 48
        %v4301 = vadd.s32 %v4294, 56
        %v4302 = vadd.s32 %v4294, 64
        %v4303 = vadd.s32 %v4294, 72
        %vm4304 = vcmp.lt.s32.totalorder %v4294, 0
        %v4305 = vsub.s32 0, %v4294
        %v4306 = vsel %vm4304, %v4305, %v4294
        %v4307 = vmul.u32.u64.compose %v4306, 3435973837
        %v4308 = vextract.low.u32 %v4307
        %v4309 = vextract.high.u32 %v4307
        %v4310 = vshrl.u32 %v4309, 3
        %v4311 = vmul.u32 %v4310, 10
        %v4312 = vsub.s32 %v4306, %v4311
        %v4313 = vsub.s32 0, %v4312
        %v4314 = vsel %vm4304, %v4313, %v4312
        %vm4315 = vcmp.lt.s32.totalorder %v4295, 0
        %v4316 = vsub.s32 0, %v4295
        %v4317 = vsel %vm4315, %v4316, %v4295
        %v4318 = vmul.u32.u64.compose %v4317, 3435973837
        %v4319 = vextract.low.u32 %v4318
        %v4320 = vextract.high.u32 %v4318
        %v4321 = vshrl.u32 %v4320, 3
        %v4322 = vmul.u32 %v4321, 10
        %v4323 = vsub.s32 %v4317, %v4322
        %v4324 = vsub.s32 0, %v4323
        %v4325 = vsel %vm4315, %v4324, %v4323
        %vm4326 = vcmp.lt.s32.totalorder %v4296, 0
        %v4327 = vsub.s32 0, %v4296
        %v4328 = vsel %vm4326, %v4327, %v4296
        %v4329 = vmul.u32.u64.compose %v4328, 3435973837
        %v4330 = vextract.low.u32 %v4329
        %v4331 = vextract.high.u32 %v4329
        %v4332 = vshrl.u32 %v4331, 3
        %v4333 = vmul.u32 %v4332, 10
        %v4334 = vsub.s32 %v4328, %v4333
        %v4335 = vsub.s32 0, %v4334
        %v4336 = vsel %vm4326, %v4335, %v4334
        %vm4337 = vcmp.lt.s32.totalorder %v4297, 0
        %v4338 = vsub.s32 0, %v4297
        %v4339 = vsel %vm4337, %v4338, %v4297
        %v4340 = vmul.u32.u64.compose %v4339, 3435973837
        %v4341 = vextract.low.u32 %v4340
        %v4342 = vextract.high.u32 %v4340
        %v4343 = vshrl.u32 %v4342, 3
        %v4344 = vmul.u32 %v4343, 10
        %v4345 = vsub.s32 %v4339, %v4344
        %v4346 = vsub.s32 0, %v4345
        %v4347 = vsel %vm4337, %v4346, %v4345
        %vm4348 = vcmp.lt.s32.totalorder %v4298, 0
        %v4349 = vsub.s32 0, %v4298
        %v4350 = vsel %vm4348, %v4349, %v4298
        %v4351 = vmul.u32.u64.compose %v4350, 3435973837
        %v4352 = vextract.low.u32 %v4351
        %v4353 = vextract.high.u32 %v4351
        %v4354 = vshrl.u32 %v4353, 3
        %v4355 = vmul.u32 %v4354, 10
        %v4356 = vsub.s32 %v4350, %v4355
        %v4357 = vsub.s32 0, %v4356
        %v4358 = vsel %vm4348, %v4357, %v4356
        %vm4359 = vcmp.lt.s32.totalorder %v4299, 0
        %v4360 = vsub.s32 0, %v4299
        %v4361 = vsel %vm4359, %v4360, %v4299
        %v4362 = vmul.u32.u64.compose %v4361, 3435973837
        %v4363 = vextract.low.u32 %v4362
        %v4364 = vextract.high.u32 %v4362
        %v4365 = vshrl.u32 %v4364, 3
        %v4366 = vmul.u32 %v4365, 10
        %v4367 = vsub.s32 %v4361, %v4366
        %v4368 = vsub.s32 0, %v4367
        %v4369 = vsel %vm4359, %v4368, %v4367
        %vm4370 = vcmp.lt.s32.totalorder %v4300, 0
        %v4371 = vsub.s32 0, %v4300
        %v4372 = vsel %vm4370, %v4371, %v4300
        %v4373 = vmul.u32.u64.compose %v4372, 3435973837
        %v4374 = vextract.low.u32 %v4373
        %v4375 = vextract.high.u32 %v4373
        %v4376 = vshrl.u32 %v4375, 3
        %v4377 = vmul.u32 %v4376, 10
        %v4378 = vsub.s32 %v4372, %v4377
        %v4379 = vsub.s32 0, %v4378
        %v4380 = vsel %vm4370, %v4379, %v4378
        %vm4381 = vcmp.lt.s32.totalorder %v4301, 0
        %v4382 = vsub.s32 0, %v4301
        %v4383 = vsel %vm4381, %v4382, %v4301
        %v4384 = vmul.u32.u64.compose %v4383, 3435973837
        %v4385 = vextract.low.u32 %v4384
        %v4386 = vextract.high.u32 %v4384
        %v4387 = vshrl.u32 %v4386, 3
        %v4388 = vmul.u32 %v4387, 10
        %v4389 = vsub.s32 %v4383, %v4388
        %v4390 = vsub.s32 0, %v4389
        %v4391 = vsel %vm4381, %v4390, %v4389
        %vm4392 = vcmp.lt.s32.totalorder %v4302, 0
        %v4393 = vsub.s32 0, %v4302
        %v4394 = vsel %vm4392, %v4393, %v4302
        %v4395 = vmul.u32.u64.compose %v4394, 3435973837
        %v4396 = vextract.low.u32 %v4395
        %v4397 = vextract.high.u32 %v4395
        %v4398 = vshrl.u32 %v4397, 3
        %v4399 = vmul.u32 %v4398, 10
        %v4400 = vsub.s32 %v4394, %v4399
        %v4401 = vsub.s32 0, %v4400
        %v4402 = vsel %vm4392, %v4401, %v4400
        %vm4403 = vcmp.lt.s32.totalorder %v4303, 0
        %v4404 = vsub.s32 0, %v4303
        %v4405 = vsel %vm4403, %v4404, %v4303
        %v4406 = vmul.u32.u64.compose %v4405, 3435973837
        %v4407 = vextract.low.u32 %v4406
        %v4408 = vextract.high.u32 %v4406
        %v4409 = vshrl.u32 %v4408, 3
        %v4410 = vmul.u32 %v4409, 10
        %v4411 = vsub.s32 %v4405, %v4410
        %v4412 = vsub.s32 0, %v4411
        %v4413 = vsel %vm4403, %v4412, %v4411
        %vm4414 = vcmp.ne.s32.totalorder %v4314, 0
        %vm4415 = vcmp.ne.s32.totalorder %v4325, 0
        %vm4416 = vcmp.ne.s32.totalorder %v4336, 0
        %vm4417 = vcmp.ne.s32.totalorder %v4347, 0
        %vm4418 = vcmp.ne.s32.totalorder %v4358, 0
        %vm4419 = vcmp.ne.s32.totalorder %v4369, 0
        %vm4420 = vcmp.ne.s32.totalorder %v4380, 0
        %vm4421 = vcmp.ne.s32.totalorder %v4391, 0
        %vm4422 = vcmp.ne.s32.totalorder %v4402, 0
        %vm4423 = vcmp.ne.s32.totalorder %v4413, 0
        %vm4424 = vcmp.lt.s32.totalorder %v4314, 0
        %vm4425 = vcmp.lt.s32.totalorder %v4325, 0
        %vm4426 = vcmp.lt.s32.totalorder %v4336, 0
        %vm4427 = vcmp.lt.s32.totalorder %v4347, 0
        %vm4428 = vcmp.lt.s32.totalorder %v4358, 0
        %vm4429 = vcmp.lt.s32.totalorder %v4369, 0
        %vm4430 = vcmp.lt.s32.totalorder %v4380, 0
        %vm4431 = vcmp.lt.s32.totalorder %v4391, 0
        %vm4432 = vcmp.lt.s32.totalorder %v4402, 0
        %vm4433 = vcmp.lt.s32.totalorder %v4413, 0
        %vm4434 = vmand %vm4424, %vm4414
        %vm4435 = vmand %vm4425, %vm4415
        %vm4436 = vmand %vm4426, %vm4416
        %vm4437 = vmand %vm4427, %vm4417
        %vm4438 = vmand %vm4428, %vm4418
        %vm4439 = vmand %vm4429, %vm4419
        %vm4440 = vmand %vm4430, %vm4420
        %vm4441 = vmand %vm4431, %vm4421
        %vm4442 = vmand %vm4432, %vm4422
        %vm4443 = vmand %vm4433, %vm4423
        %v4444 = vadd.s32 %v4314, 10
        %v4445 = vadd.s32 %v4325, 10
        %v4446 = vadd.s32 %v4336, 10
        %v4447 = vadd.s32 %v4347, 10
        %v4448 = vadd.s32 %v4358, 10
        %v4449 = vadd.s32 %v4369, 10
        %v4450 = vadd.s32 %v4380, 10
        %v4451 = vadd.s32 %v4391, 10
        %v4452 = vadd.s32 %v4402, 10
        %v4453 = vadd.s32 %v4413, 10
        %v4454 = vsel %vm4434, %v4444, %v4314
        %v4455 = vsel %vm4435, %v4445, %v4325
        %v4456 = vsel %vm4436, %v4446, %v4336
        %v4457 = vsel %vm4437, %v4447, %v4347
        %v4458 = vsel %vm4438, %v4448, %v4358
        %v4459 = vsel %vm4439, %v4449, %v4369
        %v4460 = vsel %vm4440, %v4450, %v4380
        %v4461 = vsel %vm4441, %v4451, %v4391
        %v4462 = vsel %vm4442, %v4452, %v4402
        %v4463 = vsel %vm4443, %v4453, %v4413
        %vm4464 = vcmp.lt.s32.totalorder %v4454, 8
        %vm4465 = vcmp.lt.s32.totalorder %v4455, 8
        %vm4466 = vcmp.lt.s32.totalorder %v4456, 8
        %vm4467 = vcmp.lt.s32.totalorder %v4457, 8
        %vm4468 = vcmp.lt.s32.totalorder %v4458, 8
        %vm4469 = vcmp.lt.s32.totalorder %v4459, 8
        %vm4470 = vcmp.lt.s32.totalorder %v4460, 8
        %vm4471 = vcmp.lt.s32.totalorder %v4461, 8
        %vm4472 = vcmp.lt.s32.totalorder %v4462, 8
        %vm4473 = vcmp.lt.s32.totalorder %v4463, 8
        %v4474 = vsel %vm4464, 1, 0
        %v4475 = vsel %vm4465, 1, 0
        %v4476 = vsel %vm4466, 1, 0
        %v4477 = vsel %vm4467, 1, 0
        %v4478 = vsel %vm4468, 1, 0
        %v4479 = vsel %vm4469, 1, 0
        %v4480 = vsel %vm4470, 1, 0
        %v4481 = vsel %vm4471, 1, 0
        %v4482 = vsel %vm4472, 1, 0
        %v4483 = vsel %vm4473, 1, 0
        %vm4484 = vcmp.eq.s32.totalorder %v4474, 1
        %vm4485 = vcmp.eq.s32.totalorder %v4475, 1
        %vm4486 = vcmp.eq.s32.totalorder %v4476, 1
        %vm4487 = vcmp.eq.s32.totalorder %v4477, 1
        %vm4488 = vcmp.eq.s32.totalorder %v4478, 1
        %vm4489 = vcmp.eq.s32.totalorder %v4479, 1
        %vm4490 = vcmp.eq.s32.totalorder %v4480, 1
        %vm4491 = vcmp.eq.s32.totalorder %v4481, 1
        %vm4492 = vcmp.eq.s32.totalorder %v4482, 1
        %vm4493 = vcmp.eq.s32.totalorder %v4483, 1
        %v4494 = vsel %vm4484, %v4232, 0.0
        %v4495 = vsel %vm4485, %v4233, 0.0
        %v4496 = vsel %vm4486, %v4234, 0.0
        %v4497 = vsel %vm4487, %v4235, 0.0
        %v4498 = vsel %vm4488, %v4236, 0.0
        %v4499 = vsel %vm4489, %v4237, 0.0
        %v4500 = vsel %vm4490, %v4238, 0.0
        %v4501 = vsel %vm4491, %v4239, 0.0
        %v4502 = vsel %vm4492, %v4240, 0.0
        %v4503 = vsel %vm4493, %v4241, 0.0
        %vm4504 = vcmask 64512
        %v4505 = vsel %vm4504, %v4494, 0.0
        %v4506 = vsel %vm4504, %v4495, 0.0
        %v4507 = vadd.f32 %v4505, %v4506
        %v4508 = vsel %vm4504, %v4496, 0.0
        %v4509 = vadd.f32 %v4507, %v4508
        %v4510 = vsel %vm4504, %v4497, 0.0
        %v4511 = vadd.f32 %v4509, %v4510
        %v4512 = vsel %vm4504, %v4498, 0.0
        %v4513 = vadd.f32 %v4511, %v4512
        %v4514 = vsel %vm4504, %v4499, 0.0
        %v4515 = vadd.f32 %v4513, %v4514
        %v4516 = vsel %vm4504, %v4500, 0.0
        %v4517 = vadd.f32 %v4515, %v4516
        %v4518 = vsel %vm4504, %v4501, 0.0
        %v4519 = vadd.f32 %v4517, %v4518
        %v4520 = vsel %vm4504, %v4502, 0.0
        %v4521 = vadd.f32 %v4519, %v4520
        %v4522 = vsel %vm4504, %v4503, 0.0
        %v4523 = vadd.f32 %v4521, %v4522
        %v4524 = vrot.slane %v4523, 4
        %v4525 = vadd.f32 %v4523, %v4524
        %v4526 = vrot.slane %v4525, 2
        %v4527 = vadd.f32 %v4525, %v4526
        %v4528 = vrot.slane %v4527, 1
        %v4529 = vadd.f32 %v4527, %v4528
        %vm4530 = vcmask 57344
        %4531 = vst.msk [vmem:[%s379] sm:$0x1] %vm4530, %v4529
        %v4532 = vmul.f32 %v4494, %v4232
        %v4533 = vmul.f32 %v4495, %v4233
        %v4534 = vmul.f32 %v4496, %v4234
        %v4535 = vmul.f32 %v4497, %v4235
        %v4536 = vmul.f32 %v4498, %v4236
        %v4537 = vmul.f32 %v4499, %v4237
        %v4538 = vmul.f32 %v4500, %v4238
        %v4539 = vmul.f32 %v4501, %v4239
        %v4540 = vmul.f32 %v4502, %v4240
        %v4541 = vmul.f32 %v4503, %v4241
        %v4542 = vsel %vm4504, %v4532, 0.0
        %v4543 = vsel %vm4504, %v4533, 0.0
        %v4544 = vadd.f32 %v4542, %v4543
        %v4545 = vsel %vm4504, %v4534, 0.0
        %v4546 = vadd.f32 %v4544, %v4545
        %v4547 = vsel %vm4504, %v4535, 0.0
        %v4548 = vadd.f32 %v4546, %v4547
        %v4549 = vsel %vm4504, %v4536, 0.0
        %v4550 = vadd.f32 %v4548, %v4549
        %v4551 = vsel %vm4504, %v4537, 0.0
        %v4552 = vadd.f32 %v4550, %v4551
        %v4553 = vsel %vm4504, %v4538, 0.0
        %v4554 = vadd.f32 %v4552, %v4553
        %v4555 = vsel %vm4504, %v4539, 0.0
        %v4556 = vadd.f32 %v4554, %v4555
        %v4557 = vsel %vm4504, %v4540, 0.0
        %v4558 = vadd.f32 %v4556, %v4557
        %v4559 = vsel %vm4504, %v4541, 0.0
        %v4560 = vadd.f32 %v4558, %v4559
        %v4561 = vrot.slane %v4560, 4
        %v4562 = vadd.f32 %v4560, %v4561
        %v4563 = vrot.slane %v4562, 2
        %v4564 = vadd.f32 %v4562, %v4563
        %v4565 = vrot.slane %v4564, 1
        %v4566 = vadd.f32 %v4564, %v4565
        %4567 = vst.msk [vmem:[%s379 + $0x1] sm:$0x1] %vm4530, %v4566
        %s4568 = sand.u32 %s161, 1
        %s4569 = scalar_lea.sflag [#allocation4], %s4568
        %s4570 = sand.u32 %s161, 1
        %s4571 = smul.addr %s4570, 40
        %s4572 = scalar_lea.vmem [#allocation10], %s4571
        %s4573 = sand.u32 %s189, 1
        %s4574 = scalar_lea.sflag [#allocation12], %s4573
        %s4575 = sand.u32 %s189, 1
        %s4576 = smul.addr %s4575, 2
        %s4577 = scalar_lea.vmem [#allocation11], %s4576
        // Predicated region
        $region53: #{down_forward.8} parent=35 // pred_check
          %p4578 = pneg %p171
        $region54: #{down_forward.8} parent=35 // pred_check_branch
          %4580 = sbr.rel (%p4578) target = $region56
        $region55: #{down_forward.8} parent=35 // pred_region
          %s4582 = ssub.s32 640, 640
          %4583 = vsyncadd %s4569, %s4582
          %s4584 = smul.addr %s35, 10
          %s4585 = smul.addr %s34, 80
          %s4586 = sadd.s32 %s4584, %s4585
          %s4587 = smul.addr %s4586, 64
          %s4588 = scalar_lea.hbm %s4, %s4587
          %s4589 = sshll.u32 %s4572, 4
          %s4590 = int_to_ptr.vmem [resolvable:$true] %s4589
          %4595 = dma.vmem_to_hbm [thread:$0]  %s4590, 640, %s4588, %s4569, 64, 64, 4
        $region56: #{down_forward.8} parent=35 // pred_fallthru
          _
        // Predicated region
        $region57: #{down_forward.8} parent=35 // pred_check
          %p4596 = pneg %p199
        $region58: #{down_forward.8} parent=35 // pred_check_branch
          %4598 = sbr.rel (%p4596) target = $region60
        $region59: #{down_forward.8} parent=35 // pred_region
          %s4600 = ssub.s32 32, 32
          %4601 = vsyncadd %s4574, %s4600
          %s4602 = smul.addr %s34, 8
          %s4603 = sadd.s32 %s35, %s4602
          %s4604 = smul.addr %s4603, 32
          %s4605 = scalar_lea.hbm %s5, %s4604
          %s4607 = sshll.u32 %s4577, 4
          %s4608 = int_to_ptr.vmem [resolvable:$true] %s4607
          %4610 = dma.vmem_to_hbm [thread:$0]  %s4608, 32, %s4605, %s4574
        $region60: #{down_forward.8} parent=35 // pred_fallthru
          _
      $region36: #{down_forward.8} parent=5 // pred_fallthru
        _
      %p4611 = scmp.le.s32.totalorder 2, %s25
      // Predicated region
      $region61: #{down_forward.8} parent=5 // pred_check
        %p4612 = pneg %p4611
      $region62: #{down_forward.8} parent=5 // pred_check_branch
        %4614 = sbr.rel (%p4612) target = $region64
      $region63: #{down_forward.8} parent=5 // pred_region
        %s4615 = ssub.s32 %s25, 2
        // Predicated region
        $region65: #{down_forward.8} parent=63 // pred_check
          %p4616 = pneg %p177
        $region66: #{down_forward.8} parent=63 // pred_check_branch
          %4618 = sbr.rel (%p4616) target = $region68
        $region67: #{down_forward.8} parent=63 // pred_region
          %s4619 = sand.u32 %s162, 1
          %s4620 = scalar_lea.sflag [#allocation4], %s4619
          %s4621 = sand.u32 %s162, 1
          %s4622 = smul.addr %s4621, 40
          %s4623 = scalar_lea.vmem [#allocation10], %s4622
          %4624 = dma.done %s4620, 640
        $region68: #{down_forward.8} parent=63 // pred_fallthru
          _
        // Predicated region
        $region69: #{down_forward.8} parent=63 // pred_check
          %p4625 = pneg %p205
        $region70: #{down_forward.8} parent=63 // pred_check_branch
          %4627 = sbr.rel (%p4625) target = $region72
        $region71: #{down_forward.8} parent=63 // pred_region
          %s4628 = sand.u32 %s190, 1
          %s4629 = scalar_lea.sflag [#allocation12], %s4628
          %s4630 = sand.u32 %s190, 1
          %s4631 = smul.addr %s4630, 2
          %s4632 = scalar_lea.vmem [#allocation11], %s4631
          %4633 = dma.done %s4629, 32
        $region72: #{down_forward.8} parent=63 // pred_fallthru
          _
      $region64: #{down_forward.8} parent=5 // pred_fallthru
        _
    $region6: #{down_forward.8} parent=1 // loop_footer
      %s29 = sadd.s32 1, %s25
    $region7: #{down_forward.8} parent=1 // loop_footer_branch
      %24 = sbr.rel target = $region3
    $region8: #{down_forward.8} parent=1 // loop_exit
      _
    %4634 = vsyncpa [#allocation3], 1
    %s4635 = scalar_lea.sflag [#allocation3], 1
    %4636 = vsyncpa %s4635, 1
    %4637 = vsyncpa [#allocation6], 1
    %s4638 = scalar_lea.sflag [#allocation6], 1
    %4639 = vsyncpa %s4638, 1
    %4640 = vsyncpa [#allocation9], 1
    %4641 = vsyncpa [#allocation4], 1
    %s4642 = scalar_lea.sflag [#allocation4], 1
    %4643 = vsyncpa %s4642, 1
    %4644 = vsyncpa [#allocation12], 1
    %s4645 = scalar_lea.sflag [#allocation12], 1
    %4646 = vsyncpa %s4645, 1

</llo_original>
